<compile_context>
chip_gen: v6e
topology: v6e:2x2x1
jax: 0.10.0
libtpu: 0.0.40
codegen_flags: <defaults>
</compile_context>

<pallas_src>
import functools

import jax
import jax.numpy as jnp
from jax.experimental import pallas as pl
from jax.experimental.pallas import tpu as pltpu


def _encoder_kernel(x_ref, w1_ref, b1_ref, w2_ref, b2_ref, w3_ref, b3_ref,
                    o_ref, a1_ref, a2_ref, p1_ref, p2_ref, p3_ref,
                    *, C0, C1, C2, H1, W1, H2, W2):
    """One grid step == one batch image; all three convs fused in VMEM.

    x_ref : (H1+2, 2, W1+2, 2*C0)  input, 2-px zero padded + space-to-depth (f32)
    w*_ref: (kh*kw*Cin, Cout)      im2col weight matrices (bf16)
    b*_ref: (1, Cout)              biases (f32)
    o_ref : (H2*W2, C3)            conv3 output for this image (f32)
    a1_ref: (H2+2, 2, W2+2, 2, C1) conv1 output, 2-px padded, space-to-depth (bf16)
    a2_ref: (H2+2, W2+2, C2)       conv2 output, 1-px padded (bf16)
    p*_ref: (M, K)                 im2col staging buffers for the 3 matmuls (bf16)
    """
    # Zero the padded activation buffers (only the borders need zeros, the
    # interiors are fully overwritten below).  Re-done every step because the
    # batch grid axis may be split across TensorCores (megacore).
    a1_ref[...] = jnp.zeros(a1_ref.shape, a1_ref.dtype)
    a2_ref[...] = jnp.zeros(a2_ref.shape, a2_ref.dtype)

    def stride2_im2col(read_tap, p_ref, ho, wo, cin):
        # k=4, s=2, p=1 window on a 2-px-padded space-to-depth image: tap
        # (di, dj) lives at row-group gi=(di+1)//2, sub-row si=(di+1)%2 (same
        # for columns).  Each tap is one contiguous static slice, laid
        # side-by-side along K, so the whole layer becomes a single
        # (ho*wo, 16*cin) x (16*cin, cout) MXU matmul.
        for di in range(4):
            gi, si = (di + 1) // 2, (di + 1) % 2
            for dj in range(4):
                gj, sj = (dj + 1) // 2, (dj + 1) % 2
                slab = read_tap(gi, si, gj, sj)                    # (ho, wo, cin)
                p_ref[:, pl.ds((di * 4 + dj) * cin, cin)] = (
                    slab.reshape(ho * wo, cin).astype(jnp.bfloat16))

    # ---- conv1: C0 -> C1, k=4, s=2, p=1, ReLU --------------------------------
    stride2_im2col(
        lambda gi, si, gj, sj: x_ref[pl.ds(gi, H1), si, pl.ds(gj, W1),
                                     pl.ds(sj * C0, C0)],
        p1_ref, H1, W1, C0)
    h1 = jnp.dot(p1_ref[...], w1_ref[...],
                 preferred_element_type=jnp.float32) + b1_ref[...]
    h1 = jnp.maximum(h1, 0.0).astype(jnp.bfloat16)
    # Single store into the (2-px padded, space-to-depth) conv2 input buffer:
    # a pure leading-dim reshape (minor dim untouched), no transpose.
    a1_ref[pl.ds(1, H2), :, pl.ds(1, W2), :, :] = h1.reshape(H2, 2, W2, 2, C1)

    # ---- conv2: C1 -> C2, k=4, s=2, p=1, ReLU --------------------------------
    stride2_im2col(
        lambda gi, si, gj, sj: a1_ref[pl.ds(gi, H2), si, pl.ds(gj, W2), sj, :],
        p2_ref, H2, W2, C1)
    h2 = jnp.dot(p2_ref[...], w2_ref[...],
                 preferred_element_type=jnp.float32) + b2_ref[...]
    h2 = jnp.maximum(h2, 0.0).astype(jnp.bfloat16)
    a2_ref[pl.ds(1, H2), pl.ds(1, W2), :] = h2.reshape(H2, W2, C2)

    # ---- conv3: C2 -> C3, k=3, s=1, p=1 (no ReLU) ----------------------------
    for di in range(3):
        for dj in range(3):
            slab = a2_ref[pl.ds(di, H2), pl.ds(dj, W2), :]         # (H2, W2, C2)
            p3_ref[:, pl.ds((di * 3 + dj) * C2, C2)] = slab.reshape(H2 * W2, C2)
    h3 = jnp.dot(p3_ref[...], w3_ref[...],
                 preferred_element_type=jnp.float32) + b3_ref[...]
    o_ref[...] = h3.astype(o_ref.dtype)          # Cout=4 kept unpadded (tiny layer)


def _prep_conv_weight(w):
    """(Cout, Cin, kh, kw) -> (kh*kw*Cin, Cout) im2col weight matrix (bf16)."""
    cout, cin, kh, kw = w.shape
    return (jnp.transpose(w, (2, 3, 1, 0))
            .reshape(kh * kw * cin, cout).astype(jnp.bfloat16))


def encoder_forward(params, x_nchw):
    """Encoder forward pass; NCHW float32 in, NCHW float32 out."""
    N, C0, H, W = x_nchw.shape
    assert H % 4 == 0 and W % 4 == 0, "spatial dims must be divisible by 4"
    C1 = params["w1"].shape[0]
    C2 = params["w2"].shape[0]
    C3 = params["w3"].shape[0]
    H1, W1 = H // 2, W // 2          # conv1 output / conv2 input spatial size
    H2, W2 = H1 // 2, W1 // 2        # conv2/conv3 output spatial size

    # NCHW -> NHWC, pad 2 px per side (conv pad 1 + 1 so each stride-2 window
    # starts on a row/col-pair boundary), fold the stride into channels
    # (space-to-depth).  Pure layout ops fused by XLA; the f32->bf16 cast
    # happens inside the kernel.
    x = jnp.transpose(x_nchw, (0, 2, 3, 1)).astype(jnp.float32)
    x = jnp.pad(x, ((0, 0), (2, 2), (2, 2), (0, 0)))
    x = x.reshape(N, H1 + 2, 2, W1 + 2, 2 * C0)

    w1s = _prep_conv_weight(params["w1"])            # (16*C0, C1)
    w2s = _prep_conv_weight(params["w2"])            # (16*C1, C2)
    w3s = _prep_conv_weight(params["w3"])            # ( 9*C2, C3)
    b1r = params["b1"].reshape(1, C1).astype(jnp.float32)
    b2r = params["b2"].reshape(1, C2).astype(jnp.float32)
    b3r = params["b3"].reshape(1, C3).astype(jnp.float32)

    kernel = functools.partial(_encoder_kernel, C0=C0, C1=C1, C2=C2,
                               H1=H1, W1=W1, H2=H2, W2=W2)

    out = pl.pallas_call(
        kernel,
        out_shape=jax.ShapeDtypeStruct((N, H2 * W2, C3), jnp.float32),
        grid=(N,),
        in_specs=[
            # Whole (padded, space-to-depth) image per grid step; weights and
            # biases stay resident (constant block index).
            pl.BlockSpec((None, H1 + 2, 2, W1 + 2, 2 * C0),
                         lambda b: (b, 0, 0, 0, 0)),
            pl.BlockSpec((16 * C0, C1), lambda b: (0, 0)),
            pl.BlockSpec((1, C1), lambda b: (0, 0)),
            pl.BlockSpec((16 * C1, C2), lambda b: (0, 0)),
            pl.BlockSpec((1, C2), lambda b: (0, 0)),
            pl.BlockSpec((9 * C2, C3), lambda b: (0, 0)),
            pl.BlockSpec((1, C3), lambda b: (0, 0)),
        ],
        out_specs=pl.BlockSpec((None, H2 * W2, C3), lambda b: (b, 0, 0)),
        scratch_shapes=[
            pltpu.VMEM((H2 + 2, 2, W2 + 2, 2, C1), jnp.bfloat16),  # conv1 act (padded, s2d)
            pltpu.VMEM((H2 + 2, W2 + 2, C2), jnp.bfloat16),        # conv2 act (padded)
            pltpu.VMEM((H1 * W1, 16 * C0), jnp.bfloat16),          # conv1 im2col
            pltpu.VMEM((H2 * W2, 16 * C1), jnp.bfloat16),          # conv2 im2col
            pltpu.VMEM((H2 * W2, 9 * C2), jnp.bfloat16),           # conv3 im2col
        ],
        compiler_params=pltpu.CompilerParams(
            dimension_semantics=("parallel",),     # batch images across TCs
            vmem_limit_bytes=32 * 1024 * 1024,     # total footprint here ~1.3 MB
        ),
    )(x, w1s, b1r, w2s, b2r, w3s, b3r)

    out = out.reshape(N, H2, W2, C3)
    return jnp.transpose(out, (0, 3, 1, 2))        # NHWC -> NCHW


def init_encoder_params(key, in_channels, latent_channels=4):
    """Deterministic synthetic init (shapes match the PyTorch module)."""
    shapes = [
        (32, in_channels, 4, 4),
        (64, 32, 4, 4),
        (latent_channels, 64, 3, 3),
    ]
    params = {}
    for idx, shp in enumerate(shapes, start=1):
        key, kw_, kb_ = jax.random.split(key, 3)
        fan_in = shp[1] * shp[2] * shp[3]
        scale = fan_in ** -0.5
        params[f"w{idx}"] = jax.random.uniform(
            kw_, shp, jnp.float32, minval=-scale, maxval=scale)
        params[f"b{idx}"] = jax.random.uniform(
            kb_, (shp[0],), jnp.float32, minval=-scale, maxval=scale)
    return params


def encoder_reference(params, x_nchw):
    """Pure-JAX (XLA conv) reference for correctness checking."""
    def conv(x, w, b, stride, pad):
        y = jax.lax.conv_general_dilated(
            x, w, window_strides=(stride, stride),
            padding=((pad, pad), (pad, pad)),
            dimension_numbers=("NCHW", "OIHW", "NCHW"))
        return y + b[None, :, None, None]
    h = jax.nn.relu(conv(x_nchw, params["w1"], params["b1"], 2, 1))
    h = jax.nn.relu(conv(h, params["w2"], params["b2"], 2, 1))
    return conv(h, params["w3"], params["b3"], 1, 1)


if __name__ == "__main__":
    key = jax.random.PRNGKey(0)
    k_params, k_x = jax.random.split(key)

    in_channels, latent_channels = 4, 4
    params = init_encoder_params(k_params, in_channels, latent_channels)

    # Input: batch=2, channels=4, spatial=16x16 (NCHW, PyTorch convention)
    x = jax.random.normal(k_x, (2, in_channels, 16, 16), dtype=jnp.float32)

    y = jax.block_until_ready(jax.jit(encoder_forward)(params, x))
    assert y.shape == (2, latent_channels, 4, 4), y.shape
    assert y.dtype == jnp.float32, y.dtype

    # Numerical check vs. the f32 XLA reference (kernel uses bf16 operands
    # with f32 accumulation -> generous but tight-enough tolerance).
    y_ref = jax.block_until_ready(jax.jit(encoder_reference)(params, x))
    err = float(jnp.max(jnp.abs(y - y_ref)))
    scale = float(jnp.max(jnp.abs(y_ref)))
    assert err <= 0.05 * scale + 0.02, (err, scale)

    print("KERNEL_OK")
</pallas_src>

<mosaic_0001>
module attributes {stable_mosaic.version = 11 : i64} {
  func.func @_encoder_kernel(%arg0: i32, %arg1: memref<1x10x2x10x8xf32, #tpu.memory_space<vmem>>, %arg2: memref<64x32xbf16, #tpu.memory_space<vmem>>, %arg3: memref<1x32xf32, #tpu.memory_space<vmem>>, %arg4: memref<512x64xbf16, #tpu.memory_space<vmem>>, %arg5: memref<1x64xf32, #tpu.memory_space<vmem>>, %arg6: memref<576x4xbf16, #tpu.memory_space<vmem>>, %arg7: memref<1x4xf32, #tpu.memory_space<vmem>>, %arg8: memref<1x16x4xf32, #tpu.memory_space<vmem>>, %arg9: memref<6x2x6x2x32xbf16, #tpu.memory_space<vmem>>, %arg10: memref<6x6x64xbf16, #tpu.memory_space<vmem>>, %arg11: memref<64x64xbf16, #tpu.memory_space<vmem>>, %arg12: memref<16x512xbf16, #tpu.memory_space<vmem>>, %arg13: memref<16x576xbf16, #tpu.memory_space<vmem>>) attributes {dimension_semantics = [#tpu.dimension_semantics<parallel>], iteration_bounds = array<i64: 2>, scalar_prefetch = 0 : i64, scratch_operands = 5 : i64, tpu.core_type = #tpu.core_type<tc>, window_params = [{transform_indices = @transform_0, window_bounds = array<i64: 1, 10, 2, 10, 8>}, {pipeline_mode = #tpu.pipeline_mode<synchronous>, transform_indices = @transform_1, window_bounds = array<i64: 64, 32>}, {pipeline_mode = #tpu.pipeline_mode<synchronous>, transform_indices = @transform_2, window_bounds = array<i64: 1, 32>}, {pipeline_mode = #tpu.pipeline_mode<synchronous>, transform_indices = @transform_3, window_bounds = array<i64: 512, 64>}, {pipeline_mode = #tpu.pipeline_mode<synchronous>, transform_indices = @transform_4, window_bounds = array<i64: 1, 64>}, {pipeline_mode = #tpu.pipeline_mode<synchronous>, transform_indices = @transform_5, window_bounds = array<i64: 576, 4>}, {pipeline_mode = #tpu.pipeline_mode<synchronous>, transform_indices = @transform_6, window_bounds = array<i64: 1, 4>}, {transform_indices = @transform_7, window_bounds = array<i64: 1, 16, 4>}]} {
    %cst = arith.constant 0.000000e+00 : bf16
    %0 = vector.broadcast %cst : bf16 to vector<6x2x6x2x32xbf16>
    %c0 = arith.constant 0 : index
    %c0_0 = arith.constant 0 : index
    %c0_1 = arith.constant 0 : index
    %c0_2 = arith.constant 0 : index
    %c0_3 = arith.constant 0 : index
    %1 = vector.load %arg9[%c0, %c0_0, %c0_1, %c0_2, %c0_3] : memref<6x2x6x2x32xbf16, #tpu.memory_space<vmem>>, vector<6x2x6x2x32xbf16>
    tpu.vector_store %arg9[%c0, %c0_0, %c0_1, %c0_2, %c0_3], %0 {strides = array<i32>} : memref<6x2x6x2x32xbf16, #tpu.memory_space<vmem>>, vector<6x2x6x2x32xbf16>,
    %cst_4 = arith.constant 0.000000e+00 : bf16
    %2 = vector.broadcast %cst_4 : bf16 to vector<6x6x64xbf16>
    %c0_5 = arith.constant 0 : index
    %c0_6 = arith.constant 0 : index
    %c0_7 = arith.constant 0 : index
    %3 = vector.load %arg10[%c0_5, %c0_6, %c0_7] : memref<6x6x64xbf16, #tpu.memory_space<vmem>>, vector<6x6x64xbf16>
    tpu.vector_store %arg10[%c0_5, %c0_6, %c0_7], %2 {strides = array<i32>} : memref<6x6x64xbf16, #tpu.memory_space<vmem>>, vector<6x6x64xbf16>,
    %c0_8 = arith.constant 0 : index
    %c0_9 = arith.constant 0 : index
    %c1 = arith.constant 1 : index
    %c0_10 = arith.constant 0 : index
    %c4 = arith.constant 4 : index
    %4 = vector.load %arg1[%c0_8, %c0_9, %c1, %c0_10, %c4] : memref<1x10x2x10x8xf32, #tpu.memory_space<vmem>>, vector<1x8x1x8x4xf32>
    %5 = vector.shape_cast %4 : vector<1x8x1x8x4xf32> to vector<8x8x4xf32>
    %6 = vector.shape_cast %5 : vector<8x8x4xf32> to vector<64x4xf32>
    %7 = arith.truncf %6 : vector<64x4xf32> to vector<64x4xbf16>
    %c0_11 = arith.constant 0 : index
    %c0_12 = arith.constant 0 : index
    %8 = vector.load %arg11[%c0_11, %c0_12] : memref<64x64xbf16, #tpu.memory_space<vmem>>, vector<64x4xbf16>
    tpu.vector_store %arg11[%c0_11, %c0_12], %7 {strides = array<i32>} : memref<64x64xbf16, #tpu.memory_space<vmem>>, vector<64x4xbf16>,
    %c0_13 = arith.constant 0 : index
    %c0_14 = arith.constant 0 : index
    %c1_15 = arith.constant 1 : index
    %c1_16 = arith.constant 1 : index
    %c0_17 = arith.constant 0 : index
    %9 = vector.load %arg1[%c0_13, %c0_14, %c1_15, %c1_16, %c0_17] : memref<1x10x2x10x8xf32, #tpu.memory_space<vmem>>, vector<1x8x1x8x4xf32>
    %10 = vector.shape_cast %9 : vector<1x8x1x8x4xf32> to vector<8x8x4xf32>
    %11 = vector.shape_cast %10 : vector<8x8x4xf32> to vector<64x4xf32>
    %12 = arith.truncf %11 : vector<64x4xf32> to vector<64x4xbf16>
    %c0_18 = arith.constant 0 : index
    %c4_19 = arith.constant 4 : index
    %13 = vector.load %arg11[%c0_18, %c4_19] : memref<64x64xbf16, #tpu.memory_space<vmem>>, vector<64x4xbf16>
    tpu.vector_store %arg11[%c0_18, %c4_19], %12 {strides = array<i32>} : memref<64x64xbf16, #tpu.memory_space<vmem>>, vector<64x4xbf16>,
    %c0_20 = arith.constant 0 : index
    %c0_21 = arith.constant 0 : index
    %c1_22 = arith.constant 1 : index
    %c1_23 = arith.constant 1 : index
    %c4_24 = arith.constant 4 : index
    %14 = vector.load %arg1[%c0_20, %c0_21, %c1_22, %c1_23, %c4_24] : memref<1x10x2x10x8xf32, #tpu.memory_space<vmem>>, vector<1x8x1x8x4xf32>
    %15 = vector.shape_cast %14 : vector<1x8x1x8x4xf32> to vector<8x8x4xf32>
    %16 = vector.shape_cast %15 : vector<8x8x4xf32> to vector<64x4xf32>
    %17 = arith.truncf %16 : vector<64x4xf32> to vector<64x4xbf16>
    %c0_25 = arith.constant 0 : index
    %c8 = arith.constant 8 : index
    %18 = vector.load %arg11[%c0_25, %c8] : memref<64x64xbf16, #tpu.memory_space<vmem>>, vector<64x4xbf16>
    tpu.vector_store %arg11[%c0_25, %c8], %17 {strides = array<i32>} : memref<64x64xbf16, #tpu.memory_space<vmem>>, vector<64x4xbf16>,
    %c0_26 = arith.constant 0 : index
    %c0_27 = arith.constant 0 : index
    %c1_28 = arith.constant 1 : index
    %c2 = arith.constant 2 : index
    %c0_29 = arith.constant 0 : index
    %19 = vector.load %arg1[%c0_26, %c0_27, %c1_28, %c2, %c0_29] : memref<1x10x2x10x8xf32, #tpu.memory_space<vmem>>, vector<1x8x1x8x4xf32>
    %20 = vector.shape_cast %19 : vector<1x8x1x8x4xf32> to vector<8x8x4xf32>
    %21 = vector.shape_cast %20 : vector<8x8x4xf32> to vector<64x4xf32>
    %22 = arith.truncf %21 : vector<64x4xf32> to vector<64x4xbf16>
    %c0_30 = arith.constant 0 : index
    %c12 = arith.constant 12 : index
    %23 = vector.load %arg11[%c0_30, %c12] : memref<64x64xbf16, #tpu.memory_space<vmem>>, vector<64x4xbf16>
    tpu.vector_store %arg11[%c0_30, %c12], %22 {strides = array<i32>} : memref<64x64xbf16, #tpu.memory_space<vmem>>, vector<64x4xbf16>,
    %c0_31 = arith.constant 0 : index
    %c1_32 = arith.constant 1 : index
    %c0_33 = arith.constant 0 : index
    %c0_34 = arith.constant 0 : index
    %c4_35 = arith.constant 4 : index
    %24 = vector.load %arg1[%c0_31, %c1_32, %c0_33, %c0_34, %c4_35] : memref<1x10x2x10x8xf32, #tpu.memory_space<vmem>>, vector<1x8x1x8x4xf32>
    %25 = vector.shape_cast %24 : vector<1x8x1x8x4xf32> to vector<8x8x4xf32>
    %26 = vector.shape_cast %25 : vector<8x8x4xf32> to vector<64x4xf32>
    %27 = arith.truncf %26 : vector<64x4xf32> to vector<64x4xbf16>
    %c0_36 = arith.constant 0 : index
    %c16 = arith.constant 16 : index
    %28 = vector.load %arg11[%c0_36, %c16] : memref<64x64xbf16, #tpu.memory_space<vmem>>, vector<64x4xbf16>
    tpu.vector_store %arg11[%c0_36, %c16], %27 {strides = array<i32>} : memref<64x64xbf16, #tpu.memory_space<vmem>>, vector<64x4xbf16>,
    %c0_37 = arith.constant 0 : index
    %c1_38 = arith.constant 1 : index
    %c0_39 = arith.constant 0 : index
    %c1_40 = arith.constant 1 : index
    %c0_41 = arith.constant 0 : index
    %29 = vector.load %arg1[%c0_37, %c1_38, %c0_39, %c1_40, %c0_41] : memref<1x10x2x10x8xf32, #tpu.memory_space<vmem>>, vector<1x8x1x8x4xf32>
    %30 = vector.shape_cast %29 : vector<1x8x1x8x4xf32> to vector<8x8x4xf32>
    %31 = vector.shape_cast %30 : vector<8x8x4xf32> to vector<64x4xf32>
    %32 = arith.truncf %31 : vector<64x4xf32> to vector<64x4xbf16>
    %c0_42 = arith.constant 0 : index
    %c20 = arith.constant 20 : index
    %33 = vector.load %arg11[%c0_42, %c20] : memref<64x64xbf16, #tpu.memory_space<vmem>>, vector<64x4xbf16>
    tpu.vector_store %arg11[%c0_42, %c20], %32 {strides = array<i32>} : memref<64x64xbf16, #tpu.memory_space<vmem>>, vector<64x4xbf16>,
    %c0_43 = arith.constant 0 : index
    %c1_44 = arith.constant 1 : index
    %c0_45 = arith.constant 0 : index
    %c1_46 = arith.constant 1 : index
    %c4_47 = arith.constant 4 : index
    %34 = vector.load %arg1[%c0_43, %c1_44, %c0_45, %c1_46, %c4_47] : memref<1x10x2x10x8xf32, #tpu.memory_space<vmem>>, vector<1x8x1x8x4xf32>
    %35 = vector.shape_cast %34 : vector<1x8x1x8x4xf32> to vector<8x8x4xf32>
    %36 = vector.shape_cast %35 : vector<8x8x4xf32> to vector<64x4xf32>
    %37 = arith.truncf %36 : vector<64x4xf32> to vector<64x4xbf16>
    %c0_48 = arith.constant 0 : index
    %c24 = arith.constant 24 : index
    %38 = vector.load %arg11[%c0_48, %c24] : memref<64x64xbf16, #tpu.memory_space<vmem>>, vector<64x4xbf16>
    tpu.vector_store %arg11[%c0_48, %c24], %37 {strides = array<i32>} : memref<64x64xbf16, #tpu.memory_space<vmem>>, vector<64x4xbf16>,
    %c0_49 = arith.constant 0 : index
    %c1_50 = arith.constant 1 : index
    %c0_51 = arith.constant 0 : index
    %c2_52 = arith.constant 2 : index
    %c0_53 = arith.constant 0 : index
    %39 = vector.load %arg1[%c0_49, %c1_50, %c0_51, %c2_52, %c0_53] : memref<1x10x2x10x8xf32, #tpu.memory_space<vmem>>, vector<1x8x1x8x4xf32>
    %40 = vector.shape_cast %39 : vector<1x8x1x8x4xf32> to vector<8x8x4xf32>
    %41 = vector.shape_cast %40 : vector<8x8x4xf32> to vector<64x4xf32>
    %42 = arith.truncf %41 : vector<64x4xf32> to vector<64x4xbf16>
    %c0_54 = arith.constant 0 : index
    %c28 = arith.constant 28 : index
    %43 = vector.load %arg11[%c0_54, %c28] : memref<64x64xbf16, #tpu.memory_space<vmem>>, vector<64x4xbf16>
    tpu.vector_store %arg11[%c0_54, %c28], %42 {strides = array<i32>} : memref<64x64xbf16, #tpu.memory_space<vmem>>, vector<64x4xbf16>,
    %c0_55 = arith.constant 0 : index
    %c1_56 = arith.constant 1 : index
    %c1_57 = arith.constant 1 : index
    %c0_58 = arith.constant 0 : index
    %c4_59 = arith.constant 4 : index
    %44 = vector.load %arg1[%c0_55, %c1_56, %c1_57, %c0_58, %c4_59] : memref<1x10x2x10x8xf32, #tpu.memory_space<vmem>>, vector<1x8x1x8x4xf32>
    %45 = vector.shape_cast %44 : vector<1x8x1x8x4xf32> to vector<8x8x4xf32>
    %46 = vector.shape_cast %45 : vector<8x8x4xf32> to vector<64x4xf32>
    %47 = arith.truncf %46 : vector<64x4xf32> to vector<64x4xbf16>
    %c0_60 = arith.constant 0 : index
    %c32 = arith.constant 32 : index
    %48 = vector.load %arg11[%c0_60, %c32] : memref<64x64xbf16, #tpu.memory_space<vmem>>, vector<64x4xbf16>
    tpu.vector_store %arg11[%c0_60, %c32], %47 {strides = array<i32>} : memref<64x64xbf16, #tpu.memory_space<vmem>>, vector<64x4xbf16>,
    %c0_61 = arith.constant 0 : index
    %c1_62 = arith.constant 1 : index
    %c1_63 = arith.constant 1 : index
    %c1_64 = arith.constant 1 : index
    %c0_65 = arith.constant 0 : index
    %49 = vector.load %arg1[%c0_61, %c1_62, %c1_63, %c1_64, %c0_65] : memref<1x10x2x10x8xf32, #tpu.memory_space<vmem>>, vector<1x8x1x8x4xf32>
    %50 = vector.shape_cast %49 : vector<1x8x1x8x4xf32> to vector<8x8x4xf32>
    %51 = vector.shape_cast %50 : vector<8x8x4xf32> to vector<64x4xf32>
    %52 = arith.truncf %51 : vector<64x4xf32> to vector<64x4xbf16>
    %c0_66 = arith.constant 0 : index
    %c36 = arith.constant 36 : index
    %53 = vector.load %arg11[%c0_66, %c36] : memref<64x64xbf16, #tpu.memory_space<vmem>>, vector<64x4xbf16>
    tpu.vector_store %arg11[%c0_66, %c36], %52 {strides = array<i32>} : memref<64x64xbf16, #tpu.memory_space<vmem>>, vector<64x4xbf16>,
    %c0_67 = arith.constant 0 : index
    %c1_68 = arith.constant 1 : index
    %c1_69 = arith.constant 1 : index
    %c1_70 = arith.constant 1 : index
    %c4_71 = arith.constant 4 : index
    %54 = vector.load %arg1[%c0_67, %c1_68, %c1_69, %c1_70, %c4_71] : memref<1x10x2x10x8xf32, #tpu.memory_space<vmem>>, vector<1x8x1x8x4xf32>
    %55 = vector.shape_cast %54 : vector<1x8x1x8x4xf32> to vector<8x8x4xf32>
    %56 = vector.shape_cast %55 : vector<8x8x4xf32> to vector<64x4xf32>
    %57 = arith.truncf %56 : vector<64x4xf32> to vector<64x4xbf16>
    %c0_72 = arith.constant 0 : index
    %c40 = arith.constant 40 : index
    %58 = vector.load %arg11[%c0_72, %c40] : memref<64x64xbf16, #tpu.memory_space<vmem>>, vector<64x4xbf16>
    tpu.vector_store %arg11[%c0_72, %c40], %57 {strides = array<i32>} : memref<64x64xbf16, #tpu.memory_space<vmem>>, vector<64x4xbf16>,
    %c0_73 = arith.constant 0 : index
    %c1_74 = arith.constant 1 : index
    %c1_75 = arith.constant 1 : index
    %c2_76 = arith.constant 2 : index
    %c0_77 = arith.constant 0 : index
    %59 = vector.load %arg1[%c0_73, %c1_74, %c1_75, %c2_76, %c0_77] : memref<1x10x2x10x8xf32, #tpu.memory_space<vmem>>, vector<1x8x1x8x4xf32>
    %60 = vector.shape_cast %59 : vector<1x8x1x8x4xf32> to vector<8x8x4xf32>
    %61 = vector.shape_cast %60 : vector<8x8x4xf32> to vector<64x4xf32>
    %62 = arith.truncf %61 : vector<64x4xf32> to vector<64x4xbf16>
    %c0_78 = arith.constant 0 : index
    %c44 = arith.constant 44 : index
    %63 = vector.load %arg11[%c0_78, %c44] : memref<64x64xbf16, #tpu.memory_space<vmem>>, vector<64x4xbf16>
    tpu.vector_store %arg11[%c0_78, %c44], %62 {strides = array<i32>} : memref<64x64xbf16, #tpu.memory_space<vmem>>, vector<64x4xbf16>,
    %c0_79 = arith.constant 0 : index
    %c2_80 = arith.constant 2 : index
    %c0_81 = arith.constant 0 : index
    %c0_82 = arith.constant 0 : index
    %c4_83 = arith.constant 4 : index
    %64 = vector.load %arg1[%c0_79, %c2_80, %c0_81, %c0_82, %c4_83] : memref<1x10x2x10x8xf32, #tpu.memory_space<vmem>>, vector<1x8x1x8x4xf32>
    %65 = vector.shape_cast %64 : vector<1x8x1x8x4xf32> to vector<8x8x4xf32>
    %66 = vector.shape_cast %65 : vector<8x8x4xf32> to vector<64x4xf32>
    %67 = arith.truncf %66 : vector<64x4xf32> to vector<64x4xbf16>
    %c0_84 = arith.constant 0 : index
    %c48 = arith.constant 48 : index
    %68 = vector.load %arg11[%c0_84, %c48] : memref<64x64xbf16, #tpu.memory_space<vmem>>, vector<64x4xbf16>
    tpu.vector_store %arg11[%c0_84, %c48], %67 {strides = array<i32>} : memref<64x64xbf16, #tpu.memory_space<vmem>>, vector<64x4xbf16>,
    %c0_85 = arith.constant 0 : index
    %c2_86 = arith.constant 2 : index
    %c0_87 = arith.constant 0 : index
    %c1_88 = arith.constant 1 : index
    %c0_89 = arith.constant 0 : index
    %69 = vector.load %arg1[%c0_85, %c2_86, %c0_87, %c1_88, %c0_89] : memref<1x10x2x10x8xf32, #tpu.memory_space<vmem>>, vector<1x8x1x8x4xf32>
    %70 = vector.shape_cast %69 : vector<1x8x1x8x4xf32> to vector<8x8x4xf32>
    %71 = vector.shape_cast %70 : vector<8x8x4xf32> to vector<64x4xf32>
    %72 = arith.truncf %71 : vector<64x4xf32> to vector<64x4xbf16>
    %c0_90 = arith.constant 0 : index
    %c52 = arith.constant 52 : index
    %73 = vector.load %arg11[%c0_90, %c52] : memref<64x64xbf16, #tpu.memory_space<vmem>>, vector<64x4xbf16>
    tpu.vector_store %arg11[%c0_90, %c52], %72 {strides = array<i32>} : memref<64x64xbf16, #tpu.memory_space<vmem>>, vector<64x4xbf16>,
    %c0_91 = arith.constant 0 : index
    %c2_92 = arith.constant 2 : index
    %c0_93 = arith.constant 0 : index
    %c1_94 = arith.constant 1 : index
    %c4_95 = arith.constant 4 : index
    %74 = vector.load %arg1[%c0_91, %c2_92, %c0_93, %c1_94, %c4_95] : memref<1x10x2x10x8xf32, #tpu.memory_space<vmem>>, vector<1x8x1x8x4xf32>
    %75 = vector.shape_cast %74 : vector<1x8x1x8x4xf32> to vector<8x8x4xf32>
    %76 = vector.shape_cast %75 : vector<8x8x4xf32> to vector<64x4xf32>
    %77 = arith.truncf %76 : vector<64x4xf32> to vector<64x4xbf16>
    %c0_96 = arith.constant 0 : index
    %c56 = arith.constant 56 : index
    %78 = vector.load %arg11[%c0_96, %c56] : memref<64x64xbf16, #tpu.memory_space<vmem>>, vector<64x4xbf16>
    tpu.vector_store %arg11[%c0_96, %c56], %77 {strides = array<i32>} : memref<64x64xbf16, #tpu.memory_space<vmem>>, vector<64x4xbf16>,
    %c0_97 = arith.constant 0 : index
    %c2_98 = arith.constant 2 : index
    %c0_99 = arith.constant 0 : index
    %c2_100 = arith.constant 2 : index
    %c0_101 = arith.constant 0 : index
    %79 = vector.load %arg1[%c0_97, %c2_98, %c0_99, %c2_100, %c0_101] : memref<1x10x2x10x8xf32, #tpu.memory_space<vmem>>, vector<1x8x1x8x4xf32>
    %80 = vector.shape_cast %79 : vector<1x8x1x8x4xf32> to vector<8x8x4xf32>
    %81 = vector.shape_cast %80 : vector<8x8x4xf32> to vector<64x4xf32>
    %82 = arith.truncf %81 : vector<64x4xf32> to vector<64x4xbf16>
    %c0_102 = arith.constant 0 : index
    %c60 = arith.constant 60 : index
    %83 = vector.load %arg11[%c0_102, %c60] : memref<64x64xbf16, #tpu.memory_space<vmem>>, vector<64x4xbf16>
    tpu.vector_store %arg11[%c0_102, %c60], %82 {strides = array<i32>} : memref<64x64xbf16, #tpu.memory_space<vmem>>, vector<64x4xbf16>,
    %c0_103 = arith.constant 0 : index
    %c0_104 = arith.constant 0 : index
    %84 = vector.load %arg11[%c0_103, %c0_104] : memref<64x64xbf16, #tpu.memory_space<vmem>>, vector<64x64xbf16>
    %c0_105 = arith.constant 0 : index
    %c0_106 = arith.constant 0 : index
    %85 = vector.load %arg2[%c0_105, %c0_106] : memref<64x32xbf16, #tpu.memory_space<vmem>>, vector<64x32xbf16>
    %cst_107 = arith.constant dense<0.000000e+00> : vector<64x32xf32>
    %86 = tpu.matmul %84, %85, %cst_107 {dimension_numbers = #tpu.dot_dimension_numbers<[1], [0], [0], [1], [0, 0, 1, 1], [], []>} : vector<64x64xbf16>, vector<64x32xbf16>, vector<64x32xf32> -> vector<64x32xf32>
    %c0_108 = arith.constant 0 : index
    %c0_109 = arith.constant 0 : index
    %87 = vector.load %arg3[%c0_108, %c0_109] : memref<1x32xf32, #tpu.memory_space<vmem>>, vector<1x32xf32>
    %88 = vector.broadcast %87 : vector<1x32xf32> to vector<64x32xf32>
    %89 = arith.addf %86, %88 : vector<64x32xf32>
    %cst_110 = arith.constant 0.000000e+00 : f32
    %90 = vector.broadcast %cst_110 : f32 to vector<64x32xf32>
    %91 = arith.maximumf %89, %90 : vector<64x32xf32>
    %92 = arith.truncf %91 : vector<64x32xf32> to vector<64x32xbf16>
    %93 = vector.shape_cast %92 : vector<64x32xbf16> to vector<4x2x4x2x32xbf16>
    %c1_111 = arith.constant 1 : index
    %c0_112 = arith.constant 0 : index
    %c1_113 = arith.constant 1 : index
    %c0_114 = arith.constant 0 : index
    %c0_115 = arith.constant 0 : index
    %94 = vector.load %arg9[%c1_111, %c0_112, %c1_113, %c0_114, %c0_115] : memref<6x2x6x2x32xbf16, #tpu.memory_space<vmem>>, vector<4x2x4x2x32xbf16>
    tpu.vector_store %arg9[%c1_111, %c0_112, %c1_113, %c0_114, %c0_115], %93 {strides = array<i32>} : memref<6x2x6x2x32xbf16, #tpu.memory_space<vmem>>, vector<4x2x4x2x32xbf16>,
    %c0_116 = arith.constant 0 : index
    %c1_117 = arith.constant 1 : index
    %c0_118 = arith.constant 0 : index
    %c1_119 = arith.constant 1 : index
    %c0_120 = arith.constant 0 : index
    %95 = vector.load %arg9[%c0_116, %c1_117, %c0_118, %c1_119, %c0_120] : memref<6x2x6x2x32xbf16, #tpu.memory_space<vmem>>, vector<4x1x4x1x32xbf16>
    %96 = vector.shape_cast %95 : vector<4x1x4x1x32xbf16> to vector<4x4x32xbf16>
    %97 = vector.shape_cast %96 : vector<4x4x32xbf16> to vector<16x32xbf16>
    %c0_121 = arith.constant 0 : index
    %c0_122 = arith.constant 0 : index
    %98 = vector.load %arg12[%c0_121, %c0_122] : memref<16x512xbf16, #tpu.memory_space<vmem>>, vector<16x32xbf16>
    tpu.vector_store %arg12[%c0_121, %c0_122], %97 {strides = array<i32>} : memref<16x512xbf16, #tpu.memory_space<vmem>>, vector<16x32xbf16>,
    %c0_123 = arith.constant 0 : index
    %c1_124 = arith.constant 1 : index
    %c1_125 = arith.constant 1 : index
    %c0_126 = arith.constant 0 : index
    %c0_127 = arith.constant 0 : index
    %99 = vector.load %arg9[%c0_123, %c1_124, %c1_125, %c0_126, %c0_127] : memref<6x2x6x2x32xbf16, #tpu.memory_space<vmem>>, vector<4x1x4x1x32xbf16>
    %100 = vector.shape_cast %99 : vector<4x1x4x1x32xbf16> to vector<4x4x32xbf16>
    %101 = vector.shape_cast %100 : vector<4x4x32xbf16> to vector<16x32xbf16>
    %c0_128 = arith.constant 0 : index
    %c32_129 = arith.constant 32 : index
    %102 = vector.load %arg12[%c0_128, %c32_129] : memref<16x512xbf16, #tpu.memory_space<vmem>>, vector<16x32xbf16>
    tpu.vector_store %arg12[%c0_128, %c32_129], %101 {strides = array<i32>} : memref<16x512xbf16, #tpu.memory_space<vmem>>, vector<16x32xbf16>,
    %c0_130 = arith.constant 0 : index
    %c1_131 = arith.constant 1 : index
    %c1_132 = arith.constant 1 : index
    %c1_133 = arith.constant 1 : index
    %c0_134 = arith.constant 0 : index
    %103 = vector.load %arg9[%c0_130, %c1_131, %c1_132, %c1_133, %c0_134] : memref<6x2x6x2x32xbf16, #tpu.memory_space<vmem>>, vector<4x1x4x1x32xbf16>
    %104 = vector.shape_cast %103 : vector<4x1x4x1x32xbf16> to vector<4x4x32xbf16>
    %105 = vector.shape_cast %104 : vector<4x4x32xbf16> to vector<16x32xbf16>
    %c0_135 = arith.constant 0 : index
    %c64 = arith.constant 64 : index
    %106 = vector.load %arg12[%c0_135, %c64] : memref<16x512xbf16, #tpu.memory_space<vmem>>, vector<16x32xbf16>
    tpu.vector_store %arg12[%c0_135, %c64], %105 {strides = array<i32>} : memref<16x512xbf16, #tpu.memory_space<vmem>>, vector<16x32xbf16>,
    %c0_136 = arith.constant 0 : index
    %c1_137 = arith.constant 1 : index
    %c2_138 = arith.constant 2 : index
    %c0_139 = arith.constant 0 : index
    %c0_140 = arith.constant 0 : index
    %107 = vector.load %arg9[%c0_136, %c1_137, %c2_138, %c0_139, %c0_140] : memref<6x2x6x2x32xbf16, #tpu.memory_space<vmem>>, vector<4x1x4x1x32xbf16>
    %108 = vector.shape_cast %107 : vector<4x1x4x1x32xbf16> to vector<4x4x32xbf16>
    %109 = vector.shape_cast %108 : vector<4x4x32xbf16> to vector<16x32xbf16>
    %c0_141 = arith.constant 0 : index
    %c96 = arith.constant 96 : index
    %110 = vector.load %arg12[%c0_141, %c96] : memref<16x512xbf16, #tpu.memory_space<vmem>>, vector<16x32xbf16>
    tpu.vector_store %arg12[%c0_141, %c96], %109 {strides = array<i32>} : memref<16x512xbf16, #tpu.memory_space<vmem>>, vector<16x32xbf16>,
    %c1_142 = arith.constant 1 : index
    %c0_143 = arith.constant 0 : index
    %c0_144 = arith.constant 0 : index
    %c1_145 = arith.constant 1 : index
    %c0_146 = arith.constant 0 : index
    %111 = vector.load %arg9[%c1_142, %c0_143, %c0_144, %c1_145, %c0_146] : memref<6x2x6x2x32xbf16, #tpu.memory_space<vmem>>, vector<4x1x4x1x32xbf16>
    %112 = vector.shape_cast %111 : vector<4x1x4x1x32xbf16> to vector<4x4x32xbf16>
    %113 = vector.shape_cast %112 : vector<4x4x32xbf16> to vector<16x32xbf16>
    %c0_147 = arith.constant 0 : index
    %c128 = arith.constant 128 : index
    %114 = vector.load %arg12[%c0_147, %c128] : memref<16x512xbf16, #tpu.memory_space<vmem>>, vector<16x32xbf16>
    tpu.vector_store %arg12[%c0_147, %c128], %113 {strides = array<i32>} : memref<16x512xbf16, #tpu.memory_space<vmem>>, vector<16x32xbf16>,
    %c1_148 = arith.constant 1 : index
    %c0_149 = arith.constant 0 : index
    %c1_150 = arith.constant 1 : index
    %c0_151 = arith.constant 0 : index
    %c0_152 = arith.constant 0 : index
    %115 = vector.load %arg9[%c1_148, %c0_149, %c1_150, %c0_151, %c0_152] : memref<6x2x6x2x32xbf16, #tpu.memory_space<vmem>>, vector<4x1x4x1x32xbf16>
    %116 = vector.shape_cast %115 : vector<4x1x4x1x32xbf16> to vector<4x4x32xbf16>
    %117 = vector.shape_cast %116 : vector<4x4x32xbf16> to vector<16x32xbf16>
    %c0_153 = arith.constant 0 : index
    %c160 = arith.constant 160 : index
    %118 = vector.load %arg12[%c0_153, %c160] : memref<16x512xbf16, #tpu.memory_space<vmem>>, vector<16x32xbf16>
    tpu.vector_store %arg12[%c0_153, %c160], %117 {strides = array<i32>} : memref<16x512xbf16, #tpu.memory_space<vmem>>, vector<16x32xbf16>,
    %c1_154 = arith.constant 1 : index
    %c0_155 = arith.constant 0 : index
    %c1_156 = arith.constant 1 : index
    %c1_157 = arith.constant 1 : index
    %c0_158 = arith.constant 0 : index
    %119 = vector.load %arg9[%c1_154, %c0_155, %c1_156, %c1_157, %c0_158] : memref<6x2x6x2x32xbf16, #tpu.memory_space<vmem>>, vector<4x1x4x1x32xbf16>
    %120 = vector.shape_cast %119 : vector<4x1x4x1x32xbf16> to vector<4x4x32xbf16>
    %121 = vector.shape_cast %120 : vector<4x4x32xbf16> to vector<16x32xbf16>
    %c0_159 = arith.constant 0 : index
    %c192 = arith.constant 192 : index
    %122 = vector.load %arg12[%c0_159, %c192] : memref<16x512xbf16, #tpu.memory_space<vmem>>, vector<16x32xbf16>
    tpu.vector_store %arg12[%c0_159, %c192], %121 {strides = array<i32>} : memref<16x512xbf16, #tpu.memory_space<vmem>>, vector<16x32xbf16>,
    %c1_160 = arith.constant 1 : index
    %c0_161 = arith.constant 0 : index
    %c2_162 = arith.constant 2 : index
    %c0_163 = arith.constant 0 : index
    %c0_164 = arith.constant 0 : index
    %123 = vector.load %arg9[%c1_160, %c0_161, %c2_162, %c0_163, %c0_164] : memref<6x2x6x2x32xbf16, #tpu.memory_space<vmem>>, vector<4x1x4x1x32xbf16>
    %124 = vector.shape_cast %123 : vector<4x1x4x1x32xbf16> to vector<4x4x32xbf16>
    %125 = vector.shape_cast %124 : vector<4x4x32xbf16> to vector<16x32xbf16>
    %c0_165 = arith.constant 0 : index
    %c224 = arith.constant 224 : index
    %126 = vector.load %arg12[%c0_165, %c224] : memref<16x512xbf16, #tpu.memory_space<vmem>>, vector<16x32xbf16>
    tpu.vector_store %arg12[%c0_165, %c224], %125 {strides = array<i32>} : memref<16x512xbf16, #tpu.memory_space<vmem>>, vector<16x32xbf16>,
    %c1_166 = arith.constant 1 : index
    %c1_167 = arith.constant 1 : index
    %c0_168 = arith.constant 0 : index
    %c1_169 = arith.constant 1 : index
    %c0_170 = arith.constant 0 : index
    %127 = vector.load %arg9[%c1_166, %c1_167, %c0_168, %c1_169, %c0_170] : memref<6x2x6x2x32xbf16, #tpu.memory_space<vmem>>, vector<4x1x4x1x32xbf16>
    %128 = vector.shape_cast %127 : vector<4x1x4x1x32xbf16> to vector<4x4x32xbf16>
    %129 = vector.shape_cast %128 : vector<4x4x32xbf16> to vector<16x32xbf16>
    %c0_171 = arith.constant 0 : index
    %c256 = arith.constant 256 : index
    %130 = vector.load %arg12[%c0_171, %c256] : memref<16x512xbf16, #tpu.memory_space<vmem>>, vector<16x32xbf16>
    tpu.vector_store %arg12[%c0_171, %c256], %129 {strides = array<i32>} : memref<16x512xbf16, #tpu.memory_space<vmem>>, vector<16x32xbf16>,
    %c1_172 = arith.constant 1 : index
    %c1_173 = arith.constant 1 : index
    %c1_174 = arith.constant 1 : index
    %c0_175 = arith.constant 0 : index
    %c0_176 = arith.constant 0 : index
    %131 = vector.load %arg9[%c1_172, %c1_173, %c1_174, %c0_175, %c0_176] : memref<6x2x6x2x32xbf16, #tpu.memory_space<vmem>>, vector<4x1x4x1x32xbf16>
    %132 = vector.shape_cast %131 : vector<4x1x4x1x32xbf16> to vector<4x4x32xbf16>
    %133 = vector.shape_cast %132 : vector<4x4x32xbf16> to vector<16x32xbf16>
    %c0_177 = arith.constant 0 : index
    %c288 = arith.constant 288 : index
    %134 = vector.load %arg12[%c0_177, %c288] : memref<16x512xbf16, #tpu.memory_space<vmem>>, vector<16x32xbf16>
    tpu.vector_store %arg12[%c0_177, %c288], %133 {strides = array<i32>} : memref<16x512xbf16, #tpu.memory_space<vmem>>, vector<16x32xbf16>,
    %c1_178 = arith.constant 1 : index
    %c1_179 = arith.constant 1 : index
    %c1_180 = arith.constant 1 : index
    %c1_181 = arith.constant 1 : index
    %c0_182 = arith.constant 0 : index
    %135 = vector.load %arg9[%c1_178, %c1_179, %c1_180, %c1_181, %c0_182] : memref<6x2x6x2x32xbf16, #tpu.memory_space<vmem>>, vector<4x1x4x1x32xbf16>
    %136 = vector.shape_cast %135 : vector<4x1x4x1x32xbf16> to vector<4x4x32xbf16>
    %137 = vector.shape_cast %136 : vector<4x4x32xbf16> to vector<16x32xbf16>
    %c0_183 = arith.constant 0 : index
    %c320 = arith.constant 320 : index
    %138 = vector.load %arg12[%c0_183, %c320] : memref<16x512xbf16, #tpu.memory_space<vmem>>, vector<16x32xbf16>
    tpu.vector_store %arg12[%c0_183, %c320], %137 {strides = array<i32>} : memref<16x512xbf16, #tpu.memory_space<vmem>>, vector<16x32xbf16>,
    %c1_184 = arith.constant 1 : index
    %c1_185 = arith.constant 1 : index
    %c2_186 = arith.constant 2 : index
    %c0_187 = arith.constant 0 : index
    %c0_188 = arith.constant 0 : index
    %139 = vector.load %arg9[%c1_184, %c1_185, %c2_186, %c0_187, %c0_188] : memref<6x2x6x2x32xbf16, #tpu.memory_space<vmem>>, vector<4x1x4x1x32xbf16>
    %140 = vector.shape_cast %139 : vector<4x1x4x1x32xbf16> to vector<4x4x32xbf16>
    %141 = vector.shape_cast %140 : vector<4x4x32xbf16> to vector<16x32xbf16>
    %c0_189 = arith.constant 0 : index
    %c352 = arith.constant 352 : index
    %142 = vector.load %arg12[%c0_189, %c352] : memref<16x512xbf16, #tpu.memory_space<vmem>>, vector<16x32xbf16>
    tpu.vector_store %arg12[%c0_189, %c352], %141 {strides = array<i32>} : memref<16x512xbf16, #tpu.memory_space<vmem>>, vector<16x32xbf16>,
    %c2_190 = arith.constant 2 : index
    %c0_191 = arith.constant 0 : index
    %c0_192 = arith.constant 0 : index
    %c1_193 = arith.constant 1 : index
    %c0_194 = arith.constant 0 : index
    %143 = vector.load %arg9[%c2_190, %c0_191, %c0_192, %c1_193, %c0_194] : memref<6x2x6x2x32xbf16, #tpu.memory_space<vmem>>, vector<4x1x4x1x32xbf16>
    %144 = vector.shape_cast %143 : vector<4x1x4x1x32xbf16> to vector<4x4x32xbf16>
    %145 = vector.shape_cast %144 : vector<4x4x32xbf16> to vector<16x32xbf16>
    %c0_195 = arith.constant 0 : index
    %c384 = arith.constant 384 : index
    %146 = vector.load %arg12[%c0_195, %c384] : memref<16x512xbf16, #tpu.memory_space<vmem>>, vector<16x32xbf16>
    tpu.vector_store %arg12[%c0_195, %c384], %145 {strides = array<i32>} : memref<16x512xbf16, #tpu.memory_space<vmem>>, vector<16x32xbf16>,
    %c2_196 = arith.constant 2 : index
    %c0_197 = arith.constant 0 : index
    %c1_198 = arith.constant 1 : index
    %c0_199 = arith.constant 0 : index
    %c0_200 = arith.constant 0 : index
    %147 = vector.load %arg9[%c2_196, %c0_197, %c1_198, %c0_199, %c0_200] : memref<6x2x6x2x32xbf16, #tpu.memory_space<vmem>>, vector<4x1x4x1x32xbf16>
    %148 = vector.shape_cast %147 : vector<4x1x4x1x32xbf16> to vector<4x4x32xbf16>
    %149 = vector.shape_cast %148 : vector<4x4x32xbf16> to vector<16x32xbf16>
    %c0_201 = arith.constant 0 : index
    %c416 = arith.constant 416 : index
    %150 = vector.load %arg12[%c0_201, %c416] : memref<16x512xbf16, #tpu.memory_space<vmem>>, vector<16x32xbf16>
    tpu.vector_store %arg12[%c0_201, %c416], %149 {strides = array<i32>} : memref<16x512xbf16, #tpu.memory_space<vmem>>, vector<16x32xbf16>,
    %c2_202 = arith.constant 2 : index
    %c0_203 = arith.constant 0 : index
    %c1_204 = arith.constant 1 : index
    %c1_205 = arith.constant 1 : index
    %c0_206 = arith.constant 0 : index
    %151 = vector.load %arg9[%c2_202, %c0_203, %c1_204, %c1_205, %c0_206] : memref<6x2x6x2x32xbf16, #tpu.memory_space<vmem>>, vector<4x1x4x1x32xbf16>
    %152 = vector.shape_cast %151 : vector<4x1x4x1x32xbf16> to vector<4x4x32xbf16>
    %153 = vector.shape_cast %152 : vector<4x4x32xbf16> to vector<16x32xbf16>
    %c0_207 = arith.constant 0 : index
    %c448 = arith.constant 448 : index
    %154 = vector.load %arg12[%c0_207, %c448] : memref<16x512xbf16, #tpu.memory_space<vmem>>, vector<16x32xbf16>
    tpu.vector_store %arg12[%c0_207, %c448], %153 {strides = array<i32>} : memref<16x512xbf16, #tpu.memory_space<vmem>>, vector<16x32xbf16>,
    %c2_208 = arith.constant 2 : index
    %c0_209 = arith.constant 0 : index
    %c2_210 = arith.constant 2 : index
    %c0_211 = arith.constant 0 : index
    %c0_212 = arith.constant 0 : index
    %155 = vector.load %arg9[%c2_208, %c0_209, %c2_210, %c0_211, %c0_212] : memref<6x2x6x2x32xbf16, #tpu.memory_space<vmem>>, vector<4x1x4x1x32xbf16>
    %156 = vector.shape_cast %155 : vector<4x1x4x1x32xbf16> to vector<4x4x32xbf16>
    %157 = vector.shape_cast %156 : vector<4x4x32xbf16> to vector<16x32xbf16>
    %c0_213 = arith.constant 0 : index
    %c480 = arith.constant 480 : index
    %158 = vector.load %arg12[%c0_213, %c480] : memref<16x512xbf16, #tpu.memory_space<vmem>>, vector<16x32xbf16>
    tpu.vector_store %arg12[%c0_213, %c480], %157 {strides = array<i32>} : memref<16x512xbf16, #tpu.memory_space<vmem>>, vector<16x32xbf16>,
    %c0_214 = arith.constant 0 : index
    %c0_215 = arith.constant 0 : index
    %159 = vector.load %arg12[%c0_214, %c0_215] : memref<16x512xbf16, #tpu.memory_space<vmem>>, vector<16x512xbf16>
    %c0_216 = arith.constant 0 : index
    %c0_217 = arith.constant 0 : index
    %160 = vector.load %arg4[%c0_216, %c0_217] : memref<512x64xbf16, #tpu.memory_space<vmem>>, vector<512x64xbf16>
    %cst_218 = arith.constant dense<0.000000e+00> : vector<16x64xf32>
    %161 = tpu.matmul %159, %160, %cst_218 {dimension_numbers = #tpu.dot_dimension_numbers<[1], [0], [0], [1], [0, 0, 1, 1], [], []>} : vector<16x512xbf16>, vector<512x64xbf16>, vector<16x64xf32> -> vector<16x64xf32>
    %c0_219 = arith.constant 0 : index
    %c0_220 = arith.constant 0 : index
    %162 = vector.load %arg5[%c0_219, %c0_220] : memref<1x64xf32, #tpu.memory_space<vmem>>, vector<1x64xf32>
    %163 = vector.broadcast %162 : vector<1x64xf32> to vector<16x64xf32>
    %164 = arith.addf %161, %163 : vector<16x64xf32>
    %cst_221 = arith.constant 0.000000e+00 : f32
    %165 = vector.broadcast %cst_221 : f32 to vector<16x64xf32>
    %166 = arith.maximumf %164, %165 : vector<16x64xf32>
    %167 = arith.truncf %166 : vector<16x64xf32> to vector<16x64xbf16>
    %168 = vector.shape_cast %167 : vector<16x64xbf16> to vector<4x4x64xbf16>
    %c1_222 = arith.constant 1 : index
    %c1_223 = arith.constant 1 : index
    %c0_224 = arith.constant 0 : index
    %169 = vector.load %arg10[%c1_222, %c1_223, %c0_224] : memref<6x6x64xbf16, #tpu.memory_space<vmem>>, vector<4x4x64xbf16>
    tpu.vector_store %arg10[%c1_222, %c1_223, %c0_224], %168 {strides = array<i32>} : memref<6x6x64xbf16, #tpu.memory_space<vmem>>, vector<4x4x64xbf16>,
    %c0_225 = arith.constant 0 : index
    %c0_226 = arith.constant 0 : index
    %c0_227 = arith.constant 0 : index
    %170 = vector.load %arg10[%c0_225, %c0_226, %c0_227] : memref<6x6x64xbf16, #tpu.memory_space<vmem>>, vector<4x4x64xbf16>
    %171 = vector.shape_cast %170 : vector<4x4x64xbf16> to vector<16x64xbf16>
    %c0_228 = arith.constant 0 : index
    %c0_229 = arith.constant 0 : index
    %172 = vector.load %arg13[%c0_228, %c0_229] : memref<16x576xbf16, #tpu.memory_space<vmem>>, vector<16x64xbf16>
    tpu.vector_store %arg13[%c0_228, %c0_229], %171 {strides = array<i32>} : memref<16x576xbf16, #tpu.memory_space<vmem>>, vector<16x64xbf16>,
    %c0_230 = arith.constant 0 : index
    %c1_231 = arith.constant 1 : index
    %c0_232 = arith.constant 0 : index
    %173 = vector.load %arg10[%c0_230, %c1_231, %c0_232] : memref<6x6x64xbf16, #tpu.memory_space<vmem>>, vector<4x4x64xbf16>
    %174 = vector.shape_cast %173 : vector<4x4x64xbf16> to vector<16x64xbf16>
    %c0_233 = arith.constant 0 : index
    %c64_234 = arith.constant 64 : index
    %175 = vector.load %arg13[%c0_233, %c64_234] : memref<16x576xbf16, #tpu.memory_space<vmem>>, vector<16x64xbf16>
    tpu.vector_store %arg13[%c0_233, %c64_234], %174 {strides = array<i32>} : memref<16x576xbf16, #tpu.memory_space<vmem>>, vector<16x64xbf16>,
    %c0_235 = arith.constant 0 : index
    %c2_236 = arith.constant 2 : index
    %c0_237 = arith.constant 0 : index
    %176 = vector.load %arg10[%c0_235, %c2_236, %c0_237] : memref<6x6x64xbf16, #tpu.memory_space<vmem>>, vector<4x4x64xbf16>
    %177 = vector.shape_cast %176 : vector<4x4x64xbf16> to vector<16x64xbf16>
    %c0_238 = arith.constant 0 : index
    %c128_239 = arith.constant 128 : index
    %178 = vector.load %arg13[%c0_238, %c128_239] : memref<16x576xbf16, #tpu.memory_space<vmem>>, vector<16x64xbf16>
    tpu.vector_store %arg13[%c0_238, %c128_239], %177 {strides = array<i32>} : memref<16x576xbf16, #tpu.memory_space<vmem>>, vector<16x64xbf16>,
    %c1_240 = arith.constant 1 : index
    %c0_241 = arith.constant 0 : index
    %c0_242 = arith.constant 0 : index
    %179 = vector.load %arg10[%c1_240, %c0_241, %c0_242] : memref<6x6x64xbf16, #tpu.memory_space<vmem>>, vector<4x4x64xbf16>
    %180 = vector.shape_cast %179 : vector<4x4x64xbf16> to vector<16x64xbf16>
    %c0_243 = arith.constant 0 : index
    %c192_244 = arith.constant 192 : index
    %181 = vector.load %arg13[%c0_243, %c192_244] : memref<16x576xbf16, #tpu.memory_space<vmem>>, vector<16x64xbf16>
    tpu.vector_store %arg13[%c0_243, %c192_244], %180 {strides = array<i32>} : memref<16x576xbf16, #tpu.memory_space<vmem>>, vector<16x64xbf16>,
    %c1_245 = arith.constant 1 : index
    %c1_246 = arith.constant 1 : index
    %c0_247 = arith.constant 0 : index
    %182 = vector.load %arg10[%c1_245, %c1_246, %c0_247] : memref<6x6x64xbf16, #tpu.memory_space<vmem>>, vector<4x4x64xbf16>
    %183 = vector.shape_cast %182 : vector<4x4x64xbf16> to vector<16x64xbf16>
    %c0_248 = arith.constant 0 : index
    %c256_249 = arith.constant 256 : index
    %184 = vector.load %arg13[%c0_248, %c256_249] : memref<16x576xbf16, #tpu.memory_space<vmem>>, vector<16x64xbf16>
    tpu.vector_store %arg13[%c0_248, %c256_249], %183 {strides = array<i32>} : memref<16x576xbf16, #tpu.memory_space<vmem>>, vector<16x64xbf16>,
    %c1_250 = arith.constant 1 : index
    %c2_251 = arith.constant 2 : index
    %c0_252 = arith.constant 0 : index
    %185 = vector.load %arg10[%c1_250, %c2_251, %c0_252] : memref<6x6x64xbf16, #tpu.memory_space<vmem>>, vector<4x4x64xbf16>
    %186 = vector.shape_cast %185 : vector<4x4x64xbf16> to vector<16x64xbf16>
    %c0_253 = arith.constant 0 : index
    %c320_254 = arith.constant 320 : index
    %187 = vector.load %arg13[%c0_253, %c320_254] : memref<16x576xbf16, #tpu.memory_space<vmem>>, vector<16x64xbf16>
    tpu.vector_store %arg13[%c0_253, %c320_254], %186 {strides = array<i32>} : memref<16x576xbf16, #tpu.memory_space<vmem>>, vector<16x64xbf16>,
    %c2_255 = arith.constant 2 : index
    %c0_256 = arith.constant 0 : index
    %c0_257 = arith.constant 0 : index
    %188 = vector.load %arg10[%c2_255, %c0_256, %c0_257] : memref<6x6x64xbf16, #tpu.memory_space<vmem>>, vector<4x4x64xbf16>
    %189 = vector.shape_cast %188 : vector<4x4x64xbf16> to vector<16x64xbf16>
    %c0_258 = arith.constant 0 : index
    %c384_259 = arith.constant 384 : index
    %190 = vector.load %arg13[%c0_258, %c384_259] : memref<16x576xbf16, #tpu.memory_space<vmem>>, vector<16x64xbf16>
    tpu.vector_store %arg13[%c0_258, %c384_259], %189 {strides = array<i32>} : memref<16x576xbf16, #tpu.memory_space<vmem>>, vector<16x64xbf16>,
    %c2_260 = arith.constant 2 : index
    %c1_261 = arith.constant 1 : index
    %c0_262 = arith.constant 0 : index
    %191 = vector.load %arg10[%c2_260, %c1_261, %c0_262] : memref<6x6x64xbf16, #tpu.memory_space<vmem>>, vector<4x4x64xbf16>
    %192 = vector.shape_cast %191 : vector<4x4x64xbf16> to vector<16x64xbf16>
    %c0_263 = arith.constant 0 : index
    %c448_264 = arith.constant 448 : index
    %193 = vector.load %arg13[%c0_263, %c448_264] : memref<16x576xbf16, #tpu.memory_space<vmem>>, vector<16x64xbf16>
    tpu.vector_store %arg13[%c0_263, %c448_264], %192 {strides = array<i32>} : memref<16x576xbf16, #tpu.memory_space<vmem>>, vector<16x64xbf16>,
    %c2_265 = arith.constant 2 : index
    %c2_266 = arith.constant 2 : index
    %c0_267 = arith.constant 0 : index
    %194 = vector.load %arg10[%c2_265, %c2_266, %c0_267] : memref<6x6x64xbf16, #tpu.memory_space<vmem>>, vector<4x4x64xbf16>
    %195 = vector.shape_cast %194 : vector<4x4x64xbf16> to vector<16x64xbf16>
    %c0_268 = arith.constant 0 : index
    %c512 = arith.constant 512 : index
    %196 = vector.load %arg13[%c0_268, %c512] : memref<16x576xbf16, #tpu.memory_space<vmem>>, vector<16x64xbf16>
    tpu.vector_store %arg13[%c0_268, %c512], %195 {strides = array<i32>} : memref<16x576xbf16, #tpu.memory_space<vmem>>, vector<16x64xbf16>,
    %c0_269 = arith.constant 0 : index
    %c0_270 = arith.constant 0 : index
    %197 = vector.load %arg13[%c0_269, %c0_270] : memref<16x576xbf16, #tpu.memory_space<vmem>>, vector<16x576xbf16>
    %c0_271 = arith.constant 0 : index
    %c0_272 = arith.constant 0 : index
    %198 = vector.load %arg6[%c0_271, %c0_272] : memref<576x4xbf16, #tpu.memory_space<vmem>>, vector<576x4xbf16>
    %cst_273 = arith.constant dense<0.000000e+00> : vector<16x4xf32>
    %199 = tpu.matmul %197, %198, %cst_273 {dimension_numbers = #tpu.dot_dimension_numbers<[1], [0], [0], [1], [0, 0, 1, 1], [], []>} : vector<16x576xbf16>, vector<576x4xbf16>, vector<16x4xf32> -> vector<16x4xf32>
    %c0_274 = arith.constant 0 : index
    %c0_275 = arith.constant 0 : index
    %200 = vector.load %arg7[%c0_274, %c0_275] : memref<1x4xf32, #tpu.memory_space<vmem>>, vector<1x4xf32>
    %201 = vector.broadcast %200 : vector<1x4xf32> to vector<16x4xf32>
    %202 = arith.addf %199, %201 : vector<16x4xf32>
    %c0_276 = arith.constant 0 : index
    %c0_277 = arith.constant 0 : index
    %c0_278 = arith.constant 0 : index
    %203 = vector.load %arg8[%c0_276, %c0_277, %c0_278] : memref<1x16x4xf32, #tpu.memory_space<vmem>>, vector<1x16x4xf32>
    %204 = vector.shape_cast %203 : vector<1x16x4xf32> to vector<16x4xf32>
    %205 = vector.shape_cast %202 : vector<16x4xf32> to vector<1x16x4xf32>
    tpu.vector_store %arg8[%c0_276, %c0_277, %c0_278], %205 {strides = array<i32>} : memref<1x16x4xf32, #tpu.memory_space<vmem>>, vector<1x16x4xf32>,
    return
  }
  func.func @transform_0(%arg0: i32) -> (i32, i32, i32, i32, i32) {
    %c0_i32 = arith.constant 0 : i32
    %c0_i32_0 = arith.constant 0 : i32
    %c0_i32_1 = arith.constant 0 : i32
    %c0_i32_2 = arith.constant 0 : i32
    %c0_i32_3 = arith.constant 0 : i32
    return %arg0, %c0_i32, %c0_i32_0, %c0_i32_1, %c0_i32_2 : i32, i32, i32, i32, i32
  }
  func.func @transform_1(%arg0: i32) -> (i32, i32) {
    %c0_i32 = arith.constant 0 : i32
    %c0_i32_0 = arith.constant 0 : i32
    %c0_i32_1 = arith.constant 0 : i32
    return %c0_i32, %c0_i32_0 : i32, i32
  }
  func.func @transform_2(%arg0: i32) -> (i32, i32) {
    %c0_i32 = arith.constant 0 : i32
    %c0_i32_0 = arith.constant 0 : i32
    %c0_i32_1 = arith.constant 0 : i32
    return %c0_i32, %c0_i32_0 : i32, i32
  }
  func.func @transform_3(%arg0: i32) -> (i32, i32) {
    %c0_i32 = arith.constant 0 : i32
    %c0_i32_0 = arith.constant 0 : i32
    %c0_i32_1 = arith.constant 0 : i32
    return %c0_i32, %c0_i32_0 : i32, i32
  }
  func.func @transform_4(%arg0: i32) -> (i32, i32) {
    %c0_i32 = arith.constant 0 : i32
    %c0_i32_0 = arith.constant 0 : i32
    %c0_i32_1 = arith.constant 0 : i32
    return %c0_i32, %c0_i32_0 : i32, i32
  }
  func.func @transform_5(%arg0: i32) -> (i32, i32) {
    %c0_i32 = arith.constant 0 : i32
    %c0_i32_0 = arith.constant 0 : i32
    %c0_i32_1 = arith.constant 0 : i32
    return %c0_i32, %c0_i32_0 : i32, i32
  }
  func.func @transform_6(%arg0: i32) -> (i32, i32) {
    %c0_i32 = arith.constant 0 : i32
    %c0_i32_0 = arith.constant 0 : i32
    %c0_i32_1 = arith.constant 0 : i32
    return %c0_i32, %c0_i32_0 : i32, i32
  }
  func.func @transform_7(%arg0: i32) -> (i32, i32, i32) {
    %c0_i32 = arith.constant 0 : i32
    %c0_i32_0 = arith.constant 0 : i32
    %c0_i32_1 = arith.constant 0 : i32
    return %arg0, %c0_i32, %c0_i32_0 : i32, i32, i32
  }
}

</mosaic_0001>

<llo_original>
// kernel: encoder_forward.1
$region0: #{encoder_forward.1}
  #allocation0 [shape = 'u32[]', space=smem, size = 0x4, offset = 0x4, fixed_abs, tag = 'smem constant byte address 0x4 - core index']
  #allocation1 [shape = 'u32[144,128]{1,0:T(1,128)}', space=vmem, size = 0x12000, scoped, tag = 'internal scratch']
  #allocation2 [shape = 'bf16[6,2,6,2,32]{4,3,2,1,0:T(2,128)(2,1)}', space=vmem, size = 0x9000, scoped, tag = 'scratch operand']
  #allocation3 [shape = 'bf16[6,6,64]{2,1,0:T(8,128)(2,1)}', space=vmem, size = 0x3000, scoped, tag = 'scratch operand']
  #allocation4 [shape = 'bf16[64,64]{1,0:T(8,128)(2,1)}', space=vmem, size = 0x4000, scoped, tag = 'scratch operand']
  #allocation5 [shape = 'bf16[16,512]{1,0:T(8,128)(2,1)}', space=vmem, size = 0x4000, scoped, tag = 'scratch operand']
  #allocation6 [shape = 'bf16[16,576]{1,0:T(8,128)(2,1)}', space=vmem, size = 0x5000, scoped, tag = 'scratch operand']
  %s0 = inlined_call_operand.vmem [shape: f32[2,10,2,10,8], index: 0, kind: input, shape index: {}]
  %s1 = inlined_call_operand.vmem [shape: bf16[64,32], index: 1, kind: input, shape index: {}]
  %s2 = inlined_call_operand.vmem [shape: f32[1,32], index: 2, kind: input, shape index: {}]
  %s3 = inlined_call_operand.vmem [shape: bf16[512,64], index: 3, kind: input, shape index: {}]
  %s4 = inlined_call_operand.vmem [shape: f32[1,64], index: 4, kind: input, shape index: {}]
  %s5 = inlined_call_operand.vmem [shape: bf16[576,4], index: 5, kind: input, shape index: {}]
  %s6 = inlined_call_operand.vmem [shape: f32[1,4], index: 6, kind: input, shape index: {}]
  %s7 = inlined_call_operand.vmem [shape: f32[2,16,4], index: 7, kind: output, shape index: {}]
  %s8 = sld [smem:[#allocation0]]
  $region61: #{encoder_forward.1} parent=0
    _
  %s10 = ssub.s32 1, %s8
  %s11 = scalar_select 0, %s10, %s8
  loop: start=0, step=1, limit=4
  $region2: #{encoder_forward.1} parent=0 // loop_pre_header
    _
  $region3: #{encoder_forward.1} parent=0 // loop_header
    %s13 = sphi 0, %s17
    %p14 = scmp.ge.s32.totalorder %s13, 4
    %s23 = sphi 0, %s25
    %s26 = sphi 0, %s23
    %s27 = sphi 0, %s26
    %s43 = sphi 0, %s27
    %s47 = sphi 0, %s47
    %s49 = sphi 0, %s47
    %s50 = sphi 0, %s49
    %s64 = sphi 0, %s50
    %s68 = sphi 0, %s68
    %s70 = sphi 0, %s68
    %s71 = sphi 0, %s70
    %s85 = sphi 0, %s71
    %s89 = sphi 0, %s89
    %s91 = sphi 0, %s89
    %s92 = sphi 0, %s91
    %s106 = sphi 0, %s92
    %s110 = sphi 0, %s110
    %s112 = sphi 0, %s110
    %s113 = sphi 0, %s112
    %s127 = sphi 0, %s113
    %s131 = sphi 0, %s131
    %s133 = sphi 0, %s131
    %s134 = sphi 0, %s133
    %s148 = sphi 0, %s134
    %s152 = sphi 0, %s152
    %s154 = sphi 0, %s152
    %s155 = sphi 0, %s154
    %s169 = sphi 0, %s155
    %s175 = sphi 0, %s177
    %s178 = sphi 0, %s175
    %s179 = sphi 0, %s178
    %s195 = sphi 0, %s179
  $region4: #{encoder_forward.1} parent=0 // loop_header_branch
    %16 = sbr.rel (%p14) target = $region8
  $region5: #{encoder_forward.1} parent=0 // loop_body
    %s18 = ssub.s32 %s13, 1
    %s19 = ssub.s32 %s13, 2
    %s20 = sadd.s32 %s13, 1
    %s21 = ssub.s32 %s13, %s20
    %p22 = scmp.eq.s32.totalorder %s21, 0
    %s24 = sadd.s32 %s23, 1
    %s25 = scalar_select %p22, %s23, %s24
    %p28 = pneg %p22
    %p29 = scmp.eq.s32.totalorder %s13, 1
    %p30 = por %p28, %p29
    %p31 = scmp.ne.s32.totalorder %s23, %s26
    %p32 = scmp.eq.s32.totalorder %s13, 0
    %p33 = por %p31, %p32
    %p34 = scmp.ne.s32.totalorder %s23, %s26
    %p35 = scmp.eq.s32.totalorder %s18, 1
    %p36 = por %p34, %p35
    %p37 = scmp.ne.s32.totalorder %s26, %s27
    %p38 = scmp.eq.s32.totalorder %s18, 0
    %p39 = por %p37, %p38
    %p40 = scmp.ne.s32.totalorder %s26, %s27
    %p41 = scmp.eq.s32.totalorder %s19, 1
    %p42 = por %p40, %p41
    %p44 = scmp.ne.s32.totalorder %s27, %s43
    %p45 = scmp.eq.s32.totalorder %s19, 0
    %p46 = por %p44, %p45
    %s48 = sadd.s32 %s47, 1
    %p51 = scmp.eq.s32.totalorder %s13, 1
    %p52 = scmp.ne.s32.totalorder %s47, %s49
    %p53 = scmp.eq.s32.totalorder %s13, 0
    %p54 = por %p52, %p53
    %p55 = scmp.ne.s32.totalorder %s47, %s49
    %p56 = scmp.eq.s32.totalorder %s18, 1
    %p57 = por %p55, %p56
    %p58 = scmp.ne.s32.totalorder %s49, %s50
    %p59 = scmp.eq.s32.totalorder %s18, 0
    %p60 = por %p58, %p59
    %p61 = scmp.ne.s32.totalorder %s49, %s50
    %p62 = scmp.eq.s32.totalorder %s19, 1
    %p63 = por %p61, %p62
    %p65 = scmp.ne.s32.totalorder %s50, %s64
    %p66 = scmp.eq.s32.totalorder %s19, 0
    %p67 = por %p65, %p66
    %s69 = sadd.s32 %s68, 1
    %p72 = scmp.eq.s32.totalorder %s13, 1
    %p73 = scmp.ne.s32.totalorder %s68, %s70
    %p74 = scmp.eq.s32.totalorder %s13, 0
    %p75 = por %p73, %p74
    %p76 = scmp.ne.s32.totalorder %s68, %s70
    %p77 = scmp.eq.s32.totalorder %s18, 1
    %p78 = por %p76, %p77
    %p79 = scmp.ne.s32.totalorder %s70, %s71
    %p80 = scmp.eq.s32.totalorder %s18, 0
    %p81 = por %p79, %p80
    %p82 = scmp.ne.s32.totalorder %s70, %s71
    %p83 = scmp.eq.s32.totalorder %s19, 1
    %p84 = por %p82, %p83
    %p86 = scmp.ne.s32.totalorder %s71, %s85
    %p87 = scmp.eq.s32.totalorder %s19, 0
    %p88 = por %p86, %p87
    %s90 = sadd.s32 %s89, 1
    %p93 = scmp.eq.s32.totalorder %s13, 1
    %p94 = scmp.ne.s32.totalorder %s89, %s91
    %p95 = scmp.eq.s32.totalorder %s13, 0
    %p96 = por %p94, %p95
    %p97 = scmp.ne.s32.totalorder %s89, %s91
    %p98 = scmp.eq.s32.totalorder %s18, 1
    %p99 = por %p97, %p98
    %p100 = scmp.ne.s32.totalorder %s91, %s92
    %p101 = scmp.eq.s32.totalorder %s18, 0
    %p102 = por %p100, %p101
    %p103 = scmp.ne.s32.totalorder %s91, %s92
    %p104 = scmp.eq.s32.totalorder %s19, 1
    %p105 = por %p103, %p104
    %p107 = scmp.ne.s32.totalorder %s92, %s106
    %p108 = scmp.eq.s32.totalorder %s19, 0
    %p109 = por %p107, %p108
    %s111 = sadd.s32 %s110, 1
    %p114 = scmp.eq.s32.totalorder %s13, 1
    %p115 = scmp.ne.s32.totalorder %s110, %s112
    %p116 = scmp.eq.s32.totalorder %s13, 0
    %p117 = por %p115, %p116
    %p118 = scmp.ne.s32.totalorder %s110, %s112
    %p119 = scmp.eq.s32.totalorder %s18, 1
    %p120 = por %p118, %p119
    %p121 = scmp.ne.s32.totalorder %s112, %s113
    %p122 = scmp.eq.s32.totalorder %s18, 0
    %p123 = por %p121, %p122
    %p124 = scmp.ne.s32.totalorder %s112, %s113
    %p125 = scmp.eq.s32.totalorder %s19, 1
    %p126 = por %p124, %p125
    %p128 = scmp.ne.s32.totalorder %s113, %s127
    %p129 = scmp.eq.s32.totalorder %s19, 0
    %p130 = por %p128, %p129
    %s132 = sadd.s32 %s131, 1
    %p135 = scmp.eq.s32.totalorder %s13, 1
    %p136 = scmp.ne.s32.totalorder %s131, %s133
    %p137 = scmp.eq.s32.totalorder %s13, 0
    %p138 = por %p136, %p137
    %p139 = scmp.ne.s32.totalorder %s131, %s133
    %p140 = scmp.eq.s32.totalorder %s18, 1
    %p141 = por %p139, %p140
    %p142 = scmp.ne.s32.totalorder %s133, %s134
    %p143 = scmp.eq.s32.totalorder %s18, 0
    %p144 = por %p142, %p143
    %p145 = scmp.ne.s32.totalorder %s133, %s134
    %p146 = scmp.eq.s32.totalorder %s19, 1
    %p147 = por %p145, %p146
    %p149 = scmp.ne.s32.totalorder %s134, %s148
    %p150 = scmp.eq.s32.totalorder %s19, 0
    %p151 = por %p149, %p150
    %s153 = sadd.s32 %s152, 1
    %p156 = scmp.eq.s32.totalorder %s13, 1
    %p157 = scmp.ne.s32.totalorder %s152, %s154
    %p158 = scmp.eq.s32.totalorder %s13, 0
    %p159 = por %p157, %p158
    %p160 = scmp.ne.s32.totalorder %s152, %s154
    %p161 = scmp.eq.s32.totalorder %s18, 1
    %p162 = por %p160, %p161
    %p163 = scmp.ne.s32.totalorder %s154, %s155
    %p164 = scmp.eq.s32.totalorder %s18, 0
    %p165 = por %p163, %p164
    %p166 = scmp.ne.s32.totalorder %s154, %s155
    %p167 = scmp.eq.s32.totalorder %s19, 1
    %p168 = por %p166, %p167
    %p170 = scmp.ne.s32.totalorder %s155, %s169
    %p171 = scmp.eq.s32.totalorder %s19, 0
    %p172 = por %p170, %p171
    %s173 = ssub.s32 %s13, %s20
    %p174 = scmp.eq.s32.totalorder %s173, 0
    %s176 = sadd.s32 %s175, 1
    %s177 = scalar_select %p174, %s175, %s176
    %p180 = pneg %p174
    %p181 = scmp.eq.s32.totalorder %s13, 1
    %p182 = por %p180, %p181
    %p183 = scmp.ne.s32.totalorder %s175, %s178
    %p184 = scmp.eq.s32.totalorder %s13, 0
    %p185 = por %p183, %p184
    %p186 = scmp.ne.s32.totalorder %s175, %s178
    %p187 = scmp.eq.s32.totalorder %s18, 1
    %p188 = por %p186, %p187
    %p189 = scmp.ne.s32.totalorder %s178, %s179
    %p190 = scmp.eq.s32.totalorder %s18, 0
    %p191 = por %p189, %p190
    %p192 = scmp.ne.s32.totalorder %s178, %s179
    %p193 = scmp.eq.s32.totalorder %s19, 1
    %p194 = por %p192, %p193
    %p196 = scmp.ne.s32.totalorder %s179, %s195
    %p197 = scmp.eq.s32.totalorder %s19, 0
    %p198 = por %p196, %p197
    %p199 = scmp.le.s32.totalorder 1, %s13
    %p200 = scmp.lt.s32.totalorder %s13, 3
    %p201 = pnand %p199, %p200
    %p202 = pneg %p201
    // Predicated region
    $region9: #{encoder_forward.1} parent=5 // pred_check
      _
    $region10: #{encoder_forward.1} parent=5 // pred_check_branch
      %204 = sbr.rel (%p201) target = $region12
    $region11: #{encoder_forward.1} parent=5 // pred_region
      %s205 = ssub.s32 %s13, 1
      // Predicated region
      $region13: #{encoder_forward.1} parent=11 // pred_check
        %p206 = pneg %p60
      $region14: #{encoder_forward.1} parent=11 // pred_check_branch
        %208 = sbr.rel (%p206) target = $region16
      $region15: #{encoder_forward.1} parent=11 // pred_region
        _
      $region16: #{encoder_forward.1} parent=11 // pred_fallthru
        _
      // Predicated region
      $region17: #{encoder_forward.1} parent=11 // pred_check
        %p209 = pneg %p81
      $region18: #{encoder_forward.1} parent=11 // pred_check_branch
        %211 = sbr.rel (%p209) target = $region20
      $region19: #{encoder_forward.1} parent=11 // pred_region
        _
      $region20: #{encoder_forward.1} parent=11 // pred_fallthru
        _
      // Predicated region
      $region21: #{encoder_forward.1} parent=11 // pred_check
        %p212 = pneg %p102
      $region22: #{encoder_forward.1} parent=11 // pred_check_branch
        %214 = sbr.rel (%p212) target = $region24
      $region23: #{encoder_forward.1} parent=11 // pred_region
        _
      $region24: #{encoder_forward.1} parent=11 // pred_fallthru
        _
      // Predicated region
      $region25: #{encoder_forward.1} parent=11 // pred_check
        %p215 = pneg %p123
      $region26: #{encoder_forward.1} parent=11 // pred_check_branch
        %217 = sbr.rel (%p215) target = $region28
      $region27: #{encoder_forward.1} parent=11 // pred_region
        _
      $region28: #{encoder_forward.1} parent=11 // pred_fallthru
        _
      // Predicated region
      $region29: #{encoder_forward.1} parent=11 // pred_check
        %p218 = pneg %p144
      $region30: #{encoder_forward.1} parent=11 // pred_check_branch
        %220 = sbr.rel (%p218) target = $region32
      $region31: #{encoder_forward.1} parent=11 // pred_region
        _
      $region32: #{encoder_forward.1} parent=11 // pred_fallthru
        _
      // Predicated region
      $region33: #{encoder_forward.1} parent=11 // pred_check
        %p221 = pneg %p165
      $region34: #{encoder_forward.1} parent=11 // pred_check_branch
        %223 = sbr.rel (%p221) target = $region36
      $region35: #{encoder_forward.1} parent=11 // pred_region
        _
      $region36: #{encoder_forward.1} parent=11 // pred_fallthru
        _
    $region12: #{encoder_forward.1} parent=5 // pred_fallthru
      _
    %p224 = scmp.lt.s32.totalorder %s13, 2
    // Predicated region
    $region37: #{encoder_forward.1} parent=5 // pred_check
      %p225 = pneg %p224
    $region38: #{encoder_forward.1} parent=5 // pred_check_branch
      %227 = sbr.rel (%p225) target = $region40
    $region39: #{encoder_forward.1} parent=5 // pred_region
      // Predicated region
      $region41: #{encoder_forward.1} parent=39 // pred_check
        %p228 = pneg %p33
      $region42: #{encoder_forward.1} parent=39 // pred_check_branch
        %230 = sbr.rel (%p228) target = $region44
      $region43: #{encoder_forward.1} parent=39 // pred_region
        %p231 = scmp.lt.s32.totalorder %s13, 1
        %s232 = scalar_select %p231, %s13, 1
        %s233 = smul.addr %s232, 40
        %s234 = smul.addr %s233, 8
        %s235 = scalar_lea.vmem %s0, %s234
      $region44: #{encoder_forward.1} parent=39 // pred_fallthru
        _
    $region40: #{encoder_forward.1} parent=5 // pred_fallthru
      _
    %p236 = scmp.le.s32.totalorder 1, %s13
    %p237 = scmp.lt.s32.totalorder %s13, 3
    %p238 = pnand %p236, %p237
    %p239 = pneg %p238
    // Predicated region
    $region45: #{encoder_forward.1} parent=5 // pred_check
      _
    $region46: #{encoder_forward.1} parent=5 // pred_check_branch
      %241 = sbr.rel (%p238) target = $region48
    $region47: #{encoder_forward.1} parent=5 // pred_region
      %s242 = ssub.s32 %s13, 1
      %p243 = scmp.lt.s32.totalorder %s18, 1
      %s244 = scalar_select %p243, %s18, 1
      %s245 = smul.addr %s244, 40
      %s246 = smul.addr %s245, 8
      %s247 = scalar_lea.vmem %s0, %s246
      %p248 = pneg %p39
      %p249 = pneg %p36
      %p250 = pneg %p60
      %p251 = pneg %p57
      %p252 = pneg %p81
      %p253 = pneg %p78
      %p254 = pneg %p102
      %p255 = pneg %p99
      %p256 = pneg %p123
      %p257 = pneg %p120
      %p258 = pneg %p144
      %p259 = pneg %p141
      %p260 = pneg %p165
      %p261 = pneg %p162
      %p262 = pneg %p191
      %p263 = pneg %p188
      %p264 = scmp.lt.s32.totalorder %s18, 1
      %s265 = scalar_select %p264, %s18, 1
      %s266 = smul.addr %s265, 2
      %s267 = smul.addr %s266, 8
      %s268 = scalar_lea.vmem %s7, %s267
      %p269 = scmp.lt.s32.totalorder %s18, 1
      %s270 = scalar_select %p269, %s18, 1
      %s271 = smul.addr %s270, 40
      %s272 = smul.addr %s271, 8
      %s273 = scalar_lea.vmem %s0, %s272
      %p274 = scmp.lt.s32.totalorder %s18, 1
      %s275 = scalar_select %p274, %s18, 1
      %s276 = smul.addr %s275, 2
      %s277 = smul.addr %s276, 8
      %s278 = scalar_lea.vmem %s7, %s277
      %vm280 = vcmask 253952
      %281 = vst.msk [vmem:[#allocation2] sm:$0x1] %vm280, 0
      %282 = vst.msk [vmem:[#allocation2 + $0x1] sm:$0x1] %vm280, 0
      %283 = vst.msk [vmem:[#allocation2 + $0x2] sm:$0x1] %vm280, 0
      %284 = vst.msk [vmem:[#allocation2 + $0x3] sm:$0x1] %vm280, 0
      %285 = vst.msk [vmem:[#allocation2 + $0x4] sm:$0x1] %vm280, 0
      %286 = vst.msk [vmem:[#allocation2 + $0x5] sm:$0x1] %vm280, 0
      %287 = vst.msk [vmem:[#allocation2 + $0x6] sm:$0x1] %vm280, 0
      %288 = vst.msk [vmem:[#allocation2 + $0x7] sm:$0x1] %vm280, 0
      %289 = vst.msk [vmem:[#allocation2 + $0x8] sm:$0x1] %vm280, 0
      %290 = vst.msk [vmem:[#allocation2 + $0x9] sm:$0x1] %vm280, 0
      %291 = vst.msk [vmem:[#allocation2 + $0xa] sm:$0x1] %vm280, 0
      %292 = vst.msk [vmem:[#allocation2 + $0xb] sm:$0x1] %vm280, 0
      %293 = vst.msk [vmem:[#allocation2 + $0xc] sm:$0x1] %vm280, 0
      %294 = vst.msk [vmem:[#allocation2 + $0xd] sm:$0x1] %vm280, 0
      %295 = vst.msk [vmem:[#allocation2 + $0xe] sm:$0x1] %vm280, 0
      %296 = vst.msk [vmem:[#allocation2 + $0xf] sm:$0x1] %vm280, 0
      %297 = vst.msk [vmem:[#allocation2 + $0x10] sm:$0x1] %vm280, 0
      %298 = vst.msk [vmem:[#allocation2 + $0x11] sm:$0x1] %vm280, 0
      %299 = vst.msk [vmem:[#allocation2 + $0x12] sm:$0x1] %vm280, 0
      %300 = vst.msk [vmem:[#allocation2 + $0x13] sm:$0x1] %vm280, 0
      %301 = vst.msk [vmem:[#allocation2 + $0x14] sm:$0x1] %vm280, 0
      %302 = vst.msk [vmem:[#allocation2 + $0x15] sm:$0x1] %vm280, 0
      %303 = vst.msk [vmem:[#allocation2 + $0x16] sm:$0x1] %vm280, 0
      %304 = vst.msk [vmem:[#allocation2 + $0x17] sm:$0x1] %vm280, 0
      %305 = vst.msk [vmem:[#allocation2 + $0x18] sm:$0x1] %vm280, 0
      %306 = vst.msk [vmem:[#allocation2 + $0x19] sm:$0x1] %vm280, 0
      %307 = vst.msk [vmem:[#allocation2 + $0x1a] sm:$0x1] %vm280, 0
      %308 = vst.msk [vmem:[#allocation2 + $0x1b] sm:$0x1] %vm280, 0
      %309 = vst.msk [vmem:[#allocation2 + $0x1c] sm:$0x1] %vm280, 0
      %310 = vst.msk [vmem:[#allocation2 + $0x1d] sm:$0x1] %vm280, 0
      %311 = vst.msk [vmem:[#allocation2 + $0x1e] sm:$0x1] %vm280, 0
      %312 = vst.msk [vmem:[#allocation2 + $0x1f] sm:$0x1] %vm280, 0
      %313 = vst.msk [vmem:[#allocation2 + $0x20] sm:$0x1] %vm280, 0
      %314 = vst.msk [vmem:[#allocation2 + $0x21] sm:$0x1] %vm280, 0
      %315 = vst.msk [vmem:[#allocation2 + $0x22] sm:$0x1] %vm280, 0
      %316 = vst.msk [vmem:[#allocation2 + $0x23] sm:$0x1] %vm280, 0
      %317 = vst.msk [vmem:[#allocation2 + $0x24] sm:$0x1] %vm280, 0
      %318 = vst.msk [vmem:[#allocation2 + $0x25] sm:$0x1] %vm280, 0
      %319 = vst.msk [vmem:[#allocation2 + $0x26] sm:$0x1] %vm280, 0
      %320 = vst.msk [vmem:[#allocation2 + $0x27] sm:$0x1] %vm280, 0
      %321 = vst.msk [vmem:[#allocation2 + $0x28] sm:$0x1] %vm280, 0
      %322 = vst.msk [vmem:[#allocation2 + $0x29] sm:$0x1] %vm280, 0
      %323 = vst.msk [vmem:[#allocation2 + $0x2a] sm:$0x1] %vm280, 0
      %324 = vst.msk [vmem:[#allocation2 + $0x2b] sm:$0x1] %vm280, 0
      %325 = vst.msk [vmem:[#allocation2 + $0x2c] sm:$0x1] %vm280, 0
      %326 = vst.msk [vmem:[#allocation2 + $0x2d] sm:$0x1] %vm280, 0
      %327 = vst.msk [vmem:[#allocation2 + $0x2e] sm:$0x1] %vm280, 0
      %328 = vst.msk [vmem:[#allocation2 + $0x2f] sm:$0x1] %vm280, 0
      %329 = vst.msk [vmem:[#allocation2 + $0x30] sm:$0x1] %vm280, 0
      %330 = vst.msk [vmem:[#allocation2 + $0x31] sm:$0x1] %vm280, 0
      %331 = vst.msk [vmem:[#allocation2 + $0x32] sm:$0x1] %vm280, 0
      %332 = vst.msk [vmem:[#allocation2 + $0x33] sm:$0x1] %vm280, 0
      %333 = vst.msk [vmem:[#allocation2 + $0x34] sm:$0x1] %vm280, 0
      %334 = vst.msk [vmem:[#allocation2 + $0x35] sm:$0x1] %vm280, 0
      %335 = vst.msk [vmem:[#allocation2 + $0x36] sm:$0x1] %vm280, 0
      %336 = vst.msk [vmem:[#allocation2 + $0x37] sm:$0x1] %vm280, 0
      %337 = vst.msk [vmem:[#allocation2 + $0x38] sm:$0x1] %vm280, 0
      %338 = vst.msk [vmem:[#allocation2 + $0x39] sm:$0x1] %vm280, 0
      %339 = vst.msk [vmem:[#allocation2 + $0x3a] sm:$0x1] %vm280, 0
      %340 = vst.msk [vmem:[#allocation2 + $0x3b] sm:$0x1] %vm280, 0
      %341 = vst.msk [vmem:[#allocation2 + $0x3c] sm:$0x1] %vm280, 0
      %342 = vst.msk [vmem:[#allocation2 + $0x3d] sm:$0x1] %vm280, 0
      %343 = vst.msk [vmem:[#allocation2 + $0x3e] sm:$0x1] %vm280, 0
      %344 = vst.msk [vmem:[#allocation2 + $0x3f] sm:$0x1] %vm280, 0
      %345 = vst.msk [vmem:[#allocation2 + $0x40] sm:$0x1] %vm280, 0
      %346 = vst.msk [vmem:[#allocation2 + $0x41] sm:$0x1] %vm280, 0
      %347 = vst.msk [vmem:[#allocation2 + $0x42] sm:$0x1] %vm280, 0
      %348 = vst.msk [vmem:[#allocation2 + $0x43] sm:$0x1] %vm280, 0
      %349 = vst.msk [vmem:[#allocation2 + $0x44] sm:$0x1] %vm280, 0
      %350 = vst.msk [vmem:[#allocation2 + $0x45] sm:$0x1] %vm280, 0
      %351 = vst.msk [vmem:[#allocation2 + $0x46] sm:$0x1] %vm280, 0
      %352 = vst.msk [vmem:[#allocation2 + $0x47] sm:$0x1] %vm280, 0
      %vm353 = vcmask 518144
      %354 = vst.msk [vmem:[#allocation3] sm:$0x7] %vm353, 0
      %355 = vst.msk [vmem:[#allocation3 + $0x4] sm:$0x7] %vm353, 0
      %356 = vst.msk [vmem:[#allocation3 + $0x8] sm:$0x7] %vm353, 0
      %357 = vst.msk [vmem:[#allocation3 + $0xc] sm:$0x7] %vm353, 0
      %358 = vst.msk [vmem:[#allocation3 + $0x10] sm:$0x7] %vm353, 0
      %359 = vst.msk [vmem:[#allocation3 + $0x14] sm:$0x7] %vm353, 0
      %s360 = scalar_lea.vmem %s273, 16
      %v361 = vld [vmem:[%s360] sm:$0xff]
      %v362 = vld [vmem:[%s360 + $0x20] sm:$0xff]
      %v363 = vld [vmem:[%s360 + $0x40] sm:$0xff]
      %v364 = vld [vmem:[%s360 + $0x60] sm:$0xff]
      %v365 = vld [vmem:[%s360 + $0x80] sm:$0xff]
      %v366 = vld [vmem:[%s360 + $0xa0] sm:$0xff]
      %v367 = vld [vmem:[%s360 + $0xc0] sm:$0xff]
      %v368 = vld [vmem:[%s360 + $0xe0] sm:$0xff]
      %v369 = vpack.c.bf16 %v362, %v361
      %v370 = vpack.c.bf16 %v364, %v363
      %v371 = vpack.c.bf16 %v366, %v365
      %v372 = vpack.c.bf16 %v368, %v367
      %v377 = vunpack.c.l.b16 %v369
      %v378 = vunpack.c.h.b16 %v369
      %v379 = vunpack.c.l.b16 %v370
      %v380 = vunpack.c.h.b16 %v370
      %v381 = vunpack.c.l.b16 %v371
      %v382 = vunpack.c.h.b16 %v371
      %v383 = vunpack.c.l.b16 %v372
      %v384 = vunpack.c.h.b16 %v372
      %v385 = vpack.c.b16 %v377, %v377
      %v386 = vpack.c.b16 %v378, %v378
      %v387 = vpack.c.b16 %v379, %v379
      %v388 = vpack.c.b16 %v380, %v380
      %v389 = vpack.c.b16 %v381, %v381
      %v390 = vpack.c.b16 %v382, %v382
      %v391 = vpack.c.b16 %v383, %v383
      %v392 = vpack.c.b16 %v384, %v384
      %393 = vrot.lane.b32.xlu0 %v385, 124
      %v394 = vpop.permute.xlu0 %393
      %395 = vrot.lane.b32.xlu0 %v386, 124
      %v396 = vpop.permute.xlu0 %395
      %397 = vrot.lane.b32.xlu0 %v387, 124
      %v398 = vpop.permute.xlu0 %397
      %399 = vrot.lane.b32.xlu0 %v388, 124
      %v400 = vpop.permute.xlu0 %399
      %401 = vrot.lane.b32.xlu0 %v389, 124
      %v402 = vpop.permute.xlu0 %401
      %403 = vrot.lane.b32.xlu0 %v390, 124
      %v404 = vpop.permute.xlu0 %403
      %405 = vrot.lane.b32.xlu0 %v391, 124
      %v406 = vpop.permute.xlu0 %405
      %407 = vrot.lane.b32.xlu0 %v392, 124
      %v408 = vpop.permute.xlu0 %407
      %vm417 = vcmask 27648
      %418 = vst.msk [vmem:[#allocation4] sm:$0xf] %vm417, %v394
      %419 = vst.msk [vmem:[#allocation4 + $0x4] sm:$0xf] %vm417, %v396
      %420 = vst.msk [vmem:[#allocation4 + $0x8] sm:$0xf] %vm417, %v398
      %421 = vst.msk [vmem:[#allocation4 + $0xc] sm:$0xf] %vm417, %v400
      %422 = vst.msk [vmem:[#allocation4 + $0x10] sm:$0xf] %vm417, %v402
      %423 = vst.msk [vmem:[#allocation4 + $0x14] sm:$0xf] %vm417, %v404
      %424 = vst.msk [vmem:[#allocation4 + $0x18] sm:$0xf] %vm417, %v406
      %425 = vst.msk [vmem:[#allocation4 + $0x1c] sm:$0xf] %vm417, %v408
      %v426 = vld [vmem:[%s360 + $0x1] sm:$0xff]
      %v427 = vld [vmem:[%s360 + $0x21] sm:$0xff]
      %v428 = vld [vmem:[%s360 + $0x41] sm:$0xff]
      %v429 = vld [vmem:[%s360 + $0x61] sm:$0xff]
      %v430 = vld [vmem:[%s360 + $0x81] sm:$0xff]
      %v431 = vld [vmem:[%s360 + $0xa1] sm:$0xff]
      %v432 = vld [vmem:[%s360 + $0xc1] sm:$0xff]
      %v433 = vld [vmem:[%s360 + $0xe1] sm:$0xff]
      %v434 = vpack.c.bf16 %v427, %v426
      %v435 = vpack.c.bf16 %v429, %v428
      %v436 = vpack.c.bf16 %v431, %v430
      %v437 = vpack.c.bf16 %v433, %v432
      %v442 = vunpack.c.l.b16 %v434
      %v443 = vunpack.c.h.b16 %v434
      %v444 = vunpack.c.l.b16 %v435
      %v445 = vunpack.c.h.b16 %v435
      %v446 = vunpack.c.l.b16 %v436
      %v447 = vunpack.c.h.b16 %v436
      %v448 = vunpack.c.l.b16 %v437
      %v449 = vunpack.c.h.b16 %v437
      %v450 = vpack.c.b16 %v442, %v442
      %v451 = vpack.c.b16 %v443, %v443
      %v452 = vpack.c.b16 %v444, %v444
      %v453 = vpack.c.b16 %v445, %v445
      %v454 = vpack.c.b16 %v446, %v446
      %v455 = vpack.c.b16 %v447, %v447
      %v456 = vpack.c.b16 %v448, %v448
      %v457 = vpack.c.b16 %v449, %v449
      %458 = vrot.lane.b32.xlu0 %v450, 4
      %v459 = vpop.permute.xlu0 %458
      %460 = vrot.lane.b32.xlu0 %v451, 4
      %v461 = vpop.permute.xlu0 %460
      %462 = vrot.lane.b32.xlu0 %v452, 4
      %v463 = vpop.permute.xlu0 %462
      %464 = vrot.lane.b32.xlu0 %v453, 4
      %v465 = vpop.permute.xlu0 %464
      %466 = vrot.lane.b32.xlu0 %v454, 4
      %v467 = vpop.permute.xlu0 %466
      %468 = vrot.lane.b32.xlu0 %v455, 4
      %v469 = vpop.permute.xlu0 %468
      %470 = vrot.lane.b32.xlu0 %v456, 4
      %v471 = vpop.permute.xlu0 %470
      %472 = vrot.lane.b32.xlu0 %v457, 4
      %v473 = vpop.permute.xlu0 %472
      %vm482 = vcmask 60448
      %483 = vst.msk [vmem:[#allocation4] sm:$0xf] %vm482, %v459
      %484 = vst.msk [vmem:[#allocation4 + $0x4] sm:$0xf] %vm482, %v461
      %485 = vst.msk [vmem:[#allocation4 + $0x8] sm:$0xf] %vm482, %v463
      %486 = vst.msk [vmem:[#allocation4 + $0xc] sm:$0xf] %vm482, %v465
      %487 = vst.msk [vmem:[#allocation4 + $0x10] sm:$0xf] %vm482, %v467
      %488 = vst.msk [vmem:[#allocation4 + $0x14] sm:$0xf] %vm482, %v469
      %489 = vst.msk [vmem:[#allocation4 + $0x18] sm:$0xf] %vm482, %v471
      %490 = vst.msk [vmem:[#allocation4 + $0x1c] sm:$0xf] %vm482, %v473
      %v491 = vld [vmem:[%s360 + $0x1] sm:$0xff]
      %v492 = vld [vmem:[%s360 + $0x21] sm:$0xff]
      %v493 = vld [vmem:[%s360 + $0x41] sm:$0xff]
      %v494 = vld [vmem:[%s360 + $0x61] sm:$0xff]
      %v495 = vld [vmem:[%s360 + $0x81] sm:$0xff]
      %v496 = vld [vmem:[%s360 + $0xa1] sm:$0xff]
      %v497 = vld [vmem:[%s360 + $0xc1] sm:$0xff]
      %v498 = vld [vmem:[%s360 + $0xe1] sm:$0xff]
      %v499 = vpack.c.bf16 %v492, %v491
      %v500 = vpack.c.bf16 %v494, %v493
      %v501 = vpack.c.bf16 %v496, %v495
      %v502 = vpack.c.bf16 %v498, %v497
      %v507 = vunpack.c.l.b16 %v499
      %v508 = vunpack.c.h.b16 %v499
      %v509 = vunpack.c.l.b16 %v500
      %v510 = vunpack.c.h.b16 %v500
      %v511 = vunpack.c.l.b16 %v501
      %v512 = vunpack.c.h.b16 %v501
      %v513 = vunpack.c.l.b16 %v502
      %v514 = vunpack.c.h.b16 %v502
      %v515 = vpack.c.b16 %v507, %v507
      %v516 = vpack.c.b16 %v508, %v508
      %v517 = vpack.c.b16 %v509, %v509
      %v518 = vpack.c.b16 %v510, %v510
      %v519 = vpack.c.b16 %v511, %v511
      %v520 = vpack.c.b16 %v512, %v512
      %v521 = vpack.c.b16 %v513, %v513
      %v522 = vpack.c.b16 %v514, %v514
      %523 = vrot.lane.b32.xlu0 %v515, 4
      %v524 = vpop.permute.xlu0 %523
      %525 = vrot.lane.b32.xlu0 %v516, 4
      %v526 = vpop.permute.xlu0 %525
      %527 = vrot.lane.b32.xlu0 %v517, 4
      %v528 = vpop.permute.xlu0 %527
      %529 = vrot.lane.b32.xlu0 %v518, 4
      %v530 = vpop.permute.xlu0 %529
      %531 = vrot.lane.b32.xlu0 %v519, 4
      %v532 = vpop.permute.xlu0 %531
      %533 = vrot.lane.b32.xlu0 %v520, 4
      %v534 = vpop.permute.xlu0 %533
      %535 = vrot.lane.b32.xlu0 %v521, 4
      %v536 = vpop.permute.xlu0 %535
      %537 = vrot.lane.b32.xlu0 %v522, 4
      %v538 = vpop.permute.xlu0 %537
      %vm547 = vcmask 93248
      %548 = vst.msk [vmem:[#allocation4] sm:$0xf] %vm547, %v524
      %549 = vst.msk [vmem:[#allocation4 + $0x4] sm:$0xf] %vm547, %v526
      %550 = vst.msk [vmem:[#allocation4 + $0x8] sm:$0xf] %vm547, %v528
      %551 = vst.msk [vmem:[#allocation4 + $0xc] sm:$0xf] %vm547, %v530
      %552 = vst.msk [vmem:[#allocation4 + $0x10] sm:$0xf] %vm547, %v532
      %553 = vst.msk [vmem:[#allocation4 + $0x14] sm:$0xf] %vm547, %v534
      %554 = vst.msk [vmem:[#allocation4 + $0x18] sm:$0xf] %vm547, %v536
      %555 = vst.msk [vmem:[#allocation4 + $0x1c] sm:$0xf] %vm547, %v538
      %v556 = vld [vmem:[%s360 + $0x2] sm:$0xff]
      %v557 = vld [vmem:[%s360 + $0x22] sm:$0xff]
      %v558 = vld [vmem:[%s360 + $0x42] sm:$0xff]
      %v559 = vld [vmem:[%s360 + $0x62] sm:$0xff]
      %v560 = vld [vmem:[%s360 + $0x82] sm:$0xff]
      %v561 = vld [vmem:[%s360 + $0xa2] sm:$0xff]
      %v562 = vld [vmem:[%s360 + $0xc2] sm:$0xff]
      %v563 = vld [vmem:[%s360 + $0xe2] sm:$0xff]
      %v564 = vpack.c.bf16 %v557, %v556
      %v565 = vpack.c.bf16 %v559, %v558
      %v566 = vpack.c.bf16 %v561, %v560
      %v567 = vpack.c.bf16 %v563, %v562
      %v572 = vunpack.c.l.b16 %v564
      %v573 = vunpack.c.h.b16 %v564
      %v574 = vunpack.c.l.b16 %v565
      %v575 = vunpack.c.h.b16 %v565
      %v576 = vunpack.c.l.b16 %v566
      %v577 = vunpack.c.h.b16 %v566
      %v578 = vunpack.c.l.b16 %v567
      %v579 = vunpack.c.h.b16 %v567
      %v580 = vpack.c.b16 %v572, %v572
      %v581 = vpack.c.b16 %v573, %v573
      %v582 = vpack.c.b16 %v574, %v574
      %v583 = vpack.c.b16 %v575, %v575
      %v584 = vpack.c.b16 %v576, %v576
      %v585 = vpack.c.b16 %v577, %v577
      %v586 = vpack.c.b16 %v578, %v578
      %v587 = vpack.c.b16 %v579, %v579
      %588 = vrot.lane.b32.xlu0 %v580, 12
      %v589 = vpop.permute.xlu0 %588
      %590 = vrot.lane.b32.xlu0 %v581, 12
      %v591 = vpop.permute.xlu0 %590
      %592 = vrot.lane.b32.xlu0 %v582, 12
      %v593 = vpop.permute.xlu0 %592
      %594 = vrot.lane.b32.xlu0 %v583, 12
      %v595 = vpop.permute.xlu0 %594
      %596 = vrot.lane.b32.xlu0 %v584, 12
      %v597 = vpop.permute.xlu0 %596
      %598 = vrot.lane.b32.xlu0 %v585, 12
      %v599 = vpop.permute.xlu0 %598
      %600 = vrot.lane.b32.xlu0 %v586, 12
      %v601 = vpop.permute.xlu0 %600
      %602 = vrot.lane.b32.xlu0 %v587, 12
      %v603 = vpop.permute.xlu0 %602
      %vm612 = vcmask 126048
      %613 = vst.msk [vmem:[#allocation4] sm:$0xf] %vm612, %v589
      %614 = vst.msk [vmem:[#allocation4 + $0x4] sm:$0xf] %vm612, %v591
      %615 = vst.msk [vmem:[#allocation4 + $0x8] sm:$0xf] %vm612, %v593
      %616 = vst.msk [vmem:[#allocation4 + $0xc] sm:$0xf] %vm612, %v595
      %617 = vst.msk [vmem:[#allocation4 + $0x10] sm:$0xf] %vm612, %v597
      %618 = vst.msk [vmem:[#allocation4 + $0x14] sm:$0xf] %vm612, %v599
      %619 = vst.msk [vmem:[#allocation4 + $0x18] sm:$0xf] %vm612, %v601
      %620 = vst.msk [vmem:[#allocation4 + $0x1c] sm:$0xf] %vm612, %v603
      %s621 = scalar_lea.vmem %s273, 32
      %v622 = vld [vmem:[%s621] sm:$0xff]
      %v623 = vld [vmem:[%s621 + $0x20] sm:$0xff]
      %v624 = vld [vmem:[%s621 + $0x40] sm:$0xff]
      %v625 = vld [vmem:[%s621 + $0x60] sm:$0xff]
      %v626 = vld [vmem:[%s621 + $0x80] sm:$0xff]
      %v627 = vld [vmem:[%s621 + $0xa0] sm:$0xff]
      %v628 = vld [vmem:[%s621 + $0xc0] sm:$0xff]
      %v629 = vld [vmem:[%s621 + $0xe0] sm:$0xff]
      %v630 = vpack.c.bf16 %v623, %v622
      %v631 = vpack.c.bf16 %v625, %v624
      %v632 = vpack.c.bf16 %v627, %v626
      %v633 = vpack.c.bf16 %v629, %v628
      %v638 = vunpack.c.l.b16 %v630
      %v639 = vunpack.c.h.b16 %v630
      %v640 = vunpack.c.l.b16 %v631
      %v641 = vunpack.c.h.b16 %v631
      %v642 = vunpack.c.l.b16 %v632
      %v643 = vunpack.c.h.b16 %v632
      %v644 = vunpack.c.l.b16 %v633
      %v645 = vunpack.c.h.b16 %v633
      %v646 = vpack.c.b16 %v638, %v638
      %v647 = vpack.c.b16 %v639, %v639
      %v648 = vpack.c.b16 %v640, %v640
      %v649 = vpack.c.b16 %v641, %v641
      %v650 = vpack.c.b16 %v642, %v642
      %v651 = vpack.c.b16 %v643, %v643
      %v652 = vpack.c.b16 %v644, %v644
      %v653 = vpack.c.b16 %v645, %v645
      %654 = vrot.lane.b32.xlu0 %v646, 12
      %v655 = vpop.permute.xlu0 %654
      %656 = vrot.lane.b32.xlu0 %v647, 12
      %v657 = vpop.permute.xlu0 %656
      %658 = vrot.lane.b32.xlu0 %v648, 12
      %v659 = vpop.permute.xlu0 %658
      %660 = vrot.lane.b32.xlu0 %v649, 12
      %v661 = vpop.permute.xlu0 %660
      %662 = vrot.lane.b32.xlu0 %v650, 12
      %v663 = vpop.permute.xlu0 %662
      %664 = vrot.lane.b32.xlu0 %v651, 12
      %v665 = vpop.permute.xlu0 %664
      %666 = vrot.lane.b32.xlu0 %v652, 12
      %v667 = vpop.permute.xlu0 %666
      %668 = vrot.lane.b32.xlu0 %v653, 12
      %v669 = vpop.permute.xlu0 %668
      %vm678 = vcmask 158848
      %679 = vst.msk [vmem:[#allocation4] sm:$0xf] %vm678, %v655
      %680 = vst.msk [vmem:[#allocation4 + $0x4] sm:$0xf] %vm678, %v657
      %681 = vst.msk [vmem:[#allocation4 + $0x8] sm:$0xf] %vm678, %v659
      %682 = vst.msk [vmem:[#allocation4 + $0xc] sm:$0xf] %vm678, %v661
      %683 = vst.msk [vmem:[#allocation4 + $0x10] sm:$0xf] %vm678, %v663
      %684 = vst.msk [vmem:[#allocation4 + $0x14] sm:$0xf] %vm678, %v665
      %685 = vst.msk [vmem:[#allocation4 + $0x18] sm:$0xf] %vm678, %v667
      %686 = vst.msk [vmem:[#allocation4 + $0x1c] sm:$0xf] %vm678, %v669
      %v687 = vld [vmem:[%s621 + $0x1] sm:$0xff]
      %v688 = vld [vmem:[%s621 + $0x21] sm:$0xff]
      %v689 = vld [vmem:[%s621 + $0x41] sm:$0xff]
      %v690 = vld [vmem:[%s621 + $0x61] sm:$0xff]
      %v691 = vld [vmem:[%s621 + $0x81] sm:$0xff]
      %v692 = vld [vmem:[%s621 + $0xa1] sm:$0xff]
      %v693 = vld [vmem:[%s621 + $0xc1] sm:$0xff]
      %v694 = vld [vmem:[%s621 + $0xe1] sm:$0xff]
      %v695 = vpack.c.bf16 %v688, %v687
      %v696 = vpack.c.bf16 %v690, %v689
      %v697 = vpack.c.bf16 %v692, %v691
      %v698 = vpack.c.bf16 %v694, %v693
      %v703 = vunpack.c.l.b16 %v695
      %v704 = vunpack.c.h.b16 %v695
      %v705 = vunpack.c.l.b16 %v696
      %v706 = vunpack.c.h.b16 %v696
      %v707 = vunpack.c.l.b16 %v697
      %v708 = vunpack.c.h.b16 %v697
      %v709 = vunpack.c.l.b16 %v698
      %v710 = vunpack.c.h.b16 %v698
      %v711 = vpack.c.b16 %v703, %v703
      %v712 = vpack.c.b16 %v704, %v704
      %v713 = vpack.c.b16 %v705, %v705
      %v714 = vpack.c.b16 %v706, %v706
      %v715 = vpack.c.b16 %v707, %v707
      %v716 = vpack.c.b16 %v708, %v708
      %v717 = vpack.c.b16 %v709, %v709
      %v718 = vpack.c.b16 %v710, %v710
      %719 = vrot.lane.b32.xlu0 %v711, 20
      %v720 = vpop.permute.xlu0 %719
      %721 = vrot.lane.b32.xlu0 %v712, 20
      %v722 = vpop.permute.xlu0 %721
      %723 = vrot.lane.b32.xlu0 %v713, 20
      %v724 = vpop.permute.xlu0 %723
      %725 = vrot.lane.b32.xlu0 %v714, 20
      %v726 = vpop.permute.xlu0 %725
      %727 = vrot.lane.b32.xlu0 %v715, 20
      %v728 = vpop.permute.xlu0 %727
      %729 = vrot.lane.b32.xlu0 %v716, 20
      %v730 = vpop.permute.xlu0 %729
      %731 = vrot.lane.b32.xlu0 %v717, 20
      %v732 = vpop.permute.xlu0 %731
      %733 = vrot.lane.b32.xlu0 %v718, 20
      %v734 = vpop.permute.xlu0 %733
      %vm743 = vcmask 191648
      %744 = vst.msk [vmem:[#allocation4] sm:$0xf] %vm743, %v720
      %745 = vst.msk [vmem:[#allocation4 + $0x4] sm:$0xf] %vm743, %v722
      %746 = vst.msk [vmem:[#allocation4 + $0x8] sm:$0xf] %vm743, %v724
      %747 = vst.msk [vmem:[#allocation4 + $0xc] sm:$0xf] %vm743, %v726
      %748 = vst.msk [vmem:[#allocation4 + $0x10] sm:$0xf] %vm743, %v728
      %749 = vst.msk [vmem:[#allocation4 + $0x14] sm:$0xf] %vm743, %v730
      %750 = vst.msk [vmem:[#allocation4 + $0x18] sm:$0xf] %vm743, %v732
      %751 = vst.msk [vmem:[#allocation4 + $0x1c] sm:$0xf] %vm743, %v734
      %v752 = vld [vmem:[%s621 + $0x1] sm:$0xff]
      %v753 = vld [vmem:[%s621 + $0x21] sm:$0xff]
      %v754 = vld [vmem:[%s621 + $0x41] sm:$0xff]
      %v755 = vld [vmem:[%s621 + $0x61] sm:$0xff]
      %v756 = vld [vmem:[%s621 + $0x81] sm:$0xff]
      %v757 = vld [vmem:[%s621 + $0xa1] sm:$0xff]
      %v758 = vld [vmem:[%s621 + $0xc1] sm:$0xff]
      %v759 = vld [vmem:[%s621 + $0xe1] sm:$0xff]
      %v760 = vpack.c.bf16 %v753, %v752
      %v761 = vpack.c.bf16 %v755, %v754
      %v762 = vpack.c.bf16 %v757, %v756
      %v763 = vpack.c.bf16 %v759, %v758
      %v768 = vunpack.c.l.b16 %v760
      %v769 = vunpack.c.h.b16 %v760
      %v770 = vunpack.c.l.b16 %v761
      %v771 = vunpack.c.h.b16 %v761
      %v772 = vunpack.c.l.b16 %v762
      %v773 = vunpack.c.h.b16 %v762
      %v774 = vunpack.c.l.b16 %v763
      %v775 = vunpack.c.h.b16 %v763
      %v776 = vpack.c.b16 %v768, %v768
      %v777 = vpack.c.b16 %v769, %v769
      %v778 = vpack.c.b16 %v770, %v770
      %v779 = vpack.c.b16 %v771, %v771
      %v780 = vpack.c.b16 %v772, %v772
      %v781 = vpack.c.b16 %v773, %v773
      %v782 = vpack.c.b16 %v774, %v774
      %v783 = vpack.c.b16 %v775, %v775
      %784 = vrot.lane.b32.xlu0 %v776, 20
      %v785 = vpop.permute.xlu0 %784
      %786 = vrot.lane.b32.xlu0 %v777, 20
      %v787 = vpop.permute.xlu0 %786
      %788 = vrot.lane.b32.xlu0 %v778, 20
      %v789 = vpop.permute.xlu0 %788
      %790 = vrot.lane.b32.xlu0 %v779, 20
      %v791 = vpop.permute.xlu0 %790
      %792 = vrot.lane.b32.xlu0 %v780, 20
      %v793 = vpop.permute.xlu0 %792
      %794 = vrot.lane.b32.xlu0 %v781, 20
      %v795 = vpop.permute.xlu0 %794
      %796 = vrot.lane.b32.xlu0 %v782, 20
      %v797 = vpop.permute.xlu0 %796
      %798 = vrot.lane.b32.xlu0 %v783, 20
      %v799 = vpop.permute.xlu0 %798
      %vm808 = vcmask 224448
      %809 = vst.msk [vmem:[#allocation4] sm:$0xf] %vm808, %v785
      %810 = vst.msk [vmem:[#allocation4 + $0x4] sm:$0xf] %vm808, %v787
      %811 = vst.msk [vmem:[#allocation4 + $0x8] sm:$0xf] %vm808, %v789
      %812 = vst.msk [vmem:[#allocation4 + $0xc] sm:$0xf] %vm808, %v791
      %813 = vst.msk [vmem:[#allocation4 + $0x10] sm:$0xf] %vm808, %v793
      %814 = vst.msk [vmem:[#allocation4 + $0x14] sm:$0xf] %vm808, %v795
      %815 = vst.msk [vmem:[#allocation4 + $0x18] sm:$0xf] %vm808, %v797
      %816 = vst.msk [vmem:[#allocation4 + $0x1c] sm:$0xf] %vm808, %v799
      %v817 = vld [vmem:[%s621 + $0x2] sm:$0xff]
      %v818 = vld [vmem:[%s621 + $0x22] sm:$0xff]
      %v819 = vld [vmem:[%s621 + $0x42] sm:$0xff]
      %v820 = vld [vmem:[%s621 + $0x62] sm:$0xff]
      %v821 = vld [vmem:[%s621 + $0x82] sm:$0xff]
      %v822 = vld [vmem:[%s621 + $0xa2] sm:$0xff]
      %v823 = vld [vmem:[%s621 + $0xc2] sm:$0xff]
      %v824 = vld [vmem:[%s621 + $0xe2] sm:$0xff]
      %v825 = vpack.c.bf16 %v818, %v817
      %v826 = vpack.c.bf16 %v820, %v819
      %v827 = vpack.c.bf16 %v822, %v821
      %v828 = vpack.c.bf16 %v824, %v823
      %v833 = vunpack.c.l.b16 %v825
      %v834 = vunpack.c.h.b16 %v825
      %v835 = vunpack.c.l.b16 %v826
      %v836 = vunpack.c.h.b16 %v826
      %v837 = vunpack.c.l.b16 %v827
      %v838 = vunpack.c.h.b16 %v827
      %v839 = vunpack.c.l.b16 %v828
      %v840 = vunpack.c.h.b16 %v828
      %v841 = vpack.c.b16 %v833, %v833
      %v842 = vpack.c.b16 %v834, %v834
      %v843 = vpack.c.b16 %v835, %v835
      %v844 = vpack.c.b16 %v836, %v836
      %v845 = vpack.c.b16 %v837, %v837
      %v846 = vpack.c.b16 %v838, %v838
      %v847 = vpack.c.b16 %v839, %v839
      %v848 = vpack.c.b16 %v840, %v840
      %849 = vrot.lane.b32.xlu0 %v841, 28
      %v850 = vpop.permute.xlu0 %849
      %851 = vrot.lane.b32.xlu0 %v842, 28
      %v852 = vpop.permute.xlu0 %851
      %853 = vrot.lane.b32.xlu0 %v843, 28
      %v854 = vpop.permute.xlu0 %853
      %855 = vrot.lane.b32.xlu0 %v844, 28
      %v856 = vpop.permute.xlu0 %855
      %857 = vrot.lane.b32.xlu0 %v845, 28
      %v858 = vpop.permute.xlu0 %857
      %859 = vrot.lane.b32.xlu0 %v846, 28
      %v860 = vpop.permute.xlu0 %859
      %861 = vrot.lane.b32.xlu0 %v847, 28
      %v862 = vpop.permute.xlu0 %861
      %863 = vrot.lane.b32.xlu0 %v848, 28
      %v864 = vpop.permute.xlu0 %863
      %vm873 = vcmask 257248
      %874 = vst.msk [vmem:[#allocation4] sm:$0xf] %vm873, %v850
      %875 = vst.msk [vmem:[#allocation4 + $0x4] sm:$0xf] %vm873, %v852
      %876 = vst.msk [vmem:[#allocation4 + $0x8] sm:$0xf] %vm873, %v854
      %877 = vst.msk [vmem:[#allocation4 + $0xc] sm:$0xf] %vm873, %v856
      %878 = vst.msk [vmem:[#allocation4 + $0x10] sm:$0xf] %vm873, %v858
      %879 = vst.msk [vmem:[#allocation4 + $0x14] sm:$0xf] %vm873, %v860
      %880 = vst.msk [vmem:[#allocation4 + $0x18] sm:$0xf] %vm873, %v862
      %881 = vst.msk [vmem:[#allocation4 + $0x1c] sm:$0xf] %vm873, %v864
      %s882 = scalar_lea.vmem %s273, 48
      %v883 = vld [vmem:[%s882] sm:$0xff]
      %v884 = vld [vmem:[%s882 + $0x20] sm:$0xff]
      %v885 = vld [vmem:[%s882 + $0x40] sm:$0xff]
      %v886 = vld [vmem:[%s882 + $0x60] sm:$0xff]
      %v887 = vld [vmem:[%s882 + $0x80] sm:$0xff]
      %v888 = vld [vmem:[%s882 + $0xa0] sm:$0xff]
      %v889 = vld [vmem:[%s882 + $0xc0] sm:$0xff]
      %v890 = vld [vmem:[%s882 + $0xe0] sm:$0xff]
      %v891 = vpack.c.bf16 %v884, %v883
      %v892 = vpack.c.bf16 %v886, %v885
      %v893 = vpack.c.bf16 %v888, %v887
      %v894 = vpack.c.bf16 %v890, %v889
      %v899 = vunpack.c.l.b16 %v891
      %v900 = vunpack.c.h.b16 %v891
      %v901 = vunpack.c.l.b16 %v892
      %v902 = vunpack.c.h.b16 %v892
      %v903 = vunpack.c.l.b16 %v893
      %v904 = vunpack.c.h.b16 %v893
      %v905 = vunpack.c.l.b16 %v894
      %v906 = vunpack.c.h.b16 %v894
      %v907 = vpack.c.b16 %v899, %v899
      %v908 = vpack.c.b16 %v900, %v900
      %v909 = vpack.c.b16 %v901, %v901
      %v910 = vpack.c.b16 %v902, %v902
      %v911 = vpack.c.b16 %v903, %v903
      %v912 = vpack.c.b16 %v904, %v904
      %v913 = vpack.c.b16 %v905, %v905
      %v914 = vpack.c.b16 %v906, %v906
      %915 = vrot.lane.b32.xlu0 %v907, 28
      %v916 = vpop.permute.xlu0 %915
      %917 = vrot.lane.b32.xlu0 %v908, 28
      %v918 = vpop.permute.xlu0 %917
      %919 = vrot.lane.b32.xlu0 %v909, 28
      %v920 = vpop.permute.xlu0 %919
      %921 = vrot.lane.b32.xlu0 %v910, 28
      %v922 = vpop.permute.xlu0 %921
      %923 = vrot.lane.b32.xlu0 %v911, 28
      %v924 = vpop.permute.xlu0 %923
      %925 = vrot.lane.b32.xlu0 %v912, 28
      %v926 = vpop.permute.xlu0 %925
      %927 = vrot.lane.b32.xlu0 %v913, 28
      %v928 = vpop.permute.xlu0 %927
      %929 = vrot.lane.b32.xlu0 %v914, 28
      %v930 = vpop.permute.xlu0 %929
      %vm939 = vcmask 290048
      %940 = vst.msk [vmem:[#allocation4] sm:$0xf] %vm939, %v916
      %941 = vst.msk [vmem:[#allocation4 + $0x4] sm:$0xf] %vm939, %v918
      %942 = vst.msk [vmem:[#allocation4 + $0x8] sm:$0xf] %vm939, %v920
      %943 = vst.msk [vmem:[#allocation4 + $0xc] sm:$0xf] %vm939, %v922
      %944 = vst.msk [vmem:[#allocation4 + $0x10] sm:$0xf] %vm939, %v924
      %945 = vst.msk [vmem:[#allocation4 + $0x14] sm:$0xf] %vm939, %v926
      %946 = vst.msk [vmem:[#allocation4 + $0x18] sm:$0xf] %vm939, %v928
      %947 = vst.msk [vmem:[#allocation4 + $0x1c] sm:$0xf] %vm939, %v930
      %v948 = vld [vmem:[%s882 + $0x1] sm:$0xff]
      %v949 = vld [vmem:[%s882 + $0x21] sm:$0xff]
      %v950 = vld [vmem:[%s882 + $0x41] sm:$0xff]
      %v951 = vld [vmem:[%s882 + $0x61] sm:$0xff]
      %v952 = vld [vmem:[%s882 + $0x81] sm:$0xff]
      %v953 = vld [vmem:[%s882 + $0xa1] sm:$0xff]
      %v954 = vld [vmem:[%s882 + $0xc1] sm:$0xff]
      %v955 = vld [vmem:[%s882 + $0xe1] sm:$0xff]
      %v956 = vpack.c.bf16 %v949, %v948
      %v957 = vpack.c.bf16 %v951, %v950
      %v958 = vpack.c.bf16 %v953, %v952
      %v959 = vpack.c.bf16 %v955, %v954
      %v964 = vunpack.c.l.b16 %v956
      %v965 = vunpack.c.h.b16 %v956
      %v966 = vunpack.c.l.b16 %v957
      %v967 = vunpack.c.h.b16 %v957
      %v968 = vunpack.c.l.b16 %v958
      %v969 = vunpack.c.h.b16 %v958
      %v970 = vunpack.c.l.b16 %v959
      %v971 = vunpack.c.h.b16 %v959
      %v972 = vpack.c.b16 %v964, %v964
      %v973 = vpack.c.b16 %v965, %v965
      %v974 = vpack.c.b16 %v966, %v966
      %v975 = vpack.c.b16 %v967, %v967
      %v976 = vpack.c.b16 %v968, %v968
      %v977 = vpack.c.b16 %v969, %v969
      %v978 = vpack.c.b16 %v970, %v970
      %v979 = vpack.c.b16 %v971, %v971
      %980 = vrot.lane.b32.xlu0 %v972, 36
      %v981 = vpop.permute.xlu0 %980
      %982 = vrot.lane.b32.xlu0 %v973, 36
      %v983 = vpop.permute.xlu0 %982
      %984 = vrot.lane.b32.xlu0 %v974, 36
      %v985 = vpop.permute.xlu0 %984
      %986 = vrot.lane.b32.xlu0 %v975, 36
      %v987 = vpop.permute.xlu0 %986
      %988 = vrot.lane.b32.xlu0 %v976, 36
      %v989 = vpop.permute.xlu0 %988
      %990 = vrot.lane.b32.xlu0 %v977, 36
      %v991 = vpop.permute.xlu0 %990
      %992 = vrot.lane.b32.xlu0 %v978, 36
      %v993 = vpop.permute.xlu0 %992
      %994 = vrot.lane.b32.xlu0 %v979, 36
      %v995 = vpop.permute.xlu0 %994
      %vm1004 = vcmask 322848
      %1005 = vst.msk [vmem:[#allocation4] sm:$0xf] %vm1004, %v981
      %1006 = vst.msk [vmem:[#allocation4 + $0x4] sm:$0xf] %vm1004, %v983
      %1007 = vst.msk [vmem:[#allocation4 + $0x8] sm:$0xf] %vm1004, %v985
      %1008 = vst.msk [vmem:[#allocation4 + $0xc] sm:$0xf] %vm1004, %v987
      %1009 = vst.msk [vmem:[#allocation4 + $0x10] sm:$0xf] %vm1004, %v989
      %1010 = vst.msk [vmem:[#allocation4 + $0x14] sm:$0xf] %vm1004, %v991
      %1011 = vst.msk [vmem:[#allocation4 + $0x18] sm:$0xf] %vm1004, %v993
      %1012 = vst.msk [vmem:[#allocation4 + $0x1c] sm:$0xf] %vm1004, %v995
      %v1013 = vld [vmem:[%s882 + $0x1] sm:$0xff]
      %v1014 = vld [vmem:[%s882 + $0x21] sm:$0xff]
      %v1015 = vld [vmem:[%s882 + $0x41] sm:$0xff]
      %v1016 = vld [vmem:[%s882 + $0x61] sm:$0xff]
      %v1017 = vld [vmem:[%s882 + $0x81] sm:$0xff]
      %v1018 = vld [vmem:[%s882 + $0xa1] sm:$0xff]
      %v1019 = vld [vmem:[%s882 + $0xc1] sm:$0xff]
      %v1020 = vld [vmem:[%s882 + $0xe1] sm:$0xff]
      %v1021 = vpack.c.bf16 %v1014, %v1013
      %v1022 = vpack.c.bf16 %v1016, %v1015
      %v1023 = vpack.c.bf16 %v1018, %v1017
      %v1024 = vpack.c.bf16 %v1020, %v1019
      %v1029 = vunpack.c.l.b16 %v1021
      %v1030 = vunpack.c.h.b16 %v1021
      %v1031 = vunpack.c.l.b16 %v1022
      %v1032 = vunpack.c.h.b16 %v1022
      %v1033 = vunpack.c.l.b16 %v1023
      %v1034 = vunpack.c.h.b16 %v1023
      %v1035 = vunpack.c.l.b16 %v1024
      %v1036 = vunpack.c.h.b16 %v1024
      %v1037 = vpack.c.b16 %v1029, %v1029
      %v1038 = vpack.c.b16 %v1030, %v1030
      %v1039 = vpack.c.b16 %v1031, %v1031
      %v1040 = vpack.c.b16 %v1032, %v1032
      %v1041 = vpack.c.b16 %v1033, %v1033
      %v1042 = vpack.c.b16 %v1034, %v1034
      %v1043 = vpack.c.b16 %v1035, %v1035
      %v1044 = vpack.c.b16 %v1036, %v1036
      %1045 = vrot.lane.b32.xlu0 %v1037, 36
      %v1046 = vpop.permute.xlu0 %1045
      %1047 = vrot.lane.b32.xlu0 %v1038, 36
      %v1048 = vpop.permute.xlu0 %1047
      %1049 = vrot.lane.b32.xlu0 %v1039, 36
      %v1050 = vpop.permute.xlu0 %1049
      %1051 = vrot.lane.b32.xlu0 %v1040, 36
      %v1052 = vpop.permute.xlu0 %1051
      %1053 = vrot.lane.b32.xlu0 %v1041, 36
      %v1054 = vpop.permute.xlu0 %1053
      %1055 = vrot.lane.b32.xlu0 %v1042, 36
      %v1056 = vpop.permute.xlu0 %1055
      %1057 = vrot.lane.b32.xlu0 %v1043, 36
      %v1058 = vpop.permute.xlu0 %1057
      %1059 = vrot.lane.b32.xlu0 %v1044, 36
      %v1060 = vpop.permute.xlu0 %1059
      %vm1069 = vcmask 355648
      %1070 = vst.msk [vmem:[#allocation4] sm:$0xf] %vm1069, %v1046
      %1071 = vst.msk [vmem:[#allocation4 + $0x4] sm:$0xf] %vm1069, %v1048
      %1072 = vst.msk [vmem:[#allocation4 + $0x8] sm:$0xf] %vm1069, %v1050
      %1073 = vst.msk [vmem:[#allocation4 + $0xc] sm:$0xf] %vm1069, %v1052
      %1074 = vst.msk [vmem:[#allocation4 + $0x10] sm:$0xf] %vm1069, %v1054
      %1075 = vst.msk [vmem:[#allocation4 + $0x14] sm:$0xf] %vm1069, %v1056
      %1076 = vst.msk [vmem:[#allocation4 + $0x18] sm:$0xf] %vm1069, %v1058
      %1077 = vst.msk [vmem:[#allocation4 + $0x1c] sm:$0xf] %vm1069, %v1060
      %v1078 = vld [vmem:[%s882 + $0x2] sm:$0xff]
      %v1079 = vld [vmem:[%s882 + $0x22] sm:$0xff]
      %v1080 = vld [vmem:[%s882 + $0x42] sm:$0xff]
      %v1081 = vld [vmem:[%s882 + $0x62] sm:$0xff]
      %v1082 = vld [vmem:[%s882 + $0x82] sm:$0xff]
      %v1083 = vld [vmem:[%s882 + $0xa2] sm:$0xff]
      %v1084 = vld [vmem:[%s882 + $0xc2] sm:$0xff]
      %v1085 = vld [vmem:[%s882 + $0xe2] sm:$0xff]
      %v1086 = vpack.c.bf16 %v1079, %v1078
      %v1087 = vpack.c.bf16 %v1081, %v1080
      %v1088 = vpack.c.bf16 %v1083, %v1082
      %v1089 = vpack.c.bf16 %v1085, %v1084
      %v1094 = vunpack.c.l.b16 %v1086
      %v1095 = vunpack.c.h.b16 %v1086
      %v1096 = vunpack.c.l.b16 %v1087
      %v1097 = vunpack.c.h.b16 %v1087
      %v1098 = vunpack.c.l.b16 %v1088
      %v1099 = vunpack.c.h.b16 %v1088
      %v1100 = vunpack.c.l.b16 %v1089
      %v1101 = vunpack.c.h.b16 %v1089
      %v1102 = vpack.c.b16 %v1094, %v1094
      %v1103 = vpack.c.b16 %v1095, %v1095
      %v1104 = vpack.c.b16 %v1096, %v1096
      %v1105 = vpack.c.b16 %v1097, %v1097
      %v1106 = vpack.c.b16 %v1098, %v1098
      %v1107 = vpack.c.b16 %v1099, %v1099
      %v1108 = vpack.c.b16 %v1100, %v1100
      %v1109 = vpack.c.b16 %v1101, %v1101
      %1110 = vrot.lane.b32.xlu0 %v1102, 44
      %v1111 = vpop.permute.xlu0 %1110
      %1112 = vrot.lane.b32.xlu0 %v1103, 44
      %v1113 = vpop.permute.xlu0 %1112
      %1114 = vrot.lane.b32.xlu0 %v1104, 44
      %v1115 = vpop.permute.xlu0 %1114
      %1116 = vrot.lane.b32.xlu0 %v1105, 44
      %v1117 = vpop.permute.xlu0 %1116
      %1118 = vrot.lane.b32.xlu0 %v1106, 44
      %v1119 = vpop.permute.xlu0 %1118
      %1120 = vrot.lane.b32.xlu0 %v1107, 44
      %v1121 = vpop.permute.xlu0 %1120
      %1122 = vrot.lane.b32.xlu0 %v1108, 44
      %v1123 = vpop.permute.xlu0 %1122
      %1124 = vrot.lane.b32.xlu0 %v1109, 44
      %v1125 = vpop.permute.xlu0 %1124
      %vm1134 = vcmask 388448
      %1135 = vst.msk [vmem:[#allocation4] sm:$0xf] %vm1134, %v1111
      %1136 = vst.msk [vmem:[#allocation4 + $0x4] sm:$0xf] %vm1134, %v1113
      %1137 = vst.msk [vmem:[#allocation4 + $0x8] sm:$0xf] %vm1134, %v1115
      %1138 = vst.msk [vmem:[#allocation4 + $0xc] sm:$0xf] %vm1134, %v1117
      %1139 = vst.msk [vmem:[#allocation4 + $0x10] sm:$0xf] %vm1134, %v1119
      %1140 = vst.msk [vmem:[#allocation4 + $0x14] sm:$0xf] %vm1134, %v1121
      %1141 = vst.msk [vmem:[#allocation4 + $0x18] sm:$0xf] %vm1134, %v1123
      %1142 = vst.msk [vmem:[#allocation4 + $0x1c] sm:$0xf] %vm1134, %v1125
      %s1143 = scalar_lea.vmem %s273, 64
      %v1144 = vld [vmem:[%s1143] sm:$0xff]
      %v1145 = vld [vmem:[%s1143 + $0x20] sm:$0xff]
      %v1146 = vld [vmem:[%s1143 + $0x40] sm:$0xff]
      %v1147 = vld [vmem:[%s1143 + $0x60] sm:$0xff]
      %v1148 = vld [vmem:[%s1143 + $0x80] sm:$0xff]
      %v1149 = vld [vmem:[%s1143 + $0xa0] sm:$0xff]
      %v1150 = vld [vmem:[%s1143 + $0xc0] sm:$0xff]
      %v1151 = vld [vmem:[%s1143 + $0xe0] sm:$0xff]
      %v1152 = vpack.c.bf16 %v1145, %v1144
      %v1153 = vpack.c.bf16 %v1147, %v1146
      %v1154 = vpack.c.bf16 %v1149, %v1148
      %v1155 = vpack.c.bf16 %v1151, %v1150
      %v1160 = vunpack.c.l.b16 %v1152
      %v1161 = vunpack.c.h.b16 %v1152
      %v1162 = vunpack.c.l.b16 %v1153
      %v1163 = vunpack.c.h.b16 %v1153
      %v1164 = vunpack.c.l.b16 %v1154
      %v1165 = vunpack.c.h.b16 %v1154
      %v1166 = vunpack.c.l.b16 %v1155
      %v1167 = vunpack.c.h.b16 %v1155
      %v1168 = vpack.c.b16 %v1160, %v1160
      %v1169 = vpack.c.b16 %v1161, %v1161
      %v1170 = vpack.c.b16 %v1162, %v1162
      %v1171 = vpack.c.b16 %v1163, %v1163
      %v1172 = vpack.c.b16 %v1164, %v1164
      %v1173 = vpack.c.b16 %v1165, %v1165
      %v1174 = vpack.c.b16 %v1166, %v1166
      %v1175 = vpack.c.b16 %v1167, %v1167
      %1176 = vrot.lane.b32.xlu0 %v1168, 44
      %v1177 = vpop.permute.xlu0 %1176
      %1178 = vrot.lane.b32.xlu0 %v1169, 44
      %v1179 = vpop.permute.xlu0 %1178
      %1180 = vrot.lane.b32.xlu0 %v1170, 44
      %v1181 = vpop.permute.xlu0 %1180
      %1182 = vrot.lane.b32.xlu0 %v1171, 44
      %v1183 = vpop.permute.xlu0 %1182
      %1184 = vrot.lane.b32.xlu0 %v1172, 44
      %v1185 = vpop.permute.xlu0 %1184
      %1186 = vrot.lane.b32.xlu0 %v1173, 44
      %v1187 = vpop.permute.xlu0 %1186
      %1188 = vrot.lane.b32.xlu0 %v1174, 44
      %v1189 = vpop.permute.xlu0 %1188
      %1190 = vrot.lane.b32.xlu0 %v1175, 44
      %v1191 = vpop.permute.xlu0 %1190
      %vm1200 = vcmask 421248
      %1201 = vst.msk [vmem:[#allocation4] sm:$0xf] %vm1200, %v1177
      %1202 = vst.msk [vmem:[#allocation4 + $0x4] sm:$0xf] %vm1200, %v1179
      %1203 = vst.msk [vmem:[#allocation4 + $0x8] sm:$0xf] %vm1200, %v1181
      %1204 = vst.msk [vmem:[#allocation4 + $0xc] sm:$0xf] %vm1200, %v1183
      %1205 = vst.msk [vmem:[#allocation4 + $0x10] sm:$0xf] %vm1200, %v1185
      %1206 = vst.msk [vmem:[#allocation4 + $0x14] sm:$0xf] %vm1200, %v1187
      %1207 = vst.msk [vmem:[#allocation4 + $0x18] sm:$0xf] %vm1200, %v1189
      %1208 = vst.msk [vmem:[#allocation4 + $0x1c] sm:$0xf] %vm1200, %v1191
      %v1209 = vld [vmem:[%s1143 + $0x1] sm:$0xff]
      %v1210 = vld [vmem:[%s1143 + $0x21] sm:$0xff]
      %v1211 = vld [vmem:[%s1143 + $0x41] sm:$0xff]
      %v1212 = vld [vmem:[%s1143 + $0x61] sm:$0xff]
      %v1213 = vld [vmem:[%s1143 + $0x81] sm:$0xff]
      %v1214 = vld [vmem:[%s1143 + $0xa1] sm:$0xff]
      %v1215 = vld [vmem:[%s1143 + $0xc1] sm:$0xff]
      %v1216 = vld [vmem:[%s1143 + $0xe1] sm:$0xff]
      %v1217 = vpack.c.bf16 %v1210, %v1209
      %v1218 = vpack.c.bf16 %v1212, %v1211
      %v1219 = vpack.c.bf16 %v1214, %v1213
      %v1220 = vpack.c.bf16 %v1216, %v1215
      %v1225 = vunpack.c.l.b16 %v1217
      %v1226 = vunpack.c.h.b16 %v1217
      %v1227 = vunpack.c.l.b16 %v1218
      %v1228 = vunpack.c.h.b16 %v1218
      %v1229 = vunpack.c.l.b16 %v1219
      %v1230 = vunpack.c.h.b16 %v1219
      %v1231 = vunpack.c.l.b16 %v1220
      %v1232 = vunpack.c.h.b16 %v1220
      %v1233 = vpack.c.b16 %v1225, %v1225
      %v1234 = vpack.c.b16 %v1226, %v1226
      %v1235 = vpack.c.b16 %v1227, %v1227
      %v1236 = vpack.c.b16 %v1228, %v1228
      %v1237 = vpack.c.b16 %v1229, %v1229
      %v1238 = vpack.c.b16 %v1230, %v1230
      %v1239 = vpack.c.b16 %v1231, %v1231
      %v1240 = vpack.c.b16 %v1232, %v1232
      %1241 = vrot.lane.b32.xlu0 %v1233, 52
      %v1242 = vpop.permute.xlu0 %1241
      %1243 = vrot.lane.b32.xlu0 %v1234, 52
      %v1244 = vpop.permute.xlu0 %1243
      %1245 = vrot.lane.b32.xlu0 %v1235, 52
      %v1246 = vpop.permute.xlu0 %1245
      %1247 = vrot.lane.b32.xlu0 %v1236, 52
      %v1248 = vpop.permute.xlu0 %1247
      %1249 = vrot.lane.b32.xlu0 %v1237, 52
      %v1250 = vpop.permute.xlu0 %1249
      %1251 = vrot.lane.b32.xlu0 %v1238, 52
      %v1252 = vpop.permute.xlu0 %1251
      %1253 = vrot.lane.b32.xlu0 %v1239, 52
      %v1254 = vpop.permute.xlu0 %1253
      %1255 = vrot.lane.b32.xlu0 %v1240, 52
      %v1256 = vpop.permute.xlu0 %1255
      %vm1265 = vcmask 454048
      %1266 = vst.msk [vmem:[#allocation4] sm:$0xf] %vm1265, %v1242
      %1267 = vst.msk [vmem:[#allocation4 + $0x4] sm:$0xf] %vm1265, %v1244
      %1268 = vst.msk [vmem:[#allocation4 + $0x8] sm:$0xf] %vm1265, %v1246
      %1269 = vst.msk [vmem:[#allocation4 + $0xc] sm:$0xf] %vm1265, %v1248
      %1270 = vst.msk [vmem:[#allocation4 + $0x10] sm:$0xf] %vm1265, %v1250
      %1271 = vst.msk [vmem:[#allocation4 + $0x14] sm:$0xf] %vm1265, %v1252
      %1272 = vst.msk [vmem:[#allocation4 + $0x18] sm:$0xf] %vm1265, %v1254
      %1273 = vst.msk [vmem:[#allocation4 + $0x1c] sm:$0xf] %vm1265, %v1256
      %v1274 = vld [vmem:[%s1143 + $0x1] sm:$0xff]
      %v1275 = vld [vmem:[%s1143 + $0x21] sm:$0xff]
      %v1276 = vld [vmem:[%s1143 + $0x41] sm:$0xff]
      %v1277 = vld [vmem:[%s1143 + $0x61] sm:$0xff]
      %v1278 = vld [vmem:[%s1143 + $0x81] sm:$0xff]
      %v1279 = vld [vmem:[%s1143 + $0xa1] sm:$0xff]
      %v1280 = vld [vmem:[%s1143 + $0xc1] sm:$0xff]
      %v1281 = vld [vmem:[%s1143 + $0xe1] sm:$0xff]
      %v1282 = vpack.c.bf16 %v1275, %v1274
      %v1283 = vpack.c.bf16 %v1277, %v1276
      %v1284 = vpack.c.bf16 %v1279, %v1278
      %v1285 = vpack.c.bf16 %v1281, %v1280
      %v1290 = vunpack.c.l.b16 %v1282
      %v1291 = vunpack.c.h.b16 %v1282
      %v1292 = vunpack.c.l.b16 %v1283
      %v1293 = vunpack.c.h.b16 %v1283
      %v1294 = vunpack.c.l.b16 %v1284
      %v1295 = vunpack.c.h.b16 %v1284
      %v1296 = vunpack.c.l.b16 %v1285
      %v1297 = vunpack.c.h.b16 %v1285
      %v1298 = vpack.c.b16 %v1290, %v1290
      %v1299 = vpack.c.b16 %v1291, %v1291
      %v1300 = vpack.c.b16 %v1292, %v1292
      %v1301 = vpack.c.b16 %v1293, %v1293
      %v1302 = vpack.c.b16 %v1294, %v1294
      %v1303 = vpack.c.b16 %v1295, %v1295
      %v1304 = vpack.c.b16 %v1296, %v1296
      %v1305 = vpack.c.b16 %v1297, %v1297
      %1306 = vrot.lane.b32.xlu0 %v1298, 52
      %v1307 = vpop.permute.xlu0 %1306
      %1308 = vrot.lane.b32.xlu0 %v1299, 52
      %v1309 = vpop.permute.xlu0 %1308
      %1310 = vrot.lane.b32.xlu0 %v1300, 52
      %v1311 = vpop.permute.xlu0 %1310
      %1312 = vrot.lane.b32.xlu0 %v1301, 52
      %v1313 = vpop.permute.xlu0 %1312
      %1314 = vrot.lane.b32.xlu0 %v1302, 52
      %v1315 = vpop.permute.xlu0 %1314
      %1316 = vrot.lane.b32.xlu0 %v1303, 52
      %v1317 = vpop.permute.xlu0 %1316
      %1318 = vrot.lane.b32.xlu0 %v1304, 52
      %v1319 = vpop.permute.xlu0 %1318
      %1320 = vrot.lane.b32.xlu0 %v1305, 52
      %v1321 = vpop.permute.xlu0 %1320
      %vm1330 = vcmask 486848
      %1331 = vst.msk [vmem:[#allocation4] sm:$0xf] %vm1330, %v1307
      %1332 = vst.msk [vmem:[#allocation4 + $0x4] sm:$0xf] %vm1330, %v1309
      %1333 = vst.msk [vmem:[#allocation4 + $0x8] sm:$0xf] %vm1330, %v1311
      %1334 = vst.msk [vmem:[#allocation4 + $0xc] sm:$0xf] %vm1330, %v1313
      %1335 = vst.msk [vmem:[#allocation4 + $0x10] sm:$0xf] %vm1330, %v1315
      %1336 = vst.msk [vmem:[#allocation4 + $0x14] sm:$0xf] %vm1330, %v1317
      %1337 = vst.msk [vmem:[#allocation4 + $0x18] sm:$0xf] %vm1330, %v1319
      %1338 = vst.msk [vmem:[#allocation4 + $0x1c] sm:$0xf] %vm1330, %v1321
      %v1339 = vld [vmem:[%s1143 + $0x2] sm:$0xff]
      %v1340 = vld [vmem:[%s1143 + $0x22] sm:$0xff]
      %v1341 = vld [vmem:[%s1143 + $0x42] sm:$0xff]
      %v1342 = vld [vmem:[%s1143 + $0x62] sm:$0xff]
      %v1343 = vld [vmem:[%s1143 + $0x82] sm:$0xff]
      %v1344 = vld [vmem:[%s1143 + $0xa2] sm:$0xff]
      %v1345 = vld [vmem:[%s1143 + $0xc2] sm:$0xff]
      %v1346 = vld [vmem:[%s1143 + $0xe2] sm:$0xff]
      %v1347 = vpack.c.bf16 %v1340, %v1339
      %v1348 = vpack.c.bf16 %v1342, %v1341
      %v1349 = vpack.c.bf16 %v1344, %v1343
      %v1350 = vpack.c.bf16 %v1346, %v1345
      %v1355 = vunpack.c.l.b16 %v1347
      %v1356 = vunpack.c.h.b16 %v1347
      %v1357 = vunpack.c.l.b16 %v1348
      %v1358 = vunpack.c.h.b16 %v1348
      %v1359 = vunpack.c.l.b16 %v1349
      %v1360 = vunpack.c.h.b16 %v1349
      %v1361 = vunpack.c.l.b16 %v1350
      %v1362 = vunpack.c.h.b16 %v1350
      %v1363 = vpack.c.b16 %v1355, %v1355
      %v1364 = vpack.c.b16 %v1356, %v1356
      %v1365 = vpack.c.b16 %v1357, %v1357
      %v1366 = vpack.c.b16 %v1358, %v1358
      %v1367 = vpack.c.b16 %v1359, %v1359
      %v1368 = vpack.c.b16 %v1360, %v1360
      %v1369 = vpack.c.b16 %v1361, %v1361
      %v1370 = vpack.c.b16 %v1362, %v1362
      %1371 = vrot.lane.b32.xlu0 %v1363, 60
      %v1372 = vpop.permute.xlu0 %1371
      %1373 = vrot.lane.b32.xlu0 %v1364, 60
      %v1374 = vpop.permute.xlu0 %1373
      %1375 = vrot.lane.b32.xlu0 %v1365, 60
      %v1376 = vpop.permute.xlu0 %1375
      %1377 = vrot.lane.b32.xlu0 %v1366, 60
      %v1378 = vpop.permute.xlu0 %1377
      %1379 = vrot.lane.b32.xlu0 %v1367, 60
      %v1380 = vpop.permute.xlu0 %1379
      %1381 = vrot.lane.b32.xlu0 %v1368, 60
      %v1382 = vpop.permute.xlu0 %1381
      %1383 = vrot.lane.b32.xlu0 %v1369, 60
      %v1384 = vpop.permute.xlu0 %1383
      %1385 = vrot.lane.b32.xlu0 %v1370, 60
      %v1386 = vpop.permute.xlu0 %1385
      %vm1395 = vcmask 519648
      %1396 = vst.msk [vmem:[#allocation4] sm:$0xf] %vm1395, %v1372
      %1397 = vst.msk [vmem:[#allocation4 + $0x4] sm:$0xf] %vm1395, %v1374
      %1398 = vst.msk [vmem:[#allocation4 + $0x8] sm:$0xf] %vm1395, %v1376
      %1399 = vst.msk [vmem:[#allocation4 + $0xc] sm:$0xf] %vm1395, %v1378
      %1400 = vst.msk [vmem:[#allocation4 + $0x10] sm:$0xf] %vm1395, %v1380
      %1401 = vst.msk [vmem:[#allocation4 + $0x14] sm:$0xf] %vm1395, %v1382
      %1402 = vst.msk [vmem:[#allocation4 + $0x18] sm:$0xf] %vm1395, %v1384
      %1403 = vst.msk [vmem:[#allocation4 + $0x1c] sm:$0xf] %vm1395, %v1386
      %v1404 = vld [vmem:[#allocation4] sm:$0xf]
      %v1405 = vld [vmem:[#allocation4 + $0x4] sm:$0xf]
      %v1406 = vld [vmem:[#allocation4 + $0x8] sm:$0xf]
      %v1407 = vld [vmem:[#allocation4 + $0xc] sm:$0xf]
      %v1408 = vld [vmem:[#allocation4 + $0x10] sm:$0xf]
      %v1409 = vld [vmem:[#allocation4 + $0x14] sm:$0xf]
      %v1410 = vld [vmem:[#allocation4 + $0x18] sm:$0xf]
      %v1411 = vld [vmem:[#allocation4 + $0x1c] sm:$0xf]
      %v1412 = vld [vmem:[%s1] sm:$0xf]
      %v1413 = vld [vmem:[%s1 + $0x4] sm:$0xf]
      %v1414 = vld [vmem:[%s1 + $0x8] sm:$0xf]
      %v1415 = vld [vmem:[%s1 + $0xc] sm:$0xf]
      %v1416 = vld [vmem:[%s1 + $0x10] sm:$0xf]
      %v1417 = vld [vmem:[%s1 + $0x14] sm:$0xf]
      %v1418 = vld [vmem:[%s1 + $0x18] sm:$0xf]
      %v1419 = vld [vmem:[%s1 + $0x1c] sm:$0xf]
      %v1420 = vld [vmem:[%s2] sm:$0x1]
      %v1422 = vlaneseq
      %v1423 = vshrl.u32 %v1422, 7
      %v1424 = vsub.s32 0, %v1423
      %v1425 = vrot.slane %v1420, %v1424
      %v1435 = vunpack.c.l.b16 %v1404
      %v1436 = vunpack.c.l.b16 %v1405
      %v1437 = vunpack.c.l.b16 %v1406
      %v1438 = vunpack.c.l.b16 %v1407
      %v1439 = vunpack.c.l.b16 %v1408
      %v1440 = vunpack.c.l.b16 %v1409
      %v1441 = vunpack.c.l.b16 %v1410
      %v1442 = vunpack.c.l.b16 %v1411
      %v1443 = vpack.c.b16 %v1436, %v1435
      %v1444 = vpack.c.b16 %v1438, %v1437
      %v1445 = vpack.c.b16 %v1440, %v1439
      %v1446 = vpack.c.b16 %v1442, %v1441
      %v1455 = vunpack.c.l.b16 %v1412
      %v1456 = vunpack.c.l.b16 %v1413
      %v1457 = vunpack.c.l.b16 %v1414
      %v1458 = vunpack.c.l.b16 %v1415
      %v1459 = vunpack.c.l.b16 %v1416
      %v1460 = vunpack.c.l.b16 %v1417
      %v1461 = vunpack.c.l.b16 %v1418
      %v1462 = vunpack.c.l.b16 %v1419
      %v1463 = vpack.c.b16 %v1456, %v1455
      %v1464 = vpack.c.b16 %v1458, %v1457
      %v1465 = vpack.c.b16 %v1460, %v1459
      %v1466 = vpack.c.b16 %v1462, %v1461
      %vm1471 = vcmask 523264
      %v1473 = vsel %vm1471, %v1443, 0
      %v1476 = vsel %vm1471, %v1444, 0
      %v1479 = vsel %vm1471, %v1445, 0
      %v1482 = vsel %vm1471, %v1446, 0
      %1484 = vmatprep.subr.bf16.mxu0 0
      %1485 = vmatpush1.bf16.msra.mxu0 0
      %1486 = vmatprep.subr.bf16.mxu0 0
      %1487 = vmatpush1.bf16.msra.mxu0 0
      %1488 = vmatprep.subr.bf16.mxu0 0
      %1489 = vmatpush1.bf16.msra.mxu0 0
      %1490 = vmatprep.subr.bf16.mxu0 0
      %1491 = vmatpush1.bf16.msra.mxu0 0
      %1492 = vmatprep.subr.bf16.mxu0 0
      %1493 = vmatpush1.bf16.msra.mxu0 %v1466
      %1494 = vmatprep.subr.bf16.mxu0 0
      %1495 = vmatpush1.bf16.msra.mxu0 %v1465
      %1496 = vmatprep.subr.bf16.mxu0 0
      %1497 = vmatpush1.bf16.msra.mxu0 %v1464
      %1498 = vmatprep.subr.bf16.mxu0 0
      %1499 = vmatpush1.bf16.msra.mxu0 %v1463
      %1500 = vmatprep.subr.bf16.mxu0 0
      %1501 = vmatpush2.bf16.msra.mxu0 0
      %1502 = vmatprep.subr.bf16.mxu0 0
      %1503 = vmatpush2.bf16.msra.mxu0 0
      %1504 = vmatprep.subr.bf16.mxu0 0
      %1505 = vmatpush2.bf16.msra.mxu0 0
      %1506 = vmatprep.subr.bf16.mxu0 0
      %1507 = vmatpush2.bf16.msra.mxu0 0
      %1508 = vmatprep.subr.bf16.mxu0 0
      %1509 = vmatpush2.bf16.msra.mxu0 0
      %1510 = vmatprep.subr.bf16.mxu0 0
      %1511 = vmatpush2.bf16.msra.mxu0 0
      %1512 = vmatprep.subr.bf16.mxu0 0
      %1513 = vmatpush2.bf16.msra.mxu0 0
      %1514 = vmatprep.subr.bf16.mxu0 0
      %1515 = vmatpush2.bf16.msra.mxu0 0
      %1516 = vmatprep.mubr.bf16.mxu0 0
      %1517 = vmatmul.mubr.bf16.gmra.mxu0 %v1473
      %v1518 = vpop.f32.mrf.mxu0
      %v1519 = vadd.f32 %v1425, %v1518
      %v1520 = vpop.f32.mrf.mxu0
      %v1521 = vpop.f32.mrf.mxu0
      %v1522 = vadd.f32 %v1425, %v1521
      %v1523 = vpop.f32.mrf.mxu0
      %1524 = vmatprep.mubr.bf16.mxu0 0
      %1525 = vmatmul.mubr.bf16.gmra.mxu0 %v1476
      %v1526 = vpop.f32.mrf.mxu0
      %v1527 = vadd.f32 %v1425, %v1526
      %v1528 = vpop.f32.mrf.mxu0
      %v1529 = vpop.f32.mrf.mxu0
      %v1530 = vadd.f32 %v1425, %v1529
      %v1531 = vpop.f32.mrf.mxu0
      %1532 = vmatprep.mubr.bf16.mxu0 0
      %1533 = vmatmul.mubr.bf16.gmra.mxu0 %v1479
      %v1534 = vpop.f32.mrf.mxu0
      %v1535 = vadd.f32 %v1425, %v1534
      %v1536 = vpop.f32.mrf.mxu0
      %v1537 = vpop.f32.mrf.mxu0
      %v1538 = vadd.f32 %v1425, %v1537
      %v1539 = vpop.f32.mrf.mxu0
      %1540 = vmatprep.mubr.bf16.mxu0 0
      %1541 = vmatmul.mubr.bf16.gmra.mxu0 %v1482
      %v1542 = vpop.f32.mrf.mxu0
      %v1543 = vadd.f32 %v1425, %v1542
      %v1544 = vpop.f32.mrf.mxu0
      %v1545 = vpop.f32.mrf.mxu0
      %v1546 = vadd.f32 %v1425, %v1545
      %v1547 = vpop.f32.mrf.mxu0
      %1548 = vdwg.mxu0
      %v1549 = vmax.f32 %v1519, 0.0
      %v1550 = vmax.f32 %v1522, 0.0
      %v1551 = vmax.f32 %v1527, 0.0
      %v1552 = vmax.f32 %v1530, 0.0
      %v1553 = vmax.f32 %v1535, 0.0
      %v1554 = vmax.f32 %v1538, 0.0
      %v1555 = vmax.f32 %v1543, 0.0
      %v1556 = vmax.f32 %v1546, 0.0
      %v1557 = vpack.c.bf16 %v1550, %v1549
      %v1558 = vpack.c.bf16 %v1552, %v1551
      %v1559 = vpack.c.bf16 %v1554, %v1553
      %v1560 = vpack.c.bf16 %v1556, %v1555
      %v1565 = vcombine.high %v1557, %v1557
      %v1567 = vunpack.c.l.s4 1966171168
      %v1568 = vunpack.c.0.s8 %v1567
      %v1569 = vlaneseq
      %v1570 = vshrl.u32 %v1569, 7
      %v1571 = vsub.s32 %v1568, %v1570
      %v1572 = vrot.slane %v1557, %v1571
      %v1574 = vunpack.c.l.s4 1966171168
      %v1575 = vunpack.c.0.s8 %v1574
      %v1576 = vlaneseq
      %v1577 = vshrl.u32 %v1576, 7
      %v1578 = vsub.s32 %v1575, %v1577
      %v1579 = vrot.slane %v1565, %v1578
      %v1580 = vcombine.high %v1572, %v1572
      %v1581 = vcombine.high %v1579, %v1579
      %v1583 = vunpack.c.l.s4 1966171168
      %v1584 = vunpack.c.0.s8 %v1583
      %v1585 = vlaneseq
      %v1586 = vshrl.u32 %v1585, 7
      %v1587 = vsub.s32 %v1584, %v1586
      %v1588 = vrot.slane %v1572, %v1587
      %v1590 = vunpack.c.l.s4 1966171168
      %v1591 = vunpack.c.0.s8 %v1590
      %v1592 = vlaneseq
      %v1593 = vshrl.u32 %v1592, 7
      %v1594 = vsub.s32 %v1591, %v1593
      %v1595 = vrot.slane %v1579, %v1594
      %v1597 = vunpack.c.l.s4 1966171168
      %v1598 = vunpack.c.0.s8 %v1597
      %v1599 = vlaneseq
      %v1600 = vshrl.u32 %v1599, 7
      %v1601 = vsub.s32 %v1598, %v1600
      %v1602 = vrot.slane %v1580, %v1601
      %v1604 = vunpack.c.l.s4 1966171168
      %v1605 = vunpack.c.0.s8 %v1604
      %v1606 = vlaneseq
      %v1607 = vshrl.u32 %v1606, 7
      %v1608 = vsub.s32 %v1605, %v1607
      %v1609 = vrot.slane %v1581, %v1608
      %v1610 = vcombine.high %v1588, %v1588
      %v1611 = vcombine.high %v1595, %v1595
      %v1612 = vcombine.high %v1602, %v1602
      %v1613 = vcombine.high %v1609, %v1609
      %v1614 = vcombine.high %v1558, %v1558
      %v1616 = vunpack.c.l.s4 1966171168
      %v1617 = vunpack.c.0.s8 %v1616
      %v1618 = vlaneseq
      %v1619 = vshrl.u32 %v1618, 7
      %v1620 = vsub.s32 %v1617, %v1619
      %v1621 = vrot.slane %v1558, %v1620
      %v1623 = vunpack.c.l.s4 1966171168
      %v1624 = vunpack.c.0.s8 %v1623
      %v1625 = vlaneseq
      %v1626 = vshrl.u32 %v1625, 7
      %v1627 = vsub.s32 %v1624, %v1626
      %v1628 = vrot.slane %v1614, %v1627
      %v1629 = vcombine.high %v1621, %v1621
      %v1630 = vcombine.high %v1628, %v1628
      %v1632 = vunpack.c.l.s4 1966171168
      %v1633 = vunpack.c.0.s8 %v1632
      %v1634 = vlaneseq
      %v1635 = vshrl.u32 %v1634, 7
      %v1636 = vsub.s32 %v1633, %v1635
      %v1637 = vrot.slane %v1621, %v1636
      %v1639 = vunpack.c.l.s4 1966171168
      %v1640 = vunpack.c.0.s8 %v1639
      %v1641 = vlaneseq
      %v1642 = vshrl.u32 %v1641, 7
      %v1643 = vsub.s32 %v1640, %v1642
      %v1644 = vrot.slane %v1628, %v1643
      %v1646 = vunpack.c.l.s4 1966171168
      %v1647 = vunpack.c.0.s8 %v1646
      %v1648 = vlaneseq
      %v1649 = vshrl.u32 %v1648, 7
      %v1650 = vsub.s32 %v1647, %v1649
      %v1651 = vrot.slane %v1629, %v1650
      %v1653 = vunpack.c.l.s4 1966171168
      %v1654 = vunpack.c.0.s8 %v1653
      %v1655 = vlaneseq
      %v1656 = vshrl.u32 %v1655, 7
      %v1657 = vsub.s32 %v1654, %v1656
      %v1658 = vrot.slane %v1630, %v1657
      %v1659 = vcombine.high %v1637, %v1637
      %v1660 = vcombine.high %v1644, %v1644
      %v1661 = vcombine.high %v1651, %v1651
      %v1662 = vcombine.high %v1658, %v1658
      %v1663 = vcombine.high %v1559, %v1559
      %v1665 = vunpack.c.l.s4 1966171168
      %v1666 = vunpack.c.0.s8 %v1665
      %v1667 = vlaneseq
      %v1668 = vshrl.u32 %v1667, 7
      %v1669 = vsub.s32 %v1666, %v1668
      %v1670 = vrot.slane %v1559, %v1669
      %v1672 = vunpack.c.l.s4 1966171168
      %v1673 = vunpack.c.0.s8 %v1672
      %v1674 = vlaneseq
      %v1675 = vshrl.u32 %v1674, 7
      %v1676 = vsub.s32 %v1673, %v1675
      %v1677 = vrot.slane %v1663, %v1676
      %v1678 = vcombine.high %v1670, %v1670
      %v1679 = vcombine.high %v1677, %v1677
      %v1681 = vunpack.c.l.s4 1966171168
      %v1682 = vunpack.c.0.s8 %v1681
      %v1683 = vlaneseq
      %v1684 = vshrl.u32 %v1683, 7
      %v1685 = vsub.s32 %v1682, %v1684
      %v1686 = vrot.slane %v1670, %v1685
      %v1688 = vunpack.c.l.s4 1966171168
      %v1689 = vunpack.c.0.s8 %v1688
      %v1690 = vlaneseq
      %v1691 = vshrl.u32 %v1690, 7
      %v1692 = vsub.s32 %v1689, %v1691
      %v1693 = vrot.slane %v1677, %v1692
      %v1695 = vunpack.c.l.s4 1966171168
      %v1696 = vunpack.c.0.s8 %v1695
      %v1697 = vlaneseq
      %v1698 = vshrl.u32 %v1697, 7
      %v1699 = vsub.s32 %v1696, %v1698
      %v1700 = vrot.slane %v1678, %v1699
      %v1702 = vunpack.c.l.s4 1966171168
      %v1703 = vunpack.c.0.s8 %v1702
      %v1704 = vlaneseq
      %v1705 = vshrl.u32 %v1704, 7
      %v1706 = vsub.s32 %v1703, %v1705
      %v1707 = vrot.slane %v1679, %v1706
      %v1708 = vcombine.high %v1686, %v1686
      %v1709 = vcombine.high %v1693, %v1693
      %v1710 = vcombine.high %v1700, %v1700
      %v1711 = vcombine.high %v1707, %v1707
      %v1712 = vcombine.high %v1560, %v1560
      %v1714 = vunpack.c.l.s4 1966171168
      %v1715 = vunpack.c.0.s8 %v1714
      %v1716 = vlaneseq
      %v1717 = vshrl.u32 %v1716, 7
      %v1718 = vsub.s32 %v1715, %v1717
      %v1719 = vrot.slane %v1560, %v1718
      %v1721 = vunpack.c.l.s4 1966171168
      %v1722 = vunpack.c.0.s8 %v1721
      %v1723 = vlaneseq
      %v1724 = vshrl.u32 %v1723, 7
      %v1725 = vsub.s32 %v1722, %v1724
      %v1726 = vrot.slane %v1712, %v1725
      %v1727 = vcombine.high %v1719, %v1719
      %v1728 = vcombine.high %v1726, %v1726
      %v1730 = vunpack.c.l.s4 1966171168
      %v1731 = vunpack.c.0.s8 %v1730
      %v1732 = vlaneseq
      %v1733 = vshrl.u32 %v1732, 7
      %v1734 = vsub.s32 %v1731, %v1733
      %v1735 = vrot.slane %v1719, %v1734
      %v1737 = vunpack.c.l.s4 1966171168
      %v1738 = vunpack.c.0.s8 %v1737
      %v1739 = vlaneseq
      %v1740 = vshrl.u32 %v1739, 7
      %v1741 = vsub.s32 %v1738, %v1740
      %v1742 = vrot.slane %v1726, %v1741
      %v1744 = vunpack.c.l.s4 1966171168
      %v1745 = vunpack.c.0.s8 %v1744
      %v1746 = vlaneseq
      %v1747 = vshrl.u32 %v1746, 7
      %v1748 = vsub.s32 %v1745, %v1747
      %v1749 = vrot.slane %v1727, %v1748
      %v1751 = vunpack.c.l.s4 1966171168
      %v1752 = vunpack.c.0.s8 %v1751
      %v1753 = vlaneseq
      %v1754 = vshrl.u32 %v1753, 7
      %v1755 = vsub.s32 %v1752, %v1754
      %v1756 = vrot.slane %v1728, %v1755
      %v1757 = vcombine.high %v1735, %v1735
      %v1758 = vcombine.high %v1742, %v1742
      %v1759 = vcombine.high %v1749, %v1749
      %v1760 = vcombine.high %v1756, %v1756
      %s1793 = scalar_lea.vmem [#allocation2], 13
      %1794 = vst.msk [vmem:[%s1793] sm:$0x1] %vm280, %v1588
      %1795 = vst.msk [vmem:[%s1793 + $0x1] sm:$0x1] %vm280, %v1602
      %1796 = vst.msk [vmem:[%s1793 + $0x2] sm:$0x1] %vm280, %v1610
      %1797 = vst.msk [vmem:[%s1793 + $0x3] sm:$0x1] %vm280, %v1612
      %1798 = vst.msk [vmem:[%s1793 + $0x6] sm:$0x1] %vm280, %v1595
      %1799 = vst.msk [vmem:[%s1793 + $0x7] sm:$0x1] %vm280, %v1609
      %1800 = vst.msk [vmem:[%s1793 + $0x8] sm:$0x1] %vm280, %v1611
      %1801 = vst.msk [vmem:[%s1793 + $0x9] sm:$0x1] %vm280, %v1613
      %1802 = vst.msk [vmem:[%s1793 + $0xc] sm:$0x1] %vm280, %v1637
      %1803 = vst.msk [vmem:[%s1793 + $0xd] sm:$0x1] %vm280, %v1651
      %1804 = vst.msk [vmem:[%s1793 + $0xe] sm:$0x1] %vm280, %v1659
      %1805 = vst.msk [vmem:[%s1793 + $0xf] sm:$0x1] %vm280, %v1661
      %1806 = vst.msk [vmem:[%s1793 + $0x12] sm:$0x1] %vm280, %v1644
      %1807 = vst.msk [vmem:[%s1793 + $0x13] sm:$0x1] %vm280, %v1658
      %1808 = vst.msk [vmem:[%s1793 + $0x14] sm:$0x1] %vm280, %v1660
      %1809 = vst.msk [vmem:[%s1793 + $0x15] sm:$0x1] %vm280, %v1662
      %1810 = vst.msk [vmem:[%s1793 + $0x18] sm:$0x1] %vm280, %v1686
      %1811 = vst.msk [vmem:[%s1793 + $0x19] sm:$0x1] %vm280, %v1700
      %1812 = vst.msk [vmem:[%s1793 + $0x1a] sm:$0x1] %vm280, %v1708
      %1813 = vst.msk [vmem:[%s1793 + $0x1b] sm:$0x1] %vm280, %v1710
      %1814 = vst.msk [vmem:[%s1793 + $0x1e] sm:$0x1] %vm280, %v1693
      %1815 = vst.msk [vmem:[%s1793 + $0x1f] sm:$0x1] %vm280, %v1707
      %1816 = vst.msk [vmem:[%s1793 + $0x20] sm:$0x1] %vm280, %v1709
      %1817 = vst.msk [vmem:[%s1793 + $0x21] sm:$0x1] %vm280, %v1711
      %1818 = vst.msk [vmem:[%s1793 + $0x24] sm:$0x1] %vm280, %v1735
      %1819 = vst.msk [vmem:[%s1793 + $0x25] sm:$0x1] %vm280, %v1749
      %1820 = vst.msk [vmem:[%s1793 + $0x26] sm:$0x1] %vm280, %v1757
      %1821 = vst.msk [vmem:[%s1793 + $0x27] sm:$0x1] %vm280, %v1759
      %1822 = vst.msk [vmem:[%s1793 + $0x2a] sm:$0x1] %vm280, %v1742
      %1823 = vst.msk [vmem:[%s1793 + $0x2b] sm:$0x1] %vm280, %v1756
      %1824 = vst.msk [vmem:[%s1793 + $0x2c] sm:$0x1] %vm280, %v1758
      %1825 = vst.msk [vmem:[%s1793 + $0x2d] sm:$0x1] %vm280, %v1760
      %s1826 = scalar_lea.vmem [#allocation2], 6
      %v1827 = vld [vmem:[%s1826] sm:$0x1]
      %v1828 = vld [vmem:[%s1826 + $0x1] sm:$0x1]
      %v1829 = vld [vmem:[%s1826 + $0x2] sm:$0x1]
      %v1830 = vld [vmem:[%s1826 + $0x3] sm:$0x1]
      %v1831 = vld [vmem:[%s1826 + $0xc] sm:$0x1]
      %v1832 = vld [vmem:[%s1826 + $0xd] sm:$0x1]
      %v1833 = vld [vmem:[%s1826 + $0xe] sm:$0x1]
      %v1834 = vld [vmem:[%s1826 + $0xf] sm:$0x1]
      %v1835 = vld [vmem:[%s1826 + $0x18] sm:$0x1]
      %v1836 = vld [vmem:[%s1826 + $0x19] sm:$0x1]
      %v1837 = vld [vmem:[%s1826 + $0x1a] sm:$0x1]
      %v1838 = vld [vmem:[%s1826 + $0x1b] sm:$0x1]
      %v1839 = vld [vmem:[%s1826 + $0x24] sm:$0x1]
      %v1840 = vld [vmem:[%s1826 + $0x25] sm:$0x1]
      %v1841 = vld [vmem:[%s1826 + $0x26] sm:$0x1]
      %v1842 = vld [vmem:[%s1826 + $0x27] sm:$0x1]
      %v1860 = vunpack.c.l.s4 1935823168
      %v1861 = vunpack.c.0.s8 %v1860
      %v1862 = vlaneseq
      %v1863 = vshrl.u32 %v1862, 7
      %v1864 = vsub.s32 %v1861, %v1863
      %v1865 = vrot.slane %v1827, %v1864
      %v1867 = vunpack.c.l.s4 1935823168
      %v1868 = vunpack.c.0.s8 %v1867
      %v1869 = vlaneseq
      %v1870 = vshrl.u32 %v1869, 7
      %v1871 = vsub.s32 %v1868, %v1870
      %v1872 = vrot.slane %v1865, %v1871
      %v1874 = vunpack.c.l.s4 1935823168
      %v1875 = vunpack.c.0.s8 %v1874
      %v1876 = vlaneseq
      %v1877 = vshrl.u32 %v1876, 7
      %v1878 = vsub.s32 %v1875, %v1877
      %v1879 = vrot.slane %v1828, %v1878
      %v1881 = vunpack.c.l.s4 1935823168
      %v1882 = vunpack.c.0.s8 %v1881
      %v1883 = vlaneseq
      %v1884 = vshrl.u32 %v1883, 7
      %v1885 = vsub.s32 %v1882, %v1884
      %v1886 = vrot.slane %v1879, %v1885
      %v1888 = vunpack.c.l.s4 1935823168
      %v1889 = vunpack.c.0.s8 %v1888
      %v1890 = vlaneseq
      %v1891 = vshrl.u32 %v1890, 7
      %v1892 = vsub.s32 %v1889, %v1891
      %v1893 = vrot.slane %v1829, %v1892
      %v1895 = vunpack.c.l.s4 1935823168
      %v1896 = vunpack.c.0.s8 %v1895
      %v1897 = vlaneseq
      %v1898 = vshrl.u32 %v1897, 7
      %v1899 = vsub.s32 %v1896, %v1898
      %v1900 = vrot.slane %v1893, %v1899
      %v1902 = vunpack.c.l.s4 1935823168
      %v1903 = vunpack.c.0.s8 %v1902
      %v1904 = vlaneseq
      %v1905 = vshrl.u32 %v1904, 7
      %v1906 = vsub.s32 %v1903, %v1905
      %v1907 = vrot.slane %v1830, %v1906
      %v1909 = vunpack.c.l.s4 1935823168
      %v1910 = vunpack.c.0.s8 %v1909
      %v1911 = vlaneseq
      %v1912 = vshrl.u32 %v1911, 7
      %v1913 = vsub.s32 %v1910, %v1912
      %v1914 = vrot.slane %v1907, %v1913
      %v1916 = vunpack.c.l.s4 1935823168
      %v1917 = vunpack.c.0.s8 %v1916
      %v1918 = vlaneseq
      %v1919 = vshrl.u32 %v1918, 7
      %v1920 = vsub.s32 %v1917, %v1919
      %v1921 = vrot.slane %v1831, %v1920
      %v1923 = vunpack.c.l.s4 1935823168
      %v1924 = vunpack.c.0.s8 %v1923
      %v1925 = vlaneseq
      %v1926 = vshrl.u32 %v1925, 7
      %v1927 = vsub.s32 %v1924, %v1926
      %v1928 = vrot.slane %v1921, %v1927
      %v1930 = vunpack.c.l.s4 1935823168
      %v1931 = vunpack.c.0.s8 %v1930
      %v1932 = vlaneseq
      %v1933 = vshrl.u32 %v1932, 7
      %v1934 = vsub.s32 %v1931, %v1933
      %v1935 = vrot.slane %v1832, %v1934
      %v1937 = vunpack.c.l.s4 1935823168
      %v1938 = vunpack.c.0.s8 %v1937
      %v1939 = vlaneseq
      %v1940 = vshrl.u32 %v1939, 7
      %v1941 = vsub.s32 %v1938, %v1940
      %v1942 = vrot.slane %v1935, %v1941
      %v1944 = vunpack.c.l.s4 1935823168
      %v1945 = vunpack.c.0.s8 %v1944
      %v1946 = vlaneseq
      %v1947 = vshrl.u32 %v1946, 7
      %v1948 = vsub.s32 %v1945, %v1947
      %v1949 = vrot.slane %v1833, %v1948
      %v1951 = vunpack.c.l.s4 1935823168
      %v1952 = vunpack.c.0.s8 %v1951
      %v1953 = vlaneseq
      %v1954 = vshrl.u32 %v1953, 7
      %v1955 = vsub.s32 %v1952, %v1954
      %v1956 = vrot.slane %v1949, %v1955
      %v1958 = vunpack.c.l.s4 1935823168
      %v1959 = vunpack.c.0.s8 %v1958
      %v1960 = vlaneseq
      %v1961 = vshrl.u32 %v1960, 7
      %v1962 = vsub.s32 %v1959, %v1961
      %v1963 = vrot.slane %v1834, %v1962
      %v1965 = vunpack.c.l.s4 1935823168
      %v1966 = vunpack.c.0.s8 %v1965
      %v1967 = vlaneseq
      %v1968 = vshrl.u32 %v1967, 7
      %v1969 = vsub.s32 %v1966, %v1968
      %v1970 = vrot.slane %v1963, %v1969
      %v1972 = vunpack.c.l.s4 1935823168
      %v1973 = vunpack.c.0.s8 %v1972
      %v1974 = vlaneseq
      %v1975 = vshrl.u32 %v1974, 7
      %v1976 = vsub.s32 %v1973, %v1975
      %v1977 = vrot.slane %v1835, %v1976
      %v1979 = vunpack.c.l.s4 1935823168
      %v1980 = vunpack.c.0.s8 %v1979
      %v1981 = vlaneseq
      %v1982 = vshrl.u32 %v1981, 7
      %v1983 = vsub.s32 %v1980, %v1982
      %v1984 = vrot.slane %v1977, %v1983
      %v1986 = vunpack.c.l.s4 1935823168
      %v1987 = vunpack.c.0.s8 %v1986
      %v1988 = vlaneseq
      %v1989 = vshrl.u32 %v1988, 7
      %v1990 = vsub.s32 %v1987, %v1989
      %v1991 = vrot.slane %v1836, %v1990
      %v1993 = vunpack.c.l.s4 1935823168
      %v1994 = vunpack.c.0.s8 %v1993
      %v1995 = vlaneseq
      %v1996 = vshrl.u32 %v1995, 7
      %v1997 = vsub.s32 %v1994, %v1996
      %v1998 = vrot.slane %v1991, %v1997
      %v2000 = vunpack.c.l.s4 1935823168
      %v2001 = vunpack.c.0.s8 %v2000
      %v2002 = vlaneseq
      %v2003 = vshrl.u32 %v2002, 7
      %v2004 = vsub.s32 %v2001, %v2003
      %v2005 = vrot.slane %v1837, %v2004
      %v2007 = vunpack.c.l.s4 1935823168
      %v2008 = vunpack.c.0.s8 %v2007
      %v2009 = vlaneseq
      %v2010 = vshrl.u32 %v2009, 7
      %v2011 = vsub.s32 %v2008, %v2010
      %v2012 = vrot.slane %v2005, %v2011
      %v2014 = vunpack.c.l.s4 1935823168
      %v2015 = vunpack.c.0.s8 %v2014
      %v2016 = vlaneseq
      %v2017 = vshrl.u32 %v2016, 7
      %v2018 = vsub.s32 %v2015, %v2017
      %v2019 = vrot.slane %v1838, %v2018
      %v2021 = vunpack.c.l.s4 1935823168
      %v2022 = vunpack.c.0.s8 %v2021
      %v2023 = vlaneseq
      %v2024 = vshrl.u32 %v2023, 7
      %v2025 = vsub.s32 %v2022, %v2024
      %v2026 = vrot.slane %v2019, %v2025
      %v2028 = vunpack.c.l.s4 1935823168
      %v2029 = vunpack.c.0.s8 %v2028
      %v2030 = vlaneseq
      %v2031 = vshrl.u32 %v2030, 7
      %v2032 = vsub.s32 %v2029, %v2031
      %v2033 = vrot.slane %v1839, %v2032
      %v2035 = vunpack.c.l.s4 1935823168
      %v2036 = vunpack.c.0.s8 %v2035
      %v2037 = vlaneseq
      %v2038 = vshrl.u32 %v2037, 7
      %v2039 = vsub.s32 %v2036, %v2038
      %v2040 = vrot.slane %v2033, %v2039
      %v2042 = vunpack.c.l.s4 1935823168
      %v2043 = vunpack.c.0.s8 %v2042
      %v2044 = vlaneseq
      %v2045 = vshrl.u32 %v2044, 7
      %v2046 = vsub.s32 %v2043, %v2045
      %v2047 = vrot.slane %v1840, %v2046
      %v2049 = vunpack.c.l.s4 1935823168
      %v2050 = vunpack.c.0.s8 %v2049
      %v2051 = vlaneseq
      %v2052 = vshrl.u32 %v2051, 7
      %v2053 = vsub.s32 %v2050, %v2052
      %v2054 = vrot.slane %v2047, %v2053
      %v2056 = vunpack.c.l.s4 1935823168
      %v2057 = vunpack.c.0.s8 %v2056
      %v2058 = vlaneseq
      %v2059 = vshrl.u32 %v2058, 7
      %v2060 = vsub.s32 %v2057, %v2059
      %v2061 = vrot.slane %v1841, %v2060
      %v2063 = vunpack.c.l.s4 1935823168
      %v2064 = vunpack.c.0.s8 %v2063
      %v2065 = vlaneseq
      %v2066 = vshrl.u32 %v2065, 7
      %v2067 = vsub.s32 %v2064, %v2066
      %v2068 = vrot.slane %v2061, %v2067
      %v2070 = vunpack.c.l.s4 1935823168
      %v2071 = vunpack.c.0.s8 %v2070
      %v2072 = vlaneseq
      %v2073 = vshrl.u32 %v2072, 7
      %v2074 = vsub.s32 %v2071, %v2073
      %v2075 = vrot.slane %v1842, %v2074
      %v2077 = vunpack.c.l.s4 1935823168
      %v2078 = vunpack.c.0.s8 %v2077
      %v2079 = vlaneseq
      %v2080 = vshrl.u32 %v2079, 7
      %v2081 = vsub.s32 %v2078, %v2080
      %v2082 = vrot.slane %v2075, %v2081
      %v2083 = vunpack.c.l.b16 %v1872
      %v2084 = vunpack.c.l.b16 %v1886
      %v2085 = vunpack.c.l.b16 %v1900
      %v2086 = vunpack.c.l.b16 %v1914
      %v2087 = vunpack.c.l.b16 %v1928
      %v2088 = vunpack.c.l.b16 %v1942
      %v2089 = vunpack.c.l.b16 %v1956
      %v2090 = vunpack.c.l.b16 %v1970
      %v2091 = vunpack.c.l.b16 %v1984
      %v2092 = vunpack.c.l.b16 %v1998
      %v2093 = vunpack.c.l.b16 %v2012
      %v2094 = vunpack.c.l.b16 %v2026
      %v2095 = vunpack.c.l.b16 %v2040
      %v2096 = vunpack.c.l.b16 %v2054
      %v2097 = vunpack.c.l.b16 %v2068
      %v2098 = vunpack.c.l.b16 %v2082
      %v2099 = vrot.slane %v2083, 1
      %vm2100 = vcmask 1041409
      %v2101 = vsel %vm2100, %v2084, %v2099
      %v2102 = vrot.slane %v2085, 7
      %vm2103 = vcmask 1042434
      %v2104 = vsel %vm2103, %v2102, %v2101
      %v2105 = vrot.slane %v2086, 6
      %vm2106 = vcmask 1043459
      %v2107 = vsel %vm2106, %v2105, %v2104
      %v2108 = vrot.slane %v2087, 5
      %vm2109 = vcmask 1044484
      %v2110 = vsel %vm2109, %v2108, %v2107
      %v2111 = vrot.slane %v2088, 4
      %vm2112 = vcmask 1045509
      %v2113 = vsel %vm2112, %v2111, %v2110
      %v2114 = vrot.slane %v2089, 3
      %vm2115 = vcmask 1046534
      %v2116 = vsel %vm2115, %v2114, %v2113
      %v2117 = vrot.slane %v2090, 2
      %vm2118 = vcmask 1047559
      %v2119 = vsel %vm2118, %v2117, %v2116
      %v2120 = vrot.slane %v2091, 1
      %v2121 = vsel %vm2100, %v2092, %v2120
      %v2122 = vrot.slane %v2093, 7
      %v2123 = vsel %vm2103, %v2122, %v2121
      %v2124 = vrot.slane %v2094, 6
      %v2125 = vsel %vm2106, %v2124, %v2123
      %v2126 = vrot.slane %v2095, 5
      %v2127 = vsel %vm2109, %v2126, %v2125
      %v2128 = vrot.slane %v2096, 4
      %v2129 = vsel %vm2112, %v2128, %v2127
      %v2130 = vrot.slane %v2097, 3
      %v2131 = vsel %vm2115, %v2130, %v2129
      %v2132 = vrot.slane %v2098, 2
      %v2133 = vsel %vm2118, %v2132, %v2131
      %v2134 = vpack.c.b16 %v2119, %v2119
      %v2135 = vpack.c.b16 %v2133, %v2133
      %vm2138 = vcmask 257024
      %2139 = vst.msk [vmem:[#allocation5] sm:$0xf] %vm2138, %v2134
      %2140 = vst.msk [vmem:[#allocation5 + $0x10] sm:$0xf] %vm2138, %v2135
      %s2141 = scalar_lea.vmem [#allocation2], 7
      %v2142 = vld [vmem:[%s2141] sm:$0x1]
      %v2143 = vld [vmem:[%s2141 + $0x1] sm:$0x1]
      %v2144 = vld [vmem:[%s2141 + $0x2] sm:$0x1]
      %v2145 = vld [vmem:[%s2141 + $0x3] sm:$0x1]
      %v2146 = vld [vmem:[%s2141 + $0xc] sm:$0x1]
      %v2147 = vld [vmem:[%s2141 + $0xd] sm:$0x1]
      %v2148 = vld [vmem:[%s2141 + $0xe] sm:$0x1]
      %v2149 = vld [vmem:[%s2141 + $0xf] sm:$0x1]
      %v2150 = vld [vmem:[%s2141 + $0x18] sm:$0x1]
      %v2151 = vld [vmem:[%s2141 + $0x19] sm:$0x1]
      %v2152 = vld [vmem:[%s2141 + $0x1a] sm:$0x1]
      %v2153 = vld [vmem:[%s2141 + $0x1b] sm:$0x1]
      %v2154 = vld [vmem:[%s2141 + $0x24] sm:$0x1]
      %v2155 = vld [vmem:[%s2141 + $0x25] sm:$0x1]
      %v2156 = vld [vmem:[%s2141 + $0x26] sm:$0x1]
      %v2157 = vld [vmem:[%s2141 + $0x27] sm:$0x1]
      %v2175 = vunpack.c.l.s4 1935823168
      %v2176 = vunpack.c.0.s8 %v2175
      %v2177 = vlaneseq
      %v2178 = vshrl.u32 %v2177, 7
      %v2179 = vsub.s32 %v2176, %v2178
      %v2180 = vrot.slane %v2142, %v2179
      %v2182 = vunpack.c.l.s4 1935823168
      %v2183 = vunpack.c.0.s8 %v2182
      %v2184 = vlaneseq
      %v2185 = vshrl.u32 %v2184, 7
      %v2186 = vsub.s32 %v2183, %v2185
      %v2187 = vrot.slane %v2180, %v2186
      %v2189 = vunpack.c.l.s4 1935823168
      %v2190 = vunpack.c.0.s8 %v2189
      %v2191 = vlaneseq
      %v2192 = vshrl.u32 %v2191, 7
      %v2193 = vsub.s32 %v2190, %v2192
      %v2194 = vrot.slane %v2143, %v2193
      %v2196 = vunpack.c.l.s4 1935823168
      %v2197 = vunpack.c.0.s8 %v2196
      %v2198 = vlaneseq
      %v2199 = vshrl.u32 %v2198, 7
      %v2200 = vsub.s32 %v2197, %v2199
      %v2201 = vrot.slane %v2194, %v2200
      %v2203 = vunpack.c.l.s4 1935823168
      %v2204 = vunpack.c.0.s8 %v2203
      %v2205 = vlaneseq
      %v2206 = vshrl.u32 %v2205, 7
      %v2207 = vsub.s32 %v2204, %v2206
      %v2208 = vrot.slane %v2144, %v2207
      %v2210 = vunpack.c.l.s4 1935823168
      %v2211 = vunpack.c.0.s8 %v2210
      %v2212 = vlaneseq
      %v2213 = vshrl.u32 %v2212, 7
      %v2214 = vsub.s32 %v2211, %v2213
      %v2215 = vrot.slane %v2208, %v2214
      %v2217 = vunpack.c.l.s4 1935823168
      %v2218 = vunpack.c.0.s8 %v2217
      %v2219 = vlaneseq
      %v2220 = vshrl.u32 %v2219, 7
      %v2221 = vsub.s32 %v2218, %v2220
      %v2222 = vrot.slane %v2145, %v2221
      %v2224 = vunpack.c.l.s4 1935823168
      %v2225 = vunpack.c.0.s8 %v2224
      %v2226 = vlaneseq
      %v2227 = vshrl.u32 %v2226, 7
      %v2228 = vsub.s32 %v2225, %v2227
      %v2229 = vrot.slane %v2222, %v2228
      %v2231 = vunpack.c.l.s4 1935823168
      %v2232 = vunpack.c.0.s8 %v2231
      %v2233 = vlaneseq
      %v2234 = vshrl.u32 %v2233, 7
      %v2235 = vsub.s32 %v2232, %v2234
      %v2236 = vrot.slane %v2146, %v2235
      %v2238 = vunpack.c.l.s4 1935823168
      %v2239 = vunpack.c.0.s8 %v2238
      %v2240 = vlaneseq
      %v2241 = vshrl.u32 %v2240, 7
      %v2242 = vsub.s32 %v2239, %v2241
      %v2243 = vrot.slane %v2236, %v2242
      %v2245 = vunpack.c.l.s4 1935823168
      %v2246 = vunpack.c.0.s8 %v2245
      %v2247 = vlaneseq
      %v2248 = vshrl.u32 %v2247, 7
      %v2249 = vsub.s32 %v2246, %v2248
      %v2250 = vrot.slane %v2147, %v2249
      %v2252 = vunpack.c.l.s4 1935823168
      %v2253 = vunpack.c.0.s8 %v2252
      %v2254 = vlaneseq
      %v2255 = vshrl.u32 %v2254, 7
      %v2256 = vsub.s32 %v2253, %v2255
      %v2257 = vrot.slane %v2250, %v2256
      %v2259 = vunpack.c.l.s4 1935823168
      %v2260 = vunpack.c.0.s8 %v2259
      %v2261 = vlaneseq
      %v2262 = vshrl.u32 %v2261, 7
      %v2263 = vsub.s32 %v2260, %v2262
      %v2264 = vrot.slane %v2148, %v2263
      %v2266 = vunpack.c.l.s4 1935823168
      %v2267 = vunpack.c.0.s8 %v2266
      %v2268 = vlaneseq
      %v2269 = vshrl.u32 %v2268, 7
      %v2270 = vsub.s32 %v2267, %v2269
      %v2271 = vrot.slane %v2264, %v2270
      %v2273 = vunpack.c.l.s4 1935823168
      %v2274 = vunpack.c.0.s8 %v2273
      %v2275 = vlaneseq
      %v2276 = vshrl.u32 %v2275, 7
      %v2277 = vsub.s32 %v2274, %v2276
      %v2278 = vrot.slane %v2149, %v2277
      %v2280 = vunpack.c.l.s4 1935823168
      %v2281 = vunpack.c.0.s8 %v2280
      %v2282 = vlaneseq
      %v2283 = vshrl.u32 %v2282, 7
      %v2284 = vsub.s32 %v2281, %v2283
      %v2285 = vrot.slane %v2278, %v2284
      %v2287 = vunpack.c.l.s4 1935823168
      %v2288 = vunpack.c.0.s8 %v2287
      %v2289 = vlaneseq
      %v2290 = vshrl.u32 %v2289, 7
      %v2291 = vsub.s32 %v2288, %v2290
      %v2292 = vrot.slane %v2150, %v2291
      %v2294 = vunpack.c.l.s4 1935823168
      %v2295 = vunpack.c.0.s8 %v2294
      %v2296 = vlaneseq
      %v2297 = vshrl.u32 %v2296, 7
      %v2298 = vsub.s32 %v2295, %v2297
      %v2299 = vrot.slane %v2292, %v2298
      %v2301 = vunpack.c.l.s4 1935823168
      %v2302 = vunpack.c.0.s8 %v2301
      %v2303 = vlaneseq
      %v2304 = vshrl.u32 %v2303, 7
      %v2305 = vsub.s32 %v2302, %v2304
      %v2306 = vrot.slane %v2151, %v2305
      %v2308 = vunpack.c.l.s4 1935823168
      %v2309 = vunpack.c.0.s8 %v2308
      %v2310 = vlaneseq
      %v2311 = vshrl.u32 %v2310, 7
      %v2312 = vsub.s32 %v2309, %v2311
      %v2313 = vrot.slane %v2306, %v2312
      %v2315 = vunpack.c.l.s4 1935823168
      %v2316 = vunpack.c.0.s8 %v2315
      %v2317 = vlaneseq
      %v2318 = vshrl.u32 %v2317, 7
      %v2319 = vsub.s32 %v2316, %v2318
      %v2320 = vrot.slane %v2152, %v2319
      %v2322 = vunpack.c.l.s4 1935823168
      %v2323 = vunpack.c.0.s8 %v2322
      %v2324 = vlaneseq
      %v2325 = vshrl.u32 %v2324, 7
      %v2326 = vsub.s32 %v2323, %v2325
      %v2327 = vrot.slane %v2320, %v2326
      %v2329 = vunpack.c.l.s4 1935823168
      %v2330 = vunpack.c.0.s8 %v2329
      %v2331 = vlaneseq
      %v2332 = vshrl.u32 %v2331, 7
      %v2333 = vsub.s32 %v2330, %v2332
      %v2334 = vrot.slane %v2153, %v2333
      %v2336 = vunpack.c.l.s4 1935823168
      %v2337 = vunpack.c.0.s8 %v2336
      %v2338 = vlaneseq
      %v2339 = vshrl.u32 %v2338, 7
      %v2340 = vsub.s32 %v2337, %v2339
      %v2341 = vrot.slane %v2334, %v2340
      %v2343 = vunpack.c.l.s4 1935823168
      %v2344 = vunpack.c.0.s8 %v2343
      %v2345 = vlaneseq
      %v2346 = vshrl.u32 %v2345, 7
      %v2347 = vsub.s32 %v2344, %v2346
      %v2348 = vrot.slane %v2154, %v2347
      %v2350 = vunpack.c.l.s4 1935823168
      %v2351 = vunpack.c.0.s8 %v2350
      %v2352 = vlaneseq
      %v2353 = vshrl.u32 %v2352, 7
      %v2354 = vsub.s32 %v2351, %v2353
      %v2355 = vrot.slane %v2348, %v2354
      %v2357 = vunpack.c.l.s4 1935823168
      %v2358 = vunpack.c.0.s8 %v2357
      %v2359 = vlaneseq
      %v2360 = vshrl.u32 %v2359, 7
      %v2361 = vsub.s32 %v2358, %v2360
      %v2362 = vrot.slane %v2155, %v2361
      %v2364 = vunpack.c.l.s4 1935823168
      %v2365 = vunpack.c.0.s8 %v2364
      %v2366 = vlaneseq
      %v2367 = vshrl.u32 %v2366, 7
      %v2368 = vsub.s32 %v2365, %v2367
      %v2369 = vrot.slane %v2362, %v2368
      %v2371 = vunpack.c.l.s4 1935823168
      %v2372 = vunpack.c.0.s8 %v2371
      %v2373 = vlaneseq
      %v2374 = vshrl.u32 %v2373, 7
      %v2375 = vsub.s32 %v2372, %v2374
      %v2376 = vrot.slane %v2156, %v2375
      %v2378 = vunpack.c.l.s4 1935823168
      %v2379 = vunpack.c.0.s8 %v2378
      %v2380 = vlaneseq
      %v2381 = vshrl.u32 %v2380, 7
      %v2382 = vsub.s32 %v2379, %v2381
      %v2383 = vrot.slane %v2376, %v2382
      %v2385 = vunpack.c.l.s4 1935823168
      %v2386 = vunpack.c.0.s8 %v2385
      %v2387 = vlaneseq
      %v2388 = vshrl.u32 %v2387, 7
      %v2389 = vsub.s32 %v2386, %v2388
      %v2390 = vrot.slane %v2157, %v2389
      %v2392 = vunpack.c.l.s4 1935823168
      %v2393 = vunpack.c.0.s8 %v2392
      %v2394 = vlaneseq
      %v2395 = vshrl.u32 %v2394, 7
      %v2396 = vsub.s32 %v2393, %v2395
      %v2397 = vrot.slane %v2390, %v2396
      %v2398 = vunpack.c.l.b16 %v2187
      %v2399 = vunpack.c.l.b16 %v2201
      %v2400 = vunpack.c.l.b16 %v2215
      %v2401 = vunpack.c.l.b16 %v2229
      %v2402 = vunpack.c.l.b16 %v2243
      %v2403 = vunpack.c.l.b16 %v2257
      %v2404 = vunpack.c.l.b16 %v2271
      %v2405 = vunpack.c.l.b16 %v2285
      %v2406 = vunpack.c.l.b16 %v2299
      %v2407 = vunpack.c.l.b16 %v2313
      %v2408 = vunpack.c.l.b16 %v2327
      %v2409 = vunpack.c.l.b16 %v2341
      %v2410 = vunpack.c.l.b16 %v2355
      %v2411 = vunpack.c.l.b16 %v2369
      %v2412 = vunpack.c.l.b16 %v2383
      %v2413 = vunpack.c.l.b16 %v2397
      %v2414 = vrot.slane %v2399, 7
      %v2415 = vsel %vm2100, %v2414, %v2398
      %v2416 = vrot.slane %v2400, 6
      %v2417 = vsel %vm2103, %v2416, %v2415
      %v2418 = vrot.slane %v2401, 5
      %v2419 = vsel %vm2106, %v2418, %v2417
      %v2420 = vrot.slane %v2402, 4
      %v2421 = vsel %vm2109, %v2420, %v2419
      %v2422 = vrot.slane %v2403, 3
      %v2423 = vsel %vm2112, %v2422, %v2421
      %v2424 = vrot.slane %v2404, 2
      %v2425 = vsel %vm2115, %v2424, %v2423
      %v2426 = vrot.slane %v2405, 1
      %v2427 = vsel %vm2118, %v2426, %v2425
      %v2428 = vrot.slane %v2407, 7
      %v2429 = vsel %vm2100, %v2428, %v2406
      %v2430 = vrot.slane %v2408, 6
      %v2431 = vsel %vm2103, %v2430, %v2429
      %v2432 = vrot.slane %v2409, 5
      %v2433 = vsel %vm2106, %v2432, %v2431
      %v2434 = vrot.slane %v2410, 4
      %v2435 = vsel %vm2109, %v2434, %v2433
      %v2436 = vrot.slane %v2411, 3
      %v2437 = vsel %vm2112, %v2436, %v2435
      %v2438 = vrot.slane %v2412, 2
      %v2439 = vsel %vm2115, %v2438, %v2437
      %v2440 = vrot.slane %v2413, 1
      %v2441 = vsel %vm2118, %v2440, %v2439
      %v2442 = vpack.c.b16 %v2427, %v2427
      %v2443 = vpack.c.b16 %v2441, %v2441
      %2444 = vrot.lane.b32.xlu0 %v2442, 32
      %v2445 = vpop.permute.xlu0 %2444
      %2446 = vrot.lane.b32.xlu0 %v2443, 32
      %v2447 = vpop.permute.xlu0 %2446
      %vm2450 = vcmask 519424
      %2451 = vst.msk [vmem:[#allocation5] sm:$0xf] %vm2450, %v2445
      %2452 = vst.msk [vmem:[#allocation5 + $0x10] sm:$0xf] %vm2450, %v2447
      %v2453 = vld [vmem:[%s2141] sm:$0x1]
      %v2454 = vld [vmem:[%s2141 + $0x1] sm:$0x1]
      %v2455 = vld [vmem:[%s2141 + $0x2] sm:$0x1]
      %v2456 = vld [vmem:[%s2141 + $0x3] sm:$0x1]
      %v2457 = vld [vmem:[%s2141 + $0xc] sm:$0x1]
      %v2458 = vld [vmem:[%s2141 + $0xd] sm:$0x1]
      %v2459 = vld [vmem:[%s2141 + $0xe] sm:$0x1]
      %v2460 = vld [vmem:[%s2141 + $0xf] sm:$0x1]
      %v2461 = vld [vmem:[%s2141 + $0x18] sm:$0x1]
      %v2462 = vld [vmem:[%s2141 + $0x19] sm:$0x1]
      %v2463 = vld [vmem:[%s2141 + $0x1a] sm:$0x1]
      %v2464 = vld [vmem:[%s2141 + $0x1b] sm:$0x1]
      %v2465 = vld [vmem:[%s2141 + $0x24] sm:$0x1]
      %v2466 = vld [vmem:[%s2141 + $0x25] sm:$0x1]
      %v2467 = vld [vmem:[%s2141 + $0x26] sm:$0x1]
      %v2468 = vld [vmem:[%s2141 + $0x27] sm:$0x1]
      %v2486 = vunpack.c.l.s4 1935823168
      %v2487 = vunpack.c.0.s8 %v2486
      %v2488 = vlaneseq
      %v2489 = vshrl.u32 %v2488, 7
      %v2490 = vsub.s32 %v2487, %v2489
      %v2491 = vrot.slane %v2453, %v2490
      %v2493 = vunpack.c.l.s4 1935823168
      %v2494 = vunpack.c.0.s8 %v2493
      %v2495 = vlaneseq
      %v2496 = vshrl.u32 %v2495, 7
      %v2497 = vsub.s32 %v2494, %v2496
      %v2498 = vrot.slane %v2491, %v2497
      %v2500 = vunpack.c.l.s4 1935823168
      %v2501 = vunpack.c.0.s8 %v2500
      %v2502 = vlaneseq
      %v2503 = vshrl.u32 %v2502, 7
      %v2504 = vsub.s32 %v2501, %v2503
      %v2505 = vrot.slane %v2454, %v2504
      %v2507 = vunpack.c.l.s4 1935823168
      %v2508 = vunpack.c.0.s8 %v2507
      %v2509 = vlaneseq
      %v2510 = vshrl.u32 %v2509, 7
      %v2511 = vsub.s32 %v2508, %v2510
      %v2512 = vrot.slane %v2505, %v2511
      %v2514 = vunpack.c.l.s4 1935823168
      %v2515 = vunpack.c.0.s8 %v2514
      %v2516 = vlaneseq
      %v2517 = vshrl.u32 %v2516, 7
      %v2518 = vsub.s32 %v2515, %v2517
      %v2519 = vrot.slane %v2455, %v2518
      %v2521 = vunpack.c.l.s4 1935823168
      %v2522 = vunpack.c.0.s8 %v2521
      %v2523 = vlaneseq
      %v2524 = vshrl.u32 %v2523, 7
      %v2525 = vsub.s32 %v2522, %v2524
      %v2526 = vrot.slane %v2519, %v2525
      %v2528 = vunpack.c.l.s4 1935823168
      %v2529 = vunpack.c.0.s8 %v2528
      %v2530 = vlaneseq
      %v2531 = vshrl.u32 %v2530, 7
      %v2532 = vsub.s32 %v2529, %v2531
      %v2533 = vrot.slane %v2456, %v2532
      %v2535 = vunpack.c.l.s4 1935823168
      %v2536 = vunpack.c.0.s8 %v2535
      %v2537 = vlaneseq
      %v2538 = vshrl.u32 %v2537, 7
      %v2539 = vsub.s32 %v2536, %v2538
      %v2540 = vrot.slane %v2533, %v2539
      %v2542 = vunpack.c.l.s4 1935823168
      %v2543 = vunpack.c.0.s8 %v2542
      %v2544 = vlaneseq
      %v2545 = vshrl.u32 %v2544, 7
      %v2546 = vsub.s32 %v2543, %v2545
      %v2547 = vrot.slane %v2457, %v2546
      %v2549 = vunpack.c.l.s4 1935823168
      %v2550 = vunpack.c.0.s8 %v2549
      %v2551 = vlaneseq
      %v2552 = vshrl.u32 %v2551, 7
      %v2553 = vsub.s32 %v2550, %v2552
      %v2554 = vrot.slane %v2547, %v2553
      %v2556 = vunpack.c.l.s4 1935823168
      %v2557 = vunpack.c.0.s8 %v2556
      %v2558 = vlaneseq
      %v2559 = vshrl.u32 %v2558, 7
      %v2560 = vsub.s32 %v2557, %v2559
      %v2561 = vrot.slane %v2458, %v2560
      %v2563 = vunpack.c.l.s4 1935823168
      %v2564 = vunpack.c.0.s8 %v2563
      %v2565 = vlaneseq
      %v2566 = vshrl.u32 %v2565, 7
      %v2567 = vsub.s32 %v2564, %v2566
      %v2568 = vrot.slane %v2561, %v2567
      %v2570 = vunpack.c.l.s4 1935823168
      %v2571 = vunpack.c.0.s8 %v2570
      %v2572 = vlaneseq
      %v2573 = vshrl.u32 %v2572, 7
      %v2574 = vsub.s32 %v2571, %v2573
      %v2575 = vrot.slane %v2459, %v2574
      %v2577 = vunpack.c.l.s4 1935823168
      %v2578 = vunpack.c.0.s8 %v2577
      %v2579 = vlaneseq
      %v2580 = vshrl.u32 %v2579, 7
      %v2581 = vsub.s32 %v2578, %v2580
      %v2582 = vrot.slane %v2575, %v2581
      %v2584 = vunpack.c.l.s4 1935823168
      %v2585 = vunpack.c.0.s8 %v2584
      %v2586 = vlaneseq
      %v2587 = vshrl.u32 %v2586, 7
      %v2588 = vsub.s32 %v2585, %v2587
      %v2589 = vrot.slane %v2460, %v2588
      %v2591 = vunpack.c.l.s4 1935823168
      %v2592 = vunpack.c.0.s8 %v2591
      %v2593 = vlaneseq
      %v2594 = vshrl.u32 %v2593, 7
      %v2595 = vsub.s32 %v2592, %v2594
      %v2596 = vrot.slane %v2589, %v2595
      %v2598 = vunpack.c.l.s4 1935823168
      %v2599 = vunpack.c.0.s8 %v2598
      %v2600 = vlaneseq
      %v2601 = vshrl.u32 %v2600, 7
      %v2602 = vsub.s32 %v2599, %v2601
      %v2603 = vrot.slane %v2461, %v2602
      %v2605 = vunpack.c.l.s4 1935823168
      %v2606 = vunpack.c.0.s8 %v2605
      %v2607 = vlaneseq
      %v2608 = vshrl.u32 %v2607, 7
      %v2609 = vsub.s32 %v2606, %v2608
      %v2610 = vrot.slane %v2603, %v2609
      %v2612 = vunpack.c.l.s4 1935823168
      %v2613 = vunpack.c.0.s8 %v2612
      %v2614 = vlaneseq
      %v2615 = vshrl.u32 %v2614, 7
      %v2616 = vsub.s32 %v2613, %v2615
      %v2617 = vrot.slane %v2462, %v2616
      %v2619 = vunpack.c.l.s4 1935823168
      %v2620 = vunpack.c.0.s8 %v2619
      %v2621 = vlaneseq
      %v2622 = vshrl.u32 %v2621, 7
      %v2623 = vsub.s32 %v2620, %v2622
      %v2624 = vrot.slane %v2617, %v2623
      %v2626 = vunpack.c.l.s4 1935823168
      %v2627 = vunpack.c.0.s8 %v2626
      %v2628 = vlaneseq
      %v2629 = vshrl.u32 %v2628, 7
      %v2630 = vsub.s32 %v2627, %v2629
      %v2631 = vrot.slane %v2463, %v2630
      %v2633 = vunpack.c.l.s4 1935823168
      %v2634 = vunpack.c.0.s8 %v2633
      %v2635 = vlaneseq
      %v2636 = vshrl.u32 %v2635, 7
      %v2637 = vsub.s32 %v2634, %v2636
      %v2638 = vrot.slane %v2631, %v2637
      %v2640 = vunpack.c.l.s4 1935823168
      %v2641 = vunpack.c.0.s8 %v2640
      %v2642 = vlaneseq
      %v2643 = vshrl.u32 %v2642, 7
      %v2644 = vsub.s32 %v2641, %v2643
      %v2645 = vrot.slane %v2464, %v2644
      %v2647 = vunpack.c.l.s4 1935823168
      %v2648 = vunpack.c.0.s8 %v2647
      %v2649 = vlaneseq
      %v2650 = vshrl.u32 %v2649, 7
      %v2651 = vsub.s32 %v2648, %v2650
      %v2652 = vrot.slane %v2645, %v2651
      %v2654 = vunpack.c.l.s4 1935823168
      %v2655 = vunpack.c.0.s8 %v2654
      %v2656 = vlaneseq
      %v2657 = vshrl.u32 %v2656, 7
      %v2658 = vsub.s32 %v2655, %v2657
      %v2659 = vrot.slane %v2465, %v2658
      %v2661 = vunpack.c.l.s4 1935823168
      %v2662 = vunpack.c.0.s8 %v2661
      %v2663 = vlaneseq
      %v2664 = vshrl.u32 %v2663, 7
      %v2665 = vsub.s32 %v2662, %v2664
      %v2666 = vrot.slane %v2659, %v2665
      %v2668 = vunpack.c.l.s4 1935823168
      %v2669 = vunpack.c.0.s8 %v2668
      %v2670 = vlaneseq
      %v2671 = vshrl.u32 %v2670, 7
      %v2672 = vsub.s32 %v2669, %v2671
      %v2673 = vrot.slane %v2466, %v2672
      %v2675 = vunpack.c.l.s4 1935823168
      %v2676 = vunpack.c.0.s8 %v2675
      %v2677 = vlaneseq
      %v2678 = vshrl.u32 %v2677, 7
      %v2679 = vsub.s32 %v2676, %v2678
      %v2680 = vrot.slane %v2673, %v2679
      %v2682 = vunpack.c.l.s4 1935823168
      %v2683 = vunpack.c.0.s8 %v2682
      %v2684 = vlaneseq
      %v2685 = vshrl.u32 %v2684, 7
      %v2686 = vsub.s32 %v2683, %v2685
      %v2687 = vrot.slane %v2467, %v2686
      %v2689 = vunpack.c.l.s4 1935823168
      %v2690 = vunpack.c.0.s8 %v2689
      %v2691 = vlaneseq
      %v2692 = vshrl.u32 %v2691, 7
      %v2693 = vsub.s32 %v2690, %v2692
      %v2694 = vrot.slane %v2687, %v2693
      %v2696 = vunpack.c.l.s4 1935823168
      %v2697 = vunpack.c.0.s8 %v2696
      %v2698 = vlaneseq
      %v2699 = vshrl.u32 %v2698, 7
      %v2700 = vsub.s32 %v2697, %v2699
      %v2701 = vrot.slane %v2468, %v2700
      %v2703 = vunpack.c.l.s4 1935823168
      %v2704 = vunpack.c.0.s8 %v2703
      %v2705 = vlaneseq
      %v2706 = vshrl.u32 %v2705, 7
      %v2707 = vsub.s32 %v2704, %v2706
      %v2708 = vrot.slane %v2701, %v2707
      %v2709 = vunpack.c.l.b16 %v2498
      %v2710 = vunpack.c.l.b16 %v2512
      %v2711 = vunpack.c.l.b16 %v2526
      %v2712 = vunpack.c.l.b16 %v2540
      %v2713 = vunpack.c.l.b16 %v2554
      %v2714 = vunpack.c.l.b16 %v2568
      %v2715 = vunpack.c.l.b16 %v2582
      %v2716 = vunpack.c.l.b16 %v2596
      %v2717 = vunpack.c.l.b16 %v2610
      %v2718 = vunpack.c.l.b16 %v2624
      %v2719 = vunpack.c.l.b16 %v2638
      %v2720 = vunpack.c.l.b16 %v2652
      %v2721 = vunpack.c.l.b16 %v2666
      %v2722 = vunpack.c.l.b16 %v2680
      %v2723 = vunpack.c.l.b16 %v2694
      %v2724 = vunpack.c.l.b16 %v2708
      %v2725 = vrot.slane %v2709, 1
      %v2726 = vsel %vm2100, %v2710, %v2725
      %v2727 = vrot.slane %v2711, 7
      %v2728 = vsel %vm2103, %v2727, %v2726
      %v2729 = vrot.slane %v2712, 6
      %v2730 = vsel %vm2106, %v2729, %v2728
      %v2731 = vrot.slane %v2713, 5
      %v2732 = vsel %vm2109, %v2731, %v2730
      %v2733 = vrot.slane %v2714, 4
      %v2734 = vsel %vm2112, %v2733, %v2732
      %v2735 = vrot.slane %v2715, 3
      %v2736 = vsel %vm2115, %v2735, %v2734
      %v2737 = vrot.slane %v2716, 2
      %v2738 = vsel %vm2118, %v2737, %v2736
      %v2739 = vrot.slane %v2717, 1
      %v2740 = vsel %vm2100, %v2718, %v2739
      %v2741 = vrot.slane %v2719, 7
      %v2742 = vsel %vm2103, %v2741, %v2740
      %v2743 = vrot.slane %v2720, 6
      %v2744 = vsel %vm2106, %v2743, %v2742
      %v2745 = vrot.slane %v2721, 5
      %v2746 = vsel %vm2109, %v2745, %v2744
      %v2747 = vrot.slane %v2722, 4
      %v2748 = vsel %vm2112, %v2747, %v2746
      %v2749 = vrot.slane %v2723, 3
      %v2750 = vsel %vm2115, %v2749, %v2748
      %v2751 = vrot.slane %v2724, 2
      %v2752 = vsel %vm2118, %v2751, %v2750
      %v2753 = vpack.c.b16 %v2738, %v2738
      %v2754 = vpack.c.b16 %v2752, %v2752
      %2755 = vrot.lane.b32.xlu0 %v2753, 64
      %v2756 = vpop.permute.xlu0 %2755
      %2757 = vrot.lane.b32.xlu0 %v2754, 64
      %v2758 = vpop.permute.xlu0 %2757
      %vm2761 = vcmask 781824
      %2762 = vst.msk [vmem:[#allocation5] sm:$0xf] %vm2761, %v2756
      %2763 = vst.msk [vmem:[#allocation5 + $0x10] sm:$0xf] %vm2761, %v2758
      %s2764 = scalar_lea.vmem [#allocation2], 8
      %v2765 = vld [vmem:[%s2764] sm:$0x1]
      %v2766 = vld [vmem:[%s2764 + $0x1] sm:$0x1]
      %v2767 = vld [vmem:[%s2764 + $0x2] sm:$0x1]
      %v2768 = vld [vmem:[%s2764 + $0x3] sm:$0x1]
      %v2769 = vld [vmem:[%s2764 + $0xc] sm:$0x1]
      %v2770 = vld [vmem:[%s2764 + $0xd] sm:$0x1]
      %v2771 = vld [vmem:[%s2764 + $0xe] sm:$0x1]
      %v2772 = vld [vmem:[%s2764 + $0xf] sm:$0x1]
      %v2773 = vld [vmem:[%s2764 + $0x18] sm:$0x1]
      %v2774 = vld [vmem:[%s2764 + $0x19] sm:$0x1]
      %v2775 = vld [vmem:[%s2764 + $0x1a] sm:$0x1]
      %v2776 = vld [vmem:[%s2764 + $0x1b] sm:$0x1]
      %v2777 = vld [vmem:[%s2764 + $0x24] sm:$0x1]
      %v2778 = vld [vmem:[%s2764 + $0x25] sm:$0x1]
      %v2779 = vld [vmem:[%s2764 + $0x26] sm:$0x1]
      %v2780 = vld [vmem:[%s2764 + $0x27] sm:$0x1]
      %v2798 = vunpack.c.l.s4 1935823168
      %v2799 = vunpack.c.0.s8 %v2798
      %v2800 = vlaneseq
      %v2801 = vshrl.u32 %v2800, 7
      %v2802 = vsub.s32 %v2799, %v2801
      %v2803 = vrot.slane %v2765, %v2802
      %v2805 = vunpack.c.l.s4 1935823168
      %v2806 = vunpack.c.0.s8 %v2805
      %v2807 = vlaneseq
      %v2808 = vshrl.u32 %v2807, 7
      %v2809 = vsub.s32 %v2806, %v2808
      %v2810 = vrot.slane %v2803, %v2809
      %v2812 = vunpack.c.l.s4 1935823168
      %v2813 = vunpack.c.0.s8 %v2812
      %v2814 = vlaneseq
      %v2815 = vshrl.u32 %v2814, 7
      %v2816 = vsub.s32 %v2813, %v2815
      %v2817 = vrot.slane %v2766, %v2816
      %v2819 = vunpack.c.l.s4 1935823168
      %v2820 = vunpack.c.0.s8 %v2819
      %v2821 = vlaneseq
      %v2822 = vshrl.u32 %v2821, 7
      %v2823 = vsub.s32 %v2820, %v2822
      %v2824 = vrot.slane %v2817, %v2823
      %v2826 = vunpack.c.l.s4 1935823168
      %v2827 = vunpack.c.0.s8 %v2826
      %v2828 = vlaneseq
      %v2829 = vshrl.u32 %v2828, 7
      %v2830 = vsub.s32 %v2827, %v2829
      %v2831 = vrot.slane %v2767, %v2830
      %v2833 = vunpack.c.l.s4 1935823168
      %v2834 = vunpack.c.0.s8 %v2833
      %v2835 = vlaneseq
      %v2836 = vshrl.u32 %v2835, 7
      %v2837 = vsub.s32 %v2834, %v2836
      %v2838 = vrot.slane %v2831, %v2837
      %v2840 = vunpack.c.l.s4 1935823168
      %v2841 = vunpack.c.0.s8 %v2840
      %v2842 = vlaneseq
      %v2843 = vshrl.u32 %v2842, 7
      %v2844 = vsub.s32 %v2841, %v2843
      %v2845 = vrot.slane %v2768, %v2844
      %v2847 = vunpack.c.l.s4 1935823168
      %v2848 = vunpack.c.0.s8 %v2847
      %v2849 = vlaneseq
      %v2850 = vshrl.u32 %v2849, 7
      %v2851 = vsub.s32 %v2848, %v2850
      %v2852 = vrot.slane %v2845, %v2851
      %v2854 = vunpack.c.l.s4 1935823168
      %v2855 = vunpack.c.0.s8 %v2854
      %v2856 = vlaneseq
      %v2857 = vshrl.u32 %v2856, 7
      %v2858 = vsub.s32 %v2855, %v2857
      %v2859 = vrot.slane %v2769, %v2858
      %v2861 = vunpack.c.l.s4 1935823168
      %v2862 = vunpack.c.0.s8 %v2861
      %v2863 = vlaneseq
      %v2864 = vshrl.u32 %v2863, 7
      %v2865 = vsub.s32 %v2862, %v2864
      %v2866 = vrot.slane %v2859, %v2865
      %v2868 = vunpack.c.l.s4 1935823168
      %v2869 = vunpack.c.0.s8 %v2868
      %v2870 = vlaneseq
      %v2871 = vshrl.u32 %v2870, 7
      %v2872 = vsub.s32 %v2869, %v2871
      %v2873 = vrot.slane %v2770, %v2872
      %v2875 = vunpack.c.l.s4 1935823168
      %v2876 = vunpack.c.0.s8 %v2875
      %v2877 = vlaneseq
      %v2878 = vshrl.u32 %v2877, 7
      %v2879 = vsub.s32 %v2876, %v2878
      %v2880 = vrot.slane %v2873, %v2879
      %v2882 = vunpack.c.l.s4 1935823168
      %v2883 = vunpack.c.0.s8 %v2882
      %v2884 = vlaneseq
      %v2885 = vshrl.u32 %v2884, 7
      %v2886 = vsub.s32 %v2883, %v2885
      %v2887 = vrot.slane %v2771, %v2886
      %v2889 = vunpack.c.l.s4 1935823168
      %v2890 = vunpack.c.0.s8 %v2889
      %v2891 = vlaneseq
      %v2892 = vshrl.u32 %v2891, 7
      %v2893 = vsub.s32 %v2890, %v2892
      %v2894 = vrot.slane %v2887, %v2893
      %v2896 = vunpack.c.l.s4 1935823168
      %v2897 = vunpack.c.0.s8 %v2896
      %v2898 = vlaneseq
      %v2899 = vshrl.u32 %v2898, 7
      %v2900 = vsub.s32 %v2897, %v2899
      %v2901 = vrot.slane %v2772, %v2900
      %v2903 = vunpack.c.l.s4 1935823168
      %v2904 = vunpack.c.0.s8 %v2903
      %v2905 = vlaneseq
      %v2906 = vshrl.u32 %v2905, 7
      %v2907 = vsub.s32 %v2904, %v2906
      %v2908 = vrot.slane %v2901, %v2907
      %v2910 = vunpack.c.l.s4 1935823168
      %v2911 = vunpack.c.0.s8 %v2910
      %v2912 = vlaneseq
      %v2913 = vshrl.u32 %v2912, 7
      %v2914 = vsub.s32 %v2911, %v2913
      %v2915 = vrot.slane %v2773, %v2914
      %v2917 = vunpack.c.l.s4 1935823168
      %v2918 = vunpack.c.0.s8 %v2917
      %v2919 = vlaneseq
      %v2920 = vshrl.u32 %v2919, 7
      %v2921 = vsub.s32 %v2918, %v2920
      %v2922 = vrot.slane %v2915, %v2921
      %v2924 = vunpack.c.l.s4 1935823168
      %v2925 = vunpack.c.0.s8 %v2924
      %v2926 = vlaneseq
      %v2927 = vshrl.u32 %v2926, 7
      %v2928 = vsub.s32 %v2925, %v2927
      %v2929 = vrot.slane %v2774, %v2928
      %v2931 = vunpack.c.l.s4 1935823168
      %v2932 = vunpack.c.0.s8 %v2931
      %v2933 = vlaneseq
      %v2934 = vshrl.u32 %v2933, 7
      %v2935 = vsub.s32 %v2932, %v2934
      %v2936 = vrot.slane %v2929, %v2935
      %v2938 = vunpack.c.l.s4 1935823168
      %v2939 = vunpack.c.0.s8 %v2938
      %v2940 = vlaneseq
      %v2941 = vshrl.u32 %v2940, 7
      %v2942 = vsub.s32 %v2939, %v2941
      %v2943 = vrot.slane %v2775, %v2942
      %v2945 = vunpack.c.l.s4 1935823168
      %v2946 = vunpack.c.0.s8 %v2945
      %v2947 = vlaneseq
      %v2948 = vshrl.u32 %v2947, 7
      %v2949 = vsub.s32 %v2946, %v2948
      %v2950 = vrot.slane %v2943, %v2949
      %v2952 = vunpack.c.l.s4 1935823168
      %v2953 = vunpack.c.0.s8 %v2952
      %v2954 = vlaneseq
      %v2955 = vshrl.u32 %v2954, 7
      %v2956 = vsub.s32 %v2953, %v2955
      %v2957 = vrot.slane %v2776, %v2956
      %v2959 = vunpack.c.l.s4 1935823168
      %v2960 = vunpack.c.0.s8 %v2959
      %v2961 = vlaneseq
      %v2962 = vshrl.u32 %v2961, 7
      %v2963 = vsub.s32 %v2960, %v2962
      %v2964 = vrot.slane %v2957, %v2963
      %v2966 = vunpack.c.l.s4 1935823168
      %v2967 = vunpack.c.0.s8 %v2966
      %v2968 = vlaneseq
      %v2969 = vshrl.u32 %v2968, 7
      %v2970 = vsub.s32 %v2967, %v2969
      %v2971 = vrot.slane %v2777, %v2970
      %v2973 = vunpack.c.l.s4 1935823168
      %v2974 = vunpack.c.0.s8 %v2973
      %v2975 = vlaneseq
      %v2976 = vshrl.u32 %v2975, 7
      %v2977 = vsub.s32 %v2974, %v2976
      %v2978 = vrot.slane %v2971, %v2977
      %v2980 = vunpack.c.l.s4 1935823168
      %v2981 = vunpack.c.0.s8 %v2980
      %v2982 = vlaneseq
      %v2983 = vshrl.u32 %v2982, 7
      %v2984 = vsub.s32 %v2981, %v2983
      %v2985 = vrot.slane %v2778, %v2984
      %v2987 = vunpack.c.l.s4 1935823168
      %v2988 = vunpack.c.0.s8 %v2987
      %v2989 = vlaneseq
      %v2990 = vshrl.u32 %v2989, 7
      %v2991 = vsub.s32 %v2988, %v2990
      %v2992 = vrot.slane %v2985, %v2991
      %v2994 = vunpack.c.l.s4 1935823168
      %v2995 = vunpack.c.0.s8 %v2994
      %v2996 = vlaneseq
      %v2997 = vshrl.u32 %v2996, 7
      %v2998 = vsub.s32 %v2995, %v2997
      %v2999 = vrot.slane %v2779, %v2998
      %v3001 = vunpack.c.l.s4 1935823168
      %v3002 = vunpack.c.0.s8 %v3001
      %v3003 = vlaneseq
      %v3004 = vshrl.u32 %v3003, 7
      %v3005 = vsub.s32 %v3002, %v3004
      %v3006 = vrot.slane %v2999, %v3005
      %v3008 = vunpack.c.l.s4 1935823168
      %v3009 = vunpack.c.0.s8 %v3008
      %v3010 = vlaneseq
      %v3011 = vshrl.u32 %v3010, 7
      %v3012 = vsub.s32 %v3009, %v3011
      %v3013 = vrot.slane %v2780, %v3012
      %v3015 = vunpack.c.l.s4 1935823168
      %v3016 = vunpack.c.0.s8 %v3015
      %v3017 = vlaneseq
      %v3018 = vshrl.u32 %v3017, 7
      %v3019 = vsub.s32 %v3016, %v3018
      %v3020 = vrot.slane %v3013, %v3019
      %v3021 = vunpack.c.l.b16 %v2810
      %v3022 = vunpack.c.l.b16 %v2824
      %v3023 = vunpack.c.l.b16 %v2838
      %v3024 = vunpack.c.l.b16 %v2852
      %v3025 = vunpack.c.l.b16 %v2866
      %v3026 = vunpack.c.l.b16 %v2880
      %v3027 = vunpack.c.l.b16 %v2894
      %v3028 = vunpack.c.l.b16 %v2908
      %v3029 = vunpack.c.l.b16 %v2922
      %v3030 = vunpack.c.l.b16 %v2936
      %v3031 = vunpack.c.l.b16 %v2950
      %v3032 = vunpack.c.l.b16 %v2964
      %v3033 = vunpack.c.l.b16 %v2978
      %v3034 = vunpack.c.l.b16 %v2992
      %v3035 = vunpack.c.l.b16 %v3006
      %v3036 = vunpack.c.l.b16 %v3020
      %v3037 = vrot.slane %v3022, 7
      %v3038 = vsel %vm2100, %v3037, %v3021
      %v3039 = vrot.slane %v3023, 6
      %v3040 = vsel %vm2103, %v3039, %v3038
      %v3041 = vrot.slane %v3024, 5
      %v3042 = vsel %vm2106, %v3041, %v3040
      %v3043 = vrot.slane %v3025, 4
      %v3044 = vsel %vm2109, %v3043, %v3042
      %v3045 = vrot.slane %v3026, 3
      %v3046 = vsel %vm2112, %v3045, %v3044
      %v3047 = vrot.slane %v3027, 2
      %v3048 = vsel %vm2115, %v3047, %v3046
      %v3049 = vrot.slane %v3028, 1
      %v3050 = vsel %vm2118, %v3049, %v3048
      %v3051 = vrot.slane %v3030, 7
      %v3052 = vsel %vm2100, %v3051, %v3029
      %v3053 = vrot.slane %v3031, 6
      %v3054 = vsel %vm2103, %v3053, %v3052
      %v3055 = vrot.slane %v3032, 5
      %v3056 = vsel %vm2106, %v3055, %v3054
      %v3057 = vrot.slane %v3033, 4
      %v3058 = vsel %vm2109, %v3057, %v3056
      %v3059 = vrot.slane %v3034, 3
      %v3060 = vsel %vm2112, %v3059, %v3058
      %v3061 = vrot.slane %v3035, 2
      %v3062 = vsel %vm2115, %v3061, %v3060
      %v3063 = vrot.slane %v3036, 1
      %v3064 = vsel %vm2118, %v3063, %v3062
      %v3065 = vpack.c.b16 %v3050, %v3050
      %v3066 = vpack.c.b16 %v3064, %v3064
      %3067 = vrot.lane.b32.xlu0 %v3065, 96
      %v3068 = vpop.permute.xlu0 %3067
      %3069 = vrot.lane.b32.xlu0 %v3066, 96
      %v3070 = vpop.permute.xlu0 %3069
      %vm3073 = vcmask 1044224
      %3074 = vst.msk [vmem:[#allocation5] sm:$0xf] %vm3073, %v3068
      %3075 = vst.msk [vmem:[#allocation5 + $0x10] sm:$0xf] %vm3073, %v3070
      %s3076 = scalar_lea.vmem [#allocation2], 12
      %v3077 = vld [vmem:[%s3076] sm:$0x1]
      %v3078 = vld [vmem:[%s3076 + $0x1] sm:$0x1]
      %v3079 = vld [vmem:[%s3076 + $0x2] sm:$0x1]
      %v3080 = vld [vmem:[%s3076 + $0x3] sm:$0x1]
      %v3081 = vld [vmem:[%s3076 + $0xc] sm:$0x1]
      %v3082 = vld [vmem:[%s3076 + $0xd] sm:$0x1]
      %v3083 = vld [vmem:[%s3076 + $0xe] sm:$0x1]
      %v3084 = vld [vmem:[%s3076 + $0xf] sm:$0x1]
      %v3085 = vld [vmem:[%s3076 + $0x18] sm:$0x1]
      %v3086 = vld [vmem:[%s3076 + $0x19] sm:$0x1]
      %v3087 = vld [vmem:[%s3076 + $0x1a] sm:$0x1]
      %v3088 = vld [vmem:[%s3076 + $0x1b] sm:$0x1]
      %v3089 = vld [vmem:[%s3076 + $0x24] sm:$0x1]
      %v3090 = vld [vmem:[%s3076 + $0x25] sm:$0x1]
      %v3091 = vld [vmem:[%s3076 + $0x26] sm:$0x1]
      %v3092 = vld [vmem:[%s3076 + $0x27] sm:$0x1]
      %v3110 = vunpack.c.l.s4 1935823168
      %v3111 = vunpack.c.0.s8 %v3110
      %v3112 = vlaneseq
      %v3113 = vshrl.u32 %v3112, 7
      %v3114 = vsub.s32 %v3111, %v3113
      %v3115 = vrot.slane %v3077, %v3114
      %v3117 = vunpack.c.l.s4 1935823168
      %v3118 = vunpack.c.0.s8 %v3117
      %v3119 = vlaneseq
      %v3120 = vshrl.u32 %v3119, 7
      %v3121 = vsub.s32 %v3118, %v3120
      %v3122 = vrot.slane %v3115, %v3121
      %v3124 = vunpack.c.l.s4 1935823168
      %v3125 = vunpack.c.0.s8 %v3124
      %v3126 = vlaneseq
      %v3127 = vshrl.u32 %v3126, 7
      %v3128 = vsub.s32 %v3125, %v3127
      %v3129 = vrot.slane %v3078, %v3128
      %v3131 = vunpack.c.l.s4 1935823168
      %v3132 = vunpack.c.0.s8 %v3131
      %v3133 = vlaneseq
      %v3134 = vshrl.u32 %v3133, 7
      %v3135 = vsub.s32 %v3132, %v3134
      %v3136 = vrot.slane %v3129, %v3135
      %v3138 = vunpack.c.l.s4 1935823168
      %v3139 = vunpack.c.0.s8 %v3138
      %v3140 = vlaneseq
      %v3141 = vshrl.u32 %v3140, 7
      %v3142 = vsub.s32 %v3139, %v3141
      %v3143 = vrot.slane %v3079, %v3142
      %v3145 = vunpack.c.l.s4 1935823168
      %v3146 = vunpack.c.0.s8 %v3145
      %v3147 = vlaneseq
      %v3148 = vshrl.u32 %v3147, 7
      %v3149 = vsub.s32 %v3146, %v3148
      %v3150 = vrot.slane %v3143, %v3149
      %v3152 = vunpack.c.l.s4 1935823168
      %v3153 = vunpack.c.0.s8 %v3152
      %v3154 = vlaneseq
      %v3155 = vshrl.u32 %v3154, 7
      %v3156 = vsub.s32 %v3153, %v3155
      %v3157 = vrot.slane %v3080, %v3156
      %v3159 = vunpack.c.l.s4 1935823168
      %v3160 = vunpack.c.0.s8 %v3159
      %v3161 = vlaneseq
      %v3162 = vshrl.u32 %v3161, 7
      %v3163 = vsub.s32 %v3160, %v3162
      %v3164 = vrot.slane %v3157, %v3163
      %v3166 = vunpack.c.l.s4 1935823168
      %v3167 = vunpack.c.0.s8 %v3166
      %v3168 = vlaneseq
      %v3169 = vshrl.u32 %v3168, 7
      %v3170 = vsub.s32 %v3167, %v3169
      %v3171 = vrot.slane %v3081, %v3170
      %v3173 = vunpack.c.l.s4 1935823168
      %v3174 = vunpack.c.0.s8 %v3173
      %v3175 = vlaneseq
      %v3176 = vshrl.u32 %v3175, 7
      %v3177 = vsub.s32 %v3174, %v3176
      %v3178 = vrot.slane %v3171, %v3177
      %v3180 = vunpack.c.l.s4 1935823168
      %v3181 = vunpack.c.0.s8 %v3180
      %v3182 = vlaneseq
      %v3183 = vshrl.u32 %v3182, 7
      %v3184 = vsub.s32 %v3181, %v3183
      %v3185 = vrot.slane %v3082, %v3184
      %v3187 = vunpack.c.l.s4 1935823168
      %v3188 = vunpack.c.0.s8 %v3187
      %v3189 = vlaneseq
      %v3190 = vshrl.u32 %v3189, 7
      %v3191 = vsub.s32 %v3188, %v3190
      %v3192 = vrot.slane %v3185, %v3191
      %v3194 = vunpack.c.l.s4 1935823168
      %v3195 = vunpack.c.0.s8 %v3194
      %v3196 = vlaneseq
      %v3197 = vshrl.u32 %v3196, 7
      %v3198 = vsub.s32 %v3195, %v3197
      %v3199 = vrot.slane %v3083, %v3198
      %v3201 = vunpack.c.l.s4 1935823168
      %v3202 = vunpack.c.0.s8 %v3201
      %v3203 = vlaneseq
      %v3204 = vshrl.u32 %v3203, 7
      %v3205 = vsub.s32 %v3202, %v3204
      %v3206 = vrot.slane %v3199, %v3205
      %v3208 = vunpack.c.l.s4 1935823168
      %v3209 = vunpack.c.0.s8 %v3208
      %v3210 = vlaneseq
      %v3211 = vshrl.u32 %v3210, 7
      %v3212 = vsub.s32 %v3209, %v3211
      %v3213 = vrot.slane %v3084, %v3212
      %v3215 = vunpack.c.l.s4 1935823168
      %v3216 = vunpack.c.0.s8 %v3215
      %v3217 = vlaneseq
      %v3218 = vshrl.u32 %v3217, 7
      %v3219 = vsub.s32 %v3216, %v3218
      %v3220 = vrot.slane %v3213, %v3219
      %v3222 = vunpack.c.l.s4 1935823168
      %v3223 = vunpack.c.0.s8 %v3222
      %v3224 = vlaneseq
      %v3225 = vshrl.u32 %v3224, 7
      %v3226 = vsub.s32 %v3223, %v3225
      %v3227 = vrot.slane %v3085, %v3226
      %v3229 = vunpack.c.l.s4 1935823168
      %v3230 = vunpack.c.0.s8 %v3229
      %v3231 = vlaneseq
      %v3232 = vshrl.u32 %v3231, 7
      %v3233 = vsub.s32 %v3230, %v3232
      %v3234 = vrot.slane %v3227, %v3233
      %v3236 = vunpack.c.l.s4 1935823168
      %v3237 = vunpack.c.0.s8 %v3236
      %v3238 = vlaneseq
      %v3239 = vshrl.u32 %v3238, 7
      %v3240 = vsub.s32 %v3237, %v3239
      %v3241 = vrot.slane %v3086, %v3240
      %v3243 = vunpack.c.l.s4 1935823168
      %v3244 = vunpack.c.0.s8 %v3243
      %v3245 = vlaneseq
      %v3246 = vshrl.u32 %v3245, 7
      %v3247 = vsub.s32 %v3244, %v3246
      %v3248 = vrot.slane %v3241, %v3247
      %v3250 = vunpack.c.l.s4 1935823168
      %v3251 = vunpack.c.0.s8 %v3250
      %v3252 = vlaneseq
      %v3253 = vshrl.u32 %v3252, 7
      %v3254 = vsub.s32 %v3251, %v3253
      %v3255 = vrot.slane %v3087, %v3254
      %v3257 = vunpack.c.l.s4 1935823168
      %v3258 = vunpack.c.0.s8 %v3257
      %v3259 = vlaneseq
      %v3260 = vshrl.u32 %v3259, 7
      %v3261 = vsub.s32 %v3258, %v3260
      %v3262 = vrot.slane %v3255, %v3261
      %v3264 = vunpack.c.l.s4 1935823168
      %v3265 = vunpack.c.0.s8 %v3264
      %v3266 = vlaneseq
      %v3267 = vshrl.u32 %v3266, 7
      %v3268 = vsub.s32 %v3265, %v3267
      %v3269 = vrot.slane %v3088, %v3268
      %v3271 = vunpack.c.l.s4 1935823168
      %v3272 = vunpack.c.0.s8 %v3271
      %v3273 = vlaneseq
      %v3274 = vshrl.u32 %v3273, 7
      %v3275 = vsub.s32 %v3272, %v3274
      %v3276 = vrot.slane %v3269, %v3275
      %v3278 = vunpack.c.l.s4 1935823168
      %v3279 = vunpack.c.0.s8 %v3278
      %v3280 = vlaneseq
      %v3281 = vshrl.u32 %v3280, 7
      %v3282 = vsub.s32 %v3279, %v3281
      %v3283 = vrot.slane %v3089, %v3282
      %v3285 = vunpack.c.l.s4 1935823168
      %v3286 = vunpack.c.0.s8 %v3285
      %v3287 = vlaneseq
      %v3288 = vshrl.u32 %v3287, 7
      %v3289 = vsub.s32 %v3286, %v3288
      %v3290 = vrot.slane %v3283, %v3289
      %v3292 = vunpack.c.l.s4 1935823168
      %v3293 = vunpack.c.0.s8 %v3292
      %v3294 = vlaneseq
      %v3295 = vshrl.u32 %v3294, 7
      %v3296 = vsub.s32 %v3293, %v3295
      %v3297 = vrot.slane %v3090, %v3296
      %v3299 = vunpack.c.l.s4 1935823168
      %v3300 = vunpack.c.0.s8 %v3299
      %v3301 = vlaneseq
      %v3302 = vshrl.u32 %v3301, 7
      %v3303 = vsub.s32 %v3300, %v3302
      %v3304 = vrot.slane %v3297, %v3303
      %v3306 = vunpack.c.l.s4 1935823168
      %v3307 = vunpack.c.0.s8 %v3306
      %v3308 = vlaneseq
      %v3309 = vshrl.u32 %v3308, 7
      %v3310 = vsub.s32 %v3307, %v3309
      %v3311 = vrot.slane %v3091, %v3310
      %v3313 = vunpack.c.l.s4 1935823168
      %v3314 = vunpack.c.0.s8 %v3313
      %v3315 = vlaneseq
      %v3316 = vshrl.u32 %v3315, 7
      %v3317 = vsub.s32 %v3314, %v3316
      %v3318 = vrot.slane %v3311, %v3317
      %v3320 = vunpack.c.l.s4 1935823168
      %v3321 = vunpack.c.0.s8 %v3320
      %v3322 = vlaneseq
      %v3323 = vshrl.u32 %v3322, 7
      %v3324 = vsub.s32 %v3321, %v3323
      %v3325 = vrot.slane %v3092, %v3324
      %v3327 = vunpack.c.l.s4 1935823168
      %v3328 = vunpack.c.0.s8 %v3327
      %v3329 = vlaneseq
      %v3330 = vshrl.u32 %v3329, 7
      %v3331 = vsub.s32 %v3328, %v3330
      %v3332 = vrot.slane %v3325, %v3331
      %v3333 = vunpack.c.l.b16 %v3122
      %v3334 = vunpack.c.l.b16 %v3136
      %v3335 = vunpack.c.l.b16 %v3150
      %v3336 = vunpack.c.l.b16 %v3164
      %v3337 = vunpack.c.l.b16 %v3178
      %v3338 = vunpack.c.l.b16 %v3192
      %v3339 = vunpack.c.l.b16 %v3206
      %v3340 = vunpack.c.l.b16 %v3220
      %v3341 = vunpack.c.l.b16 %v3234
      %v3342 = vunpack.c.l.b16 %v3248
      %v3343 = vunpack.c.l.b16 %v3262
      %v3344 = vunpack.c.l.b16 %v3276
      %v3345 = vunpack.c.l.b16 %v3290
      %v3346 = vunpack.c.l.b16 %v3304
      %v3347 = vunpack.c.l.b16 %v3318
      %v3348 = vunpack.c.l.b16 %v3332
      %v3349 = vrot.slane %v3333, 1
      %v3350 = vsel %vm2100, %v3334, %v3349
      %v3351 = vrot.slane %v3335, 7
      %v3352 = vsel %vm2103, %v3351, %v3350
      %v3353 = vrot.slane %v3336, 6
      %v3354 = vsel %vm2106, %v3353, %v3352
      %v3355 = vrot.slane %v3337, 5
      %v3356 = vsel %vm2109, %v3355, %v3354
      %v3357 = vrot.slane %v3338, 4
      %v3358 = vsel %vm2112, %v3357, %v3356
      %v3359 = vrot.slane %v3339, 3
      %v3360 = vsel %vm2115, %v3359, %v3358
      %v3361 = vrot.slane %v3340, 2
      %v3362 = vsel %vm2118, %v3361, %v3360
      %v3363 = vrot.slane %v3341, 1
      %v3364 = vsel %vm2100, %v3342, %v3363
      %v3365 = vrot.slane %v3343, 7
      %v3366 = vsel %vm2103, %v3365, %v3364
      %v3367 = vrot.slane %v3344, 6
      %v3368 = vsel %vm2106, %v3367, %v3366
      %v3369 = vrot.slane %v3345, 5
      %v3370 = vsel %vm2109, %v3369, %v3368
      %v3371 = vrot.slane %v3346, 4
      %v3372 = vsel %vm2112, %v3371, %v3370
      %v3373 = vrot.slane %v3347, 3
      %v3374 = vsel %vm2115, %v3373, %v3372
      %v3375 = vrot.slane %v3348, 2
      %v3376 = vsel %vm2118, %v3375, %v3374
      %v3377 = vpack.c.b16 %v3362, %v3362
      %v3378 = vpack.c.b16 %v3376, %v3376
      %3381 = vst.msk [vmem:[#allocation5 + $0x4] sm:$0xf] %vm2138, %v3377
      %3382 = vst.msk [vmem:[#allocation5 + $0x14] sm:$0xf] %vm2138, %v3378
      %v3383 = vld [vmem:[%s1793] sm:$0x1]
      %v3384 = vld [vmem:[%s1793 + $0x1] sm:$0x1]
      %v3385 = vld [vmem:[%s1793 + $0x2] sm:$0x1]
      %v3386 = vld [vmem:[%s1793 + $0x3] sm:$0x1]
      %v3387 = vld [vmem:[%s1793 + $0xc] sm:$0x1]
      %v3388 = vld [vmem:[%s1793 + $0xd] sm:$0x1]
      %v3389 = vld [vmem:[%s1793 + $0xe] sm:$0x1]
      %v3390 = vld [vmem:[%s1793 + $0xf] sm:$0x1]
      %v3391 = vld [vmem:[%s1793 + $0x18] sm:$0x1]
      %v3392 = vld [vmem:[%s1793 + $0x19] sm:$0x1]
      %v3393 = vld [vmem:[%s1793 + $0x1a] sm:$0x1]
      %v3394 = vld [vmem:[%s1793 + $0x1b] sm:$0x1]
      %v3395 = vld [vmem:[%s1793 + $0x24] sm:$0x1]
      %v3396 = vld [vmem:[%s1793 + $0x25] sm:$0x1]
      %v3397 = vld [vmem:[%s1793 + $0x26] sm:$0x1]
      %v3398 = vld [vmem:[%s1793 + $0x27] sm:$0x1]
      %v3416 = vunpack.c.l.s4 1935823168
      %v3417 = vunpack.c.0.s8 %v3416
      %v3418 = vlaneseq
      %v3419 = vshrl.u32 %v3418, 7
      %v3420 = vsub.s32 %v3417, %v3419
      %v3421 = vrot.slane %v3383, %v3420
      %v3423 = vunpack.c.l.s4 1935823168
      %v3424 = vunpack.c.0.s8 %v3423
      %v3425 = vlaneseq
      %v3426 = vshrl.u32 %v3425, 7
      %v3427 = vsub.s32 %v3424, %v3426
      %v3428 = vrot.slane %v3421, %v3427
      %v3430 = vunpack.c.l.s4 1935823168
      %v3431 = vunpack.c.0.s8 %v3430
      %v3432 = vlaneseq
      %v3433 = vshrl.u32 %v3432, 7
      %v3434 = vsub.s32 %v3431, %v3433
      %v3435 = vrot.slane %v3384, %v3434
      %v3437 = vunpack.c.l.s4 1935823168
      %v3438 = vunpack.c.0.s8 %v3437
      %v3439 = vlaneseq
      %v3440 = vshrl.u32 %v3439, 7
      %v3441 = vsub.s32 %v3438, %v3440
      %v3442 = vrot.slane %v3435, %v3441
      %v3444 = vunpack.c.l.s4 1935823168
      %v3445 = vunpack.c.0.s8 %v3444
      %v3446 = vlaneseq
      %v3447 = vshrl.u32 %v3446, 7
      %v3448 = vsub.s32 %v3445, %v3447
      %v3449 = vrot.slane %v3385, %v3448
      %v3451 = vunpack.c.l.s4 1935823168
      %v3452 = vunpack.c.0.s8 %v3451
      %v3453 = vlaneseq
      %v3454 = vshrl.u32 %v3453, 7
      %v3455 = vsub.s32 %v3452, %v3454
      %v3456 = vrot.slane %v3449, %v3455
      %v3458 = vunpack.c.l.s4 1935823168
      %v3459 = vunpack.c.0.s8 %v3458
      %v3460 = vlaneseq
      %v3461 = vshrl.u32 %v3460, 7
      %v3462 = vsub.s32 %v3459, %v3461
      %v3463 = vrot.slane %v3386, %v3462
      %v3465 = vunpack.c.l.s4 1935823168
      %v3466 = vunpack.c.0.s8 %v3465
      %v3467 = vlaneseq
      %v3468 = vshrl.u32 %v3467, 7
      %v3469 = vsub.s32 %v3466, %v3468
      %v3470 = vrot.slane %v3463, %v3469
      %v3472 = vunpack.c.l.s4 1935823168
      %v3473 = vunpack.c.0.s8 %v3472
      %v3474 = vlaneseq
      %v3475 = vshrl.u32 %v3474, 7
      %v3476 = vsub.s32 %v3473, %v3475
      %v3477 = vrot.slane %v3387, %v3476
      %v3479 = vunpack.c.l.s4 1935823168
      %v3480 = vunpack.c.0.s8 %v3479
      %v3481 = vlaneseq
      %v3482 = vshrl.u32 %v3481, 7
      %v3483 = vsub.s32 %v3480, %v3482
      %v3484 = vrot.slane %v3477, %v3483
      %v3486 = vunpack.c.l.s4 1935823168
      %v3487 = vunpack.c.0.s8 %v3486
      %v3488 = vlaneseq
      %v3489 = vshrl.u32 %v3488, 7
      %v3490 = vsub.s32 %v3487, %v3489
      %v3491 = vrot.slane %v3388, %v3490
      %v3493 = vunpack.c.l.s4 1935823168
      %v3494 = vunpack.c.0.s8 %v3493
      %v3495 = vlaneseq
      %v3496 = vshrl.u32 %v3495, 7
      %v3497 = vsub.s32 %v3494, %v3496
      %v3498 = vrot.slane %v3491, %v3497
      %v3500 = vunpack.c.l.s4 1935823168
      %v3501 = vunpack.c.0.s8 %v3500
      %v3502 = vlaneseq
      %v3503 = vshrl.u32 %v3502, 7
      %v3504 = vsub.s32 %v3501, %v3503
      %v3505 = vrot.slane %v3389, %v3504
      %v3507 = vunpack.c.l.s4 1935823168
      %v3508 = vunpack.c.0.s8 %v3507
      %v3509 = vlaneseq
      %v3510 = vshrl.u32 %v3509, 7
      %v3511 = vsub.s32 %v3508, %v3510
      %v3512 = vrot.slane %v3505, %v3511
      %v3514 = vunpack.c.l.s4 1935823168
      %v3515 = vunpack.c.0.s8 %v3514
      %v3516 = vlaneseq
      %v3517 = vshrl.u32 %v3516, 7
      %v3518 = vsub.s32 %v3515, %v3517
      %v3519 = vrot.slane %v3390, %v3518
      %v3521 = vunpack.c.l.s4 1935823168
      %v3522 = vunpack.c.0.s8 %v3521
      %v3523 = vlaneseq
      %v3524 = vshrl.u32 %v3523, 7
      %v3525 = vsub.s32 %v3522, %v3524
      %v3526 = vrot.slane %v3519, %v3525
      %v3528 = vunpack.c.l.s4 1935823168
      %v3529 = vunpack.c.0.s8 %v3528
      %v3530 = vlaneseq
      %v3531 = vshrl.u32 %v3530, 7
      %v3532 = vsub.s32 %v3529, %v3531
      %v3533 = vrot.slane %v3391, %v3532
      %v3535 = vunpack.c.l.s4 1935823168
      %v3536 = vunpack.c.0.s8 %v3535
      %v3537 = vlaneseq
      %v3538 = vshrl.u32 %v3537, 7
      %v3539 = vsub.s32 %v3536, %v3538
      %v3540 = vrot.slane %v3533, %v3539
      %v3542 = vunpack.c.l.s4 1935823168
      %v3543 = vunpack.c.0.s8 %v3542
      %v3544 = vlaneseq
      %v3545 = vshrl.u32 %v3544, 7
      %v3546 = vsub.s32 %v3543, %v3545
      %v3547 = vrot.slane %v3392, %v3546
      %v3549 = vunpack.c.l.s4 1935823168
      %v3550 = vunpack.c.0.s8 %v3549
      %v3551 = vlaneseq
      %v3552 = vshrl.u32 %v3551, 7
      %v3553 = vsub.s32 %v3550, %v3552
      %v3554 = vrot.slane %v3547, %v3553
      %v3556 = vunpack.c.l.s4 1935823168
      %v3557 = vunpack.c.0.s8 %v3556
      %v3558 = vlaneseq
      %v3559 = vshrl.u32 %v3558, 7
      %v3560 = vsub.s32 %v3557, %v3559
      %v3561 = vrot.slane %v3393, %v3560
      %v3563 = vunpack.c.l.s4 1935823168
      %v3564 = vunpack.c.0.s8 %v3563
      %v3565 = vlaneseq
      %v3566 = vshrl.u32 %v3565, 7
      %v3567 = vsub.s32 %v3564, %v3566
      %v3568 = vrot.slane %v3561, %v3567
      %v3570 = vunpack.c.l.s4 1935823168
      %v3571 = vunpack.c.0.s8 %v3570
      %v3572 = vlaneseq
      %v3573 = vshrl.u32 %v3572, 7
      %v3574 = vsub.s32 %v3571, %v3573
      %v3575 = vrot.slane %v3394, %v3574
      %v3577 = vunpack.c.l.s4 1935823168
      %v3578 = vunpack.c.0.s8 %v3577
      %v3579 = vlaneseq
      %v3580 = vshrl.u32 %v3579, 7
      %v3581 = vsub.s32 %v3578, %v3580
      %v3582 = vrot.slane %v3575, %v3581
      %v3584 = vunpack.c.l.s4 1935823168
      %v3585 = vunpack.c.0.s8 %v3584
      %v3586 = vlaneseq
      %v3587 = vshrl.u32 %v3586, 7
      %v3588 = vsub.s32 %v3585, %v3587
      %v3589 = vrot.slane %v3395, %v3588
      %v3591 = vunpack.c.l.s4 1935823168
      %v3592 = vunpack.c.0.s8 %v3591
      %v3593 = vlaneseq
      %v3594 = vshrl.u32 %v3593, 7
      %v3595 = vsub.s32 %v3592, %v3594
      %v3596 = vrot.slane %v3589, %v3595
      %v3598 = vunpack.c.l.s4 1935823168
      %v3599 = vunpack.c.0.s8 %v3598
      %v3600 = vlaneseq
      %v3601 = vshrl.u32 %v3600, 7
      %v3602 = vsub.s32 %v3599, %v3601
      %v3603 = vrot.slane %v3396, %v3602
      %v3605 = vunpack.c.l.s4 1935823168
      %v3606 = vunpack.c.0.s8 %v3605
      %v3607 = vlaneseq
      %v3608 = vshrl.u32 %v3607, 7
      %v3609 = vsub.s32 %v3606, %v3608
      %v3610 = vrot.slane %v3603, %v3609
      %v3612 = vunpack.c.l.s4 1935823168
      %v3613 = vunpack.c.0.s8 %v3612
      %v3614 = vlaneseq
      %v3615 = vshrl.u32 %v3614, 7
      %v3616 = vsub.s32 %v3613, %v3615
      %v3617 = vrot.slane %v3397, %v3616
      %v3619 = vunpack.c.l.s4 1935823168
      %v3620 = vunpack.c.0.s8 %v3619
      %v3621 = vlaneseq
      %v3622 = vshrl.u32 %v3621, 7
      %v3623 = vsub.s32 %v3620, %v3622
      %v3624 = vrot.slane %v3617, %v3623
      %v3626 = vunpack.c.l.s4 1935823168
      %v3627 = vunpack.c.0.s8 %v3626
      %v3628 = vlaneseq
      %v3629 = vshrl.u32 %v3628, 7
      %v3630 = vsub.s32 %v3627, %v3629
      %v3631 = vrot.slane %v3398, %v3630
      %v3633 = vunpack.c.l.s4 1935823168
      %v3634 = vunpack.c.0.s8 %v3633
      %v3635 = vlaneseq
      %v3636 = vshrl.u32 %v3635, 7
      %v3637 = vsub.s32 %v3634, %v3636
      %v3638 = vrot.slane %v3631, %v3637
      %v3639 = vunpack.c.l.b16 %v3428
      %v3640 = vunpack.c.l.b16 %v3442
      %v3641 = vunpack.c.l.b16 %v3456
      %v3642 = vunpack.c.l.b16 %v3470
      %v3643 = vunpack.c.l.b16 %v3484
      %v3644 = vunpack.c.l.b16 %v3498
      %v3645 = vunpack.c.l.b16 %v3512
      %v3646 = vunpack.c.l.b16 %v3526
      %v3647 = vunpack.c.l.b16 %v3540
      %v3648 = vunpack.c.l.b16 %v3554
      %v3649 = vunpack.c.l.b16 %v3568
      %v3650 = vunpack.c.l.b16 %v3582
      %v3651 = vunpack.c.l.b16 %v3596
      %v3652 = vunpack.c.l.b16 %v3610
      %v3653 = vunpack.c.l.b16 %v3624
      %v3654 = vunpack.c.l.b16 %v3638
      %v3655 = vrot.slane %v3640, 7
      %v3656 = vsel %vm2100, %v3655, %v3639
      %v3657 = vrot.slane %v3641, 6
      %v3658 = vsel %vm2103, %v3657, %v3656
      %v3659 = vrot.slane %v3642, 5
      %v3660 = vsel %vm2106, %v3659, %v3658
      %v3661 = vrot.slane %v3643, 4
      %v3662 = vsel %vm2109, %v3661, %v3660
      %v3663 = vrot.slane %v3644, 3
      %v3664 = vsel %vm2112, %v3663, %v3662
      %v3665 = vrot.slane %v3645, 2
      %v3666 = vsel %vm2115, %v3665, %v3664
      %v3667 = vrot.slane %v3646, 1
      %v3668 = vsel %vm2118, %v3667, %v3666
      %v3669 = vrot.slane %v3648, 7
      %v3670 = vsel %vm2100, %v3669, %v3647
      %v3671 = vrot.slane %v3649, 6
      %v3672 = vsel %vm2103, %v3671, %v3670
      %v3673 = vrot.slane %v3650, 5
      %v3674 = vsel %vm2106, %v3673, %v3672
      %v3675 = vrot.slane %v3651, 4
      %v3676 = vsel %vm2109, %v3675, %v3674
      %v3677 = vrot.slane %v3652, 3
      %v3678 = vsel %vm2112, %v3677, %v3676
      %v3679 = vrot.slane %v3653, 2
      %v3680 = vsel %vm2115, %v3679, %v3678
      %v3681 = vrot.slane %v3654, 1
      %v3682 = vsel %vm2118, %v3681, %v3680
      %v3683 = vpack.c.b16 %v3668, %v3668
      %v3684 = vpack.c.b16 %v3682, %v3682
      %3685 = vrot.lane.b32.xlu0 %v3683, 32
      %v3686 = vpop.permute.xlu0 %3685
      %3687 = vrot.lane.b32.xlu0 %v3684, 32
      %v3688 = vpop.permute.xlu0 %3687
      %3691 = vst.msk [vmem:[#allocation5 + $0x4] sm:$0xf] %vm2450, %v3686
      %3692 = vst.msk [vmem:[#allocation5 + $0x14] sm:$0xf] %vm2450, %v3688
      %v3693 = vld [vmem:[%s1793] sm:$0x1]
      %v3694 = vld [vmem:[%s1793 + $0x1] sm:$0x1]
      %v3695 = vld [vmem:[%s1793 + $0x2] sm:$0x1]
      %v3696 = vld [vmem:[%s1793 + $0x3] sm:$0x1]
      %v3697 = vld [vmem:[%s1793 + $0xc] sm:$0x1]
      %v3698 = vld [vmem:[%s1793 + $0xd] sm:$0x1]
      %v3699 = vld [vmem:[%s1793 + $0xe] sm:$0x1]
      %v3700 = vld [vmem:[%s1793 + $0xf] sm:$0x1]
      %v3701 = vld [vmem:[%s1793 + $0x18] sm:$0x1]
      %v3702 = vld [vmem:[%s1793 + $0x19] sm:$0x1]
      %v3703 = vld [vmem:[%s1793 + $0x1a] sm:$0x1]
      %v3704 = vld [vmem:[%s1793 + $0x1b] sm:$0x1]
      %v3705 = vld [vmem:[%s1793 + $0x24] sm:$0x1]
      %v3706 = vld [vmem:[%s1793 + $0x25] sm:$0x1]
      %v3707 = vld [vmem:[%s1793 + $0x26] sm:$0x1]
      %v3708 = vld [vmem:[%s1793 + $0x27] sm:$0x1]
      %v3726 = vunpack.c.l.s4 1935823168
      %v3727 = vunpack.c.0.s8 %v3726
      %v3728 = vlaneseq
      %v3729 = vshrl.u32 %v3728, 7
      %v3730 = vsub.s32 %v3727, %v3729
      %v3731 = vrot.slane %v3693, %v3730
      %v3733 = vunpack.c.l.s4 1935823168
      %v3734 = vunpack.c.0.s8 %v3733
      %v3735 = vlaneseq
      %v3736 = vshrl.u32 %v3735, 7
      %v3737 = vsub.s32 %v3734, %v3736
      %v3738 = vrot.slane %v3731, %v3737
      %v3740 = vunpack.c.l.s4 1935823168
      %v3741 = vunpack.c.0.s8 %v3740
      %v3742 = vlaneseq
      %v3743 = vshrl.u32 %v3742, 7
      %v3744 = vsub.s32 %v3741, %v3743
      %v3745 = vrot.slane %v3694, %v3744
      %v3747 = vunpack.c.l.s4 1935823168
      %v3748 = vunpack.c.0.s8 %v3747
      %v3749 = vlaneseq
      %v3750 = vshrl.u32 %v3749, 7
      %v3751 = vsub.s32 %v3748, %v3750
      %v3752 = vrot.slane %v3745, %v3751
      %v3754 = vunpack.c.l.s4 1935823168
      %v3755 = vunpack.c.0.s8 %v3754
      %v3756 = vlaneseq
      %v3757 = vshrl.u32 %v3756, 7
      %v3758 = vsub.s32 %v3755, %v3757
      %v3759 = vrot.slane %v3695, %v3758
      %v3761 = vunpack.c.l.s4 1935823168
      %v3762 = vunpack.c.0.s8 %v3761
      %v3763 = vlaneseq
      %v3764 = vshrl.u32 %v3763, 7
      %v3765 = vsub.s32 %v3762, %v3764
      %v3766 = vrot.slane %v3759, %v3765
      %v3768 = vunpack.c.l.s4 1935823168
      %v3769 = vunpack.c.0.s8 %v3768
      %v3770 = vlaneseq
      %v3771 = vshrl.u32 %v3770, 7
      %v3772 = vsub.s32 %v3769, %v3771
      %v3773 = vrot.slane %v3696, %v3772
      %v3775 = vunpack.c.l.s4 1935823168
      %v3776 = vunpack.c.0.s8 %v3775
      %v3777 = vlaneseq
      %v3778 = vshrl.u32 %v3777, 7
      %v3779 = vsub.s32 %v3776, %v3778
      %v3780 = vrot.slane %v3773, %v3779
      %v3782 = vunpack.c.l.s4 1935823168
      %v3783 = vunpack.c.0.s8 %v3782
      %v3784 = vlaneseq
      %v3785 = vshrl.u32 %v3784, 7
      %v3786 = vsub.s32 %v3783, %v3785
      %v3787 = vrot.slane %v3697, %v3786
      %v3789 = vunpack.c.l.s4 1935823168
      %v3790 = vunpack.c.0.s8 %v3789
      %v3791 = vlaneseq
      %v3792 = vshrl.u32 %v3791, 7
      %v3793 = vsub.s32 %v3790, %v3792
      %v3794 = vrot.slane %v3787, %v3793
      %v3796 = vunpack.c.l.s4 1935823168
      %v3797 = vunpack.c.0.s8 %v3796
      %v3798 = vlaneseq
      %v3799 = vshrl.u32 %v3798, 7
      %v3800 = vsub.s32 %v3797, %v3799
      %v3801 = vrot.slane %v3698, %v3800
      %v3803 = vunpack.c.l.s4 1935823168
      %v3804 = vunpack.c.0.s8 %v3803
      %v3805 = vlaneseq
      %v3806 = vshrl.u32 %v3805, 7
      %v3807 = vsub.s32 %v3804, %v3806
      %v3808 = vrot.slane %v3801, %v3807
      %v3810 = vunpack.c.l.s4 1935823168
      %v3811 = vunpack.c.0.s8 %v3810
      %v3812 = vlaneseq
      %v3813 = vshrl.u32 %v3812, 7
      %v3814 = vsub.s32 %v3811, %v3813
      %v3815 = vrot.slane %v3699, %v3814
      %v3817 = vunpack.c.l.s4 1935823168
      %v3818 = vunpack.c.0.s8 %v3817
      %v3819 = vlaneseq
      %v3820 = vshrl.u32 %v3819, 7
      %v3821 = vsub.s32 %v3818, %v3820
      %v3822 = vrot.slane %v3815, %v3821
      %v3824 = vunpack.c.l.s4 1935823168
      %v3825 = vunpack.c.0.s8 %v3824
      %v3826 = vlaneseq
      %v3827 = vshrl.u32 %v3826, 7
      %v3828 = vsub.s32 %v3825, %v3827
      %v3829 = vrot.slane %v3700, %v3828
      %v3831 = vunpack.c.l.s4 1935823168
      %v3832 = vunpack.c.0.s8 %v3831
      %v3833 = vlaneseq
      %v3834 = vshrl.u32 %v3833, 7
      %v3835 = vsub.s32 %v3832, %v3834
      %v3836 = vrot.slane %v3829, %v3835
      %v3838 = vunpack.c.l.s4 1935823168
      %v3839 = vunpack.c.0.s8 %v3838
      %v3840 = vlaneseq
      %v3841 = vshrl.u32 %v3840, 7
      %v3842 = vsub.s32 %v3839, %v3841
      %v3843 = vrot.slane %v3701, %v3842
      %v3845 = vunpack.c.l.s4 1935823168
      %v3846 = vunpack.c.0.s8 %v3845
      %v3847 = vlaneseq
      %v3848 = vshrl.u32 %v3847, 7
      %v3849 = vsub.s32 %v3846, %v3848
      %v3850 = vrot.slane %v3843, %v3849
      %v3852 = vunpack.c.l.s4 1935823168
      %v3853 = vunpack.c.0.s8 %v3852
      %v3854 = vlaneseq
      %v3855 = vshrl.u32 %v3854, 7
      %v3856 = vsub.s32 %v3853, %v3855
      %v3857 = vrot.slane %v3702, %v3856
      %v3859 = vunpack.c.l.s4 1935823168
      %v3860 = vunpack.c.0.s8 %v3859
      %v3861 = vlaneseq
      %v3862 = vshrl.u32 %v3861, 7
      %v3863 = vsub.s32 %v3860, %v3862
      %v3864 = vrot.slane %v3857, %v3863
      %v3866 = vunpack.c.l.s4 1935823168
      %v3867 = vunpack.c.0.s8 %v3866
      %v3868 = vlaneseq
      %v3869 = vshrl.u32 %v3868, 7
      %v3870 = vsub.s32 %v3867, %v3869
      %v3871 = vrot.slane %v3703, %v3870
      %v3873 = vunpack.c.l.s4 1935823168
      %v3874 = vunpack.c.0.s8 %v3873
      %v3875 = vlaneseq
      %v3876 = vshrl.u32 %v3875, 7
      %v3877 = vsub.s32 %v3874, %v3876
      %v3878 = vrot.slane %v3871, %v3877
      %v3880 = vunpack.c.l.s4 1935823168
      %v3881 = vunpack.c.0.s8 %v3880
      %v3882 = vlaneseq
      %v3883 = vshrl.u32 %v3882, 7
      %v3884 = vsub.s32 %v3881, %v3883
      %v3885 = vrot.slane %v3704, %v3884
      %v3887 = vunpack.c.l.s4 1935823168
      %v3888 = vunpack.c.0.s8 %v3887
      %v3889 = vlaneseq
      %v3890 = vshrl.u32 %v3889, 7
      %v3891 = vsub.s32 %v3888, %v3890
      %v3892 = vrot.slane %v3885, %v3891
      %v3894 = vunpack.c.l.s4 1935823168
      %v3895 = vunpack.c.0.s8 %v3894
      %v3896 = vlaneseq
      %v3897 = vshrl.u32 %v3896, 7
      %v3898 = vsub.s32 %v3895, %v3897
      %v3899 = vrot.slane %v3705, %v3898
      %v3901 = vunpack.c.l.s4 1935823168
      %v3902 = vunpack.c.0.s8 %v3901
      %v3903 = vlaneseq
      %v3904 = vshrl.u32 %v3903, 7
      %v3905 = vsub.s32 %v3902, %v3904
      %v3906 = vrot.slane %v3899, %v3905
      %v3908 = vunpack.c.l.s4 1935823168
      %v3909 = vunpack.c.0.s8 %v3908
      %v3910 = vlaneseq
      %v3911 = vshrl.u32 %v3910, 7
      %v3912 = vsub.s32 %v3909, %v3911
      %v3913 = vrot.slane %v3706, %v3912
      %v3915 = vunpack.c.l.s4 1935823168
      %v3916 = vunpack.c.0.s8 %v3915
      %v3917 = vlaneseq
      %v3918 = vshrl.u32 %v3917, 7
      %v3919 = vsub.s32 %v3916, %v3918
      %v3920 = vrot.slane %v3913, %v3919
      %v3922 = vunpack.c.l.s4 1935823168
      %v3923 = vunpack.c.0.s8 %v3922
      %v3924 = vlaneseq
      %v3925 = vshrl.u32 %v3924, 7
      %v3926 = vsub.s32 %v3923, %v3925
      %v3927 = vrot.slane %v3707, %v3926
      %v3929 = vunpack.c.l.s4 1935823168
      %v3930 = vunpack.c.0.s8 %v3929
      %v3931 = vlaneseq
      %v3932 = vshrl.u32 %v3931, 7
      %v3933 = vsub.s32 %v3930, %v3932
      %v3934 = vrot.slane %v3927, %v3933
      %v3936 = vunpack.c.l.s4 1935823168
      %v3937 = vunpack.c.0.s8 %v3936
      %v3938 = vlaneseq
      %v3939 = vshrl.u32 %v3938, 7
      %v3940 = vsub.s32 %v3937, %v3939
      %v3941 = vrot.slane %v3708, %v3940
      %v3943 = vunpack.c.l.s4 1935823168
      %v3944 = vunpack.c.0.s8 %v3943
      %v3945 = vlaneseq
      %v3946 = vshrl.u32 %v3945, 7
      %v3947 = vsub.s32 %v3944, %v3946
      %v3948 = vrot.slane %v3941, %v3947
      %v3949 = vunpack.c.l.b16 %v3738
      %v3950 = vunpack.c.l.b16 %v3752
      %v3951 = vunpack.c.l.b16 %v3766
      %v3952 = vunpack.c.l.b16 %v3780
      %v3953 = vunpack.c.l.b16 %v3794
      %v3954 = vunpack.c.l.b16 %v3808
      %v3955 = vunpack.c.l.b16 %v3822
      %v3956 = vunpack.c.l.b16 %v3836
      %v3957 = vunpack.c.l.b16 %v3850
      %v3958 = vunpack.c.l.b16 %v3864
      %v3959 = vunpack.c.l.b16 %v3878
      %v3960 = vunpack.c.l.b16 %v3892
      %v3961 = vunpack.c.l.b16 %v3906
      %v3962 = vunpack.c.l.b16 %v3920
      %v3963 = vunpack.c.l.b16 %v3934
      %v3964 = vunpack.c.l.b16 %v3948
      %v3965 = vrot.slane %v3949, 1
      %v3966 = vsel %vm2100, %v3950, %v3965
      %v3967 = vrot.slane %v3951, 7
      %v3968 = vsel %vm2103, %v3967, %v3966
      %v3969 = vrot.slane %v3952, 6
      %v3970 = vsel %vm2106, %v3969, %v3968
      %v3971 = vrot.slane %v3953, 5
      %v3972 = vsel %vm2109, %v3971, %v3970
      %v3973 = vrot.slane %v3954, 4
      %v3974 = vsel %vm2112, %v3973, %v3972
      %v3975 = vrot.slane %v3955, 3
      %v3976 = vsel %vm2115, %v3975, %v3974
      %v3977 = vrot.slane %v3956, 2
      %v3978 = vsel %vm2118, %v3977, %v3976
      %v3979 = vrot.slane %v3957, 1
      %v3980 = vsel %vm2100, %v3958, %v3979
      %v3981 = vrot.slane %v3959, 7
      %v3982 = vsel %vm2103, %v3981, %v3980
      %v3983 = vrot.slane %v3960, 6
      %v3984 = vsel %vm2106, %v3983, %v3982
      %v3985 = vrot.slane %v3961, 5
      %v3986 = vsel %vm2109, %v3985, %v3984
      %v3987 = vrot.slane %v3962, 4
      %v3988 = vsel %vm2112, %v3987, %v3986
      %v3989 = vrot.slane %v3963, 3
      %v3990 = vsel %vm2115, %v3989, %v3988
      %v3991 = vrot.slane %v3964, 2
      %v3992 = vsel %vm2118, %v3991, %v3990
      %v3993 = vpack.c.b16 %v3978, %v3978
      %v3994 = vpack.c.b16 %v3992, %v3992
      %3995 = vrot.lane.b32.xlu0 %v3993, 64
      %v3996 = vpop.permute.xlu0 %3995
      %3997 = vrot.lane.b32.xlu0 %v3994, 64
      %v3998 = vpop.permute.xlu0 %3997
      %4001 = vst.msk [vmem:[#allocation5 + $0x4] sm:$0xf] %vm2761, %v3996
      %4002 = vst.msk [vmem:[#allocation5 + $0x14] sm:$0xf] %vm2761, %v3998
      %s4003 = scalar_lea.vmem [#allocation2], 14
      %v4004 = vld [vmem:[%s4003] sm:$0x1]
      %v4005 = vld [vmem:[%s4003 + $0x1] sm:$0x1]
      %v4006 = vld [vmem:[%s4003 + $0x2] sm:$0x1]
      %v4007 = vld [vmem:[%s4003 + $0x3] sm:$0x1]
      %v4008 = vld [vmem:[%s4003 + $0xc] sm:$0x1]
      %v4009 = vld [vmem:[%s4003 + $0xd] sm:$0x1]
      %v4010 = vld [vmem:[%s4003 + $0xe] sm:$0x1]
      %v4011 = vld [vmem:[%s4003 + $0xf] sm:$0x1]
      %v4012 = vld [vmem:[%s4003 + $0x18] sm:$0x1]
      %v4013 = vld [vmem:[%s4003 + $0x19] sm:$0x1]
      %v4014 = vld [vmem:[%s4003 + $0x1a] sm:$0x1]
      %v4015 = vld [vmem:[%s4003 + $0x1b] sm:$0x1]
      %v4016 = vld [vmem:[%s4003 + $0x24] sm:$0x1]
      %v4017 = vld [vmem:[%s4003 + $0x25] sm:$0x1]
      %v4018 = vld [vmem:[%s4003 + $0x26] sm:$0x1]
      %v4019 = vld [vmem:[%s4003 + $0x27] sm:$0x1]
      %v4037 = vunpack.c.l.s4 1935823168
      %v4038 = vunpack.c.0.s8 %v4037
      %v4039 = vlaneseq
      %v4040 = vshrl.u32 %v4039, 7
      %v4041 = vsub.s32 %v4038, %v4040
      %v4042 = vrot.slane %v4004, %v4041
      %v4044 = vunpack.c.l.s4 1935823168
      %v4045 = vunpack.c.0.s8 %v4044
      %v4046 = vlaneseq
      %v4047 = vshrl.u32 %v4046, 7
      %v4048 = vsub.s32 %v4045, %v4047
      %v4049 = vrot.slane %v4042, %v4048
      %v4051 = vunpack.c.l.s4 1935823168
      %v4052 = vunpack.c.0.s8 %v4051
      %v4053 = vlaneseq
      %v4054 = vshrl.u32 %v4053, 7
      %v4055 = vsub.s32 %v4052, %v4054
      %v4056 = vrot.slane %v4005, %v4055
      %v4058 = vunpack.c.l.s4 1935823168
      %v4059 = vunpack.c.0.s8 %v4058
      %v4060 = vlaneseq
      %v4061 = vshrl.u32 %v4060, 7
      %v4062 = vsub.s32 %v4059, %v4061
      %v4063 = vrot.slane %v4056, %v4062
      %v4065 = vunpack.c.l.s4 1935823168
      %v4066 = vunpack.c.0.s8 %v4065
      %v4067 = vlaneseq
      %v4068 = vshrl.u32 %v4067, 7
      %v4069 = vsub.s32 %v4066, %v4068
      %v4070 = vrot.slane %v4006, %v4069
      %v4072 = vunpack.c.l.s4 1935823168
      %v4073 = vunpack.c.0.s8 %v4072
      %v4074 = vlaneseq
      %v4075 = vshrl.u32 %v4074, 7
      %v4076 = vsub.s32 %v4073, %v4075
      %v4077 = vrot.slane %v4070, %v4076
      %v4079 = vunpack.c.l.s4 1935823168
      %v4080 = vunpack.c.0.s8 %v4079
      %v4081 = vlaneseq
      %v4082 = vshrl.u32 %v4081, 7
      %v4083 = vsub.s32 %v4080, %v4082
      %v4084 = vrot.slane %v4007, %v4083
      %v4086 = vunpack.c.l.s4 1935823168
      %v4087 = vunpack.c.0.s8 %v4086
      %v4088 = vlaneseq
      %v4089 = vshrl.u32 %v4088, 7
      %v4090 = vsub.s32 %v4087, %v4089
      %v4091 = vrot.slane %v4084, %v4090
      %v4093 = vunpack.c.l.s4 1935823168
      %v4094 = vunpack.c.0.s8 %v4093
      %v4095 = vlaneseq
      %v4096 = vshrl.u32 %v4095, 7
      %v4097 = vsub.s32 %v4094, %v4096
      %v4098 = vrot.slane %v4008, %v4097
      %v4100 = vunpack.c.l.s4 1935823168
      %v4101 = vunpack.c.0.s8 %v4100
      %v4102 = vlaneseq
      %v4103 = vshrl.u32 %v4102, 7
      %v4104 = vsub.s32 %v4101, %v4103
      %v4105 = vrot.slane %v4098, %v4104
      %v4107 = vunpack.c.l.s4 1935823168
      %v4108 = vunpack.c.0.s8 %v4107
      %v4109 = vlaneseq
      %v4110 = vshrl.u32 %v4109, 7
      %v4111 = vsub.s32 %v4108, %v4110
      %v4112 = vrot.slane %v4009, %v4111
      %v4114 = vunpack.c.l.s4 1935823168
      %v4115 = vunpack.c.0.s8 %v4114
      %v4116 = vlaneseq
      %v4117 = vshrl.u32 %v4116, 7
      %v4118 = vsub.s32 %v4115, %v4117
      %v4119 = vrot.slane %v4112, %v4118
      %v4121 = vunpack.c.l.s4 1935823168
      %v4122 = vunpack.c.0.s8 %v4121
      %v4123 = vlaneseq
      %v4124 = vshrl.u32 %v4123, 7
      %v4125 = vsub.s32 %v4122, %v4124
      %v4126 = vrot.slane %v4010, %v4125
      %v4128 = vunpack.c.l.s4 1935823168
      %v4129 = vunpack.c.0.s8 %v4128
      %v4130 = vlaneseq
      %v4131 = vshrl.u32 %v4130, 7
      %v4132 = vsub.s32 %v4129, %v4131
      %v4133 = vrot.slane %v4126, %v4132
      %v4135 = vunpack.c.l.s4 1935823168
      %v4136 = vunpack.c.0.s8 %v4135
      %v4137 = vlaneseq
      %v4138 = vshrl.u32 %v4137, 7
      %v4139 = vsub.s32 %v4136, %v4138
      %v4140 = vrot.slane %v4011, %v4139
      %v4142 = vunpack.c.l.s4 1935823168
      %v4143 = vunpack.c.0.s8 %v4142
      %v4144 = vlaneseq
      %v4145 = vshrl.u32 %v4144, 7
      %v4146 = vsub.s32 %v4143, %v4145
      %v4147 = vrot.slane %v4140, %v4146
      %v4149 = vunpack.c.l.s4 1935823168
      %v4150 = vunpack.c.0.s8 %v4149
      %v4151 = vlaneseq
      %v4152 = vshrl.u32 %v4151, 7
      %v4153 = vsub.s32 %v4150, %v4152
      %v4154 = vrot.slane %v4012, %v4153
      %v4156 = vunpack.c.l.s4 1935823168
      %v4157 = vunpack.c.0.s8 %v4156
      %v4158 = vlaneseq
      %v4159 = vshrl.u32 %v4158, 7
      %v4160 = vsub.s32 %v4157, %v4159
      %v4161 = vrot.slane %v4154, %v4160
      %v4163 = vunpack.c.l.s4 1935823168
      %v4164 = vunpack.c.0.s8 %v4163
      %v4165 = vlaneseq
      %v4166 = vshrl.u32 %v4165, 7
      %v4167 = vsub.s32 %v4164, %v4166
      %v4168 = vrot.slane %v4013, %v4167
      %v4170 = vunpack.c.l.s4 1935823168
      %v4171 = vunpack.c.0.s8 %v4170
      %v4172 = vlaneseq
      %v4173 = vshrl.u32 %v4172, 7
      %v4174 = vsub.s32 %v4171, %v4173
      %v4175 = vrot.slane %v4168, %v4174
      %v4177 = vunpack.c.l.s4 1935823168
      %v4178 = vunpack.c.0.s8 %v4177
      %v4179 = vlaneseq
      %v4180 = vshrl.u32 %v4179, 7
      %v4181 = vsub.s32 %v4178, %v4180
      %v4182 = vrot.slane %v4014, %v4181
      %v4184 = vunpack.c.l.s4 1935823168
      %v4185 = vunpack.c.0.s8 %v4184
      %v4186 = vlaneseq
      %v4187 = vshrl.u32 %v4186, 7
      %v4188 = vsub.s32 %v4185, %v4187
      %v4189 = vrot.slane %v4182, %v4188
      %v4191 = vunpack.c.l.s4 1935823168
      %v4192 = vunpack.c.0.s8 %v4191
      %v4193 = vlaneseq
      %v4194 = vshrl.u32 %v4193, 7
      %v4195 = vsub.s32 %v4192, %v4194
      %v4196 = vrot.slane %v4015, %v4195
      %v4198 = vunpack.c.l.s4 1935823168
      %v4199 = vunpack.c.0.s8 %v4198
      %v4200 = vlaneseq
      %v4201 = vshrl.u32 %v4200, 7
      %v4202 = vsub.s32 %v4199, %v4201
      %v4203 = vrot.slane %v4196, %v4202
      %v4205 = vunpack.c.l.s4 1935823168
      %v4206 = vunpack.c.0.s8 %v4205
      %v4207 = vlaneseq
      %v4208 = vshrl.u32 %v4207, 7
      %v4209 = vsub.s32 %v4206, %v4208
      %v4210 = vrot.slane %v4016, %v4209
      %v4212 = vunpack.c.l.s4 1935823168
      %v4213 = vunpack.c.0.s8 %v4212
      %v4214 = vlaneseq
      %v4215 = vshrl.u32 %v4214, 7
      %v4216 = vsub.s32 %v4213, %v4215
      %v4217 = vrot.slane %v4210, %v4216
      %v4219 = vunpack.c.l.s4 1935823168
      %v4220 = vunpack.c.0.s8 %v4219
      %v4221 = vlaneseq
      %v4222 = vshrl.u32 %v4221, 7
      %v4223 = vsub.s32 %v4220, %v4222
      %v4224 = vrot.slane %v4017, %v4223
      %v4226 = vunpack.c.l.s4 1935823168
      %v4227 = vunpack.c.0.s8 %v4226
      %v4228 = vlaneseq
      %v4229 = vshrl.u32 %v4228, 7
      %v4230 = vsub.s32 %v4227, %v4229
      %v4231 = vrot.slane %v4224, %v4230
      %v4233 = vunpack.c.l.s4 1935823168
      %v4234 = vunpack.c.0.s8 %v4233
      %v4235 = vlaneseq
      %v4236 = vshrl.u32 %v4235, 7
      %v4237 = vsub.s32 %v4234, %v4236
      %v4238 = vrot.slane %v4018, %v4237
      %v4240 = vunpack.c.l.s4 1935823168
      %v4241 = vunpack.c.0.s8 %v4240
      %v4242 = vlaneseq
      %v4243 = vshrl.u32 %v4242, 7
      %v4244 = vsub.s32 %v4241, %v4243
      %v4245 = vrot.slane %v4238, %v4244
      %v4247 = vunpack.c.l.s4 1935823168
      %v4248 = vunpack.c.0.s8 %v4247
      %v4249 = vlaneseq
      %v4250 = vshrl.u32 %v4249, 7
      %v4251 = vsub.s32 %v4248, %v4250
      %v4252 = vrot.slane %v4019, %v4251
      %v4254 = vunpack.c.l.s4 1935823168
      %v4255 = vunpack.c.0.s8 %v4254
      %v4256 = vlaneseq
      %v4257 = vshrl.u32 %v4256, 7
      %v4258 = vsub.s32 %v4255, %v4257
      %v4259 = vrot.slane %v4252, %v4258
      %v4260 = vunpack.c.l.b16 %v4049
      %v4261 = vunpack.c.l.b16 %v4063
      %v4262 = vunpack.c.l.b16 %v4077
      %v4263 = vunpack.c.l.b16 %v4091
      %v4264 = vunpack.c.l.b16 %v4105
      %v4265 = vunpack.c.l.b16 %v4119
      %v4266 = vunpack.c.l.b16 %v4133
      %v4267 = vunpack.c.l.b16 %v4147
      %v4268 = vunpack.c.l.b16 %v4161
      %v4269 = vunpack.c.l.b16 %v4175
      %v4270 = vunpack.c.l.b16 %v4189
      %v4271 = vunpack.c.l.b16 %v4203
      %v4272 = vunpack.c.l.b16 %v4217
      %v4273 = vunpack.c.l.b16 %v4231
      %v4274 = vunpack.c.l.b16 %v4245
      %v4275 = vunpack.c.l.b16 %v4259
      %v4276 = vrot.slane %v4261, 7
      %v4277 = vsel %vm2100, %v4276, %v4260
      %v4278 = vrot.slane %v4262, 6
      %v4279 = vsel %vm2103, %v4278, %v4277
      %v4280 = vrot.slane %v4263, 5
      %v4281 = vsel %vm2106, %v4280, %v4279
      %v4282 = vrot.slane %v4264, 4
      %v4283 = vsel %vm2109, %v4282, %v4281
      %v4284 = vrot.slane %v4265, 3
      %v4285 = vsel %vm2112, %v4284, %v4283
      %v4286 = vrot.slane %v4266, 2
      %v4287 = vsel %vm2115, %v4286, %v4285
      %v4288 = vrot.slane %v4267, 1
      %v4289 = vsel %vm2118, %v4288, %v4287
      %v4290 = vrot.slane %v4269, 7
      %v4291 = vsel %vm2100, %v4290, %v4268
      %v4292 = vrot.slane %v4270, 6
      %v4293 = vsel %vm2103, %v4292, %v4291
      %v4294 = vrot.slane %v4271, 5
      %v4295 = vsel %vm2106, %v4294, %v4293
      %v4296 = vrot.slane %v4272, 4
      %v4297 = vsel %vm2109, %v4296, %v4295
      %v4298 = vrot.slane %v4273, 3
      %v4299 = vsel %vm2112, %v4298, %v4297
      %v4300 = vrot.slane %v4274, 2
      %v4301 = vsel %vm2115, %v4300, %v4299
      %v4302 = vrot.slane %v4275, 1
      %v4303 = vsel %vm2118, %v4302, %v4301
      %v4304 = vpack.c.b16 %v4289, %v4289
      %v4305 = vpack.c.b16 %v4303, %v4303
      %4306 = vrot.lane.b32.xlu0 %v4304, 96
      %v4307 = vpop.permute.xlu0 %4306
      %4308 = vrot.lane.b32.xlu0 %v4305, 96
      %v4309 = vpop.permute.xlu0 %4308
      %4312 = vst.msk [vmem:[#allocation5 + $0x4] sm:$0xf] %vm3073, %v4307
      %4313 = vst.msk [vmem:[#allocation5 + $0x14] sm:$0xf] %vm3073, %v4309
      %s4314 = scalar_lea.vmem [#allocation2], 18
      %v4315 = vld [vmem:[%s4314] sm:$0x1]
      %v4316 = vld [vmem:[%s4314 + $0x1] sm:$0x1]
      %v4317 = vld [vmem:[%s4314 + $0x2] sm:$0x1]
      %v4318 = vld [vmem:[%s4314 + $0x3] sm:$0x1]
      %v4319 = vld [vmem:[%s4314 + $0xc] sm:$0x1]
      %v4320 = vld [vmem:[%s4314 + $0xd] sm:$0x1]
      %v4321 = vld [vmem:[%s4314 + $0xe] sm:$0x1]
      %v4322 = vld [vmem:[%s4314 + $0xf] sm:$0x1]
      %v4323 = vld [vmem:[%s4314 + $0x18] sm:$0x1]
      %v4324 = vld [vmem:[%s4314 + $0x19] sm:$0x1]
      %v4325 = vld [vmem:[%s4314 + $0x1a] sm:$0x1]
      %v4326 = vld [vmem:[%s4314 + $0x1b] sm:$0x1]
      %v4327 = vld [vmem:[%s4314 + $0x24] sm:$0x1]
      %v4328 = vld [vmem:[%s4314 + $0x25] sm:$0x1]
      %v4329 = vld [vmem:[%s4314 + $0x26] sm:$0x1]
      %v4330 = vld [vmem:[%s4314 + $0x27] sm:$0x1]
      %v4348 = vunpack.c.l.s4 1935823168
      %v4349 = vunpack.c.0.s8 %v4348
      %v4350 = vlaneseq
      %v4351 = vshrl.u32 %v4350, 7
      %v4352 = vsub.s32 %v4349, %v4351
      %v4353 = vrot.slane %v4315, %v4352
      %v4355 = vunpack.c.l.s4 1935823168
      %v4356 = vunpack.c.0.s8 %v4355
      %v4357 = vlaneseq
      %v4358 = vshrl.u32 %v4357, 7
      %v4359 = vsub.s32 %v4356, %v4358
      %v4360 = vrot.slane %v4353, %v4359
      %v4362 = vunpack.c.l.s4 1935823168
      %v4363 = vunpack.c.0.s8 %v4362
      %v4364 = vlaneseq
      %v4365 = vshrl.u32 %v4364, 7
      %v4366 = vsub.s32 %v4363, %v4365
      %v4367 = vrot.slane %v4316, %v4366
      %v4369 = vunpack.c.l.s4 1935823168
      %v4370 = vunpack.c.0.s8 %v4369
      %v4371 = vlaneseq
      %v4372 = vshrl.u32 %v4371, 7
      %v4373 = vsub.s32 %v4370, %v4372
      %v4374 = vrot.slane %v4367, %v4373
      %v4376 = vunpack.c.l.s4 1935823168
      %v4377 = vunpack.c.0.s8 %v4376
      %v4378 = vlaneseq
      %v4379 = vshrl.u32 %v4378, 7
      %v4380 = vsub.s32 %v4377, %v4379
      %v4381 = vrot.slane %v4317, %v4380
      %v4383 = vunpack.c.l.s4 1935823168
      %v4384 = vunpack.c.0.s8 %v4383
      %v4385 = vlaneseq
      %v4386 = vshrl.u32 %v4385, 7
      %v4387 = vsub.s32 %v4384, %v4386
      %v4388 = vrot.slane %v4381, %v4387
      %v4390 = vunpack.c.l.s4 1935823168
      %v4391 = vunpack.c.0.s8 %v4390
      %v4392 = vlaneseq
      %v4393 = vshrl.u32 %v4392, 7
      %v4394 = vsub.s32 %v4391, %v4393
      %v4395 = vrot.slane %v4318, %v4394
      %v4397 = vunpack.c.l.s4 1935823168
      %v4398 = vunpack.c.0.s8 %v4397
      %v4399 = vlaneseq
      %v4400 = vshrl.u32 %v4399, 7
      %v4401 = vsub.s32 %v4398, %v4400
      %v4402 = vrot.slane %v4395, %v4401
      %v4404 = vunpack.c.l.s4 1935823168
      %v4405 = vunpack.c.0.s8 %v4404
      %v4406 = vlaneseq
      %v4407 = vshrl.u32 %v4406, 7
      %v4408 = vsub.s32 %v4405, %v4407
      %v4409 = vrot.slane %v4319, %v4408
      %v4411 = vunpack.c.l.s4 1935823168
      %v4412 = vunpack.c.0.s8 %v4411
      %v4413 = vlaneseq
      %v4414 = vshrl.u32 %v4413, 7
      %v4415 = vsub.s32 %v4412, %v4414
      %v4416 = vrot.slane %v4409, %v4415
      %v4418 = vunpack.c.l.s4 1935823168
      %v4419 = vunpack.c.0.s8 %v4418
      %v4420 = vlaneseq
      %v4421 = vshrl.u32 %v4420, 7
      %v4422 = vsub.s32 %v4419, %v4421
      %v4423 = vrot.slane %v4320, %v4422
      %v4425 = vunpack.c.l.s4 1935823168
      %v4426 = vunpack.c.0.s8 %v4425
      %v4427 = vlaneseq
      %v4428 = vshrl.u32 %v4427, 7
      %v4429 = vsub.s32 %v4426, %v4428
      %v4430 = vrot.slane %v4423, %v4429
      %v4432 = vunpack.c.l.s4 1935823168
      %v4433 = vunpack.c.0.s8 %v4432
      %v4434 = vlaneseq
      %v4435 = vshrl.u32 %v4434, 7
      %v4436 = vsub.s32 %v4433, %v4435
      %v4437 = vrot.slane %v4321, %v4436
      %v4439 = vunpack.c.l.s4 1935823168
      %v4440 = vunpack.c.0.s8 %v4439
      %v4441 = vlaneseq
      %v4442 = vshrl.u32 %v4441, 7
      %v4443 = vsub.s32 %v4440, %v4442
      %v4444 = vrot.slane %v4437, %v4443
      %v4446 = vunpack.c.l.s4 1935823168
      %v4447 = vunpack.c.0.s8 %v4446
      %v4448 = vlaneseq
      %v4449 = vshrl.u32 %v4448, 7
      %v4450 = vsub.s32 %v4447, %v4449
      %v4451 = vrot.slane %v4322, %v4450
      %v4453 = vunpack.c.l.s4 1935823168
      %v4454 = vunpack.c.0.s8 %v4453
      %v4455 = vlaneseq
      %v4456 = vshrl.u32 %v4455, 7
      %v4457 = vsub.s32 %v4454, %v4456
      %v4458 = vrot.slane %v4451, %v4457
      %v4460 = vunpack.c.l.s4 1935823168
      %v4461 = vunpack.c.0.s8 %v4460
      %v4462 = vlaneseq
      %v4463 = vshrl.u32 %v4462, 7
      %v4464 = vsub.s32 %v4461, %v4463
      %v4465 = vrot.slane %v4323, %v4464
      %v4467 = vunpack.c.l.s4 1935823168
      %v4468 = vunpack.c.0.s8 %v4467
      %v4469 = vlaneseq
      %v4470 = vshrl.u32 %v4469, 7
      %v4471 = vsub.s32 %v4468, %v4470
      %v4472 = vrot.slane %v4465, %v4471
      %v4474 = vunpack.c.l.s4 1935823168
      %v4475 = vunpack.c.0.s8 %v4474
      %v4476 = vlaneseq
      %v4477 = vshrl.u32 %v4476, 7
      %v4478 = vsub.s32 %v4475, %v4477
      %v4479 = vrot.slane %v4324, %v4478
      %v4481 = vunpack.c.l.s4 1935823168
      %v4482 = vunpack.c.0.s8 %v4481
      %v4483 = vlaneseq
      %v4484 = vshrl.u32 %v4483, 7
      %v4485 = vsub.s32 %v4482, %v4484
      %v4486 = vrot.slane %v4479, %v4485
      %v4488 = vunpack.c.l.s4 1935823168
      %v4489 = vunpack.c.0.s8 %v4488
      %v4490 = vlaneseq
      %v4491 = vshrl.u32 %v4490, 7
      %v4492 = vsub.s32 %v4489, %v4491
      %v4493 = vrot.slane %v4325, %v4492
      %v4495 = vunpack.c.l.s4 1935823168
      %v4496 = vunpack.c.0.s8 %v4495
      %v4497 = vlaneseq
      %v4498 = vshrl.u32 %v4497, 7
      %v4499 = vsub.s32 %v4496, %v4498
      %v4500 = vrot.slane %v4493, %v4499
      %v4502 = vunpack.c.l.s4 1935823168
      %v4503 = vunpack.c.0.s8 %v4502
      %v4504 = vlaneseq
      %v4505 = vshrl.u32 %v4504, 7
      %v4506 = vsub.s32 %v4503, %v4505
      %v4507 = vrot.slane %v4326, %v4506
      %v4509 = vunpack.c.l.s4 1935823168
      %v4510 = vunpack.c.0.s8 %v4509
      %v4511 = vlaneseq
      %v4512 = vshrl.u32 %v4511, 7
      %v4513 = vsub.s32 %v4510, %v4512
      %v4514 = vrot.slane %v4507, %v4513
      %v4516 = vunpack.c.l.s4 1935823168
      %v4517 = vunpack.c.0.s8 %v4516
      %v4518 = vlaneseq
      %v4519 = vshrl.u32 %v4518, 7
      %v4520 = vsub.s32 %v4517, %v4519
      %v4521 = vrot.slane %v4327, %v4520
      %v4523 = vunpack.c.l.s4 1935823168
      %v4524 = vunpack.c.0.s8 %v4523
      %v4525 = vlaneseq
      %v4526 = vshrl.u32 %v4525, 7
      %v4527 = vsub.s32 %v4524, %v4526
      %v4528 = vrot.slane %v4521, %v4527
      %v4530 = vunpack.c.l.s4 1935823168
      %v4531 = vunpack.c.0.s8 %v4530
      %v4532 = vlaneseq
      %v4533 = vshrl.u32 %v4532, 7
      %v4534 = vsub.s32 %v4531, %v4533
      %v4535 = vrot.slane %v4328, %v4534
      %v4537 = vunpack.c.l.s4 1935823168
      %v4538 = vunpack.c.0.s8 %v4537
      %v4539 = vlaneseq
      %v4540 = vshrl.u32 %v4539, 7
      %v4541 = vsub.s32 %v4538, %v4540
      %v4542 = vrot.slane %v4535, %v4541
      %v4544 = vunpack.c.l.s4 1935823168
      %v4545 = vunpack.c.0.s8 %v4544
      %v4546 = vlaneseq
      %v4547 = vshrl.u32 %v4546, 7
      %v4548 = vsub.s32 %v4545, %v4547
      %v4549 = vrot.slane %v4329, %v4548
      %v4551 = vunpack.c.l.s4 1935823168
      %v4552 = vunpack.c.0.s8 %v4551
      %v4553 = vlaneseq
      %v4554 = vshrl.u32 %v4553, 7
      %v4555 = vsub.s32 %v4552, %v4554
      %v4556 = vrot.slane %v4549, %v4555
      %v4558 = vunpack.c.l.s4 1935823168
      %v4559 = vunpack.c.0.s8 %v4558
      %v4560 = vlaneseq
      %v4561 = vshrl.u32 %v4560, 7
      %v4562 = vsub.s32 %v4559, %v4561
      %v4563 = vrot.slane %v4330, %v4562
      %v4565 = vunpack.c.l.s4 1935823168
      %v4566 = vunpack.c.0.s8 %v4565
      %v4567 = vlaneseq
      %v4568 = vshrl.u32 %v4567, 7
      %v4569 = vsub.s32 %v4566, %v4568
      %v4570 = vrot.slane %v4563, %v4569
      %v4571 = vunpack.c.l.b16 %v4360
      %v4572 = vunpack.c.l.b16 %v4374
      %v4573 = vunpack.c.l.b16 %v4388
      %v4574 = vunpack.c.l.b16 %v4402
      %v4575 = vunpack.c.l.b16 %v4416
      %v4576 = vunpack.c.l.b16 %v4430
      %v4577 = vunpack.c.l.b16 %v4444
      %v4578 = vunpack.c.l.b16 %v4458
      %v4579 = vunpack.c.l.b16 %v4472
      %v4580 = vunpack.c.l.b16 %v4486
      %v4581 = vunpack.c.l.b16 %v4500
      %v4582 = vunpack.c.l.b16 %v4514
      %v4583 = vunpack.c.l.b16 %v4528
      %v4584 = vunpack.c.l.b16 %v4542
      %v4585 = vunpack.c.l.b16 %v4556
      %v4586 = vunpack.c.l.b16 %v4570
      %v4587 = vrot.slane %v4571, 1
      %v4588 = vsel %vm2100, %v4572, %v4587
      %v4589 = vrot.slane %v4573, 7
      %v4590 = vsel %vm2103, %v4589, %v4588
      %v4591 = vrot.slane %v4574, 6
      %v4592 = vsel %vm2106, %v4591, %v4590
      %v4593 = vrot.slane %v4575, 5
      %v4594 = vsel %vm2109, %v4593, %v4592
      %v4595 = vrot.slane %v4576, 4
      %v4596 = vsel %vm2112, %v4595, %v4594
      %v4597 = vrot.slane %v4577, 3
      %v4598 = vsel %vm2115, %v4597, %v4596
      %v4599 = vrot.slane %v4578, 2
      %v4600 = vsel %vm2118, %v4599, %v4598
      %v4601 = vrot.slane %v4579, 1
      %v4602 = vsel %vm2100, %v4580, %v4601
      %v4603 = vrot.slane %v4581, 7
      %v4604 = vsel %vm2103, %v4603, %v4602
      %v4605 = vrot.slane %v4582, 6
      %v4606 = vsel %vm2106, %v4605, %v4604
      %v4607 = vrot.slane %v4583, 5
      %v4608 = vsel %vm2109, %v4607, %v4606
      %v4609 = vrot.slane %v4584, 4
      %v4610 = vsel %vm2112, %v4609, %v4608
      %v4611 = vrot.slane %v4585, 3
      %v4612 = vsel %vm2115, %v4611, %v4610
      %v4613 = vrot.slane %v4586, 2
      %v4614 = vsel %vm2118, %v4613, %v4612
      %v4615 = vpack.c.b16 %v4600, %v4600
      %v4616 = vpack.c.b16 %v4614, %v4614
      %4619 = vst.msk [vmem:[#allocation5 + $0x8] sm:$0xf] %vm2138, %v4615
      %4620 = vst.msk [vmem:[#allocation5 + $0x18] sm:$0xf] %vm2138, %v4616
      %s4621 = scalar_lea.vmem [#allocation2], 19
      %v4622 = vld [vmem:[%s4621] sm:$0x1]
      %v4623 = vld [vmem:[%s4621 + $0x1] sm:$0x1]
      %v4624 = vld [vmem:[%s4621 + $0x2] sm:$0x1]
      %v4625 = vld [vmem:[%s4621 + $0x3] sm:$0x1]
      %v4626 = vld [vmem:[%s4621 + $0xc] sm:$0x1]
      %v4627 = vld [vmem:[%s4621 + $0xd] sm:$0x1]
      %v4628 = vld [vmem:[%s4621 + $0xe] sm:$0x1]
      %v4629 = vld [vmem:[%s4621 + $0xf] sm:$0x1]
      %v4630 = vld [vmem:[%s4621 + $0x18] sm:$0x1]
      %v4631 = vld [vmem:[%s4621 + $0x19] sm:$0x1]
      %v4632 = vld [vmem:[%s4621 + $0x1a] sm:$0x1]
      %v4633 = vld [vmem:[%s4621 + $0x1b] sm:$0x1]
      %v4634 = vld [vmem:[%s4621 + $0x24] sm:$0x1]
      %v4635 = vld [vmem:[%s4621 + $0x25] sm:$0x1]
      %v4636 = vld [vmem:[%s4621 + $0x26] sm:$0x1]
      %v4637 = vld [vmem:[%s4621 + $0x27] sm:$0x1]
      %v4655 = vunpack.c.l.s4 1935823168
      %v4656 = vunpack.c.0.s8 %v4655
      %v4657 = vlaneseq
      %v4658 = vshrl.u32 %v4657, 7
      %v4659 = vsub.s32 %v4656, %v4658
      %v4660 = vrot.slane %v4622, %v4659
      %v4662 = vunpack.c.l.s4 1935823168
      %v4663 = vunpack.c.0.s8 %v4662
      %v4664 = vlaneseq
      %v4665 = vshrl.u32 %v4664, 7
      %v4666 = vsub.s32 %v4663, %v4665
      %v4667 = vrot.slane %v4660, %v4666
      %v4669 = vunpack.c.l.s4 1935823168
      %v4670 = vunpack.c.0.s8 %v4669
      %v4671 = vlaneseq
      %v4672 = vshrl.u32 %v4671, 7
      %v4673 = vsub.s32 %v4670, %v4672
      %v4674 = vrot.slane %v4623, %v4673
      %v4676 = vunpack.c.l.s4 1935823168
      %v4677 = vunpack.c.0.s8 %v4676
      %v4678 = vlaneseq
      %v4679 = vshrl.u32 %v4678, 7
      %v4680 = vsub.s32 %v4677, %v4679
      %v4681 = vrot.slane %v4674, %v4680
      %v4683 = vunpack.c.l.s4 1935823168
      %v4684 = vunpack.c.0.s8 %v4683
      %v4685 = vlaneseq
      %v4686 = vshrl.u32 %v4685, 7
      %v4687 = vsub.s32 %v4684, %v4686
      %v4688 = vrot.slane %v4624, %v4687
      %v4690 = vunpack.c.l.s4 1935823168
      %v4691 = vunpack.c.0.s8 %v4690
      %v4692 = vlaneseq
      %v4693 = vshrl.u32 %v4692, 7
      %v4694 = vsub.s32 %v4691, %v4693
      %v4695 = vrot.slane %v4688, %v4694
      %v4697 = vunpack.c.l.s4 1935823168
      %v4698 = vunpack.c.0.s8 %v4697
      %v4699 = vlaneseq
      %v4700 = vshrl.u32 %v4699, 7
      %v4701 = vsub.s32 %v4698, %v4700
      %v4702 = vrot.slane %v4625, %v4701
      %v4704 = vunpack.c.l.s4 1935823168
      %v4705 = vunpack.c.0.s8 %v4704
      %v4706 = vlaneseq
      %v4707 = vshrl.u32 %v4706, 7
      %v4708 = vsub.s32 %v4705, %v4707
      %v4709 = vrot.slane %v4702, %v4708
      %v4711 = vunpack.c.l.s4 1935823168
      %v4712 = vunpack.c.0.s8 %v4711
      %v4713 = vlaneseq
      %v4714 = vshrl.u32 %v4713, 7
      %v4715 = vsub.s32 %v4712, %v4714
      %v4716 = vrot.slane %v4626, %v4715
      %v4718 = vunpack.c.l.s4 1935823168
      %v4719 = vunpack.c.0.s8 %v4718
      %v4720 = vlaneseq
      %v4721 = vshrl.u32 %v4720, 7
      %v4722 = vsub.s32 %v4719, %v4721
      %v4723 = vrot.slane %v4716, %v4722
      %v4725 = vunpack.c.l.s4 1935823168
      %v4726 = vunpack.c.0.s8 %v4725
      %v4727 = vlaneseq
      %v4728 = vshrl.u32 %v4727, 7
      %v4729 = vsub.s32 %v4726, %v4728
      %v4730 = vrot.slane %v4627, %v4729
      %v4732 = vunpack.c.l.s4 1935823168
      %v4733 = vunpack.c.0.s8 %v4732
      %v4734 = vlaneseq
      %v4735 = vshrl.u32 %v4734, 7
      %v4736 = vsub.s32 %v4733, %v4735
      %v4737 = vrot.slane %v4730, %v4736
      %v4739 = vunpack.c.l.s4 1935823168
      %v4740 = vunpack.c.0.s8 %v4739
      %v4741 = vlaneseq
      %v4742 = vshrl.u32 %v4741, 7
      %v4743 = vsub.s32 %v4740, %v4742
      %v4744 = vrot.slane %v4628, %v4743
      %v4746 = vunpack.c.l.s4 1935823168
      %v4747 = vunpack.c.0.s8 %v4746
      %v4748 = vlaneseq
      %v4749 = vshrl.u32 %v4748, 7
      %v4750 = vsub.s32 %v4747, %v4749
      %v4751 = vrot.slane %v4744, %v4750
      %v4753 = vunpack.c.l.s4 1935823168
      %v4754 = vunpack.c.0.s8 %v4753
      %v4755 = vlaneseq
      %v4756 = vshrl.u32 %v4755, 7
      %v4757 = vsub.s32 %v4754, %v4756
      %v4758 = vrot.slane %v4629, %v4757
      %v4760 = vunpack.c.l.s4 1935823168
      %v4761 = vunpack.c.0.s8 %v4760
      %v4762 = vlaneseq
      %v4763 = vshrl.u32 %v4762, 7
      %v4764 = vsub.s32 %v4761, %v4763
      %v4765 = vrot.slane %v4758, %v4764
      %v4767 = vunpack.c.l.s4 1935823168
      %v4768 = vunpack.c.0.s8 %v4767
      %v4769 = vlaneseq
      %v4770 = vshrl.u32 %v4769, 7
      %v4771 = vsub.s32 %v4768, %v4770
      %v4772 = vrot.slane %v4630, %v4771
      %v4774 = vunpack.c.l.s4 1935823168
      %v4775 = vunpack.c.0.s8 %v4774
      %v4776 = vlaneseq
      %v4777 = vshrl.u32 %v4776, 7
      %v4778 = vsub.s32 %v4775, %v4777
      %v4779 = vrot.slane %v4772, %v4778
      %v4781 = vunpack.c.l.s4 1935823168
      %v4782 = vunpack.c.0.s8 %v4781
      %v4783 = vlaneseq
      %v4784 = vshrl.u32 %v4783, 7
      %v4785 = vsub.s32 %v4782, %v4784
      %v4786 = vrot.slane %v4631, %v4785
      %v4788 = vunpack.c.l.s4 1935823168
      %v4789 = vunpack.c.0.s8 %v4788
      %v4790 = vlaneseq
      %v4791 = vshrl.u32 %v4790, 7
      %v4792 = vsub.s32 %v4789, %v4791
      %v4793 = vrot.slane %v4786, %v4792
      %v4795 = vunpack.c.l.s4 1935823168
      %v4796 = vunpack.c.0.s8 %v4795
      %v4797 = vlaneseq
      %v4798 = vshrl.u32 %v4797, 7
      %v4799 = vsub.s32 %v4796, %v4798
      %v4800 = vrot.slane %v4632, %v4799
      %v4802 = vunpack.c.l.s4 1935823168
      %v4803 = vunpack.c.0.s8 %v4802
      %v4804 = vlaneseq
      %v4805 = vshrl.u32 %v4804, 7
      %v4806 = vsub.s32 %v4803, %v4805
      %v4807 = vrot.slane %v4800, %v4806
      %v4809 = vunpack.c.l.s4 1935823168
      %v4810 = vunpack.c.0.s8 %v4809
      %v4811 = vlaneseq
      %v4812 = vshrl.u32 %v4811, 7
      %v4813 = vsub.s32 %v4810, %v4812
      %v4814 = vrot.slane %v4633, %v4813
      %v4816 = vunpack.c.l.s4 1935823168
      %v4817 = vunpack.c.0.s8 %v4816
      %v4818 = vlaneseq
      %v4819 = vshrl.u32 %v4818, 7
      %v4820 = vsub.s32 %v4817, %v4819
      %v4821 = vrot.slane %v4814, %v4820
      %v4823 = vunpack.c.l.s4 1935823168
      %v4824 = vunpack.c.0.s8 %v4823
      %v4825 = vlaneseq
      %v4826 = vshrl.u32 %v4825, 7
      %v4827 = vsub.s32 %v4824, %v4826
      %v4828 = vrot.slane %v4634, %v4827
      %v4830 = vunpack.c.l.s4 1935823168
      %v4831 = vunpack.c.0.s8 %v4830
      %v4832 = vlaneseq
      %v4833 = vshrl.u32 %v4832, 7
      %v4834 = vsub.s32 %v4831, %v4833
      %v4835 = vrot.slane %v4828, %v4834
      %v4837 = vunpack.c.l.s4 1935823168
      %v4838 = vunpack.c.0.s8 %v4837
      %v4839 = vlaneseq
      %v4840 = vshrl.u32 %v4839, 7
      %v4841 = vsub.s32 %v4838, %v4840
      %v4842 = vrot.slane %v4635, %v4841
      %v4844 = vunpack.c.l.s4 1935823168
      %v4845 = vunpack.c.0.s8 %v4844
      %v4846 = vlaneseq
      %v4847 = vshrl.u32 %v4846, 7
      %v4848 = vsub.s32 %v4845, %v4847
      %v4849 = vrot.slane %v4842, %v4848
      %v4851 = vunpack.c.l.s4 1935823168
      %v4852 = vunpack.c.0.s8 %v4851
      %v4853 = vlaneseq
      %v4854 = vshrl.u32 %v4853, 7
      %v4855 = vsub.s32 %v4852, %v4854
      %v4856 = vrot.slane %v4636, %v4855
      %v4858 = vunpack.c.l.s4 1935823168
      %v4859 = vunpack.c.0.s8 %v4858
      %v4860 = vlaneseq
      %v4861 = vshrl.u32 %v4860, 7
      %v4862 = vsub.s32 %v4859, %v4861
      %v4863 = vrot.slane %v4856, %v4862
      %v4865 = vunpack.c.l.s4 1935823168
      %v4866 = vunpack.c.0.s8 %v4865
      %v4867 = vlaneseq
      %v4868 = vshrl.u32 %v4867, 7
      %v4869 = vsub.s32 %v4866, %v4868
      %v4870 = vrot.slane %v4637, %v4869
      %v4872 = vunpack.c.l.s4 1935823168
      %v4873 = vunpack.c.0.s8 %v4872
      %v4874 = vlaneseq
      %v4875 = vshrl.u32 %v4874, 7
      %v4876 = vsub.s32 %v4873, %v4875
      %v4877 = vrot.slane %v4870, %v4876
      %v4878 = vunpack.c.l.b16 %v4667
      %v4879 = vunpack.c.l.b16 %v4681
      %v4880 = vunpack.c.l.b16 %v4695
      %v4881 = vunpack.c.l.b16 %v4709
      %v4882 = vunpack.c.l.b16 %v4723
      %v4883 = vunpack.c.l.b16 %v4737
      %v4884 = vunpack.c.l.b16 %v4751
      %v4885 = vunpack.c.l.b16 %v4765
      %v4886 = vunpack.c.l.b16 %v4779
      %v4887 = vunpack.c.l.b16 %v4793
      %v4888 = vunpack.c.l.b16 %v4807
      %v4889 = vunpack.c.l.b16 %v4821
      %v4890 = vunpack.c.l.b16 %v4835
      %v4891 = vunpack.c.l.b16 %v4849
      %v4892 = vunpack.c.l.b16 %v4863
      %v4893 = vunpack.c.l.b16 %v4877
      %v4894 = vrot.slane %v4879, 7
      %v4895 = vsel %vm2100, %v4894, %v4878
      %v4896 = vrot.slane %v4880, 6
      %v4897 = vsel %vm2103, %v4896, %v4895
      %v4898 = vrot.slane %v4881, 5
      %v4899 = vsel %vm2106, %v4898, %v4897
      %v4900 = vrot.slane %v4882, 4
      %v4901 = vsel %vm2109, %v4900, %v4899
      %v4902 = vrot.slane %v4883, 3
      %v4903 = vsel %vm2112, %v4902, %v4901
      %v4904 = vrot.slane %v4884, 2
      %v4905 = vsel %vm2115, %v4904, %v4903
      %v4906 = vrot.slane %v4885, 1
      %v4907 = vsel %vm2118, %v4906, %v4905
      %v4908 = vrot.slane %v4887, 7
      %v4909 = vsel %vm2100, %v4908, %v4886
      %v4910 = vrot.slane %v4888, 6
      %v4911 = vsel %vm2103, %v4910, %v4909
      %v4912 = vrot.slane %v4889, 5
      %v4913 = vsel %vm2106, %v4912, %v4911
      %v4914 = vrot.slane %v4890, 4
      %v4915 = vsel %vm2109, %v4914, %v4913
      %v4916 = vrot.slane %v4891, 3
      %v4917 = vsel %vm2112, %v4916, %v4915
      %v4918 = vrot.slane %v4892, 2
      %v4919 = vsel %vm2115, %v4918, %v4917
      %v4920 = vrot.slane %v4893, 1
      %v4921 = vsel %vm2118, %v4920, %v4919
      %v4922 = vpack.c.b16 %v4907, %v4907
      %v4923 = vpack.c.b16 %v4921, %v4921
      %4924 = vrot.lane.b32.xlu0 %v4922, 32
      %v4925 = vpop.permute.xlu0 %4924
      %4926 = vrot.lane.b32.xlu0 %v4923, 32
      %v4927 = vpop.permute.xlu0 %4926
      %4930 = vst.msk [vmem:[#allocation5 + $0x8] sm:$0xf] %vm2450, %v4925
      %4931 = vst.msk [vmem:[#allocation5 + $0x18] sm:$0xf] %vm2450, %v4927
      %v4932 = vld [vmem:[%s4621] sm:$0x1]
      %v4933 = vld [vmem:[%s4621 + $0x1] sm:$0x1]
      %v4934 = vld [vmem:[%s4621 + $0x2] sm:$0x1]
      %v4935 = vld [vmem:[%s4621 + $0x3] sm:$0x1]
      %v4936 = vld [vmem:[%s4621 + $0xc] sm:$0x1]
      %v4937 = vld [vmem:[%s4621 + $0xd] sm:$0x1]
      %v4938 = vld [vmem:[%s4621 + $0xe] sm:$0x1]
      %v4939 = vld [vmem:[%s4621 + $0xf] sm:$0x1]
      %v4940 = vld [vmem:[%s4621 + $0x18] sm:$0x1]
      %v4941 = vld [vmem:[%s4621 + $0x19] sm:$0x1]
      %v4942 = vld [vmem:[%s4621 + $0x1a] sm:$0x1]
      %v4943 = vld [vmem:[%s4621 + $0x1b] sm:$0x1]
      %v4944 = vld [vmem:[%s4621 + $0x24] sm:$0x1]
      %v4945 = vld [vmem:[%s4621 + $0x25] sm:$0x1]
      %v4946 = vld [vmem:[%s4621 + $0x26] sm:$0x1]
      %v4947 = vld [vmem:[%s4621 + $0x27] sm:$0x1]
      %v4965 = vunpack.c.l.s4 1935823168
      %v4966 = vunpack.c.0.s8 %v4965
      %v4967 = vlaneseq
      %v4968 = vshrl.u32 %v4967, 7
      %v4969 = vsub.s32 %v4966, %v4968
      %v4970 = vrot.slane %v4932, %v4969
      %v4972 = vunpack.c.l.s4 1935823168
      %v4973 = vunpack.c.0.s8 %v4972
      %v4974 = vlaneseq
      %v4975 = vshrl.u32 %v4974, 7
      %v4976 = vsub.s32 %v4973, %v4975
      %v4977 = vrot.slane %v4970, %v4976
      %v4979 = vunpack.c.l.s4 1935823168
      %v4980 = vunpack.c.0.s8 %v4979
      %v4981 = vlaneseq
      %v4982 = vshrl.u32 %v4981, 7
      %v4983 = vsub.s32 %v4980, %v4982
      %v4984 = vrot.slane %v4933, %v4983
      %v4986 = vunpack.c.l.s4 1935823168
      %v4987 = vunpack.c.0.s8 %v4986
      %v4988 = vlaneseq
      %v4989 = vshrl.u32 %v4988, 7
      %v4990 = vsub.s32 %v4987, %v4989
      %v4991 = vrot.slane %v4984, %v4990
      %v4993 = vunpack.c.l.s4 1935823168
      %v4994 = vunpack.c.0.s8 %v4993
      %v4995 = vlaneseq
      %v4996 = vshrl.u32 %v4995, 7
      %v4997 = vsub.s32 %v4994, %v4996
      %v4998 = vrot.slane %v4934, %v4997
      %v5000 = vunpack.c.l.s4 1935823168
      %v5001 = vunpack.c.0.s8 %v5000
      %v5002 = vlaneseq
      %v5003 = vshrl.u32 %v5002, 7
      %v5004 = vsub.s32 %v5001, %v5003
      %v5005 = vrot.slane %v4998, %v5004
      %v5007 = vunpack.c.l.s4 1935823168
      %v5008 = vunpack.c.0.s8 %v5007
      %v5009 = vlaneseq
      %v5010 = vshrl.u32 %v5009, 7
      %v5011 = vsub.s32 %v5008, %v5010
      %v5012 = vrot.slane %v4935, %v5011
      %v5014 = vunpack.c.l.s4 1935823168
      %v5015 = vunpack.c.0.s8 %v5014
      %v5016 = vlaneseq
      %v5017 = vshrl.u32 %v5016, 7
      %v5018 = vsub.s32 %v5015, %v5017
      %v5019 = vrot.slane %v5012, %v5018
      %v5021 = vunpack.c.l.s4 1935823168
      %v5022 = vunpack.c.0.s8 %v5021
      %v5023 = vlaneseq
      %v5024 = vshrl.u32 %v5023, 7
      %v5025 = vsub.s32 %v5022, %v5024
      %v5026 = vrot.slane %v4936, %v5025
      %v5028 = vunpack.c.l.s4 1935823168
      %v5029 = vunpack.c.0.s8 %v5028
      %v5030 = vlaneseq
      %v5031 = vshrl.u32 %v5030, 7
      %v5032 = vsub.s32 %v5029, %v5031
      %v5033 = vrot.slane %v5026, %v5032
      %v5035 = vunpack.c.l.s4 1935823168
      %v5036 = vunpack.c.0.s8 %v5035
      %v5037 = vlaneseq
      %v5038 = vshrl.u32 %v5037, 7
      %v5039 = vsub.s32 %v5036, %v5038
      %v5040 = vrot.slane %v4937, %v5039
      %v5042 = vunpack.c.l.s4 1935823168
      %v5043 = vunpack.c.0.s8 %v5042
      %v5044 = vlaneseq
      %v5045 = vshrl.u32 %v5044, 7
      %v5046 = vsub.s32 %v5043, %v5045
      %v5047 = vrot.slane %v5040, %v5046
      %v5049 = vunpack.c.l.s4 1935823168
      %v5050 = vunpack.c.0.s8 %v5049
      %v5051 = vlaneseq
      %v5052 = vshrl.u32 %v5051, 7
      %v5053 = vsub.s32 %v5050, %v5052
      %v5054 = vrot.slane %v4938, %v5053
      %v5056 = vunpack.c.l.s4 1935823168
      %v5057 = vunpack.c.0.s8 %v5056
      %v5058 = vlaneseq
      %v5059 = vshrl.u32 %v5058, 7
      %v5060 = vsub.s32 %v5057, %v5059
      %v5061 = vrot.slane %v5054, %v5060
      %v5063 = vunpack.c.l.s4 1935823168
      %v5064 = vunpack.c.0.s8 %v5063
      %v5065 = vlaneseq
      %v5066 = vshrl.u32 %v5065, 7
      %v5067 = vsub.s32 %v5064, %v5066
      %v5068 = vrot.slane %v4939, %v5067
      %v5070 = vunpack.c.l.s4 1935823168
      %v5071 = vunpack.c.0.s8 %v5070
      %v5072 = vlaneseq
      %v5073 = vshrl.u32 %v5072, 7
      %v5074 = vsub.s32 %v5071, %v5073
      %v5075 = vrot.slane %v5068, %v5074
      %v5077 = vunpack.c.l.s4 1935823168
      %v5078 = vunpack.c.0.s8 %v5077
      %v5079 = vlaneseq
      %v5080 = vshrl.u32 %v5079, 7
      %v5081 = vsub.s32 %v5078, %v5080
      %v5082 = vrot.slane %v4940, %v5081
      %v5084 = vunpack.c.l.s4 1935823168
      %v5085 = vunpack.c.0.s8 %v5084
      %v5086 = vlaneseq
      %v5087 = vshrl.u32 %v5086, 7
      %v5088 = vsub.s32 %v5085, %v5087
      %v5089 = vrot.slane %v5082, %v5088
      %v5091 = vunpack.c.l.s4 1935823168
      %v5092 = vunpack.c.0.s8 %v5091
      %v5093 = vlaneseq
      %v5094 = vshrl.u32 %v5093, 7
      %v5095 = vsub.s32 %v5092, %v5094
      %v5096 = vrot.slane %v4941, %v5095
      %v5098 = vunpack.c.l.s4 1935823168
      %v5099 = vunpack.c.0.s8 %v5098
      %v5100 = vlaneseq
      %v5101 = vshrl.u32 %v5100, 7
      %v5102 = vsub.s32 %v5099, %v5101
      %v5103 = vrot.slane %v5096, %v5102
      %v5105 = vunpack.c.l.s4 1935823168
      %v5106 = vunpack.c.0.s8 %v5105
      %v5107 = vlaneseq
      %v5108 = vshrl.u32 %v5107, 7
      %v5109 = vsub.s32 %v5106, %v5108
      %v5110 = vrot.slane %v4942, %v5109
      %v5112 = vunpack.c.l.s4 1935823168
      %v5113 = vunpack.c.0.s8 %v5112
      %v5114 = vlaneseq
      %v5115 = vshrl.u32 %v5114, 7
      %v5116 = vsub.s32 %v5113, %v5115
      %v5117 = vrot.slane %v5110, %v5116
      %v5119 = vunpack.c.l.s4 1935823168
      %v5120 = vunpack.c.0.s8 %v5119
      %v5121 = vlaneseq
      %v5122 = vshrl.u32 %v5121, 7
      %v5123 = vsub.s32 %v5120, %v5122
      %v5124 = vrot.slane %v4943, %v5123
      %v5126 = vunpack.c.l.s4 1935823168
      %v5127 = vunpack.c.0.s8 %v5126
      %v5128 = vlaneseq
      %v5129 = vshrl.u32 %v5128, 7
      %v5130 = vsub.s32 %v5127, %v5129
      %v5131 = vrot.slane %v5124, %v5130
      %v5133 = vunpack.c.l.s4 1935823168
      %v5134 = vunpack.c.0.s8 %v5133
      %v5135 = vlaneseq
      %v5136 = vshrl.u32 %v5135, 7
      %v5137 = vsub.s32 %v5134, %v5136
      %v5138 = vrot.slane %v4944, %v5137
      %v5140 = vunpack.c.l.s4 1935823168
      %v5141 = vunpack.c.0.s8 %v5140
      %v5142 = vlaneseq
      %v5143 = vshrl.u32 %v5142, 7
      %v5144 = vsub.s32 %v5141, %v5143
      %v5145 = vrot.slane %v5138, %v5144
      %v5147 = vunpack.c.l.s4 1935823168
      %v5148 = vunpack.c.0.s8 %v5147
      %v5149 = vlaneseq
      %v5150 = vshrl.u32 %v5149, 7
      %v5151 = vsub.s32 %v5148, %v5150
      %v5152 = vrot.slane %v4945, %v5151
      %v5154 = vunpack.c.l.s4 1935823168
      %v5155 = vunpack.c.0.s8 %v5154
      %v5156 = vlaneseq
      %v5157 = vshrl.u32 %v5156, 7
      %v5158 = vsub.s32 %v5155, %v5157
      %v5159 = vrot.slane %v5152, %v5158
      %v5161 = vunpack.c.l.s4 1935823168
      %v5162 = vunpack.c.0.s8 %v5161
      %v5163 = vlaneseq
      %v5164 = vshrl.u32 %v5163, 7
      %v5165 = vsub.s32 %v5162, %v5164
      %v5166 = vrot.slane %v4946, %v5165
      %v5168 = vunpack.c.l.s4 1935823168
      %v5169 = vunpack.c.0.s8 %v5168
      %v5170 = vlaneseq
      %v5171 = vshrl.u32 %v5170, 7
      %v5172 = vsub.s32 %v5169, %v5171
      %v5173 = vrot.slane %v5166, %v5172
      %v5175 = vunpack.c.l.s4 1935823168
      %v5176 = vunpack.c.0.s8 %v5175
      %v5177 = vlaneseq
      %v5178 = vshrl.u32 %v5177, 7
      %v5179 = vsub.s32 %v5176, %v5178
      %v5180 = vrot.slane %v4947, %v5179
      %v5182 = vunpack.c.l.s4 1935823168
      %v5183 = vunpack.c.0.s8 %v5182
      %v5184 = vlaneseq
      %v5185 = vshrl.u32 %v5184, 7
      %v5186 = vsub.s32 %v5183, %v5185
      %v5187 = vrot.slane %v5180, %v5186
      %v5188 = vunpack.c.l.b16 %v4977
      %v5189 = vunpack.c.l.b16 %v4991
      %v5190 = vunpack.c.l.b16 %v5005
      %v5191 = vunpack.c.l.b16 %v5019
      %v5192 = vunpack.c.l.b16 %v5033
      %v5193 = vunpack.c.l.b16 %v5047
      %v5194 = vunpack.c.l.b16 %v5061
      %v5195 = vunpack.c.l.b16 %v5075
      %v5196 = vunpack.c.l.b16 %v5089
      %v5197 = vunpack.c.l.b16 %v5103
      %v5198 = vunpack.c.l.b16 %v5117
      %v5199 = vunpack.c.l.b16 %v5131
      %v5200 = vunpack.c.l.b16 %v5145
      %v5201 = vunpack.c.l.b16 %v5159
      %v5202 = vunpack.c.l.b16 %v5173
      %v5203 = vunpack.c.l.b16 %v5187
      %v5204 = vrot.slane %v5188, 1
      %v5205 = vsel %vm2100, %v5189, %v5204
      %v5206 = vrot.slane %v5190, 7
      %v5207 = vsel %vm2103, %v5206, %v5205
      %v5208 = vrot.slane %v5191, 6
      %v5209 = vsel %vm2106, %v5208, %v5207
      %v5210 = vrot.slane %v5192, 5
      %v5211 = vsel %vm2109, %v5210, %v5209
      %v5212 = vrot.slane %v5193, 4
      %v5213 = vsel %vm2112, %v5212, %v5211
      %v5214 = vrot.slane %v5194, 3
      %v5215 = vsel %vm2115, %v5214, %v5213
      %v5216 = vrot.slane %v5195, 2
      %v5217 = vsel %vm2118, %v5216, %v5215
      %v5218 = vrot.slane %v5196, 1
      %v5219 = vsel %vm2100, %v5197, %v5218
      %v5220 = vrot.slane %v5198, 7
      %v5221 = vsel %vm2103, %v5220, %v5219
      %v5222 = vrot.slane %v5199, 6
      %v5223 = vsel %vm2106, %v5222, %v5221
      %v5224 = vrot.slane %v5200, 5
      %v5225 = vsel %vm2109, %v5224, %v5223
      %v5226 = vrot.slane %v5201, 4
      %v5227 = vsel %vm2112, %v5226, %v5225
      %v5228 = vrot.slane %v5202, 3
      %v5229 = vsel %vm2115, %v5228, %v5227
      %v5230 = vrot.slane %v5203, 2
      %v5231 = vsel %vm2118, %v5230, %v5229
      %v5232 = vpack.c.b16 %v5217, %v5217
      %v5233 = vpack.c.b16 %v5231, %v5231
      %5234 = vrot.lane.b32.xlu0 %v5232, 64
      %v5235 = vpop.permute.xlu0 %5234
      %5236 = vrot.lane.b32.xlu0 %v5233, 64
      %v5237 = vpop.permute.xlu0 %5236
      %5240 = vst.msk [vmem:[#allocation5 + $0x8] sm:$0xf] %vm2761, %v5235
      %5241 = vst.msk [vmem:[#allocation5 + $0x18] sm:$0xf] %vm2761, %v5237
      %s5242 = scalar_lea.vmem [#allocation2], 20
      %v5243 = vld [vmem:[%s5242] sm:$0x1]
      %v5244 = vld [vmem:[%s5242 + $0x1] sm:$0x1]
      %v5245 = vld [vmem:[%s5242 + $0x2] sm:$0x1]
      %v5246 = vld [vmem:[%s5242 + $0x3] sm:$0x1]
      %v5247 = vld [vmem:[%s5242 + $0xc] sm:$0x1]
      %v5248 = vld [vmem:[%s5242 + $0xd] sm:$0x1]
      %v5249 = vld [vmem:[%s5242 + $0xe] sm:$0x1]
      %v5250 = vld [vmem:[%s5242 + $0xf] sm:$0x1]
      %v5251 = vld [vmem:[%s5242 + $0x18] sm:$0x1]
      %v5252 = vld [vmem:[%s5242 + $0x19] sm:$0x1]
      %v5253 = vld [vmem:[%s5242 + $0x1a] sm:$0x1]
      %v5254 = vld [vmem:[%s5242 + $0x1b] sm:$0x1]
      %v5255 = vld [vmem:[%s5242 + $0x24] sm:$0x1]
      %v5256 = vld [vmem:[%s5242 + $0x25] sm:$0x1]
      %v5257 = vld [vmem:[%s5242 + $0x26] sm:$0x1]
      %v5258 = vld [vmem:[%s5242 + $0x27] sm:$0x1]
      %v5276 = vunpack.c.l.s4 1935823168
      %v5277 = vunpack.c.0.s8 %v5276
      %v5278 = vlaneseq
      %v5279 = vshrl.u32 %v5278, 7
      %v5280 = vsub.s32 %v5277, %v5279
      %v5281 = vrot.slane %v5243, %v5280
      %v5283 = vunpack.c.l.s4 1935823168
      %v5284 = vunpack.c.0.s8 %v5283
      %v5285 = vlaneseq
      %v5286 = vshrl.u32 %v5285, 7
      %v5287 = vsub.s32 %v5284, %v5286
      %v5288 = vrot.slane %v5281, %v5287
      %v5290 = vunpack.c.l.s4 1935823168
      %v5291 = vunpack.c.0.s8 %v5290
      %v5292 = vlaneseq
      %v5293 = vshrl.u32 %v5292, 7
      %v5294 = vsub.s32 %v5291, %v5293
      %v5295 = vrot.slane %v5244, %v5294
      %v5297 = vunpack.c.l.s4 1935823168
      %v5298 = vunpack.c.0.s8 %v5297
      %v5299 = vlaneseq
      %v5300 = vshrl.u32 %v5299, 7
      %v5301 = vsub.s32 %v5298, %v5300
      %v5302 = vrot.slane %v5295, %v5301
      %v5304 = vunpack.c.l.s4 1935823168
      %v5305 = vunpack.c.0.s8 %v5304
      %v5306 = vlaneseq
      %v5307 = vshrl.u32 %v5306, 7
      %v5308 = vsub.s32 %v5305, %v5307
      %v5309 = vrot.slane %v5245, %v5308
      %v5311 = vunpack.c.l.s4 1935823168
      %v5312 = vunpack.c.0.s8 %v5311
      %v5313 = vlaneseq
      %v5314 = vshrl.u32 %v5313, 7
      %v5315 = vsub.s32 %v5312, %v5314
      %v5316 = vrot.slane %v5309, %v5315
      %v5318 = vunpack.c.l.s4 1935823168
      %v5319 = vunpack.c.0.s8 %v5318
      %v5320 = vlaneseq
      %v5321 = vshrl.u32 %v5320, 7
      %v5322 = vsub.s32 %v5319, %v5321
      %v5323 = vrot.slane %v5246, %v5322
      %v5325 = vunpack.c.l.s4 1935823168
      %v5326 = vunpack.c.0.s8 %v5325
      %v5327 = vlaneseq
      %v5328 = vshrl.u32 %v5327, 7
      %v5329 = vsub.s32 %v5326, %v5328
      %v5330 = vrot.slane %v5323, %v5329
      %v5332 = vunpack.c.l.s4 1935823168
      %v5333 = vunpack.c.0.s8 %v5332
      %v5334 = vlaneseq
      %v5335 = vshrl.u32 %v5334, 7
      %v5336 = vsub.s32 %v5333, %v5335
      %v5337 = vrot.slane %v5247, %v5336
      %v5339 = vunpack.c.l.s4 1935823168
      %v5340 = vunpack.c.0.s8 %v5339
      %v5341 = vlaneseq
      %v5342 = vshrl.u32 %v5341, 7
      %v5343 = vsub.s32 %v5340, %v5342
      %v5344 = vrot.slane %v5337, %v5343
      %v5346 = vunpack.c.l.s4 1935823168
      %v5347 = vunpack.c.0.s8 %v5346
      %v5348 = vlaneseq
      %v5349 = vshrl.u32 %v5348, 7
      %v5350 = vsub.s32 %v5347, %v5349
      %v5351 = vrot.slane %v5248, %v5350
      %v5353 = vunpack.c.l.s4 1935823168
      %v5354 = vunpack.c.0.s8 %v5353
      %v5355 = vlaneseq
      %v5356 = vshrl.u32 %v5355, 7
      %v5357 = vsub.s32 %v5354, %v5356
      %v5358 = vrot.slane %v5351, %v5357
      %v5360 = vunpack.c.l.s4 1935823168
      %v5361 = vunpack.c.0.s8 %v5360
      %v5362 = vlaneseq
      %v5363 = vshrl.u32 %v5362, 7
      %v5364 = vsub.s32 %v5361, %v5363
      %v5365 = vrot.slane %v5249, %v5364
      %v5367 = vunpack.c.l.s4 1935823168
      %v5368 = vunpack.c.0.s8 %v5367
      %v5369 = vlaneseq
      %v5370 = vshrl.u32 %v5369, 7
      %v5371 = vsub.s32 %v5368, %v5370
      %v5372 = vrot.slane %v5365, %v5371
      %v5374 = vunpack.c.l.s4 1935823168
      %v5375 = vunpack.c.0.s8 %v5374
      %v5376 = vlaneseq
      %v5377 = vshrl.u32 %v5376, 7
      %v5378 = vsub.s32 %v5375, %v5377
      %v5379 = vrot.slane %v5250, %v5378
      %v5381 = vunpack.c.l.s4 1935823168
      %v5382 = vunpack.c.0.s8 %v5381
      %v5383 = vlaneseq
      %v5384 = vshrl.u32 %v5383, 7
      %v5385 = vsub.s32 %v5382, %v5384
      %v5386 = vrot.slane %v5379, %v5385
      %v5388 = vunpack.c.l.s4 1935823168
      %v5389 = vunpack.c.0.s8 %v5388
      %v5390 = vlaneseq
      %v5391 = vshrl.u32 %v5390, 7
      %v5392 = vsub.s32 %v5389, %v5391
      %v5393 = vrot.slane %v5251, %v5392
      %v5395 = vunpack.c.l.s4 1935823168
      %v5396 = vunpack.c.0.s8 %v5395
      %v5397 = vlaneseq
      %v5398 = vshrl.u32 %v5397, 7
      %v5399 = vsub.s32 %v5396, %v5398
      %v5400 = vrot.slane %v5393, %v5399
      %v5402 = vunpack.c.l.s4 1935823168
      %v5403 = vunpack.c.0.s8 %v5402
      %v5404 = vlaneseq
      %v5405 = vshrl.u32 %v5404, 7
      %v5406 = vsub.s32 %v5403, %v5405
      %v5407 = vrot.slane %v5252, %v5406
      %v5409 = vunpack.c.l.s4 1935823168
      %v5410 = vunpack.c.0.s8 %v5409
      %v5411 = vlaneseq
      %v5412 = vshrl.u32 %v5411, 7
      %v5413 = vsub.s32 %v5410, %v5412
      %v5414 = vrot.slane %v5407, %v5413
      %v5416 = vunpack.c.l.s4 1935823168
      %v5417 = vunpack.c.0.s8 %v5416
      %v5418 = vlaneseq
      %v5419 = vshrl.u32 %v5418, 7
      %v5420 = vsub.s32 %v5417, %v5419
      %v5421 = vrot.slane %v5253, %v5420
      %v5423 = vunpack.c.l.s4 1935823168
      %v5424 = vunpack.c.0.s8 %v5423
      %v5425 = vlaneseq
      %v5426 = vshrl.u32 %v5425, 7
      %v5427 = vsub.s32 %v5424, %v5426
      %v5428 = vrot.slane %v5421, %v5427
      %v5430 = vunpack.c.l.s4 1935823168
      %v5431 = vunpack.c.0.s8 %v5430
      %v5432 = vlaneseq
      %v5433 = vshrl.u32 %v5432, 7
      %v5434 = vsub.s32 %v5431, %v5433
      %v5435 = vrot.slane %v5254, %v5434
      %v5437 = vunpack.c.l.s4 1935823168
      %v5438 = vunpack.c.0.s8 %v5437
      %v5439 = vlaneseq
      %v5440 = vshrl.u32 %v5439, 7
      %v5441 = vsub.s32 %v5438, %v5440
      %v5442 = vrot.slane %v5435, %v5441
      %v5444 = vunpack.c.l.s4 1935823168
      %v5445 = vunpack.c.0.s8 %v5444
      %v5446 = vlaneseq
      %v5447 = vshrl.u32 %v5446, 7
      %v5448 = vsub.s32 %v5445, %v5447
      %v5449 = vrot.slane %v5255, %v5448
      %v5451 = vunpack.c.l.s4 1935823168
      %v5452 = vunpack.c.0.s8 %v5451
      %v5453 = vlaneseq
      %v5454 = vshrl.u32 %v5453, 7
      %v5455 = vsub.s32 %v5452, %v5454
      %v5456 = vrot.slane %v5449, %v5455
      %v5458 = vunpack.c.l.s4 1935823168
      %v5459 = vunpack.c.0.s8 %v5458
      %v5460 = vlaneseq
      %v5461 = vshrl.u32 %v5460, 7
      %v5462 = vsub.s32 %v5459, %v5461
      %v5463 = vrot.slane %v5256, %v5462
      %v5465 = vunpack.c.l.s4 1935823168
      %v5466 = vunpack.c.0.s8 %v5465
      %v5467 = vlaneseq
      %v5468 = vshrl.u32 %v5467, 7
      %v5469 = vsub.s32 %v5466, %v5468
      %v5470 = vrot.slane %v5463, %v5469
      %v5472 = vunpack.c.l.s4 1935823168
      %v5473 = vunpack.c.0.s8 %v5472
      %v5474 = vlaneseq
      %v5475 = vshrl.u32 %v5474, 7
      %v5476 = vsub.s32 %v5473, %v5475
      %v5477 = vrot.slane %v5257, %v5476
      %v5479 = vunpack.c.l.s4 1935823168
      %v5480 = vunpack.c.0.s8 %v5479
      %v5481 = vlaneseq
      %v5482 = vshrl.u32 %v5481, 7
      %v5483 = vsub.s32 %v5480, %v5482
      %v5484 = vrot.slane %v5477, %v5483
      %v5486 = vunpack.c.l.s4 1935823168
      %v5487 = vunpack.c.0.s8 %v5486
      %v5488 = vlaneseq
      %v5489 = vshrl.u32 %v5488, 7
      %v5490 = vsub.s32 %v5487, %v5489
      %v5491 = vrot.slane %v5258, %v5490
      %v5493 = vunpack.c.l.s4 1935823168
      %v5494 = vunpack.c.0.s8 %v5493
      %v5495 = vlaneseq
      %v5496 = vshrl.u32 %v5495, 7
      %v5497 = vsub.s32 %v5494, %v5496
      %v5498 = vrot.slane %v5491, %v5497
      %v5499 = vunpack.c.l.b16 %v5288
      %v5500 = vunpack.c.l.b16 %v5302
      %v5501 = vunpack.c.l.b16 %v5316
      %v5502 = vunpack.c.l.b16 %v5330
      %v5503 = vunpack.c.l.b16 %v5344
      %v5504 = vunpack.c.l.b16 %v5358
      %v5505 = vunpack.c.l.b16 %v5372
      %v5506 = vunpack.c.l.b16 %v5386
      %v5507 = vunpack.c.l.b16 %v5400
      %v5508 = vunpack.c.l.b16 %v5414
      %v5509 = vunpack.c.l.b16 %v5428
      %v5510 = vunpack.c.l.b16 %v5442
      %v5511 = vunpack.c.l.b16 %v5456
      %v5512 = vunpack.c.l.b16 %v5470
      %v5513 = vunpack.c.l.b16 %v5484
      %v5514 = vunpack.c.l.b16 %v5498
      %v5515 = vrot.slane %v5500, 7
      %v5516 = vsel %vm2100, %v5515, %v5499
      %v5517 = vrot.slane %v5501, 6
      %v5518 = vsel %vm2103, %v5517, %v5516
      %v5519 = vrot.slane %v5502, 5
      %v5520 = vsel %vm2106, %v5519, %v5518
      %v5521 = vrot.slane %v5503, 4
      %v5522 = vsel %vm2109, %v5521, %v5520
      %v5523 = vrot.slane %v5504, 3
      %v5524 = vsel %vm2112, %v5523, %v5522
      %v5525 = vrot.slane %v5505, 2
      %v5526 = vsel %vm2115, %v5525, %v5524
      %v5527 = vrot.slane %v5506, 1
      %v5528 = vsel %vm2118, %v5527, %v5526
      %v5529 = vrot.slane %v5508, 7
      %v5530 = vsel %vm2100, %v5529, %v5507
      %v5531 = vrot.slane %v5509, 6
      %v5532 = vsel %vm2103, %v5531, %v5530
      %v5533 = vrot.slane %v5510, 5
      %v5534 = vsel %vm2106, %v5533, %v5532
      %v5535 = vrot.slane %v5511, 4
      %v5536 = vsel %vm2109, %v5535, %v5534
      %v5537 = vrot.slane %v5512, 3
      %v5538 = vsel %vm2112, %v5537, %v5536
      %v5539 = vrot.slane %v5513, 2
      %v5540 = vsel %vm2115, %v5539, %v5538
      %v5541 = vrot.slane %v5514, 1
      %v5542 = vsel %vm2118, %v5541, %v5540
      %v5543 = vpack.c.b16 %v5528, %v5528
      %v5544 = vpack.c.b16 %v5542, %v5542
      %5545 = vrot.lane.b32.xlu0 %v5543, 96
      %v5546 = vpop.permute.xlu0 %5545
      %5547 = vrot.lane.b32.xlu0 %v5544, 96
      %v5548 = vpop.permute.xlu0 %5547
      %5551 = vst.msk [vmem:[#allocation5 + $0x8] sm:$0xf] %vm3073, %v5546
      %5552 = vst.msk [vmem:[#allocation5 + $0x18] sm:$0xf] %vm3073, %v5548
      %s5553 = scalar_lea.vmem [#allocation2], 24
      %v5554 = vld [vmem:[%s5553] sm:$0x1]
      %v5555 = vld [vmem:[%s5553 + $0x1] sm:$0x1]
      %v5556 = vld [vmem:[%s5553 + $0x2] sm:$0x1]
      %v5557 = vld [vmem:[%s5553 + $0x3] sm:$0x1]
      %v5558 = vld [vmem:[%s5553 + $0xc] sm:$0x1]
      %v5559 = vld [vmem:[%s5553 + $0xd] sm:$0x1]
      %v5560 = vld [vmem:[%s5553 + $0xe] sm:$0x1]
      %v5561 = vld [vmem:[%s5553 + $0xf] sm:$0x1]
      %v5562 = vld [vmem:[%s5553 + $0x18] sm:$0x1]
      %v5563 = vld [vmem:[%s5553 + $0x19] sm:$0x1]
      %v5564 = vld [vmem:[%s5553 + $0x1a] sm:$0x1]
      %v5565 = vld [vmem:[%s5553 + $0x1b] sm:$0x1]
      %v5566 = vld [vmem:[%s5553 + $0x24] sm:$0x1]
      %v5567 = vld [vmem:[%s5553 + $0x25] sm:$0x1]
      %v5568 = vld [vmem:[%s5553 + $0x26] sm:$0x1]
      %v5569 = vld [vmem:[%s5553 + $0x27] sm:$0x1]
      %v5587 = vunpack.c.l.s4 1935823168
      %v5588 = vunpack.c.0.s8 %v5587
      %v5589 = vlaneseq
      %v5590 = vshrl.u32 %v5589, 7
      %v5591 = vsub.s32 %v5588, %v5590
      %v5592 = vrot.slane %v5554, %v5591
      %v5594 = vunpack.c.l.s4 1935823168
      %v5595 = vunpack.c.0.s8 %v5594
      %v5596 = vlaneseq
      %v5597 = vshrl.u32 %v5596, 7
      %v5598 = vsub.s32 %v5595, %v5597
      %v5599 = vrot.slane %v5592, %v5598
      %v5601 = vunpack.c.l.s4 1935823168
      %v5602 = vunpack.c.0.s8 %v5601
      %v5603 = vlaneseq
      %v5604 = vshrl.u32 %v5603, 7
      %v5605 = vsub.s32 %v5602, %v5604
      %v5606 = vrot.slane %v5555, %v5605
      %v5608 = vunpack.c.l.s4 1935823168
      %v5609 = vunpack.c.0.s8 %v5608
      %v5610 = vlaneseq
      %v5611 = vshrl.u32 %v5610, 7
      %v5612 = vsub.s32 %v5609, %v5611
      %v5613 = vrot.slane %v5606, %v5612
      %v5615 = vunpack.c.l.s4 1935823168
      %v5616 = vunpack.c.0.s8 %v5615
      %v5617 = vlaneseq
      %v5618 = vshrl.u32 %v5617, 7
      %v5619 = vsub.s32 %v5616, %v5618
      %v5620 = vrot.slane %v5556, %v5619
      %v5622 = vunpack.c.l.s4 1935823168
      %v5623 = vunpack.c.0.s8 %v5622
      %v5624 = vlaneseq
      %v5625 = vshrl.u32 %v5624, 7
      %v5626 = vsub.s32 %v5623, %v5625
      %v5627 = vrot.slane %v5620, %v5626
      %v5629 = vunpack.c.l.s4 1935823168
      %v5630 = vunpack.c.0.s8 %v5629
      %v5631 = vlaneseq
      %v5632 = vshrl.u32 %v5631, 7
      %v5633 = vsub.s32 %v5630, %v5632
      %v5634 = vrot.slane %v5557, %v5633
      %v5636 = vunpack.c.l.s4 1935823168
      %v5637 = vunpack.c.0.s8 %v5636
      %v5638 = vlaneseq
      %v5639 = vshrl.u32 %v5638, 7
      %v5640 = vsub.s32 %v5637, %v5639
      %v5641 = vrot.slane %v5634, %v5640
      %v5643 = vunpack.c.l.s4 1935823168
      %v5644 = vunpack.c.0.s8 %v5643
      %v5645 = vlaneseq
      %v5646 = vshrl.u32 %v5645, 7
      %v5647 = vsub.s32 %v5644, %v5646
      %v5648 = vrot.slane %v5558, %v5647
      %v5650 = vunpack.c.l.s4 1935823168
      %v5651 = vunpack.c.0.s8 %v5650
      %v5652 = vlaneseq
      %v5653 = vshrl.u32 %v5652, 7
      %v5654 = vsub.s32 %v5651, %v5653
      %v5655 = vrot.slane %v5648, %v5654
      %v5657 = vunpack.c.l.s4 1935823168
      %v5658 = vunpack.c.0.s8 %v5657
      %v5659 = vlaneseq
      %v5660 = vshrl.u32 %v5659, 7
      %v5661 = vsub.s32 %v5658, %v5660
      %v5662 = vrot.slane %v5559, %v5661
      %v5664 = vunpack.c.l.s4 1935823168
      %v5665 = vunpack.c.0.s8 %v5664
      %v5666 = vlaneseq
      %v5667 = vshrl.u32 %v5666, 7
      %v5668 = vsub.s32 %v5665, %v5667
      %v5669 = vrot.slane %v5662, %v5668
      %v5671 = vunpack.c.l.s4 1935823168
      %v5672 = vunpack.c.0.s8 %v5671
      %v5673 = vlaneseq
      %v5674 = vshrl.u32 %v5673, 7
      %v5675 = vsub.s32 %v5672, %v5674
      %v5676 = vrot.slane %v5560, %v5675
      %v5678 = vunpack.c.l.s4 1935823168
      %v5679 = vunpack.c.0.s8 %v5678
      %v5680 = vlaneseq
      %v5681 = vshrl.u32 %v5680, 7
      %v5682 = vsub.s32 %v5679, %v5681
      %v5683 = vrot.slane %v5676, %v5682
      %v5685 = vunpack.c.l.s4 1935823168
      %v5686 = vunpack.c.0.s8 %v5685
      %v5687 = vlaneseq
      %v5688 = vshrl.u32 %v5687, 7
      %v5689 = vsub.s32 %v5686, %v5688
      %v5690 = vrot.slane %v5561, %v5689
      %v5692 = vunpack.c.l.s4 1935823168
      %v5693 = vunpack.c.0.s8 %v5692
      %v5694 = vlaneseq
      %v5695 = vshrl.u32 %v5694, 7
      %v5696 = vsub.s32 %v5693, %v5695
      %v5697 = vrot.slane %v5690, %v5696
      %v5699 = vunpack.c.l.s4 1935823168
      %v5700 = vunpack.c.0.s8 %v5699
      %v5701 = vlaneseq
      %v5702 = vshrl.u32 %v5701, 7
      %v5703 = vsub.s32 %v5700, %v5702
      %v5704 = vrot.slane %v5562, %v5703
      %v5706 = vunpack.c.l.s4 1935823168
      %v5707 = vunpack.c.0.s8 %v5706
      %v5708 = vlaneseq
      %v5709 = vshrl.u32 %v5708, 7
      %v5710 = vsub.s32 %v5707, %v5709
      %v5711 = vrot.slane %v5704, %v5710
      %v5713 = vunpack.c.l.s4 1935823168
      %v5714 = vunpack.c.0.s8 %v5713
      %v5715 = vlaneseq
      %v5716 = vshrl.u32 %v5715, 7
      %v5717 = vsub.s32 %v5714, %v5716
      %v5718 = vrot.slane %v5563, %v5717
      %v5720 = vunpack.c.l.s4 1935823168
      %v5721 = vunpack.c.0.s8 %v5720
      %v5722 = vlaneseq
      %v5723 = vshrl.u32 %v5722, 7
      %v5724 = vsub.s32 %v5721, %v5723
      %v5725 = vrot.slane %v5718, %v5724
      %v5727 = vunpack.c.l.s4 1935823168
      %v5728 = vunpack.c.0.s8 %v5727
      %v5729 = vlaneseq
      %v5730 = vshrl.u32 %v5729, 7
      %v5731 = vsub.s32 %v5728, %v5730
      %v5732 = vrot.slane %v5564, %v5731
      %v5734 = vunpack.c.l.s4 1935823168
      %v5735 = vunpack.c.0.s8 %v5734
      %v5736 = vlaneseq
      %v5737 = vshrl.u32 %v5736, 7
      %v5738 = vsub.s32 %v5735, %v5737
      %v5739 = vrot.slane %v5732, %v5738
      %v5741 = vunpack.c.l.s4 1935823168
      %v5742 = vunpack.c.0.s8 %v5741
      %v5743 = vlaneseq
      %v5744 = vshrl.u32 %v5743, 7
      %v5745 = vsub.s32 %v5742, %v5744
      %v5746 = vrot.slane %v5565, %v5745
      %v5748 = vunpack.c.l.s4 1935823168
      %v5749 = vunpack.c.0.s8 %v5748
      %v5750 = vlaneseq
      %v5751 = vshrl.u32 %v5750, 7
      %v5752 = vsub.s32 %v5749, %v5751
      %v5753 = vrot.slane %v5746, %v5752
      %v5755 = vunpack.c.l.s4 1935823168
      %v5756 = vunpack.c.0.s8 %v5755
      %v5757 = vlaneseq
      %v5758 = vshrl.u32 %v5757, 7
      %v5759 = vsub.s32 %v5756, %v5758
      %v5760 = vrot.slane %v5566, %v5759
      %v5762 = vunpack.c.l.s4 1935823168
      %v5763 = vunpack.c.0.s8 %v5762
      %v5764 = vlaneseq
      %v5765 = vshrl.u32 %v5764, 7
      %v5766 = vsub.s32 %v5763, %v5765
      %v5767 = vrot.slane %v5760, %v5766
      %v5769 = vunpack.c.l.s4 1935823168
      %v5770 = vunpack.c.0.s8 %v5769
      %v5771 = vlaneseq
      %v5772 = vshrl.u32 %v5771, 7
      %v5773 = vsub.s32 %v5770, %v5772
      %v5774 = vrot.slane %v5567, %v5773
      %v5776 = vunpack.c.l.s4 1935823168
      %v5777 = vunpack.c.0.s8 %v5776
      %v5778 = vlaneseq
      %v5779 = vshrl.u32 %v5778, 7
      %v5780 = vsub.s32 %v5777, %v5779
      %v5781 = vrot.slane %v5774, %v5780
      %v5783 = vunpack.c.l.s4 1935823168
      %v5784 = vunpack.c.0.s8 %v5783
      %v5785 = vlaneseq
      %v5786 = vshrl.u32 %v5785, 7
      %v5787 = vsub.s32 %v5784, %v5786
      %v5788 = vrot.slane %v5568, %v5787
      %v5790 = vunpack.c.l.s4 1935823168
      %v5791 = vunpack.c.0.s8 %v5790
      %v5792 = vlaneseq
      %v5793 = vshrl.u32 %v5792, 7
      %v5794 = vsub.s32 %v5791, %v5793
      %v5795 = vrot.slane %v5788, %v5794
      %v5797 = vunpack.c.l.s4 1935823168
      %v5798 = vunpack.c.0.s8 %v5797
      %v5799 = vlaneseq
      %v5800 = vshrl.u32 %v5799, 7
      %v5801 = vsub.s32 %v5798, %v5800
      %v5802 = vrot.slane %v5569, %v5801
      %v5804 = vunpack.c.l.s4 1935823168
      %v5805 = vunpack.c.0.s8 %v5804
      %v5806 = vlaneseq
      %v5807 = vshrl.u32 %v5806, 7
      %v5808 = vsub.s32 %v5805, %v5807
      %v5809 = vrot.slane %v5802, %v5808
      %v5810 = vunpack.c.l.b16 %v5599
      %v5811 = vunpack.c.l.b16 %v5613
      %v5812 = vunpack.c.l.b16 %v5627
      %v5813 = vunpack.c.l.b16 %v5641
      %v5814 = vunpack.c.l.b16 %v5655
      %v5815 = vunpack.c.l.b16 %v5669
      %v5816 = vunpack.c.l.b16 %v5683
      %v5817 = vunpack.c.l.b16 %v5697
      %v5818 = vunpack.c.l.b16 %v5711
      %v5819 = vunpack.c.l.b16 %v5725
      %v5820 = vunpack.c.l.b16 %v5739
      %v5821 = vunpack.c.l.b16 %v5753
      %v5822 = vunpack.c.l.b16 %v5767
      %v5823 = vunpack.c.l.b16 %v5781
      %v5824 = vunpack.c.l.b16 %v5795
      %v5825 = vunpack.c.l.b16 %v5809
      %v5826 = vrot.slane %v5810, 1
      %v5827 = vsel %vm2100, %v5811, %v5826
      %v5828 = vrot.slane %v5812, 7
      %v5829 = vsel %vm2103, %v5828, %v5827
      %v5830 = vrot.slane %v5813, 6
      %v5831 = vsel %vm2106, %v5830, %v5829
      %v5832 = vrot.slane %v5814, 5
      %v5833 = vsel %vm2109, %v5832, %v5831
      %v5834 = vrot.slane %v5815, 4
      %v5835 = vsel %vm2112, %v5834, %v5833
      %v5836 = vrot.slane %v5816, 3
      %v5837 = vsel %vm2115, %v5836, %v5835
      %v5838 = vrot.slane %v5817, 2
      %v5839 = vsel %vm2118, %v5838, %v5837
      %v5840 = vrot.slane %v5818, 1
      %v5841 = vsel %vm2100, %v5819, %v5840
      %v5842 = vrot.slane %v5820, 7
      %v5843 = vsel %vm2103, %v5842, %v5841
      %v5844 = vrot.slane %v5821, 6
      %v5845 = vsel %vm2106, %v5844, %v5843
      %v5846 = vrot.slane %v5822, 5
      %v5847 = vsel %vm2109, %v5846, %v5845
      %v5848 = vrot.slane %v5823, 4
      %v5849 = vsel %vm2112, %v5848, %v5847
      %v5850 = vrot.slane %v5824, 3
      %v5851 = vsel %vm2115, %v5850, %v5849
      %v5852 = vrot.slane %v5825, 2
      %v5853 = vsel %vm2118, %v5852, %v5851
      %v5854 = vpack.c.b16 %v5839, %v5839
      %v5855 = vpack.c.b16 %v5853, %v5853
      %5858 = vst.msk [vmem:[#allocation5 + $0xc] sm:$0xf] %vm2138, %v5854
      %5859 = vst.msk [vmem:[#allocation5 + $0x1c] sm:$0xf] %vm2138, %v5855
      %s5860 = scalar_lea.vmem [#allocation2], 25
      %v5861 = vld [vmem:[%s5860] sm:$0x1]
      %v5862 = vld [vmem:[%s5860 + $0x1] sm:$0x1]
      %v5863 = vld [vmem:[%s5860 + $0x2] sm:$0x1]
      %v5864 = vld [vmem:[%s5860 + $0x3] sm:$0x1]
      %v5865 = vld [vmem:[%s5860 + $0xc] sm:$0x1]
      %v5866 = vld [vmem:[%s5860 + $0xd] sm:$0x1]
      %v5867 = vld [vmem:[%s5860 + $0xe] sm:$0x1]
      %v5868 = vld [vmem:[%s5860 + $0xf] sm:$0x1]
      %v5869 = vld [vmem:[%s5860 + $0x18] sm:$0x1]
      %v5870 = vld [vmem:[%s5860 + $0x19] sm:$0x1]
      %v5871 = vld [vmem:[%s5860 + $0x1a] sm:$0x1]
      %v5872 = vld [vmem:[%s5860 + $0x1b] sm:$0x1]
      %v5873 = vld [vmem:[%s5860 + $0x24] sm:$0x1]
      %v5874 = vld [vmem:[%s5860 + $0x25] sm:$0x1]
      %v5875 = vld [vmem:[%s5860 + $0x26] sm:$0x1]
      %v5876 = vld [vmem:[%s5860 + $0x27] sm:$0x1]
      %v5894 = vunpack.c.l.s4 1935823168
      %v5895 = vunpack.c.0.s8 %v5894
      %v5896 = vlaneseq
      %v5897 = vshrl.u32 %v5896, 7
      %v5898 = vsub.s32 %v5895, %v5897
      %v5899 = vrot.slane %v5861, %v5898
      %v5901 = vunpack.c.l.s4 1935823168
      %v5902 = vunpack.c.0.s8 %v5901
      %v5903 = vlaneseq
      %v5904 = vshrl.u32 %v5903, 7
      %v5905 = vsub.s32 %v5902, %v5904
      %v5906 = vrot.slane %v5899, %v5905
      %v5908 = vunpack.c.l.s4 1935823168
      %v5909 = vunpack.c.0.s8 %v5908
      %v5910 = vlaneseq
      %v5911 = vshrl.u32 %v5910, 7
      %v5912 = vsub.s32 %v5909, %v5911
      %v5913 = vrot.slane %v5862, %v5912
      %v5915 = vunpack.c.l.s4 1935823168
      %v5916 = vunpack.c.0.s8 %v5915
      %v5917 = vlaneseq
      %v5918 = vshrl.u32 %v5917, 7
      %v5919 = vsub.s32 %v5916, %v5918
      %v5920 = vrot.slane %v5913, %v5919
      %v5922 = vunpack.c.l.s4 1935823168
      %v5923 = vunpack.c.0.s8 %v5922
      %v5924 = vlaneseq
      %v5925 = vshrl.u32 %v5924, 7
      %v5926 = vsub.s32 %v5923, %v5925
      %v5927 = vrot.slane %v5863, %v5926
      %v5929 = vunpack.c.l.s4 1935823168
      %v5930 = vunpack.c.0.s8 %v5929
      %v5931 = vlaneseq
      %v5932 = vshrl.u32 %v5931, 7
      %v5933 = vsub.s32 %v5930, %v5932
      %v5934 = vrot.slane %v5927, %v5933
      %v5936 = vunpack.c.l.s4 1935823168
      %v5937 = vunpack.c.0.s8 %v5936
      %v5938 = vlaneseq
      %v5939 = vshrl.u32 %v5938, 7
      %v5940 = vsub.s32 %v5937, %v5939
      %v5941 = vrot.slane %v5864, %v5940
      %v5943 = vunpack.c.l.s4 1935823168
      %v5944 = vunpack.c.0.s8 %v5943
      %v5945 = vlaneseq
      %v5946 = vshrl.u32 %v5945, 7
      %v5947 = vsub.s32 %v5944, %v5946
      %v5948 = vrot.slane %v5941, %v5947
      %v5950 = vunpack.c.l.s4 1935823168
      %v5951 = vunpack.c.0.s8 %v5950
      %v5952 = vlaneseq
      %v5953 = vshrl.u32 %v5952, 7
      %v5954 = vsub.s32 %v5951, %v5953
      %v5955 = vrot.slane %v5865, %v5954
      %v5957 = vunpack.c.l.s4 1935823168
      %v5958 = vunpack.c.0.s8 %v5957
      %v5959 = vlaneseq
      %v5960 = vshrl.u32 %v5959, 7
      %v5961 = vsub.s32 %v5958, %v5960
      %v5962 = vrot.slane %v5955, %v5961
      %v5964 = vunpack.c.l.s4 1935823168
      %v5965 = vunpack.c.0.s8 %v5964
      %v5966 = vlaneseq
      %v5967 = vshrl.u32 %v5966, 7
      %v5968 = vsub.s32 %v5965, %v5967
      %v5969 = vrot.slane %v5866, %v5968
      %v5971 = vunpack.c.l.s4 1935823168
      %v5972 = vunpack.c.0.s8 %v5971
      %v5973 = vlaneseq
      %v5974 = vshrl.u32 %v5973, 7
      %v5975 = vsub.s32 %v5972, %v5974
      %v5976 = vrot.slane %v5969, %v5975
      %v5978 = vunpack.c.l.s4 1935823168
      %v5979 = vunpack.c.0.s8 %v5978
      %v5980 = vlaneseq
      %v5981 = vshrl.u32 %v5980, 7
      %v5982 = vsub.s32 %v5979, %v5981
      %v5983 = vrot.slane %v5867, %v5982
      %v5985 = vunpack.c.l.s4 1935823168
      %v5986 = vunpack.c.0.s8 %v5985
      %v5987 = vlaneseq
      %v5988 = vshrl.u32 %v5987, 7
      %v5989 = vsub.s32 %v5986, %v5988
      %v5990 = vrot.slane %v5983, %v5989
      %v5992 = vunpack.c.l.s4 1935823168
      %v5993 = vunpack.c.0.s8 %v5992
      %v5994 = vlaneseq
      %v5995 = vshrl.u32 %v5994, 7
      %v5996 = vsub.s32 %v5993, %v5995
      %v5997 = vrot.slane %v5868, %v5996
      %v5999 = vunpack.c.l.s4 1935823168
      %v6000 = vunpack.c.0.s8 %v5999
      %v6001 = vlaneseq
      %v6002 = vshrl.u32 %v6001, 7
      %v6003 = vsub.s32 %v6000, %v6002
      %v6004 = vrot.slane %v5997, %v6003
      %v6006 = vunpack.c.l.s4 1935823168
      %v6007 = vunpack.c.0.s8 %v6006
      %v6008 = vlaneseq
      %v6009 = vshrl.u32 %v6008, 7
      %v6010 = vsub.s32 %v6007, %v6009
      %v6011 = vrot.slane %v5869, %v6010
      %v6013 = vunpack.c.l.s4 1935823168
      %v6014 = vunpack.c.0.s8 %v6013
      %v6015 = vlaneseq
      %v6016 = vshrl.u32 %v6015, 7
      %v6017 = vsub.s32 %v6014, %v6016
      %v6018 = vrot.slane %v6011, %v6017
      %v6020 = vunpack.c.l.s4 1935823168
      %v6021 = vunpack.c.0.s8 %v6020
      %v6022 = vlaneseq
      %v6023 = vshrl.u32 %v6022, 7
      %v6024 = vsub.s32 %v6021, %v6023
      %v6025 = vrot.slane %v5870, %v6024
      %v6027 = vunpack.c.l.s4 1935823168
      %v6028 = vunpack.c.0.s8 %v6027
      %v6029 = vlaneseq
      %v6030 = vshrl.u32 %v6029, 7
      %v6031 = vsub.s32 %v6028, %v6030
      %v6032 = vrot.slane %v6025, %v6031
      %v6034 = vunpack.c.l.s4 1935823168
      %v6035 = vunpack.c.0.s8 %v6034
      %v6036 = vlaneseq
      %v6037 = vshrl.u32 %v6036, 7
      %v6038 = vsub.s32 %v6035, %v6037
      %v6039 = vrot.slane %v5871, %v6038
      %v6041 = vunpack.c.l.s4 1935823168
      %v6042 = vunpack.c.0.s8 %v6041
      %v6043 = vlaneseq
      %v6044 = vshrl.u32 %v6043, 7
      %v6045 = vsub.s32 %v6042, %v6044
      %v6046 = vrot.slane %v6039, %v6045
      %v6048 = vunpack.c.l.s4 1935823168
      %v6049 = vunpack.c.0.s8 %v6048
      %v6050 = vlaneseq
      %v6051 = vshrl.u32 %v6050, 7
      %v6052 = vsub.s32 %v6049, %v6051
      %v6053 = vrot.slane %v5872, %v6052
      %v6055 = vunpack.c.l.s4 1935823168
      %v6056 = vunpack.c.0.s8 %v6055
      %v6057 = vlaneseq
      %v6058 = vshrl.u32 %v6057, 7
      %v6059 = vsub.s32 %v6056, %v6058
      %v6060 = vrot.slane %v6053, %v6059
      %v6062 = vunpack.c.l.s4 1935823168
      %v6063 = vunpack.c.0.s8 %v6062
      %v6064 = vlaneseq
      %v6065 = vshrl.u32 %v6064, 7
      %v6066 = vsub.s32 %v6063, %v6065
      %v6067 = vrot.slane %v5873, %v6066
      %v6069 = vunpack.c.l.s4 1935823168
      %v6070 = vunpack.c.0.s8 %v6069
      %v6071 = vlaneseq
      %v6072 = vshrl.u32 %v6071, 7
      %v6073 = vsub.s32 %v6070, %v6072
      %v6074 = vrot.slane %v6067, %v6073
      %v6076 = vunpack.c.l.s4 1935823168
      %v6077 = vunpack.c.0.s8 %v6076
      %v6078 = vlaneseq
      %v6079 = vshrl.u32 %v6078, 7
      %v6080 = vsub.s32 %v6077, %v6079
      %v6081 = vrot.slane %v5874, %v6080
      %v6083 = vunpack.c.l.s4 1935823168
      %v6084 = vunpack.c.0.s8 %v6083
      %v6085 = vlaneseq
      %v6086 = vshrl.u32 %v6085, 7
      %v6087 = vsub.s32 %v6084, %v6086
      %v6088 = vrot.slane %v6081, %v6087
      %v6090 = vunpack.c.l.s4 1935823168
      %v6091 = vunpack.c.0.s8 %v6090
      %v6092 = vlaneseq
      %v6093 = vshrl.u32 %v6092, 7
      %v6094 = vsub.s32 %v6091, %v6093
      %v6095 = vrot.slane %v5875, %v6094
      %v6097 = vunpack.c.l.s4 1935823168
      %v6098 = vunpack.c.0.s8 %v6097
      %v6099 = vlaneseq
      %v6100 = vshrl.u32 %v6099, 7
      %v6101 = vsub.s32 %v6098, %v6100
      %v6102 = vrot.slane %v6095, %v6101
      %v6104 = vunpack.c.l.s4 1935823168
      %v6105 = vunpack.c.0.s8 %v6104
      %v6106 = vlaneseq
      %v6107 = vshrl.u32 %v6106, 7
      %v6108 = vsub.s32 %v6105, %v6107
      %v6109 = vrot.slane %v5876, %v6108
      %v6111 = vunpack.c.l.s4 1935823168
      %v6112 = vunpack.c.0.s8 %v6111
      %v6113 = vlaneseq
      %v6114 = vshrl.u32 %v6113, 7
      %v6115 = vsub.s32 %v6112, %v6114
      %v6116 = vrot.slane %v6109, %v6115
      %v6117 = vunpack.c.l.b16 %v5906
      %v6118 = vunpack.c.l.b16 %v5920
      %v6119 = vunpack.c.l.b16 %v5934
      %v6120 = vunpack.c.l.b16 %v5948
      %v6121 = vunpack.c.l.b16 %v5962
      %v6122 = vunpack.c.l.b16 %v5976
      %v6123 = vunpack.c.l.b16 %v5990
      %v6124 = vunpack.c.l.b16 %v6004
      %v6125 = vunpack.c.l.b16 %v6018
      %v6126 = vunpack.c.l.b16 %v6032
      %v6127 = vunpack.c.l.b16 %v6046
      %v6128 = vunpack.c.l.b16 %v6060
      %v6129 = vunpack.c.l.b16 %v6074
      %v6130 = vunpack.c.l.b16 %v6088
      %v6131 = vunpack.c.l.b16 %v6102
      %v6132 = vunpack.c.l.b16 %v6116
      %v6133 = vrot.slane %v6118, 7
      %v6134 = vsel %vm2100, %v6133, %v6117
      %v6135 = vrot.slane %v6119, 6
      %v6136 = vsel %vm2103, %v6135, %v6134
      %v6137 = vrot.slane %v6120, 5
      %v6138 = vsel %vm2106, %v6137, %v6136
      %v6139 = vrot.slane %v6121, 4
      %v6140 = vsel %vm2109, %v6139, %v6138
      %v6141 = vrot.slane %v6122, 3
      %v6142 = vsel %vm2112, %v6141, %v6140
      %v6143 = vrot.slane %v6123, 2
      %v6144 = vsel %vm2115, %v6143, %v6142
      %v6145 = vrot.slane %v6124, 1
      %v6146 = vsel %vm2118, %v6145, %v6144
      %v6147 = vrot.slane %v6126, 7
      %v6148 = vsel %vm2100, %v6147, %v6125
      %v6149 = vrot.slane %v6127, 6
      %v6150 = vsel %vm2103, %v6149, %v6148
      %v6151 = vrot.slane %v6128, 5
      %v6152 = vsel %vm2106, %v6151, %v6150
      %v6153 = vrot.slane %v6129, 4
      %v6154 = vsel %vm2109, %v6153, %v6152
      %v6155 = vrot.slane %v6130, 3
      %v6156 = vsel %vm2112, %v6155, %v6154
      %v6157 = vrot.slane %v6131, 2
      %v6158 = vsel %vm2115, %v6157, %v6156
      %v6159 = vrot.slane %v6132, 1
      %v6160 = vsel %vm2118, %v6159, %v6158
      %v6161 = vpack.c.b16 %v6146, %v6146
      %v6162 = vpack.c.b16 %v6160, %v6160
      %6163 = vrot.lane.b32.xlu0 %v6161, 32
      %v6164 = vpop.permute.xlu0 %6163
      %6165 = vrot.lane.b32.xlu0 %v6162, 32
      %v6166 = vpop.permute.xlu0 %6165
      %6169 = vst.msk [vmem:[#allocation5 + $0xc] sm:$0xf] %vm2450, %v6164
      %6170 = vst.msk [vmem:[#allocation5 + $0x1c] sm:$0xf] %vm2450, %v6166
      %v6171 = vld [vmem:[%s5860] sm:$0x1]
      %v6172 = vld [vmem:[%s5860 + $0x1] sm:$0x1]
      %v6173 = vld [vmem:[%s5860 + $0x2] sm:$0x1]
      %v6174 = vld [vmem:[%s5860 + $0x3] sm:$0x1]
      %v6175 = vld [vmem:[%s5860 + $0xc] sm:$0x1]
      %v6176 = vld [vmem:[%s5860 + $0xd] sm:$0x1]
      %v6177 = vld [vmem:[%s5860 + $0xe] sm:$0x1]
      %v6178 = vld [vmem:[%s5860 + $0xf] sm:$0x1]
      %v6179 = vld [vmem:[%s5860 + $0x18] sm:$0x1]
      %v6180 = vld [vmem:[%s5860 + $0x19] sm:$0x1]
      %v6181 = vld [vmem:[%s5860 + $0x1a] sm:$0x1]
      %v6182 = vld [vmem:[%s5860 + $0x1b] sm:$0x1]
      %v6183 = vld [vmem:[%s5860 + $0x24] sm:$0x1]
      %v6184 = vld [vmem:[%s5860 + $0x25] sm:$0x1]
      %v6185 = vld [vmem:[%s5860 + $0x26] sm:$0x1]
      %v6186 = vld [vmem:[%s5860 + $0x27] sm:$0x1]
      %v6204 = vunpack.c.l.s4 1935823168
      %v6205 = vunpack.c.0.s8 %v6204
      %v6206 = vlaneseq
      %v6207 = vshrl.u32 %v6206, 7
      %v6208 = vsub.s32 %v6205, %v6207
      %v6209 = vrot.slane %v6171, %v6208
      %v6211 = vunpack.c.l.s4 1935823168
      %v6212 = vunpack.c.0.s8 %v6211
      %v6213 = vlaneseq
      %v6214 = vshrl.u32 %v6213, 7
      %v6215 = vsub.s32 %v6212, %v6214
      %v6216 = vrot.slane %v6209, %v6215
      %v6218 = vunpack.c.l.s4 1935823168
      %v6219 = vunpack.c.0.s8 %v6218
      %v6220 = vlaneseq
      %v6221 = vshrl.u32 %v6220, 7
      %v6222 = vsub.s32 %v6219, %v6221
      %v6223 = vrot.slane %v6172, %v6222
      %v6225 = vunpack.c.l.s4 1935823168
      %v6226 = vunpack.c.0.s8 %v6225
      %v6227 = vlaneseq
      %v6228 = vshrl.u32 %v6227, 7
      %v6229 = vsub.s32 %v6226, %v6228
      %v6230 = vrot.slane %v6223, %v6229
      %v6232 = vunpack.c.l.s4 1935823168
      %v6233 = vunpack.c.0.s8 %v6232
      %v6234 = vlaneseq
      %v6235 = vshrl.u32 %v6234, 7
      %v6236 = vsub.s32 %v6233, %v6235
      %v6237 = vrot.slane %v6173, %v6236
      %v6239 = vunpack.c.l.s4 1935823168
      %v6240 = vunpack.c.0.s8 %v6239
      %v6241 = vlaneseq
      %v6242 = vshrl.u32 %v6241, 7
      %v6243 = vsub.s32 %v6240, %v6242
      %v6244 = vrot.slane %v6237, %v6243
      %v6246 = vunpack.c.l.s4 1935823168
      %v6247 = vunpack.c.0.s8 %v6246
      %v6248 = vlaneseq
      %v6249 = vshrl.u32 %v6248, 7
      %v6250 = vsub.s32 %v6247, %v6249
      %v6251 = vrot.slane %v6174, %v6250
      %v6253 = vunpack.c.l.s4 1935823168
      %v6254 = vunpack.c.0.s8 %v6253
      %v6255 = vlaneseq
      %v6256 = vshrl.u32 %v6255, 7
      %v6257 = vsub.s32 %v6254, %v6256
      %v6258 = vrot.slane %v6251, %v6257
      %v6260 = vunpack.c.l.s4 1935823168
      %v6261 = vunpack.c.0.s8 %v6260
      %v6262 = vlaneseq
      %v6263 = vshrl.u32 %v6262, 7
      %v6264 = vsub.s32 %v6261, %v6263
      %v6265 = vrot.slane %v6175, %v6264
      %v6267 = vunpack.c.l.s4 1935823168
      %v6268 = vunpack.c.0.s8 %v6267
      %v6269 = vlaneseq
      %v6270 = vshrl.u32 %v6269, 7
      %v6271 = vsub.s32 %v6268, %v6270
      %v6272 = vrot.slane %v6265, %v6271
      %v6274 = vunpack.c.l.s4 1935823168
      %v6275 = vunpack.c.0.s8 %v6274
      %v6276 = vlaneseq
      %v6277 = vshrl.u32 %v6276, 7
      %v6278 = vsub.s32 %v6275, %v6277
      %v6279 = vrot.slane %v6176, %v6278
      %v6281 = vunpack.c.l.s4 1935823168
      %v6282 = vunpack.c.0.s8 %v6281
      %v6283 = vlaneseq
      %v6284 = vshrl.u32 %v6283, 7
      %v6285 = vsub.s32 %v6282, %v6284
      %v6286 = vrot.slane %v6279, %v6285
      %v6288 = vunpack.c.l.s4 1935823168
      %v6289 = vunpack.c.0.s8 %v6288
      %v6290 = vlaneseq
      %v6291 = vshrl.u32 %v6290, 7
      %v6292 = vsub.s32 %v6289, %v6291
      %v6293 = vrot.slane %v6177, %v6292
      %v6295 = vunpack.c.l.s4 1935823168
      %v6296 = vunpack.c.0.s8 %v6295
      %v6297 = vlaneseq
      %v6298 = vshrl.u32 %v6297, 7
      %v6299 = vsub.s32 %v6296, %v6298
      %v6300 = vrot.slane %v6293, %v6299
      %v6302 = vunpack.c.l.s4 1935823168
      %v6303 = vunpack.c.0.s8 %v6302
      %v6304 = vlaneseq
      %v6305 = vshrl.u32 %v6304, 7
      %v6306 = vsub.s32 %v6303, %v6305
      %v6307 = vrot.slane %v6178, %v6306
      %v6309 = vunpack.c.l.s4 1935823168
      %v6310 = vunpack.c.0.s8 %v6309
      %v6311 = vlaneseq
      %v6312 = vshrl.u32 %v6311, 7
      %v6313 = vsub.s32 %v6310, %v6312
      %v6314 = vrot.slane %v6307, %v6313
      %v6316 = vunpack.c.l.s4 1935823168
      %v6317 = vunpack.c.0.s8 %v6316
      %v6318 = vlaneseq
      %v6319 = vshrl.u32 %v6318, 7
      %v6320 = vsub.s32 %v6317, %v6319
      %v6321 = vrot.slane %v6179, %v6320
      %v6323 = vunpack.c.l.s4 1935823168
      %v6324 = vunpack.c.0.s8 %v6323
      %v6325 = vlaneseq
      %v6326 = vshrl.u32 %v6325, 7
      %v6327 = vsub.s32 %v6324, %v6326
      %v6328 = vrot.slane %v6321, %v6327
      %v6330 = vunpack.c.l.s4 1935823168
      %v6331 = vunpack.c.0.s8 %v6330
      %v6332 = vlaneseq
      %v6333 = vshrl.u32 %v6332, 7
      %v6334 = vsub.s32 %v6331, %v6333
      %v6335 = vrot.slane %v6180, %v6334
      %v6337 = vunpack.c.l.s4 1935823168
      %v6338 = vunpack.c.0.s8 %v6337
      %v6339 = vlaneseq
      %v6340 = vshrl.u32 %v6339, 7
      %v6341 = vsub.s32 %v6338, %v6340
      %v6342 = vrot.slane %v6335, %v6341
      %v6344 = vunpack.c.l.s4 1935823168
      %v6345 = vunpack.c.0.s8 %v6344
      %v6346 = vlaneseq
      %v6347 = vshrl.u32 %v6346, 7
      %v6348 = vsub.s32 %v6345, %v6347
      %v6349 = vrot.slane %v6181, %v6348
      %v6351 = vunpack.c.l.s4 1935823168
      %v6352 = vunpack.c.0.s8 %v6351
      %v6353 = vlaneseq
      %v6354 = vshrl.u32 %v6353, 7
      %v6355 = vsub.s32 %v6352, %v6354
      %v6356 = vrot.slane %v6349, %v6355
      %v6358 = vunpack.c.l.s4 1935823168
      %v6359 = vunpack.c.0.s8 %v6358
      %v6360 = vlaneseq
      %v6361 = vshrl.u32 %v6360, 7
      %v6362 = vsub.s32 %v6359, %v6361
      %v6363 = vrot.slane %v6182, %v6362
      %v6365 = vunpack.c.l.s4 1935823168
      %v6366 = vunpack.c.0.s8 %v6365
      %v6367 = vlaneseq
      %v6368 = vshrl.u32 %v6367, 7
      %v6369 = vsub.s32 %v6366, %v6368
      %v6370 = vrot.slane %v6363, %v6369
      %v6372 = vunpack.c.l.s4 1935823168
      %v6373 = vunpack.c.0.s8 %v6372
      %v6374 = vlaneseq
      %v6375 = vshrl.u32 %v6374, 7
      %v6376 = vsub.s32 %v6373, %v6375
      %v6377 = vrot.slane %v6183, %v6376
      %v6379 = vunpack.c.l.s4 1935823168
      %v6380 = vunpack.c.0.s8 %v6379
      %v6381 = vlaneseq
      %v6382 = vshrl.u32 %v6381, 7
      %v6383 = vsub.s32 %v6380, %v6382
      %v6384 = vrot.slane %v6377, %v6383
      %v6386 = vunpack.c.l.s4 1935823168
      %v6387 = vunpack.c.0.s8 %v6386
      %v6388 = vlaneseq
      %v6389 = vshrl.u32 %v6388, 7
      %v6390 = vsub.s32 %v6387, %v6389
      %v6391 = vrot.slane %v6184, %v6390
      %v6393 = vunpack.c.l.s4 1935823168
      %v6394 = vunpack.c.0.s8 %v6393
      %v6395 = vlaneseq
      %v6396 = vshrl.u32 %v6395, 7
      %v6397 = vsub.s32 %v6394, %v6396
      %v6398 = vrot.slane %v6391, %v6397
      %v6400 = vunpack.c.l.s4 1935823168
      %v6401 = vunpack.c.0.s8 %v6400
      %v6402 = vlaneseq
      %v6403 = vshrl.u32 %v6402, 7
      %v6404 = vsub.s32 %v6401, %v6403
      %v6405 = vrot.slane %v6185, %v6404
      %v6407 = vunpack.c.l.s4 1935823168
      %v6408 = vunpack.c.0.s8 %v6407
      %v6409 = vlaneseq
      %v6410 = vshrl.u32 %v6409, 7
      %v6411 = vsub.s32 %v6408, %v6410
      %v6412 = vrot.slane %v6405, %v6411
      %v6414 = vunpack.c.l.s4 1935823168
      %v6415 = vunpack.c.0.s8 %v6414
      %v6416 = vlaneseq
      %v6417 = vshrl.u32 %v6416, 7
      %v6418 = vsub.s32 %v6415, %v6417
      %v6419 = vrot.slane %v6186, %v6418
      %v6421 = vunpack.c.l.s4 1935823168
      %v6422 = vunpack.c.0.s8 %v6421
      %v6423 = vlaneseq
      %v6424 = vshrl.u32 %v6423, 7
      %v6425 = vsub.s32 %v6422, %v6424
      %v6426 = vrot.slane %v6419, %v6425
      %v6427 = vunpack.c.l.b16 %v6216
      %v6428 = vunpack.c.l.b16 %v6230
      %v6429 = vunpack.c.l.b16 %v6244
      %v6430 = vunpack.c.l.b16 %v6258
      %v6431 = vunpack.c.l.b16 %v6272
      %v6432 = vunpack.c.l.b16 %v6286
      %v6433 = vunpack.c.l.b16 %v6300
      %v6434 = vunpack.c.l.b16 %v6314
      %v6435 = vunpack.c.l.b16 %v6328
      %v6436 = vunpack.c.l.b16 %v6342
      %v6437 = vunpack.c.l.b16 %v6356
      %v6438 = vunpack.c.l.b16 %v6370
      %v6439 = vunpack.c.l.b16 %v6384
      %v6440 = vunpack.c.l.b16 %v6398
      %v6441 = vunpack.c.l.b16 %v6412
      %v6442 = vunpack.c.l.b16 %v6426
      %v6443 = vrot.slane %v6427, 1
      %v6444 = vsel %vm2100, %v6428, %v6443
      %v6445 = vrot.slane %v6429, 7
      %v6446 = vsel %vm2103, %v6445, %v6444
      %v6447 = vrot.slane %v6430, 6
      %v6448 = vsel %vm2106, %v6447, %v6446
      %v6449 = vrot.slane %v6431, 5
      %v6450 = vsel %vm2109, %v6449, %v6448
      %v6451 = vrot.slane %v6432, 4
      %v6452 = vsel %vm2112, %v6451, %v6450
      %v6453 = vrot.slane %v6433, 3
      %v6454 = vsel %vm2115, %v6453, %v6452
      %v6455 = vrot.slane %v6434, 2
      %v6456 = vsel %vm2118, %v6455, %v6454
      %v6457 = vrot.slane %v6435, 1
      %v6458 = vsel %vm2100, %v6436, %v6457
      %v6459 = vrot.slane %v6437, 7
      %v6460 = vsel %vm2103, %v6459, %v6458
      %v6461 = vrot.slane %v6438, 6
      %v6462 = vsel %vm2106, %v6461, %v6460
      %v6463 = vrot.slane %v6439, 5
      %v6464 = vsel %vm2109, %v6463, %v6462
      %v6465 = vrot.slane %v6440, 4
      %v6466 = vsel %vm2112, %v6465, %v6464
      %v6467 = vrot.slane %v6441, 3
      %v6468 = vsel %vm2115, %v6467, %v6466
      %v6469 = vrot.slane %v6442, 2
      %v6470 = vsel %vm2118, %v6469, %v6468
      %v6471 = vpack.c.b16 %v6456, %v6456
      %v6472 = vpack.c.b16 %v6470, %v6470
      %6473 = vrot.lane.b32.xlu0 %v6471, 64
      %v6474 = vpop.permute.xlu0 %6473
      %6475 = vrot.lane.b32.xlu0 %v6472, 64
      %v6476 = vpop.permute.xlu0 %6475
      %6479 = vst.msk [vmem:[#allocation5 + $0xc] sm:$0xf] %vm2761, %v6474
      %6480 = vst.msk [vmem:[#allocation5 + $0x1c] sm:$0xf] %vm2761, %v6476
      %s6481 = scalar_lea.vmem [#allocation2], 26
      %v6482 = vld [vmem:[%s6481] sm:$0x1]
      %v6483 = vld [vmem:[%s6481 + $0x1] sm:$0x1]
      %v6484 = vld [vmem:[%s6481 + $0x2] sm:$0x1]
      %v6485 = vld [vmem:[%s6481 + $0x3] sm:$0x1]
      %v6486 = vld [vmem:[%s6481 + $0xc] sm:$0x1]
      %v6487 = vld [vmem:[%s6481 + $0xd] sm:$0x1]
      %v6488 = vld [vmem:[%s6481 + $0xe] sm:$0x1]
      %v6489 = vld [vmem:[%s6481 + $0xf] sm:$0x1]
      %v6490 = vld [vmem:[%s6481 + $0x18] sm:$0x1]
      %v6491 = vld [vmem:[%s6481 + $0x19] sm:$0x1]
      %v6492 = vld [vmem:[%s6481 + $0x1a] sm:$0x1]
      %v6493 = vld [vmem:[%s6481 + $0x1b] sm:$0x1]
      %v6494 = vld [vmem:[%s6481 + $0x24] sm:$0x1]
      %v6495 = vld [vmem:[%s6481 + $0x25] sm:$0x1]
      %v6496 = vld [vmem:[%s6481 + $0x26] sm:$0x1]
      %v6497 = vld [vmem:[%s6481 + $0x27] sm:$0x1]
      %v6515 = vunpack.c.l.s4 1935823168
      %v6516 = vunpack.c.0.s8 %v6515
      %v6517 = vlaneseq
      %v6518 = vshrl.u32 %v6517, 7
      %v6519 = vsub.s32 %v6516, %v6518
      %v6520 = vrot.slane %v6482, %v6519
      %v6522 = vunpack.c.l.s4 1935823168
      %v6523 = vunpack.c.0.s8 %v6522
      %v6524 = vlaneseq
      %v6525 = vshrl.u32 %v6524, 7
      %v6526 = vsub.s32 %v6523, %v6525
      %v6527 = vrot.slane %v6520, %v6526
      %v6529 = vunpack.c.l.s4 1935823168
      %v6530 = vunpack.c.0.s8 %v6529
      %v6531 = vlaneseq
      %v6532 = vshrl.u32 %v6531, 7
      %v6533 = vsub.s32 %v6530, %v6532
      %v6534 = vrot.slane %v6483, %v6533
      %v6536 = vunpack.c.l.s4 1935823168
      %v6537 = vunpack.c.0.s8 %v6536
      %v6538 = vlaneseq
      %v6539 = vshrl.u32 %v6538, 7
      %v6540 = vsub.s32 %v6537, %v6539
      %v6541 = vrot.slane %v6534, %v6540
      %v6543 = vunpack.c.l.s4 1935823168
      %v6544 = vunpack.c.0.s8 %v6543
      %v6545 = vlaneseq
      %v6546 = vshrl.u32 %v6545, 7
      %v6547 = vsub.s32 %v6544, %v6546
      %v6548 = vrot.slane %v6484, %v6547
      %v6550 = vunpack.c.l.s4 1935823168
      %v6551 = vunpack.c.0.s8 %v6550
      %v6552 = vlaneseq
      %v6553 = vshrl.u32 %v6552, 7
      %v6554 = vsub.s32 %v6551, %v6553
      %v6555 = vrot.slane %v6548, %v6554
      %v6557 = vunpack.c.l.s4 1935823168
      %v6558 = vunpack.c.0.s8 %v6557
      %v6559 = vlaneseq
      %v6560 = vshrl.u32 %v6559, 7
      %v6561 = vsub.s32 %v6558, %v6560
      %v6562 = vrot.slane %v6485, %v6561
      %v6564 = vunpack.c.l.s4 1935823168
      %v6565 = vunpack.c.0.s8 %v6564
      %v6566 = vlaneseq
      %v6567 = vshrl.u32 %v6566, 7
      %v6568 = vsub.s32 %v6565, %v6567
      %v6569 = vrot.slane %v6562, %v6568
      %v6571 = vunpack.c.l.s4 1935823168
      %v6572 = vunpack.c.0.s8 %v6571
      %v6573 = vlaneseq
      %v6574 = vshrl.u32 %v6573, 7
      %v6575 = vsub.s32 %v6572, %v6574
      %v6576 = vrot.slane %v6486, %v6575
      %v6578 = vunpack.c.l.s4 1935823168
      %v6579 = vunpack.c.0.s8 %v6578
      %v6580 = vlaneseq
      %v6581 = vshrl.u32 %v6580, 7
      %v6582 = vsub.s32 %v6579, %v6581
      %v6583 = vrot.slane %v6576, %v6582
      %v6585 = vunpack.c.l.s4 1935823168
      %v6586 = vunpack.c.0.s8 %v6585
      %v6587 = vlaneseq
      %v6588 = vshrl.u32 %v6587, 7
      %v6589 = vsub.s32 %v6586, %v6588
      %v6590 = vrot.slane %v6487, %v6589
      %v6592 = vunpack.c.l.s4 1935823168
      %v6593 = vunpack.c.0.s8 %v6592
      %v6594 = vlaneseq
      %v6595 = vshrl.u32 %v6594, 7
      %v6596 = vsub.s32 %v6593, %v6595
      %v6597 = vrot.slane %v6590, %v6596
      %v6599 = vunpack.c.l.s4 1935823168
      %v6600 = vunpack.c.0.s8 %v6599
      %v6601 = vlaneseq
      %v6602 = vshrl.u32 %v6601, 7
      %v6603 = vsub.s32 %v6600, %v6602
      %v6604 = vrot.slane %v6488, %v6603
      %v6606 = vunpack.c.l.s4 1935823168
      %v6607 = vunpack.c.0.s8 %v6606
      %v6608 = vlaneseq
      %v6609 = vshrl.u32 %v6608, 7
      %v6610 = vsub.s32 %v6607, %v6609
      %v6611 = vrot.slane %v6604, %v6610
      %v6613 = vunpack.c.l.s4 1935823168
      %v6614 = vunpack.c.0.s8 %v6613
      %v6615 = vlaneseq
      %v6616 = vshrl.u32 %v6615, 7
      %v6617 = vsub.s32 %v6614, %v6616
      %v6618 = vrot.slane %v6489, %v6617
      %v6620 = vunpack.c.l.s4 1935823168
      %v6621 = vunpack.c.0.s8 %v6620
      %v6622 = vlaneseq
      %v6623 = vshrl.u32 %v6622, 7
      %v6624 = vsub.s32 %v6621, %v6623
      %v6625 = vrot.slane %v6618, %v6624
      %v6627 = vunpack.c.l.s4 1935823168
      %v6628 = vunpack.c.0.s8 %v6627
      %v6629 = vlaneseq
      %v6630 = vshrl.u32 %v6629, 7
      %v6631 = vsub.s32 %v6628, %v6630
      %v6632 = vrot.slane %v6490, %v6631
      %v6634 = vunpack.c.l.s4 1935823168
      %v6635 = vunpack.c.0.s8 %v6634
      %v6636 = vlaneseq
      %v6637 = vshrl.u32 %v6636, 7
      %v6638 = vsub.s32 %v6635, %v6637
      %v6639 = vrot.slane %v6632, %v6638
      %v6641 = vunpack.c.l.s4 1935823168
      %v6642 = vunpack.c.0.s8 %v6641
      %v6643 = vlaneseq
      %v6644 = vshrl.u32 %v6643, 7
      %v6645 = vsub.s32 %v6642, %v6644
      %v6646 = vrot.slane %v6491, %v6645
      %v6648 = vunpack.c.l.s4 1935823168
      %v6649 = vunpack.c.0.s8 %v6648
      %v6650 = vlaneseq
      %v6651 = vshrl.u32 %v6650, 7
      %v6652 = vsub.s32 %v6649, %v6651
      %v6653 = vrot.slane %v6646, %v6652
      %v6655 = vunpack.c.l.s4 1935823168
      %v6656 = vunpack.c.0.s8 %v6655
      %v6657 = vlaneseq
      %v6658 = vshrl.u32 %v6657, 7
      %v6659 = vsub.s32 %v6656, %v6658
      %v6660 = vrot.slane %v6492, %v6659
      %v6662 = vunpack.c.l.s4 1935823168
      %v6663 = vunpack.c.0.s8 %v6662
      %v6664 = vlaneseq
      %v6665 = vshrl.u32 %v6664, 7
      %v6666 = vsub.s32 %v6663, %v6665
      %v6667 = vrot.slane %v6660, %v6666
      %v6669 = vunpack.c.l.s4 1935823168
      %v6670 = vunpack.c.0.s8 %v6669
      %v6671 = vlaneseq
      %v6672 = vshrl.u32 %v6671, 7
      %v6673 = vsub.s32 %v6670, %v6672
      %v6674 = vrot.slane %v6493, %v6673
      %v6676 = vunpack.c.l.s4 1935823168
      %v6677 = vunpack.c.0.s8 %v6676
      %v6678 = vlaneseq
      %v6679 = vshrl.u32 %v6678, 7
      %v6680 = vsub.s32 %v6677, %v6679
      %v6681 = vrot.slane %v6674, %v6680
      %v6683 = vunpack.c.l.s4 1935823168
      %v6684 = vunpack.c.0.s8 %v6683
      %v6685 = vlaneseq
      %v6686 = vshrl.u32 %v6685, 7
      %v6687 = vsub.s32 %v6684, %v6686
      %v6688 = vrot.slane %v6494, %v6687
      %v6690 = vunpack.c.l.s4 1935823168
      %v6691 = vunpack.c.0.s8 %v6690
      %v6692 = vlaneseq
      %v6693 = vshrl.u32 %v6692, 7
      %v6694 = vsub.s32 %v6691, %v6693
      %v6695 = vrot.slane %v6688, %v6694
      %v6697 = vunpack.c.l.s4 1935823168
      %v6698 = vunpack.c.0.s8 %v6697
      %v6699 = vlaneseq
      %v6700 = vshrl.u32 %v6699, 7
      %v6701 = vsub.s32 %v6698, %v6700
      %v6702 = vrot.slane %v6495, %v6701
      %v6704 = vunpack.c.l.s4 1935823168
      %v6705 = vunpack.c.0.s8 %v6704
      %v6706 = vlaneseq
      %v6707 = vshrl.u32 %v6706, 7
      %v6708 = vsub.s32 %v6705, %v6707
      %v6709 = vrot.slane %v6702, %v6708
      %v6711 = vunpack.c.l.s4 1935823168
      %v6712 = vunpack.c.0.s8 %v6711
      %v6713 = vlaneseq
      %v6714 = vshrl.u32 %v6713, 7
      %v6715 = vsub.s32 %v6712, %v6714
      %v6716 = vrot.slane %v6496, %v6715
      %v6718 = vunpack.c.l.s4 1935823168
      %v6719 = vunpack.c.0.s8 %v6718
      %v6720 = vlaneseq
      %v6721 = vshrl.u32 %v6720, 7
      %v6722 = vsub.s32 %v6719, %v6721
      %v6723 = vrot.slane %v6716, %v6722
      %v6725 = vunpack.c.l.s4 1935823168
      %v6726 = vunpack.c.0.s8 %v6725
      %v6727 = vlaneseq
      %v6728 = vshrl.u32 %v6727, 7
      %v6729 = vsub.s32 %v6726, %v6728
      %v6730 = vrot.slane %v6497, %v6729
      %v6732 = vunpack.c.l.s4 1935823168
      %v6733 = vunpack.c.0.s8 %v6732
      %v6734 = vlaneseq
      %v6735 = vshrl.u32 %v6734, 7
      %v6736 = vsub.s32 %v6733, %v6735
      %v6737 = vrot.slane %v6730, %v6736
      %v6738 = vunpack.c.l.b16 %v6527
      %v6739 = vunpack.c.l.b16 %v6541
      %v6740 = vunpack.c.l.b16 %v6555
      %v6741 = vunpack.c.l.b16 %v6569
      %v6742 = vunpack.c.l.b16 %v6583
      %v6743 = vunpack.c.l.b16 %v6597
      %v6744 = vunpack.c.l.b16 %v6611
      %v6745 = vunpack.c.l.b16 %v6625
      %v6746 = vunpack.c.l.b16 %v6639
      %v6747 = vunpack.c.l.b16 %v6653
      %v6748 = vunpack.c.l.b16 %v6667
      %v6749 = vunpack.c.l.b16 %v6681
      %v6750 = vunpack.c.l.b16 %v6695
      %v6751 = vunpack.c.l.b16 %v6709
      %v6752 = vunpack.c.l.b16 %v6723
      %v6753 = vunpack.c.l.b16 %v6737
      %v6754 = vrot.slane %v6739, 7
      %v6755 = vsel %vm2100, %v6754, %v6738
      %v6756 = vrot.slane %v6740, 6
      %v6757 = vsel %vm2103, %v6756, %v6755
      %v6758 = vrot.slane %v6741, 5
      %v6759 = vsel %vm2106, %v6758, %v6757
      %v6760 = vrot.slane %v6742, 4
      %v6761 = vsel %vm2109, %v6760, %v6759
      %v6762 = vrot.slane %v6743, 3
      %v6763 = vsel %vm2112, %v6762, %v6761
      %v6764 = vrot.slane %v6744, 2
      %v6765 = vsel %vm2115, %v6764, %v6763
      %v6766 = vrot.slane %v6745, 1
      %v6767 = vsel %vm2118, %v6766, %v6765
      %v6768 = vrot.slane %v6747, 7
      %v6769 = vsel %vm2100, %v6768, %v6746
      %v6770 = vrot.slane %v6748, 6
      %v6771 = vsel %vm2103, %v6770, %v6769
      %v6772 = vrot.slane %v6749, 5
      %v6773 = vsel %vm2106, %v6772, %v6771
      %v6774 = vrot.slane %v6750, 4
      %v6775 = vsel %vm2109, %v6774, %v6773
      %v6776 = vrot.slane %v6751, 3
      %v6777 = vsel %vm2112, %v6776, %v6775
      %v6778 = vrot.slane %v6752, 2
      %v6779 = vsel %vm2115, %v6778, %v6777
      %v6780 = vrot.slane %v6753, 1
      %v6781 = vsel %vm2118, %v6780, %v6779
      %v6782 = vpack.c.b16 %v6767, %v6767
      %v6783 = vpack.c.b16 %v6781, %v6781
      %6784 = vrot.lane.b32.xlu0 %v6782, 96
      %v6785 = vpop.permute.xlu0 %6784
      %6786 = vrot.lane.b32.xlu0 %v6783, 96
      %v6787 = vpop.permute.xlu0 %6786
      %6790 = vst.msk [vmem:[#allocation5 + $0xc] sm:$0xf] %vm3073, %v6785
      %6791 = vst.msk [vmem:[#allocation5 + $0x1c] sm:$0xf] %vm3073, %v6787
      %v6792 = vld [vmem:[#allocation5] sm:$0xff]
      %v6793 = vld [vmem:[#allocation5 + $0x8] sm:$0xff]
      %v6794 = vld [vmem:[#allocation5 + $0x10] sm:$0xff]
      %v6795 = vld [vmem:[#allocation5 + $0x18] sm:$0xff]
      %v6796 = vld [vmem:[%s3] sm:$0xf]
      %v6797 = vld [vmem:[%s3 + $0x4] sm:$0xf]
      %v6798 = vld [vmem:[%s3 + $0x8] sm:$0xf]
      %v6799 = vld [vmem:[%s3 + $0xc] sm:$0xf]
      %v6800 = vld [vmem:[%s3 + $0x10] sm:$0xf]
      %v6801 = vld [vmem:[%s3 + $0x14] sm:$0xf]
      %v6802 = vld [vmem:[%s3 + $0x18] sm:$0xf]
      %v6803 = vld [vmem:[%s3 + $0x1c] sm:$0xf]
      %v6804 = vld [vmem:[%s3 + $0x20] sm:$0xf]
      %v6805 = vld [vmem:[%s3 + $0x24] sm:$0xf]
      %v6806 = vld [vmem:[%s3 + $0x28] sm:$0xf]
      %v6807 = vld [vmem:[%s3 + $0x2c] sm:$0xf]
      %v6808 = vld [vmem:[%s3 + $0x30] sm:$0xf]
      %v6809 = vld [vmem:[%s3 + $0x34] sm:$0xf]
      %v6810 = vld [vmem:[%s3 + $0x38] sm:$0xf]
      %v6811 = vld [vmem:[%s3 + $0x3c] sm:$0xf]
      %v6812 = vld [vmem:[%s3 + $0x40] sm:$0xf]
      %v6813 = vld [vmem:[%s3 + $0x44] sm:$0xf]
      %v6814 = vld [vmem:[%s3 + $0x48] sm:$0xf]
      %v6815 = vld [vmem:[%s3 + $0x4c] sm:$0xf]
      %v6816 = vld [vmem:[%s3 + $0x50] sm:$0xf]
      %v6817 = vld [vmem:[%s3 + $0x54] sm:$0xf]
      %v6818 = vld [vmem:[%s3 + $0x58] sm:$0xf]
      %v6819 = vld [vmem:[%s3 + $0x5c] sm:$0xf]
      %v6820 = vld [vmem:[%s3 + $0x60] sm:$0xf]
      %v6821 = vld [vmem:[%s3 + $0x64] sm:$0xf]
      %v6822 = vld [vmem:[%s3 + $0x68] sm:$0xf]
      %v6823 = vld [vmem:[%s3 + $0x6c] sm:$0xf]
      %v6824 = vld [vmem:[%s3 + $0x70] sm:$0xf]
      %v6825 = vld [vmem:[%s3 + $0x74] sm:$0xf]
      %v6826 = vld [vmem:[%s3 + $0x78] sm:$0xf]
      %v6827 = vld [vmem:[%s3 + $0x7c] sm:$0xf]
      %v6828 = vld [vmem:[%s3 + $0x80] sm:$0xf]
      %v6829 = vld [vmem:[%s3 + $0x84] sm:$0xf]
      %v6830 = vld [vmem:[%s3 + $0x88] sm:$0xf]
      %v6831 = vld [vmem:[%s3 + $0x8c] sm:$0xf]
      %v6832 = vld [vmem:[%s3 + $0x90] sm:$0xf]
      %v6833 = vld [vmem:[%s3 + $0x94] sm:$0xf]
      %v6834 = vld [vmem:[%s3 + $0x98] sm:$0xf]
      %v6835 = vld [vmem:[%s3 + $0x9c] sm:$0xf]
      %v6836 = vld [vmem:[%s3 + $0xa0] sm:$0xf]
      %v6837 = vld [vmem:[%s3 + $0xa4] sm:$0xf]
      %v6838 = vld [vmem:[%s3 + $0xa8] sm:$0xf]
      %v6839 = vld [vmem:[%s3 + $0xac] sm:$0xf]
      %v6840 = vld [vmem:[%s3 + $0xb0] sm:$0xf]
      %v6841 = vld [vmem:[%s3 + $0xb4] sm:$0xf]
      %v6842 = vld [vmem:[%s3 + $0xb8] sm:$0xf]
      %v6843 = vld [vmem:[%s3 + $0xbc] sm:$0xf]
      %v6844 = vld [vmem:[%s3 + $0xc0] sm:$0xf]
      %v6845 = vld [vmem:[%s3 + $0xc4] sm:$0xf]
      %v6846 = vld [vmem:[%s3 + $0xc8] sm:$0xf]
      %v6847 = vld [vmem:[%s3 + $0xcc] sm:$0xf]
      %v6848 = vld [vmem:[%s3 + $0xd0] sm:$0xf]
      %v6849 = vld [vmem:[%s3 + $0xd4] sm:$0xf]
      %v6850 = vld [vmem:[%s3 + $0xd8] sm:$0xf]
      %v6851 = vld [vmem:[%s3 + $0xdc] sm:$0xf]
      %v6852 = vld [vmem:[%s3 + $0xe0] sm:$0xf]
      %v6853 = vld [vmem:[%s3 + $0xe4] sm:$0xf]
      %v6854 = vld [vmem:[%s3 + $0xe8] sm:$0xf]
      %v6855 = vld [vmem:[%s3 + $0xec] sm:$0xf]
      %v6856 = vld [vmem:[%s3 + $0xf0] sm:$0xf]
      %v6857 = vld [vmem:[%s3 + $0xf4] sm:$0xf]
      %v6858 = vld [vmem:[%s3 + $0xf8] sm:$0xf]
      %v6859 = vld [vmem:[%s3 + $0xfc] sm:$0xf]
      %v6860 = vld [vmem:[%s4] sm:$0x1]
      %v6862 = vlaneseq
      %v6863 = vshrl.u32 %v6862, 7
      %v6864 = vsub.s32 0, %v6863
      %v6865 = vrot.slane %v6860, %v6864
      %v6871 = vunpack.c.l.b16 %v6792
      %v6872 = vunpack.c.h.b16 %v6792
      %v6873 = vunpack.c.l.b16 %v6793
      %v6874 = vunpack.c.h.b16 %v6793
      %v6875 = vunpack.c.l.b16 %v6794
      %v6876 = vunpack.c.h.b16 %v6794
      %v6877 = vunpack.c.l.b16 %v6795
      %v6878 = vunpack.c.h.b16 %v6795
      %v6879 = vpack.c.b16 %v6875, %v6871
      %v6880 = vpack.c.b16 %v6876, %v6872
      %v6881 = vpack.c.b16 %v6877, %v6873
      %v6882 = vpack.c.b16 %v6878, %v6874
      %v6951 = vunpack.c.l.b16 %v6796
      %v6952 = vunpack.c.l.b16 %v6797
      %v6953 = vunpack.c.l.b16 %v6798
      %v6954 = vunpack.c.l.b16 %v6799
      %v6955 = vunpack.c.l.b16 %v6800
      %v6956 = vunpack.c.l.b16 %v6801
      %v6957 = vunpack.c.l.b16 %v6802
      %v6958 = vunpack.c.l.b16 %v6803
      %v6959 = vunpack.c.l.b16 %v6804
      %v6960 = vunpack.c.l.b16 %v6805
      %v6961 = vunpack.c.l.b16 %v6806
      %v6962 = vunpack.c.l.b16 %v6807
      %v6963 = vunpack.c.l.b16 %v6808
      %v6964 = vunpack.c.l.b16 %v6809
      %v6965 = vunpack.c.l.b16 %v6810
      %v6966 = vunpack.c.l.b16 %v6811
      %v6967 = vunpack.c.l.b16 %v6812
      %v6968 = vunpack.c.l.b16 %v6813
      %v6969 = vunpack.c.l.b16 %v6814
      %v6970 = vunpack.c.l.b16 %v6815
      %v6971 = vunpack.c.l.b16 %v6816
      %v6972 = vunpack.c.l.b16 %v6817
      %v6973 = vunpack.c.l.b16 %v6818
      %v6974 = vunpack.c.l.b16 %v6819
      %v6975 = vunpack.c.l.b16 %v6820
      %v6976 = vunpack.c.l.b16 %v6821
      %v6977 = vunpack.c.l.b16 %v6822
      %v6978 = vunpack.c.l.b16 %v6823
      %v6979 = vunpack.c.l.b16 %v6824
      %v6980 = vunpack.c.l.b16 %v6825
      %v6981 = vunpack.c.l.b16 %v6826
      %v6982 = vunpack.c.l.b16 %v6827
      %v6983 = vunpack.c.l.b16 %v6828
      %v6984 = vunpack.c.l.b16 %v6829
      %v6985 = vunpack.c.l.b16 %v6830
      %v6986 = vunpack.c.l.b16 %v6831
      %v6987 = vunpack.c.l.b16 %v6832
      %v6988 = vunpack.c.l.b16 %v6833
      %v6989 = vunpack.c.l.b16 %v6834
      %v6990 = vunpack.c.l.b16 %v6835
      %v6991 = vunpack.c.l.b16 %v6836
      %v6992 = vunpack.c.l.b16 %v6837
      %v6993 = vunpack.c.l.b16 %v6838
      %v6994 = vunpack.c.l.b16 %v6839
      %v6995 = vunpack.c.l.b16 %v6840
      %v6996 = vunpack.c.l.b16 %v6841
      %v6997 = vunpack.c.l.b16 %v6842
      %v6998 = vunpack.c.l.b16 %v6843
      %v6999 = vunpack.c.l.b16 %v6844
      %v7000 = vunpack.c.l.b16 %v6845
      %v7001 = vunpack.c.l.b16 %v6846
      %v7002 = vunpack.c.l.b16 %v6847
      %v7003 = vunpack.c.l.b16 %v6848
      %v7004 = vunpack.c.l.b16 %v6849
      %v7005 = vunpack.c.l.b16 %v6850
      %v7006 = vunpack.c.l.b16 %v6851
      %v7007 = vunpack.c.l.b16 %v6852
      %v7008 = vunpack.c.l.b16 %v6853
      %v7009 = vunpack.c.l.b16 %v6854
      %v7010 = vunpack.c.l.b16 %v6855
      %v7011 = vunpack.c.l.b16 %v6856
      %v7012 = vunpack.c.l.b16 %v6857
      %v7013 = vunpack.c.l.b16 %v6858
      %v7014 = vunpack.c.l.b16 %v6859
      %v7015 = vpack.c.b16 %v6952, %v6951
      %v7016 = vpack.c.b16 %v6954, %v6953
      %v7017 = vpack.c.b16 %v6956, %v6955
      %v7018 = vpack.c.b16 %v6958, %v6957
      %v7019 = vpack.c.b16 %v6960, %v6959
      %v7020 = vpack.c.b16 %v6962, %v6961
      %v7021 = vpack.c.b16 %v6964, %v6963
      %v7022 = vpack.c.b16 %v6966, %v6965
      %v7023 = vpack.c.b16 %v6968, %v6967
      %v7024 = vpack.c.b16 %v6970, %v6969
      %v7025 = vpack.c.b16 %v6972, %v6971
      %v7026 = vpack.c.b16 %v6974, %v6973
      %v7027 = vpack.c.b16 %v6976, %v6975
      %v7028 = vpack.c.b16 %v6978, %v6977
      %v7029 = vpack.c.b16 %v6980, %v6979
      %v7030 = vpack.c.b16 %v6982, %v6981
      %v7031 = vpack.c.b16 %v6984, %v6983
      %v7032 = vpack.c.b16 %v6986, %v6985
      %v7033 = vpack.c.b16 %v6988, %v6987
      %v7034 = vpack.c.b16 %v6990, %v6989
      %v7035 = vpack.c.b16 %v6992, %v6991
      %v7036 = vpack.c.b16 %v6994, %v6993
      %v7037 = vpack.c.b16 %v6996, %v6995
      %v7038 = vpack.c.b16 %v6998, %v6997
      %v7039 = vpack.c.b16 %v7000, %v6999
      %v7040 = vpack.c.b16 %v7002, %v7001
      %v7041 = vpack.c.b16 %v7004, %v7003
      %v7042 = vpack.c.b16 %v7006, %v7005
      %v7043 = vpack.c.b16 %v7008, %v7007
      %v7044 = vpack.c.b16 %v7010, %v7009
      %v7045 = vpack.c.b16 %v7012, %v7011
      %v7046 = vpack.c.b16 %v7014, %v7013
      %7079 = vmatprep.subr.bf16.mxu0 0
      %7080 = vmatpush1.bf16.msra.mxu0 %v7022
      %7081 = vmatprep.subr.bf16.mxu0 0
      %7082 = vmatpush1.bf16.msra.mxu0 %v7021
      %7083 = vmatprep.subr.bf16.mxu0 0
      %7084 = vmatpush1.bf16.msra.mxu0 %v7020
      %7085 = vmatprep.subr.bf16.mxu0 0
      %7086 = vmatpush1.bf16.msra.mxu0 %v7019
      %7087 = vmatprep.subr.bf16.mxu0 0
      %7088 = vmatpush1.bf16.msra.mxu0 %v7018
      %7089 = vmatprep.subr.bf16.mxu0 0
      %7090 = vmatpush1.bf16.msra.mxu0 %v7017
      %7091 = vmatprep.subr.bf16.mxu0 0
      %7092 = vmatpush1.bf16.msra.mxu0 %v7016
      %7093 = vmatprep.subr.bf16.mxu0 0
      %7094 = vmatpush1.bf16.msra.mxu0 %v7015
      %7095 = vmatprep.subr.bf16.mxu0 0
      %7096 = vmatpush2.bf16.msra.mxu0 %v7030
      %7097 = vmatprep.subr.bf16.mxu0 0
      %7098 = vmatpush2.bf16.msra.mxu0 %v7029
      %7099 = vmatprep.subr.bf16.mxu0 0
      %7100 = vmatpush2.bf16.msra.mxu0 %v7028
      %7101 = vmatprep.subr.bf16.mxu0 0
      %7102 = vmatpush2.bf16.msra.mxu0 %v7027
      %7103 = vmatprep.subr.bf16.mxu0 0
      %7104 = vmatpush2.bf16.msra.mxu0 %v7026
      %7105 = vmatprep.subr.bf16.mxu0 0
      %7106 = vmatpush2.bf16.msra.mxu0 %v7025
      %7107 = vmatprep.subr.bf16.mxu0 0
      %7108 = vmatpush2.bf16.msra.mxu0 %v7024
      %7109 = vmatprep.subr.bf16.mxu0 0
      %7110 = vmatpush2.bf16.msra.mxu0 %v7023
      %7111 = vmatprep.mubr.bf16.mxu0 %v6880
      %7112 = vmatmul.mubr.bf16.gmra.mxu0 %v6879
      %v7113 = vpop.f32.mrf.mxu0
      %v7114 = vadd.f32 %v6865, %v7113
      %v7115 = vpop.f32.mrf.mxu0
      %v7116 = vpop.f32.mrf.mxu0
      %v7117 = vadd.f32 %v6865, %v7116
      %v7118 = vpop.f32.mrf.mxu0
      %7119 = vdwg.mxu0
      %7120 = vmatprep.subr.bf16.mxu0 0
      %7121 = vmatpush1.bf16.msra.mxu0 %v7038
      %7122 = vmatprep.subr.bf16.mxu0 0
      %7123 = vmatpush1.bf16.msra.mxu0 %v7037
      %7124 = vmatprep.subr.bf16.mxu0 0
      %7125 = vmatpush1.bf16.msra.mxu0 %v7036
      %7126 = vmatprep.subr.bf16.mxu0 0
      %7127 = vmatpush1.bf16.msra.mxu0 %v7035
      %7128 = vmatprep.subr.bf16.mxu0 0
      %7129 = vmatpush1.bf16.msra.mxu0 %v7034
      %7130 = vmatprep.subr.bf16.mxu0 0
      %7131 = vmatpush1.bf16.msra.mxu0 %v7033
      %7132 = vmatprep.subr.bf16.mxu0 0
      %7133 = vmatpush1.bf16.msra.mxu0 %v7032
      %7134 = vmatprep.subr.bf16.mxu0 0
      %7135 = vmatpush1.bf16.msra.mxu0 %v7031
      %7136 = vmatprep.subr.bf16.mxu0 0
      %7137 = vmatpush2.bf16.msra.mxu0 %v7046
      %7138 = vmatprep.subr.bf16.mxu0 0
      %7139 = vmatpush2.bf16.msra.mxu0 %v7045
      %7140 = vmatprep.subr.bf16.mxu0 0
      %7141 = vmatpush2.bf16.msra.mxu0 %v7044
      %7142 = vmatprep.subr.bf16.mxu0 0
      %7143 = vmatpush2.bf16.msra.mxu0 %v7043
      %7144 = vmatprep.subr.bf16.mxu0 0
      %7145 = vmatpush2.bf16.msra.mxu0 %v7042
      %7146 = vmatprep.subr.bf16.mxu0 0
      %7147 = vmatpush2.bf16.msra.mxu0 %v7041
      %7148 = vmatprep.subr.bf16.mxu0 0
      %7149 = vmatpush2.bf16.msra.mxu0 %v7040
      %7150 = vmatprep.subr.bf16.mxu0 0
      %7151 = vmatpush2.bf16.msra.mxu0 %v7039
      %7152 = vmatprep.mubr.bf16.mxu0 %v6882
      %7153 = vmatmul.mubr.bf16.gmra.mxu0 %v6881
      %v7154 = vpop.f32.mrf.mxu0
      %v7155 = vadd.f32 %v7114, %v7154
      %v7156 = vpop.f32.mrf.mxu0
      %v7157 = vpop.f32.mrf.mxu0
      %v7158 = vadd.f32 %v7117, %v7157
      %v7159 = vpop.f32.mrf.mxu0
      %7160 = vdwg.mxu0
      %v7161 = vmax.f32 %v7155, 0.0
      %v7162 = vmax.f32 %v7158, 0.0
      %v7163 = vpack.c.bf16 %v7162, %v7161
      %v7165 = vcombine.high %v7163, %v7163
      %v7167 = vunpack.c.l.s4 1983009808
      %v7168 = vunpack.c.0.s8 %v7167
      %v7169 = vlaneseq
      %v7170 = vshrl.u32 %v7169, 7
      %v7171 = vsub.s32 %v7168, %v7170
      %v7172 = vrot.slane %v7163, %v7171
      %v7174 = vunpack.c.l.s4 1983009808
      %v7175 = vunpack.c.0.s8 %v7174
      %v7176 = vlaneseq
      %v7177 = vshrl.u32 %v7176, 7
      %v7178 = vsub.s32 %v7175, %v7177
      %v7179 = vrot.slane %v7165, %v7178
      %v7180 = vcombine.high %v7172, %v7172
      %v7181 = vcombine.high %v7179, %v7179
      %v7183 = vunpack.c.l.s4 1983009808
      %v7184 = vunpack.c.0.s8 %v7183
      %v7185 = vlaneseq
      %v7186 = vshrl.u32 %v7185, 7
      %v7187 = vsub.s32 %v7184, %v7186
      %v7188 = vrot.slane %v7172, %v7187
      %v7190 = vunpack.c.l.s4 1983009808
      %v7191 = vunpack.c.0.s8 %v7190
      %v7192 = vlaneseq
      %v7193 = vshrl.u32 %v7192, 7
      %v7194 = vsub.s32 %v7191, %v7193
      %v7195 = vrot.slane %v7180, %v7194
      %v7197 = vunpack.c.l.s4 1983009808
      %v7198 = vunpack.c.0.s8 %v7197
      %v7199 = vlaneseq
      %v7200 = vshrl.u32 %v7199, 7
      %v7201 = vsub.s32 %v7198, %v7200
      %v7202 = vrot.slane %v7179, %v7201
      %v7204 = vunpack.c.l.s4 1983009808
      %v7205 = vunpack.c.0.s8 %v7204
      %v7206 = vlaneseq
      %v7207 = vshrl.u32 %v7206, 7
      %v7208 = vsub.s32 %v7205, %v7207
      %v7209 = vrot.slane %v7181, %v7208
      %v7211 = vshrl.u32 %v7188, 16
      %v7213 = vrot.slane %v7211, 7
      %v7214 = vshll.u32 %v7188, 16
      %v7216 = vor.u32 %v7213, %v7214
      %v7218 = vshrl.u32 %v7195, 16
      %v7220 = vrot.slane %v7218, 7
      %v7221 = vshll.u32 %v7195, 16
      %v7223 = vor.u32 %v7220, %v7221
      %v7225 = vshrl.u32 %v7202, 16
      %v7227 = vrot.slane %v7225, 7
      %v7228 = vshll.u32 %v7202, 16
      %v7230 = vor.u32 %v7227, %v7228
      %v7232 = vshrl.u32 %v7209, 16
      %v7234 = vrot.slane %v7232, 7
      %v7235 = vshll.u32 %v7209, 16
      %v7237 = vor.u32 %v7234, %v7235
      %s7242 = scalar_lea.vmem [#allocation3], 4
      %vm7243 = vcmask 518144
      %vm7244 = vsmask.f32 2306
      %vm7245 = vmand %vm7243, %vm7244
      %v7246 = vld [vmem:[%s7242] sm:$0x7]
      %v7247 = vsel %vm7245, %v7216, %v7246
      %7248 = vst [vmem:[%s7242] sm:$0x7] %v7247
      %v7249 = vld [vmem:[%s7242 + $0x4] sm:$0x7]
      %v7250 = vsel %vm7245, %v7223, %v7249
      %7251 = vst [vmem:[%s7242 + $0x4] sm:$0x7] %v7250
      %v7252 = vld [vmem:[%s7242 + $0x8] sm:$0x7]
      %v7253 = vsel %vm7245, %v7230, %v7252
      %7254 = vst [vmem:[%s7242 + $0x8] sm:$0x7] %v7253
      %v7255 = vld [vmem:[%s7242 + $0xc] sm:$0x7]
      %v7256 = vsel %vm7245, %v7237, %v7255
      %7257 = vst [vmem:[%s7242 + $0xc] sm:$0x7] %v7256
      %v7258 = vld [vmem:[#allocation3] sm:$0x3]
      %v7259 = vld [vmem:[#allocation3 + $0x4] sm:$0x3]
      %v7260 = vld [vmem:[#allocation3 + $0x8] sm:$0x3]
      %v7261 = vld [vmem:[#allocation3 + $0xc] sm:$0x3]
      %v7266 = vcombine.low %v7258, %v7259
      %v7268 = vunpack.c.l.s4 1983009808
      %v7269 = vunpack.c.0.s8 %v7268
      %v7270 = vlaneseq
      %v7271 = vshrl.u32 %v7270, 7
      %v7272 = vsub.s32 %v7269, %v7271
      %v7273 = vrot.slane %v7266, %v7272
      %v7274 = vcombine.low %v7260, %v7261
      %v7276 = vunpack.c.l.s4 1983009808
      %v7277 = vunpack.c.0.s8 %v7276
      %v7278 = vlaneseq
      %v7279 = vshrl.u32 %v7278, 7
      %v7280 = vsub.s32 %v7277, %v7279
      %v7281 = vrot.slane %v7274, %v7280
      %vm7284 = vcmask 519168
      %7285 = vst.msk [vmem:[#allocation6] sm:$0xf] %vm7284, %v7273
      %7286 = vst.msk [vmem:[#allocation6 + $0x14] sm:$0xf] %vm7284, %v7281
      %v7287 = vld [vmem:[#allocation3] sm:$0x7]
      %v7288 = vld [vmem:[#allocation3 + $0x4] sm:$0x7]
      %v7289 = vld [vmem:[#allocation3 + $0x8] sm:$0x7]
      %v7290 = vld [vmem:[#allocation3 + $0xc] sm:$0x7]
      %v7296 = vunpack.c.l.s4 1983009808
      %v7297 = vunpack.c.0.s8 %v7296
      %v7298 = vlaneseq
      %v7299 = vshrl.u32 %v7298, 7
      %v7300 = vsub.s32 %v7297, %v7299
      %v7301 = vrot.slane %v7287, %v7300
      %v7302 = vcombine.high %v7301, %v7301
      %v7304 = vunpack.c.l.s4 1983009808
      %v7305 = vunpack.c.0.s8 %v7304
      %v7306 = vlaneseq
      %v7307 = vshrl.u32 %v7306, 7
      %v7308 = vsub.s32 %v7305, %v7307
      %v7309 = vrot.slane %v7288, %v7308
      %v7310 = vcombine.high %v7309, %v7309
      %v7312 = vunpack.c.l.s4 1983009808
      %v7313 = vunpack.c.0.s8 %v7312
      %v7314 = vlaneseq
      %v7315 = vshrl.u32 %v7314, 7
      %v7316 = vsub.s32 %v7313, %v7315
      %v7317 = vrot.slane %v7289, %v7316
      %v7318 = vcombine.high %v7317, %v7317
      %v7320 = vunpack.c.l.s4 1983009808
      %v7321 = vunpack.c.0.s8 %v7320
      %v7322 = vlaneseq
      %v7323 = vshrl.u32 %v7322, 7
      %v7324 = vsub.s32 %v7321, %v7323
      %v7325 = vrot.slane %v7290, %v7324
      %v7326 = vcombine.high %v7325, %v7325
      %vm7327 = vsmask.f32 1280
      %vm7328 = vsmask.f32 3336
      %vm7329 = vmor %vm7327, %vm7328
      %vm7330 = vsmask.f32 5392
      %vm7331 = vmor %vm7329, %vm7330
      %vm7332 = vsmask.f32 7448
      %vm7333 = vmor %vm7331, %vm7332
      %v7335 = vshrl.u32 %v7301, 16
      %v7337 = vrot.slane %v7335, 6
      %v7338 = vshll.u32 %v7301, 16
      %v7340 = vrot.slane %v7338, 7
      %v7341 = vor.u32 %v7337, %v7340
      %v7342 = vrot.slane %v7341, 2
      %v7344 = vshll.u32 %v7302, 16
      %v7346 = vrot.slane %v7344, 7
      %v7347 = vsel %vm7333, %v7342, %v7346
      %v7349 = vshrl.u32 %v7309, 16
      %v7351 = vrot.slane %v7349, 6
      %v7352 = vshll.u32 %v7309, 16
      %v7354 = vrot.slane %v7352, 7
      %v7355 = vor.u32 %v7351, %v7354
      %v7356 = vrot.slane %v7355, 2
      %v7358 = vshll.u32 %v7310, 16
      %v7360 = vrot.slane %v7358, 7
      %v7361 = vsel %vm7333, %v7356, %v7360
      %v7363 = vshrl.u32 %v7317, 16
      %v7365 = vrot.slane %v7363, 6
      %v7366 = vshll.u32 %v7317, 16
      %v7368 = vrot.slane %v7366, 7
      %v7369 = vor.u32 %v7365, %v7368
      %v7370 = vrot.slane %v7369, 2
      %v7372 = vshll.u32 %v7318, 16
      %v7374 = vrot.slane %v7372, 7
      %v7375 = vsel %vm7333, %v7370, %v7374
      %v7377 = vshrl.u32 %v7325, 16
      %v7379 = vrot.slane %v7377, 6
      %v7380 = vshll.u32 %v7325, 16
      %v7382 = vrot.slane %v7380, 7
      %v7383 = vor.u32 %v7379, %v7382
      %v7384 = vrot.slane %v7383, 2
      %v7386 = vshll.u32 %v7326, 16
      %v7388 = vrot.slane %v7386, 7
      %v7389 = vsel %vm7333, %v7384, %v7388
      %v7390 = vcombine.low %v7347, %v7361
      %v7392 = vunpack.c.l.s4 1983009808
      %v7393 = vunpack.c.0.s8 %v7392
      %v7394 = vlaneseq
      %v7395 = vshrl.u32 %v7394, 7
      %v7396 = vsub.s32 %v7393, %v7395
      %v7397 = vrot.slane %v7390, %v7396
      %v7398 = vcombine.low %v7375, %v7389
      %v7400 = vunpack.c.l.s4 1983009808
      %v7401 = vunpack.c.0.s8 %v7400
      %v7402 = vlaneseq
      %v7403 = vshrl.u32 %v7402, 7
      %v7404 = vsub.s32 %v7401, %v7403
      %v7405 = vrot.slane %v7398, %v7404
      %7406 = vrot.lane.b32.xlu0 %v7397, 64
      %v7407 = vpop.permute.xlu0 %7406
      %7408 = vrot.lane.b32.xlu0 %v7405, 64
      %v7409 = vpop.permute.xlu0 %7408
      %vm7412 = vcmask 1043968
      %7413 = vst.msk [vmem:[#allocation6] sm:$0xf] %vm7412, %v7407
      %7414 = vst.msk [vmem:[#allocation6 + $0x14] sm:$0xf] %vm7412, %v7409
      %v7415 = vld [vmem:[#allocation3] sm:$0x6]
      %v7416 = vld [vmem:[#allocation3 + $0x4] sm:$0x6]
      %v7417 = vld [vmem:[#allocation3 + $0x8] sm:$0x6]
      %v7418 = vld [vmem:[#allocation3 + $0xc] sm:$0x6]
      %v7424 = vunpack.c.l.s4 1983009808
      %v7425 = vunpack.c.0.s8 %v7424
      %v7426 = vlaneseq
      %v7427 = vshrl.u32 %v7426, 7
      %v7428 = vsub.s32 %v7425, %v7427
      %v7429 = vrot.slane %v7415, %v7428
      %v7430 = vcombine.high %v7429, %v7429
      %v7432 = vunpack.c.l.s4 1983009808
      %v7433 = vunpack.c.0.s8 %v7432
      %v7434 = vlaneseq
      %v7435 = vshrl.u32 %v7434, 7
      %v7436 = vsub.s32 %v7433, %v7435
      %v7437 = vrot.slane %v7416, %v7436
      %v7438 = vcombine.high %v7437, %v7437
      %v7440 = vunpack.c.l.s4 1983009808
      %v7441 = vunpack.c.0.s8 %v7440
      %v7442 = vlaneseq
      %v7443 = vshrl.u32 %v7442, 7
      %v7444 = vsub.s32 %v7441, %v7443
      %v7445 = vrot.slane %v7417, %v7444
      %v7446 = vcombine.high %v7445, %v7445
      %v7448 = vunpack.c.l.s4 1983009808
      %v7449 = vunpack.c.0.s8 %v7448
      %v7450 = vlaneseq
      %v7451 = vshrl.u32 %v7450, 7
      %v7452 = vsub.s32 %v7449, %v7451
      %v7453 = vrot.slane %v7418, %v7452
      %v7454 = vcombine.high %v7453, %v7453
      %vm7455 = vcmask 1040384
      %vm7456 = vcmask 1042434
      %vm7457 = vmor %vm7455, %vm7456
      %vm7458 = vcmask 1044484
      %vm7459 = vmor %vm7457, %vm7458
      %vm7460 = vcmask 1046534
      %vm7461 = vmor %vm7459, %vm7460
      %v7462 = vrot.slane %v7429, 7
      %v7463 = vrot.slane %v7462, 2
      %v7464 = vrot.slane %v7430, 7
      %v7465 = vsel %vm7461, %v7463, %v7464
      %v7466 = vrot.slane %v7437, 7
      %v7467 = vrot.slane %v7466, 2
      %v7468 = vrot.slane %v7438, 7
      %v7469 = vsel %vm7461, %v7467, %v7468
      %v7470 = vrot.slane %v7445, 7
      %v7471 = vrot.slane %v7470, 2
      %v7472 = vrot.slane %v7446, 7
      %v7473 = vsel %vm7461, %v7471, %v7472
      %v7474 = vrot.slane %v7453, 7
      %v7475 = vrot.slane %v7474, 2
      %v7476 = vrot.slane %v7454, 7
      %v7477 = vsel %vm7461, %v7475, %v7476
      %v7478 = vcombine.low %v7465, %v7469
      %v7480 = vunpack.c.l.s4 1983009808
      %v7481 = vunpack.c.0.s8 %v7480
      %v7482 = vlaneseq
      %v7483 = vshrl.u32 %v7482, 7
      %v7484 = vsub.s32 %v7481, %v7483
      %v7485 = vrot.slane %v7478, %v7484
      %v7486 = vcombine.low %v7473, %v7477
      %v7488 = vunpack.c.l.s4 1983009808
      %v7489 = vunpack.c.0.s8 %v7488
      %v7490 = vlaneseq
      %v7491 = vshrl.u32 %v7490, 7
      %v7492 = vsub.s32 %v7489, %v7491
      %v7493 = vrot.slane %v7486, %v7492
      %7496 = vst.msk [vmem:[#allocation6 + $0x4] sm:$0xf] %vm7284, %v7485
      %7497 = vst.msk [vmem:[#allocation6 + $0x18] sm:$0xf] %vm7284, %v7493
      %v7498 = vld [vmem:[%s7242] sm:$0x3]
      %v7499 = vld [vmem:[%s7242 + $0x4] sm:$0x3]
      %v7500 = vld [vmem:[%s7242 + $0x8] sm:$0x3]
      %v7501 = vld [vmem:[%s7242 + $0xc] sm:$0x3]
      %v7506 = vcombine.low %v7498, %v7499
      %v7508 = vunpack.c.l.s4 1983009808
      %v7509 = vunpack.c.0.s8 %v7508
      %v7510 = vlaneseq
      %v7511 = vshrl.u32 %v7510, 7
      %v7512 = vsub.s32 %v7509, %v7511
      %v7513 = vrot.slane %v7506, %v7512
      %v7514 = vcombine.low %v7500, %v7501
      %v7516 = vunpack.c.l.s4 1983009808
      %v7517 = vunpack.c.0.s8 %v7516
      %v7518 = vlaneseq
      %v7519 = vshrl.u32 %v7518, 7
      %v7520 = vsub.s32 %v7517, %v7519
      %v7521 = vrot.slane %v7514, %v7520
      %7522 = vrot.lane.b32.xlu0 %v7513, 64
      %v7523 = vpop.permute.xlu0 %7522
      %7524 = vrot.lane.b32.xlu0 %v7521, 64
      %v7525 = vpop.permute.xlu0 %7524
      %7528 = vst.msk [vmem:[#allocation6 + $0x4] sm:$0xf] %vm7412, %v7523
      %7529 = vst.msk [vmem:[#allocation6 + $0x18] sm:$0xf] %vm7412, %v7525
      %v7530 = vld [vmem:[%s7242] sm:$0x7]
      %v7531 = vld [vmem:[%s7242 + $0x4] sm:$0x7]
      %v7532 = vld [vmem:[%s7242 + $0x8] sm:$0x7]
      %v7533 = vld [vmem:[%s7242 + $0xc] sm:$0x7]
      %v7539 = vunpack.c.l.s4 1983009808
      %v7540 = vunpack.c.0.s8 %v7539
      %v7541 = vlaneseq
      %v7542 = vshrl.u32 %v7541, 7
      %v7543 = vsub.s32 %v7540, %v7542
      %v7544 = vrot.slane %v7530, %v7543
      %v7545 = vcombine.high %v7544, %v7544
      %v7547 = vunpack.c.l.s4 1983009808
      %v7548 = vunpack.c.0.s8 %v7547
      %v7549 = vlaneseq
      %v7550 = vshrl.u32 %v7549, 7
      %v7551 = vsub.s32 %v7548, %v7550
      %v7552 = vrot.slane %v7531, %v7551
      %v7553 = vcombine.high %v7552, %v7552
      %v7555 = vunpack.c.l.s4 1983009808
      %v7556 = vunpack.c.0.s8 %v7555
      %v7557 = vlaneseq
      %v7558 = vshrl.u32 %v7557, 7
      %v7559 = vsub.s32 %v7556, %v7558
      %v7560 = vrot.slane %v7532, %v7559
      %v7561 = vcombine.high %v7560, %v7560
      %v7563 = vunpack.c.l.s4 1983009808
      %v7564 = vunpack.c.0.s8 %v7563
      %v7565 = vlaneseq
      %v7566 = vshrl.u32 %v7565, 7
      %v7567 = vsub.s32 %v7564, %v7566
      %v7568 = vrot.slane %v7533, %v7567
      %v7569 = vcombine.high %v7568, %v7568
      %v7571 = vshrl.u32 %v7544, 16
      %v7573 = vrot.slane %v7571, 6
      %v7574 = vshll.u32 %v7544, 16
      %v7576 = vrot.slane %v7574, 7
      %v7577 = vor.u32 %v7573, %v7576
      %v7578 = vrot.slane %v7577, 2
      %v7580 = vshll.u32 %v7545, 16
      %v7582 = vrot.slane %v7580, 7
      %v7583 = vsel %vm7333, %v7578, %v7582
      %v7585 = vshrl.u32 %v7552, 16
      %v7587 = vrot.slane %v7585, 6
      %v7588 = vshll.u32 %v7552, 16
      %v7590 = vrot.slane %v7588, 7
      %v7591 = vor.u32 %v7587, %v7590
      %v7592 = vrot.slane %v7591, 2
      %v7594 = vshll.u32 %v7553, 16
      %v7596 = vrot.slane %v7594, 7
      %v7597 = vsel %vm7333, %v7592, %v7596
      %v7599 = vshrl.u32 %v7560, 16
      %v7601 = vrot.slane %v7599, 6
      %v7602 = vshll.u32 %v7560, 16
      %v7604 = vrot.slane %v7602, 7
      %v7605 = vor.u32 %v7601, %v7604
      %v7606 = vrot.slane %v7605, 2
      %v7608 = vshll.u32 %v7561, 16
      %v7610 = vrot.slane %v7608, 7
      %v7611 = vsel %vm7333, %v7606, %v7610
      %v7613 = vshrl.u32 %v7568, 16
      %v7615 = vrot.slane %v7613, 6
      %v7616 = vshll.u32 %v7568, 16
      %v7618 = vrot.slane %v7616, 7
      %v7619 = vor.u32 %v7615, %v7618
      %v7620 = vrot.slane %v7619, 2
      %v7622 = vshll.u32 %v7569, 16
      %v7624 = vrot.slane %v7622, 7
      %v7625 = vsel %vm7333, %v7620, %v7624
      %v7626 = vcombine.low %v7583, %v7597
      %v7628 = vunpack.c.l.s4 1983009808
      %v7629 = vunpack.c.0.s8 %v7628
      %v7630 = vlaneseq
      %v7631 = vshrl.u32 %v7630, 7
      %v7632 = vsub.s32 %v7629, %v7631
      %v7633 = vrot.slane %v7626, %v7632
      %v7634 = vcombine.low %v7611, %v7625
      %v7636 = vunpack.c.l.s4 1983009808
      %v7637 = vunpack.c.0.s8 %v7636
      %v7638 = vlaneseq
      %v7639 = vshrl.u32 %v7638, 7
      %v7640 = vsub.s32 %v7637, %v7639
      %v7641 = vrot.slane %v7634, %v7640
      %7644 = vst.msk [vmem:[#allocation6 + $0x8] sm:$0xf] %vm7284, %v7633
      %7645 = vst.msk [vmem:[#allocation6 + $0x1c] sm:$0xf] %vm7284, %v7641
      %v7646 = vld [vmem:[%s7242] sm:$0x6]
      %v7647 = vld [vmem:[%s7242 + $0x4] sm:$0x6]
      %v7648 = vld [vmem:[%s7242 + $0x8] sm:$0x6]
      %v7649 = vld [vmem:[%s7242 + $0xc] sm:$0x6]
      %v7655 = vunpack.c.l.s4 1983009808
      %v7656 = vunpack.c.0.s8 %v7655
      %v7657 = vlaneseq
      %v7658 = vshrl.u32 %v7657, 7
      %v7659 = vsub.s32 %v7656, %v7658
      %v7660 = vrot.slane %v7646, %v7659
      %v7661 = vcombine.high %v7660, %v7660
      %v7663 = vunpack.c.l.s4 1983009808
      %v7664 = vunpack.c.0.s8 %v7663
      %v7665 = vlaneseq
      %v7666 = vshrl.u32 %v7665, 7
      %v7667 = vsub.s32 %v7664, %v7666
      %v7668 = vrot.slane %v7647, %v7667
      %v7669 = vcombine.high %v7668, %v7668
      %v7671 = vunpack.c.l.s4 1983009808
      %v7672 = vunpack.c.0.s8 %v7671
      %v7673 = vlaneseq
      %v7674 = vshrl.u32 %v7673, 7
      %v7675 = vsub.s32 %v7672, %v7674
      %v7676 = vrot.slane %v7648, %v7675
      %v7677 = vcombine.high %v7676, %v7676
      %v7679 = vunpack.c.l.s4 1983009808
      %v7680 = vunpack.c.0.s8 %v7679
      %v7681 = vlaneseq
      %v7682 = vshrl.u32 %v7681, 7
      %v7683 = vsub.s32 %v7680, %v7682
      %v7684 = vrot.slane %v7649, %v7683
      %v7685 = vcombine.high %v7684, %v7684
      %v7686 = vrot.slane %v7660, 7
      %v7687 = vrot.slane %v7686, 2
      %v7688 = vrot.slane %v7661, 7
      %v7689 = vsel %vm7461, %v7687, %v7688
      %v7690 = vrot.slane %v7668, 7
      %v7691 = vrot.slane %v7690, 2
      %v7692 = vrot.slane %v7669, 7
      %v7693 = vsel %vm7461, %v7691, %v7692
      %v7694 = vrot.slane %v7676, 7
      %v7695 = vrot.slane %v7694, 2
      %v7696 = vrot.slane %v7677, 7
      %v7697 = vsel %vm7461, %v7695, %v7696
      %v7698 = vrot.slane %v7684, 7
      %v7699 = vrot.slane %v7698, 2
      %v7700 = vrot.slane %v7685, 7
      %v7701 = vsel %vm7461, %v7699, %v7700
      %v7702 = vcombine.low %v7689, %v7693
      %v7704 = vunpack.c.l.s4 1983009808
      %v7705 = vunpack.c.0.s8 %v7704
      %v7706 = vlaneseq
      %v7707 = vshrl.u32 %v7706, 7
      %v7708 = vsub.s32 %v7705, %v7707
      %v7709 = vrot.slane %v7702, %v7708
      %v7710 = vcombine.low %v7697, %v7701
      %v7712 = vunpack.c.l.s4 1983009808
      %v7713 = vunpack.c.0.s8 %v7712
      %v7714 = vlaneseq
      %v7715 = vshrl.u32 %v7714, 7
      %v7716 = vsub.s32 %v7713, %v7715
      %v7717 = vrot.slane %v7710, %v7716
      %7718 = vrot.lane.b32.xlu0 %v7709, 64
      %v7719 = vpop.permute.xlu0 %7718
      %7720 = vrot.lane.b32.xlu0 %v7717, 64
      %v7721 = vpop.permute.xlu0 %7720
      %7724 = vst.msk [vmem:[#allocation6 + $0x8] sm:$0xf] %vm7412, %v7719
      %7725 = vst.msk [vmem:[#allocation6 + $0x1c] sm:$0xf] %vm7412, %v7721
      %s7726 = scalar_lea.vmem [#allocation3], 8
      %v7727 = vld [vmem:[%s7726] sm:$0x3]
      %v7728 = vld [vmem:[%s7726 + $0x4] sm:$0x3]
      %v7729 = vld [vmem:[%s7726 + $0x8] sm:$0x3]
      %v7730 = vld [vmem:[%s7726 + $0xc] sm:$0x3]
      %v7735 = vcombine.low %v7727, %v7728
      %v7737 = vunpack.c.l.s4 1983009808
      %v7738 = vunpack.c.0.s8 %v7737
      %v7739 = vlaneseq
      %v7740 = vshrl.u32 %v7739, 7
      %v7741 = vsub.s32 %v7738, %v7740
      %v7742 = vrot.slane %v7735, %v7741
      %v7743 = vcombine.low %v7729, %v7730
      %v7745 = vunpack.c.l.s4 1983009808
      %v7746 = vunpack.c.0.s8 %v7745
      %v7747 = vlaneseq
      %v7748 = vshrl.u32 %v7747, 7
      %v7749 = vsub.s32 %v7746, %v7748
      %v7750 = vrot.slane %v7743, %v7749
      %7753 = vst.msk [vmem:[#allocation6 + $0xc] sm:$0xf] %vm7284, %v7742
      %7754 = vst.msk [vmem:[#allocation6 + $0x20] sm:$0xf] %vm7284, %v7750
      %v7755 = vld [vmem:[%s7726] sm:$0x7]
      %v7756 = vld [vmem:[%s7726 + $0x4] sm:$0x7]
      %v7757 = vld [vmem:[%s7726 + $0x8] sm:$0x7]
      %v7758 = vld [vmem:[%s7726 + $0xc] sm:$0x7]
      %v7764 = vunpack.c.l.s4 1983009808
      %v7765 = vunpack.c.0.s8 %v7764
      %v7766 = vlaneseq
      %v7767 = vshrl.u32 %v7766, 7
      %v7768 = vsub.s32 %v7765, %v7767
      %v7769 = vrot.slane %v7755, %v7768
      %v7770 = vcombine.high %v7769, %v7769
      %v7772 = vunpack.c.l.s4 1983009808
      %v7773 = vunpack.c.0.s8 %v7772
      %v7774 = vlaneseq
      %v7775 = vshrl.u32 %v7774, 7
      %v7776 = vsub.s32 %v7773, %v7775
      %v7777 = vrot.slane %v7756, %v7776
      %v7778 = vcombine.high %v7777, %v7777
      %v7780 = vunpack.c.l.s4 1983009808
      %v7781 = vunpack.c.0.s8 %v7780
      %v7782 = vlaneseq
      %v7783 = vshrl.u32 %v7782, 7
      %v7784 = vsub.s32 %v7781, %v7783
      %v7785 = vrot.slane %v7757, %v7784
      %v7786 = vcombine.high %v7785, %v7785
      %v7788 = vunpack.c.l.s4 1983009808
      %v7789 = vunpack.c.0.s8 %v7788
      %v7790 = vlaneseq
      %v7791 = vshrl.u32 %v7790, 7
      %v7792 = vsub.s32 %v7789, %v7791
      %v7793 = vrot.slane %v7758, %v7792
      %v7794 = vcombine.high %v7793, %v7793
      %v7796 = vshrl.u32 %v7769, 16
      %v7798 = vrot.slane %v7796, 6
      %v7799 = vshll.u32 %v7769, 16
      %v7801 = vrot.slane %v7799, 7
      %v7802 = vor.u32 %v7798, %v7801
      %v7803 = vrot.slane %v7802, 2
      %v7805 = vshll.u32 %v7770, 16
      %v7807 = vrot.slane %v7805, 7
      %v7808 = vsel %vm7333, %v7803, %v7807
      %v7810 = vshrl.u32 %v7777, 16
      %v7812 = vrot.slane %v7810, 6
      %v7813 = vshll.u32 %v7777, 16
      %v7815 = vrot.slane %v7813, 7
      %v7816 = vor.u32 %v7812, %v7815
      %v7817 = vrot.slane %v7816, 2
      %v7819 = vshll.u32 %v7778, 16
      %v7821 = vrot.slane %v7819, 7
      %v7822 = vsel %vm7333, %v7817, %v7821
      %v7824 = vshrl.u32 %v7785, 16
      %v7826 = vrot.slane %v7824, 6
      %v7827 = vshll.u32 %v7785, 16
      %v7829 = vrot.slane %v7827, 7
      %v7830 = vor.u32 %v7826, %v7829
      %v7831 = vrot.slane %v7830, 2
      %v7833 = vshll.u32 %v7786, 16
      %v7835 = vrot.slane %v7833, 7
      %v7836 = vsel %vm7333, %v7831, %v7835
      %v7838 = vshrl.u32 %v7793, 16
      %v7840 = vrot.slane %v7838, 6
      %v7841 = vshll.u32 %v7793, 16
      %v7843 = vrot.slane %v7841, 7
      %v7844 = vor.u32 %v7840, %v7843
      %v7845 = vrot.slane %v7844, 2
      %v7847 = vshll.u32 %v7794, 16
      %v7849 = vrot.slane %v7847, 7
      %v7850 = vsel %vm7333, %v7845, %v7849
      %v7851 = vcombine.low %v7808, %v7822
      %v7853 = vunpack.c.l.s4 1983009808
      %v7854 = vunpack.c.0.s8 %v7853
      %v7855 = vlaneseq
      %v7856 = vshrl.u32 %v7855, 7
      %v7857 = vsub.s32 %v7854, %v7856
      %v7858 = vrot.slane %v7851, %v7857
      %v7859 = vcombine.low %v7836, %v7850
      %v7861 = vunpack.c.l.s4 1983009808
      %v7862 = vunpack.c.0.s8 %v7861
      %v7863 = vlaneseq
      %v7864 = vshrl.u32 %v7863, 7
      %v7865 = vsub.s32 %v7862, %v7864
      %v7866 = vrot.slane %v7859, %v7865
      %7867 = vrot.lane.b32.xlu0 %v7858, 64
      %v7868 = vpop.permute.xlu0 %7867
      %7869 = vrot.lane.b32.xlu0 %v7866, 64
      %v7870 = vpop.permute.xlu0 %7869
      %7873 = vst.msk [vmem:[#allocation6 + $0xc] sm:$0xf] %vm7412, %v7868
      %7874 = vst.msk [vmem:[#allocation6 + $0x20] sm:$0xf] %vm7412, %v7870
      %v7875 = vld [vmem:[%s7726] sm:$0x6]
      %v7876 = vld [vmem:[%s7726 + $0x4] sm:$0x6]
      %v7877 = vld [vmem:[%s7726 + $0x8] sm:$0x6]
      %v7878 = vld [vmem:[%s7726 + $0xc] sm:$0x6]
      %v7884 = vunpack.c.l.s4 1983009808
      %v7885 = vunpack.c.0.s8 %v7884
      %v7886 = vlaneseq
      %v7887 = vshrl.u32 %v7886, 7
      %v7888 = vsub.s32 %v7885, %v7887
      %v7889 = vrot.slane %v7875, %v7888
      %v7890 = vcombine.high %v7889, %v7889
      %v7892 = vunpack.c.l.s4 1983009808
      %v7893 = vunpack.c.0.s8 %v7892
      %v7894 = vlaneseq
      %v7895 = vshrl.u32 %v7894, 7
      %v7896 = vsub.s32 %v7893, %v7895
      %v7897 = vrot.slane %v7876, %v7896
      %v7898 = vcombine.high %v7897, %v7897
      %v7900 = vunpack.c.l.s4 1983009808
      %v7901 = vunpack.c.0.s8 %v7900
      %v7902 = vlaneseq
      %v7903 = vshrl.u32 %v7902, 7
      %v7904 = vsub.s32 %v7901, %v7903
      %v7905 = vrot.slane %v7877, %v7904
      %v7906 = vcombine.high %v7905, %v7905
      %v7908 = vunpack.c.l.s4 1983009808
      %v7909 = vunpack.c.0.s8 %v7908
      %v7910 = vlaneseq
      %v7911 = vshrl.u32 %v7910, 7
      %v7912 = vsub.s32 %v7909, %v7911
      %v7913 = vrot.slane %v7878, %v7912
      %v7914 = vcombine.high %v7913, %v7913
      %v7915 = vrot.slane %v7889, 7
      %v7916 = vrot.slane %v7915, 2
      %v7917 = vrot.slane %v7890, 7
      %v7918 = vsel %vm7461, %v7916, %v7917
      %v7919 = vrot.slane %v7897, 7
      %v7920 = vrot.slane %v7919, 2
      %v7921 = vrot.slane %v7898, 7
      %v7922 = vsel %vm7461, %v7920, %v7921
      %v7923 = vrot.slane %v7905, 7
      %v7924 = vrot.slane %v7923, 2
      %v7925 = vrot.slane %v7906, 7
      %v7926 = vsel %vm7461, %v7924, %v7925
      %v7927 = vrot.slane %v7913, 7
      %v7928 = vrot.slane %v7927, 2
      %v7929 = vrot.slane %v7914, 7
      %v7930 = vsel %vm7461, %v7928, %v7929
      %v7931 = vcombine.low %v7918, %v7922
      %v7933 = vunpack.c.l.s4 1983009808
      %v7934 = vunpack.c.0.s8 %v7933
      %v7935 = vlaneseq
      %v7936 = vshrl.u32 %v7935, 7
      %v7937 = vsub.s32 %v7934, %v7936
      %v7938 = vrot.slane %v7931, %v7937
      %v7939 = vcombine.low %v7926, %v7930
      %v7941 = vunpack.c.l.s4 1983009808
      %v7942 = vunpack.c.0.s8 %v7941
      %v7943 = vlaneseq
      %v7944 = vshrl.u32 %v7943, 7
      %v7945 = vsub.s32 %v7942, %v7944
      %v7946 = vrot.slane %v7939, %v7945
      %7949 = vst.msk [vmem:[#allocation6 + $0x10] sm:$0xf] %vm7284, %v7938
      %7950 = vst.msk [vmem:[#allocation6 + $0x24] sm:$0xf] %vm7284, %v7946
      %v7951 = vld [vmem:[#allocation6] sm:$0xff]
      %v7952 = vld [vmem:[#allocation6 + $0x8] sm:$0xff]
      %v7953 = vld [vmem:[#allocation6 + $0x10] sm:$0xf]
      %v7954 = vld [vmem:[#allocation6 + $0x14] sm:$0xff]
      %v7955 = vld [vmem:[#allocation6 + $0x1c] sm:$0xff]
      %v7956 = vld [vmem:[#allocation6 + $0x24] sm:$0xf]
      %v7957 = vld [vmem:[%s5] sm:$0xf]
      %v7958 = vld [vmem:[%s5 + $0x4] sm:$0xf]
      %v7959 = vld [vmem:[%s5 + $0x8] sm:$0xf]
      %v7960 = vld [vmem:[%s5 + $0xc] sm:$0xf]
      %v7961 = vld [vmem:[%s5 + $0x10] sm:$0xf]
      %v7962 = vld [vmem:[%s5 + $0x14] sm:$0xf]
      %v7963 = vld [vmem:[%s5 + $0x18] sm:$0xf]
      %v7964 = vld [vmem:[%s5 + $0x1c] sm:$0xf]
      %v7965 = vld [vmem:[%s5 + $0x20] sm:$0xf]
      %v7966 = vld [vmem:[%s5 + $0x24] sm:$0xf]
      %v7967 = vld [vmem:[%s5 + $0x28] sm:$0xf]
      %v7968 = vld [vmem:[%s5 + $0x2c] sm:$0xf]
      %v7969 = vld [vmem:[%s5 + $0x30] sm:$0xf]
      %v7970 = vld [vmem:[%s5 + $0x34] sm:$0xf]
      %v7971 = vld [vmem:[%s5 + $0x38] sm:$0xf]
      %v7972 = vld [vmem:[%s5 + $0x3c] sm:$0xf]
      %v7973 = vld [vmem:[%s5 + $0x40] sm:$0xf]
      %v7974 = vld [vmem:[%s5 + $0x44] sm:$0xf]
      %v7975 = vld [vmem:[%s5 + $0x48] sm:$0xf]
      %v7976 = vld [vmem:[%s5 + $0x4c] sm:$0xf]
      %v7977 = vld [vmem:[%s5 + $0x50] sm:$0xf]
      %v7978 = vld [vmem:[%s5 + $0x54] sm:$0xf]
      %v7979 = vld [vmem:[%s5 + $0x58] sm:$0xf]
      %v7980 = vld [vmem:[%s5 + $0x5c] sm:$0xf]
      %v7981 = vld [vmem:[%s5 + $0x60] sm:$0xf]
      %v7982 = vld [vmem:[%s5 + $0x64] sm:$0xf]
      %v7983 = vld [vmem:[%s5 + $0x68] sm:$0xf]
      %v7984 = vld [vmem:[%s5 + $0x6c] sm:$0xf]
      %v7985 = vld [vmem:[%s5 + $0x70] sm:$0xf]
      %v7986 = vld [vmem:[%s5 + $0x74] sm:$0xf]
      %v7987 = vld [vmem:[%s5 + $0x78] sm:$0xf]
      %v7988 = vld [vmem:[%s5 + $0x7c] sm:$0xf]
      %v7989 = vld [vmem:[%s5 + $0x80] sm:$0xf]
      %v7990 = vld [vmem:[%s5 + $0x84] sm:$0xf]
      %v7991 = vld [vmem:[%s5 + $0x88] sm:$0xf]
      %v7992 = vld [vmem:[%s5 + $0x8c] sm:$0xf]
      %v7993 = vld [vmem:[%s5 + $0x90] sm:$0xf]
      %v7994 = vld [vmem:[%s5 + $0x94] sm:$0xf]
      %v7995 = vld [vmem:[%s5 + $0x98] sm:$0xf]
      %v7996 = vld [vmem:[%s5 + $0x9c] sm:$0xf]
      %v7997 = vld [vmem:[%s5 + $0xa0] sm:$0xf]
      %v7998 = vld [vmem:[%s5 + $0xa4] sm:$0xf]
      %v7999 = vld [vmem:[%s5 + $0xa8] sm:$0xf]
      %v8000 = vld [vmem:[%s5 + $0xac] sm:$0xf]
      %v8001 = vld [vmem:[%s5 + $0xb0] sm:$0xf]
      %v8002 = vld [vmem:[%s5 + $0xb4] sm:$0xf]
      %v8003 = vld [vmem:[%s5 + $0xb8] sm:$0xf]
      %v8004 = vld [vmem:[%s5 + $0xbc] sm:$0xf]
      %v8005 = vld [vmem:[%s5 + $0xc0] sm:$0xf]
      %v8006 = vld [vmem:[%s5 + $0xc4] sm:$0xf]
      %v8007 = vld [vmem:[%s5 + $0xc8] sm:$0xf]
      %v8008 = vld [vmem:[%s5 + $0xcc] sm:$0xf]
      %v8009 = vld [vmem:[%s5 + $0xd0] sm:$0xf]
      %v8010 = vld [vmem:[%s5 + $0xd4] sm:$0xf]
      %v8011 = vld [vmem:[%s5 + $0xd8] sm:$0xf]
      %v8012 = vld [vmem:[%s5 + $0xdc] sm:$0xf]
      %v8013 = vld [vmem:[%s5 + $0xe0] sm:$0xf]
      %v8014 = vld [vmem:[%s5 + $0xe4] sm:$0xf]
      %v8015 = vld [vmem:[%s5 + $0xe8] sm:$0xf]
      %v8016 = vld [vmem:[%s5 + $0xec] sm:$0xf]
      %v8017 = vld [vmem:[%s5 + $0xf0] sm:$0xf]
      %v8018 = vld [vmem:[%s5 + $0xf4] sm:$0xf]
      %v8019 = vld [vmem:[%s5 + $0xf8] sm:$0xf]
      %v8020 = vld [vmem:[%s5 + $0xfc] sm:$0xf]
      %v8021 = vld [vmem:[%s5 + $0x100] sm:$0xf]
      %v8022 = vld [vmem:[%s5 + $0x104] sm:$0xf]
      %v8023 = vld [vmem:[%s5 + $0x108] sm:$0xf]
      %v8024 = vld [vmem:[%s5 + $0x10c] sm:$0xf]
      %v8025 = vld [vmem:[%s5 + $0x110] sm:$0xf]
      %v8026 = vld [vmem:[%s5 + $0x114] sm:$0xf]
      %v8027 = vld [vmem:[%s5 + $0x118] sm:$0xf]
      %v8028 = vld [vmem:[%s5 + $0x11c] sm:$0xf]
      %v8029 = vld [vmem:[%s6] sm:$0x1]
      %v8031 = vlaneseq
      %v8032 = vshrl.u32 %v8031, 7
      %v8033 = vsub.s32 0, %v8032
      %v8034 = vrot.slane %v8029, %v8033
      %v8042 = vunpack.c.l.b16 %v7951
      %v8043 = vunpack.c.h.b16 %v7951
      %v8044 = vunpack.c.l.b16 %v7952
      %v8045 = vunpack.c.h.b16 %v7952
      %v8046 = vunpack.c.l.b16 %v7953
      %v8047 = vunpack.c.l.b16 %v7954
      %v8048 = vunpack.c.h.b16 %v7954
      %v8049 = vunpack.c.l.b16 %v7955
      %v8050 = vunpack.c.h.b16 %v7955
      %v8051 = vunpack.c.l.b16 %v7956
      %v8052 = vpack.c.b16 %v8047, %v8042
      %v8053 = vpack.c.b16 %v8048, %v8043
      %v8054 = vpack.c.b16 %v8049, %v8044
      %v8055 = vpack.c.b16 %v8050, %v8045
      %v8056 = vpack.c.b16 %v8051, %v8046
      %v8133 = vunpack.c.l.b16 %v7957
      %v8134 = vunpack.c.l.b16 %v7958
      %v8135 = vunpack.c.l.b16 %v7959
      %v8136 = vunpack.c.l.b16 %v7960
      %v8137 = vunpack.c.l.b16 %v7961
      %v8138 = vunpack.c.l.b16 %v7962
      %v8139 = vunpack.c.l.b16 %v7963
      %v8140 = vunpack.c.l.b16 %v7964
      %v8141 = vunpack.c.l.b16 %v7965
      %v8142 = vunpack.c.l.b16 %v7966
      %v8143 = vunpack.c.l.b16 %v7967
      %v8144 = vunpack.c.l.b16 %v7968
      %v8145 = vunpack.c.l.b16 %v7969
      %v8146 = vunpack.c.l.b16 %v7970
      %v8147 = vunpack.c.l.b16 %v7971
      %v8148 = vunpack.c.l.b16 %v7972
      %v8149 = vunpack.c.l.b16 %v7973
      %v8150 = vunpack.c.l.b16 %v7974
      %v8151 = vunpack.c.l.b16 %v7975
      %v8152 = vunpack.c.l.b16 %v7976
      %v8153 = vunpack.c.l.b16 %v7977
      %v8154 = vunpack.c.l.b16 %v7978
      %v8155 = vunpack.c.l.b16 %v7979
      %v8156 = vunpack.c.l.b16 %v7980
      %v8157 = vunpack.c.l.b16 %v7981
      %v8158 = vunpack.c.l.b16 %v7982
      %v8159 = vunpack.c.l.b16 %v7983
      %v8160 = vunpack.c.l.b16 %v7984
      %v8161 = vunpack.c.l.b16 %v7985
      %v8162 = vunpack.c.l.b16 %v7986
      %v8163 = vunpack.c.l.b16 %v7987
      %v8164 = vunpack.c.l.b16 %v7988
      %v8165 = vunpack.c.l.b16 %v7989
      %v8166 = vunpack.c.l.b16 %v7990
      %v8167 = vunpack.c.l.b16 %v7991
      %v8168 = vunpack.c.l.b16 %v7992
      %v8169 = vunpack.c.l.b16 %v7993
      %v8170 = vunpack.c.l.b16 %v7994
      %v8171 = vunpack.c.l.b16 %v7995
      %v8172 = vunpack.c.l.b16 %v7996
      %v8173 = vunpack.c.l.b16 %v7997
      %v8174 = vunpack.c.l.b16 %v7998
      %v8175 = vunpack.c.l.b16 %v7999
      %v8176 = vunpack.c.l.b16 %v8000
      %v8177 = vunpack.c.l.b16 %v8001
      %v8178 = vunpack.c.l.b16 %v8002
      %v8179 = vunpack.c.l.b16 %v8003
      %v8180 = vunpack.c.l.b16 %v8004
      %v8181 = vunpack.c.l.b16 %v8005
      %v8182 = vunpack.c.l.b16 %v8006
      %v8183 = vunpack.c.l.b16 %v8007
      %v8184 = vunpack.c.l.b16 %v8008
      %v8185 = vunpack.c.l.b16 %v8009
      %v8186 = vunpack.c.l.b16 %v8010
      %v8187 = vunpack.c.l.b16 %v8011
      %v8188 = vunpack.c.l.b16 %v8012
      %v8189 = vunpack.c.l.b16 %v8013
      %v8190 = vunpack.c.l.b16 %v8014
      %v8191 = vunpack.c.l.b16 %v8015
      %v8192 = vunpack.c.l.b16 %v8016
      %v8193 = vunpack.c.l.b16 %v8017
      %v8194 = vunpack.c.l.b16 %v8018
      %v8195 = vunpack.c.l.b16 %v8019
      %v8196 = vunpack.c.l.b16 %v8020
      %v8197 = vunpack.c.l.b16 %v8021
      %v8198 = vunpack.c.l.b16 %v8022
      %v8199 = vunpack.c.l.b16 %v8023
      %v8200 = vunpack.c.l.b16 %v8024
      %v8201 = vunpack.c.l.b16 %v8025
      %v8202 = vunpack.c.l.b16 %v8026
      %v8203 = vunpack.c.l.b16 %v8027
      %v8204 = vunpack.c.l.b16 %v8028
      %v8205 = vpack.c.b16 %v8134, %v8133
      %v8206 = vpack.c.b16 %v8136, %v8135
      %v8207 = vpack.c.b16 %v8138, %v8137
      %v8208 = vpack.c.b16 %v8140, %v8139
      %v8209 = vpack.c.b16 %v8142, %v8141
      %v8210 = vpack.c.b16 %v8144, %v8143
      %v8211 = vpack.c.b16 %v8146, %v8145
      %v8212 = vpack.c.b16 %v8148, %v8147
      %v8213 = vpack.c.b16 %v8150, %v8149
      %v8214 = vpack.c.b16 %v8152, %v8151
      %v8215 = vpack.c.b16 %v8154, %v8153
      %v8216 = vpack.c.b16 %v8156, %v8155
      %v8217 = vpack.c.b16 %v8158, %v8157
      %v8218 = vpack.c.b16 %v8160, %v8159
      %v8219 = vpack.c.b16 %v8162, %v8161
      %v8220 = vpack.c.b16 %v8164, %v8163
      %v8221 = vpack.c.b16 %v8166, %v8165
      %v8222 = vpack.c.b16 %v8168, %v8167
      %v8223 = vpack.c.b16 %v8170, %v8169
      %v8224 = vpack.c.b16 %v8172, %v8171
      %v8225 = vpack.c.b16 %v8174, %v8173
      %v8226 = vpack.c.b16 %v8176, %v8175
      %v8227 = vpack.c.b16 %v8178, %v8177
      %v8228 = vpack.c.b16 %v8180, %v8179
      %v8229 = vpack.c.b16 %v8182, %v8181
      %v8230 = vpack.c.b16 %v8184, %v8183
      %v8231 = vpack.c.b16 %v8186, %v8185
      %v8232 = vpack.c.b16 %v8188, %v8187
      %v8233 = vpack.c.b16 %v8190, %v8189
      %v8234 = vpack.c.b16 %v8192, %v8191
      %v8235 = vpack.c.b16 %v8194, %v8193
      %v8236 = vpack.c.b16 %v8196, %v8195
      %v8237 = vpack.c.b16 %v8198, %v8197
      %v8238 = vpack.c.b16 %v8200, %v8199
      %v8239 = vpack.c.b16 %v8202, %v8201
      %v8240 = vpack.c.b16 %v8204, %v8203
      %v8278 = vsel %vm1471, %v8056, 0
      %8280 = vmatprep.subr.bf16.mxu0 0
      %8281 = vmatpush1.bf16.msra.mxu0 %v8212
      %8282 = vmatprep.subr.bf16.mxu0 0
      %8283 = vmatpush1.bf16.msra.mxu0 %v8211
      %8284 = vmatprep.subr.bf16.mxu0 0
      %8285 = vmatpush1.bf16.msra.mxu0 %v8210
      %8286 = vmatprep.subr.bf16.mxu0 0
      %8287 = vmatpush1.bf16.msra.mxu0 %v8209
      %8288 = vmatprep.subr.bf16.mxu0 0
      %8289 = vmatpush1.bf16.msra.mxu0 %v8208
      %8290 = vmatprep.subr.bf16.mxu0 0
      %8291 = vmatpush1.bf16.msra.mxu0 %v8207
      %8292 = vmatprep.subr.bf16.mxu0 0
      %8293 = vmatpush1.bf16.msra.mxu0 %v8206
      %8294 = vmatprep.subr.bf16.mxu0 0
      %8295 = vmatpush1.bf16.msra.mxu0 %v8205
      %8296 = vmatprep.subr.bf16.mxu0 0
      %8297 = vmatpush2.bf16.msra.mxu0 %v8220
      %8298 = vmatprep.subr.bf16.mxu0 0
      %8299 = vmatpush2.bf16.msra.mxu0 %v8219
      %8300 = vmatprep.subr.bf16.mxu0 0
      %8301 = vmatpush2.bf16.msra.mxu0 %v8218
      %8302 = vmatprep.subr.bf16.mxu0 0
      %8303 = vmatpush2.bf16.msra.mxu0 %v8217
      %8304 = vmatprep.subr.bf16.mxu0 0
      %8305 = vmatpush2.bf16.msra.mxu0 %v8216
      %8306 = vmatprep.subr.bf16.mxu0 0
      %8307 = vmatpush2.bf16.msra.mxu0 %v8215
      %8308 = vmatprep.subr.bf16.mxu0 0
      %8309 = vmatpush2.bf16.msra.mxu0 %v8214
      %8310 = vmatprep.subr.bf16.mxu0 0
      %8311 = vmatpush2.bf16.msra.mxu0 %v8213
      %8312 = vmatprep.mubr.bf16.mxu0 %v8053
      %8313 = vmatmul.mubr.bf16.gmra.mxu0 %v8052
      %v8314 = vpop.f32.mrf.mxu0
      %v8315 = vadd.f32 %v8034, %v8314
      %v8316 = vpop.f32.mrf.mxu0
      %v8317 = vpop.f32.mrf.mxu0
      %v8318 = vadd.f32 %v8034, %v8317
      %v8319 = vpop.f32.mrf.mxu0
      %8320 = vdwg.mxu0
      %8321 = vmatprep.subr.bf16.mxu0 0
      %8322 = vmatpush1.bf16.msra.mxu0 %v8228
      %8323 = vmatprep.subr.bf16.mxu0 0
      %8324 = vmatpush1.bf16.msra.mxu0 %v8227
      %8325 = vmatprep.subr.bf16.mxu0 0
      %8326 = vmatpush1.bf16.msra.mxu0 %v8226
      %8327 = vmatprep.subr.bf16.mxu0 0
      %8328 = vmatpush1.bf16.msra.mxu0 %v8225
      %8329 = vmatprep.subr.bf16.mxu0 0
      %8330 = vmatpush1.bf16.msra.mxu0 %v8224
      %8331 = vmatprep.subr.bf16.mxu0 0
      %8332 = vmatpush1.bf16.msra.mxu0 %v8223
      %8333 = vmatprep.subr.bf16.mxu0 0
      %8334 = vmatpush1.bf16.msra.mxu0 %v8222
      %8335 = vmatprep.subr.bf16.mxu0 0
      %8336 = vmatpush1.bf16.msra.mxu0 %v8221
      %8337 = vmatprep.subr.bf16.mxu0 0
      %8338 = vmatpush2.bf16.msra.mxu0 %v8236
      %8339 = vmatprep.subr.bf16.mxu0 0
      %8340 = vmatpush2.bf16.msra.mxu0 %v8235
      %8341 = vmatprep.subr.bf16.mxu0 0
      %8342 = vmatpush2.bf16.msra.mxu0 %v8234
      %8343 = vmatprep.subr.bf16.mxu0 0
      %8344 = vmatpush2.bf16.msra.mxu0 %v8233
      %8345 = vmatprep.subr.bf16.mxu0 0
      %8346 = vmatpush2.bf16.msra.mxu0 %v8232
      %8347 = vmatprep.subr.bf16.mxu0 0
      %8348 = vmatpush2.bf16.msra.mxu0 %v8231
      %8349 = vmatprep.subr.bf16.mxu0 0
      %8350 = vmatpush2.bf16.msra.mxu0 %v8230
      %8351 = vmatprep.subr.bf16.mxu0 0
      %8352 = vmatpush2.bf16.msra.mxu0 %v8229
      %8353 = vmatprep.mubr.bf16.mxu0 %v8055
      %8354 = vmatmul.mubr.bf16.gmra.mxu0 %v8054
      %v8355 = vpop.f32.mrf.mxu0
      %v8356 = vadd.f32 %v8315, %v8355
      %v8357 = vpop.f32.mrf.mxu0
      %v8358 = vpop.f32.mrf.mxu0
      %v8359 = vadd.f32 %v8318, %v8358
      %v8360 = vpop.f32.mrf.mxu0
      %8361 = vdwg.mxu0
      %8362 = vmatprep.subr.bf16.mxu0 0
      %8363 = vmatpush1.bf16.msra.mxu0 0
      %8364 = vmatprep.subr.bf16.mxu0 0
      %8365 = vmatpush1.bf16.msra.mxu0 0
      %8366 = vmatprep.subr.bf16.mxu0 0
      %8367 = vmatpush1.bf16.msra.mxu0 0
      %8368 = vmatprep.subr.bf16.mxu0 0
      %8369 = vmatpush1.bf16.msra.mxu0 0
      %8370 = vmatprep.subr.bf16.mxu0 0
      %8371 = vmatpush1.bf16.msra.mxu0 %v8240
      %8372 = vmatprep.subr.bf16.mxu0 0
      %8373 = vmatpush1.bf16.msra.mxu0 %v8239
      %8374 = vmatprep.subr.bf16.mxu0 0
      %8375 = vmatpush1.bf16.msra.mxu0 %v8238
      %8376 = vmatprep.subr.bf16.mxu0 0
      %8377 = vmatpush1.bf16.msra.mxu0 %v8237
      %8378 = vmatprep.subr.bf16.mxu0 0
      %8379 = vmatpush2.bf16.msra.mxu0 0
      %8380 = vmatprep.subr.bf16.mxu0 0
      %8381 = vmatpush2.bf16.msra.mxu0 0
      %8382 = vmatprep.subr.bf16.mxu0 0
      %8383 = vmatpush2.bf16.msra.mxu0 0
      %8384 = vmatprep.subr.bf16.mxu0 0
      %8385 = vmatpush2.bf16.msra.mxu0 0
      %8386 = vmatprep.subr.bf16.mxu0 0
      %8387 = vmatpush2.bf16.msra.mxu0 0
      %8388 = vmatprep.subr.bf16.mxu0 0
      %8389 = vmatpush2.bf16.msra.mxu0 0
      %8390 = vmatprep.subr.bf16.mxu0 0
      %8391 = vmatpush2.bf16.msra.mxu0 0
      %8392 = vmatprep.subr.bf16.mxu0 0
      %8393 = vmatpush2.bf16.msra.mxu0 0
      %8394 = vmatprep.mubr.bf16.mxu0 0
      %8395 = vmatmul.mubr.bf16.gmra.mxu0 %v8278
      %v8396 = vpop.f32.mrf.mxu0
      %v8397 = vadd.f32 %v8356, %v8396
      %v8398 = vpop.f32.mrf.mxu0
      %v8399 = vpop.f32.mrf.mxu0
      %v8400 = vadd.f32 %v8359, %v8399
      %v8401 = vpop.f32.mrf.mxu0
      %8402 = vdwg.mxu0
      %vm8403 = vcmask 31744
      %8404 = vst.msk [vmem:[%s278] sm:$0xff] %vm8403, %v8397
      %8405 = vst.msk [vmem:[%s278 + $0x8] sm:$0xff] %vm8403, %v8400
      %p8406 = scmp.lt.s32.totalorder %s18, 1
      %s8407 = scalar_select %p8406, %s18, 1
      %s8408 = smul.addr %s8407, 2
      %s8409 = smul.addr %s8408, 8
      %s8410 = scalar_lea.vmem %s7, %s8409
      // Predicated region
      $region49: #{encoder_forward.1} parent=47 // pred_check
        %p8411 = pneg %p188
      $region50: #{encoder_forward.1} parent=47 // pred_check_branch
        %8413 = sbr.rel (%p8411) target = $region52
      $region51: #{encoder_forward.1} parent=47 // pred_region
        _
      $region52: #{encoder_forward.1} parent=47 // pred_fallthru
        _
    $region48: #{encoder_forward.1} parent=5 // pred_fallthru
      _
    %p8414 = scmp.le.s32.totalorder 2, %s13
    // Predicated region
    $region53: #{encoder_forward.1} parent=5 // pred_check
      %p8415 = pneg %p8414
    $region54: #{encoder_forward.1} parent=5 // pred_check_branch
      %8417 = sbr.rel (%p8415) target = $region56
    $region55: #{encoder_forward.1} parent=5 // pred_region
      %s8418 = ssub.s32 %s13, 2
      // Predicated region
      $region57: #{encoder_forward.1} parent=55 // pred_check
        %p8419 = pneg %p194
      $region58: #{encoder_forward.1} parent=55 // pred_check_branch
        %8421 = sbr.rel (%p8419) target = $region60
      $region59: #{encoder_forward.1} parent=55 // pred_region
        %p8422 = scmp.lt.s32.totalorder %s19, 1
        %s8423 = scalar_select %p8422, %s19, 1
        %s8424 = smul.addr %s8423, 2
        %s8425 = smul.addr %s8424, 8
        %s8426 = scalar_lea.vmem %s7, %s8425
      $region60: #{encoder_forward.1} parent=55 // pred_fallthru
        _
    $region56: #{encoder_forward.1} parent=5 // pred_fallthru
      _
  $region6: #{encoder_forward.1} parent=0 // loop_footer
    %s17 = sadd.s32 1, %s13
  $region7: #{encoder_forward.1} parent=0 // loop_footer_branch
    %12 = sbr.rel target = $region3
  $region8: #{encoder_forward.1} parent=0 // loop_exit
    _

</llo_original>
